<compile_context>
chip_gen: v7x
topology: tpu7x:2x2x1
jax: 0.10.0
libtpu: 0.0.40
codegen_flags: <defaults>
</compile_context>

<pallas_src>
import functools

import jax
import jax.numpy as jnp
from jax.experimental import pallas as pl
from jax.experimental.pallas import tpu as pltpu

EPS = 1e-5
LANE = 128
VMEM_LIMIT = 32 * 1024 * 1024


def _round_up(x, m):
    return (x + m - 1) // m * m


def _pick_tile(m):
    # largest row-tile that divides M and still leaves >= 2 grid steps
    for t in (1024, 512, 256, 128, 64, 32, 16, 8):
        if m % t == 0 and m // t >= 2:
            return t
    return m


def _cparams():
    return pltpu.CompilerParams(dimension_semantics=("parallel",),
                                vmem_limit_bytes=VMEM_LIMIT)


# ---------------------------------------------------------------------------
# Kernels
# ---------------------------------------------------------------------------
def _matmul_stats_kernel(x_ref, w_ref, y_ref, s_ref, q_ref):
    # y = x @ w (bf16 MXU, f32 acc) + per-tile partial BN stats (sum, sum sq).
    y = jnp.dot(x_ref[...], w_ref[...], preferred_element_type=jnp.float32)
    y_ref[...] = y
    s_ref[...] = jnp.sum(y, axis=0, keepdims=True)
    q_ref[...] = jnp.sum(y * y, axis=0, keepdims=True)


def _norm_matmul_stats_kernel(y_ref, sc_ref, sh_ref, w_ref, o_ref, s_ref, q_ref):
    # z = relu(scale*y + shift)  (f32 VPU math);  o = z @ w (bf16 MXU, f32 acc)
    z = jnp.maximum(y_ref[...] * sc_ref[...] + sh_ref[...], 0.0)
    o = jnp.dot(z.astype(jnp.bfloat16), w_ref[...],
                preferred_element_type=jnp.float32)
    o_ref[...] = o
    s_ref[...] = jnp.sum(o, axis=0, keepdims=True)
    q_ref[...] = jnp.sum(o * o, axis=0, keepdims=True)


def _conv3x3_stats_kernel(z_ref, w_ref, y_ref, s_ref, q_ref, acc_ref,
                          *, H, W, G, Mp_out):
    # 3x3 conv (stride=1, pad=1) for one image.  z_ref holds the spatially
    # padded image flattened row-major at rows [G, G + (H+2)*(W+2)), with zero
    # guard rows on both sides.  Each tap is a matmul on a row-shifted slice;
    # interior rows are then gathered from the accumulator scratch.
    Wp = W + 2
    C = w_ref.shape[-1]
    acc = jnp.zeros((Mp_out, C), jnp.float32)
    for t in range(9):                       # 9 static taps (ky, kx)
        ky, kx = divmod(t, 3)
        off = (ky - 1) * Wp + (kx - 1)
        patch = z_ref[pl.ds(G + off, Mp_out), :].astype(jnp.bfloat16)
        acc = acc + jnp.dot(patch, w_ref[t],
                            preferred_element_type=jnp.float32)
    acc_ref[...] = acc
    # extract interior rows: out[h*W + w] = acc[(h+1)*Wp + (w+1)]
    for h in range(H):
        y_ref[pl.ds(h * W, W), :] = acc_ref[pl.ds((h + 1) * Wp + 1, W), :]
    y = y_ref[...]
    s_ref[...] = jnp.sum(y, axis=0, keepdims=True)
    q_ref[...] = jnp.sum(y * y, axis=0, keepdims=True)


def _norm_add_relu_kernel(y_ref, sc_ref, sh_ref, r_ref, o_ref):
    o_ref[...] = jnp.maximum(
        y_ref[...] * sc_ref[...] + sh_ref[...] + r_ref[...], 0.0)


# ---------------------------------------------------------------------------
# pallas_call wrappers
# ---------------------------------------------------------------------------
def conv1x1_stats(x_bf16, w_bf16, tm):
    M, K = x_bf16.shape
    C = w_bf16.shape[1]
    T = M // tm
    return pl.pallas_call(
        _matmul_stats_kernel,
        out_shape=(jax.ShapeDtypeStruct((M, C), jnp.float32),
                   jax.ShapeDtypeStruct((T, 1, C), jnp.float32),
                   jax.ShapeDtypeStruct((T, 1, C), jnp.float32)),
        grid=(T,),
        in_specs=[pl.BlockSpec((tm, K), lambda i: (i, 0)),
                  pl.BlockSpec((K, C), lambda i: (0, 0))],
        out_specs=(pl.BlockSpec((tm, C), lambda i: (i, 0)),
                   pl.BlockSpec((None, 1, C), lambda i: (i, 0, 0)),
                   pl.BlockSpec((None, 1, C), lambda i: (i, 0, 0))),
        compiler_params=_cparams(),
        cost_estimate=pl.CostEstimate(
            flops=2 * M * K * C, transcendentals=0,
            bytes_accessed=2 * M * K + 2 * K * C + 4 * M * C + 8 * T * C),
    )(x_bf16, w_bf16)


def norm_matmul_stats(y_in, scale, shift, w_bf16, tm):
    M, K = y_in.shape
    C = w_bf16.shape[1]
    T = M // tm
    return pl.pallas_call(
        _norm_matmul_stats_kernel,
        out_shape=(jax.ShapeDtypeStruct((M, C), jnp.float32),
                   jax.ShapeDtypeStruct((T, 1, C), jnp.float32),
                   jax.ShapeDtypeStruct((T, 1, C), jnp.float32)),
        grid=(T,),
        in_specs=[pl.BlockSpec((tm, K), lambda i: (i, 0)),
                  pl.BlockSpec((1, K), lambda i: (0, 0)),
                  pl.BlockSpec((1, K), lambda i: (0, 0)),
                  pl.BlockSpec((K, C), lambda i: (0, 0))],
        out_specs=(pl.BlockSpec((tm, C), lambda i: (i, 0)),
                   pl.BlockSpec((None, 1, C), lambda i: (i, 0, 0)),
                   pl.BlockSpec((None, 1, C), lambda i: (i, 0, 0))),
        compiler_params=_cparams(),
        cost_estimate=pl.CostEstimate(
            flops=2 * M * K * C + 3 * M * K, transcendentals=0,
            bytes_accessed=4 * M * K + 2 * K * C + 4 * M * C + 8 * T * C),
    )(y_in, scale, shift, w_bf16)


def conv3x3_stats(z1f, w_bf16, H, W, G, Mp_out):
    N, R, P = z1f.shape
    C = w_bf16.shape[-1]
    HW = H * W
    kern = functools.partial(_conv3x3_stats_kernel, H=H, W=W, G=G, Mp_out=Mp_out)
    return pl.pallas_call(
        kern,
        out_shape=(jax.ShapeDtypeStruct((N, HW, C), jnp.float32),
                   jax.ShapeDtypeStruct((N, 1, C), jnp.float32),
                   jax.ShapeDtypeStruct((N, 1, C), jnp.float32)),
        grid=(N,),
        in_specs=[pl.BlockSpec((None, R, P), lambda n: (n, 0, 0)),
                  pl.BlockSpec((9, P, C), lambda n: (0, 0, 0))],
        out_specs=(pl.BlockSpec((None, HW, C), lambda n: (n, 0, 0)),
                   pl.BlockSpec((None, 1, C), lambda n: (n, 0, 0)),
                   pl.BlockSpec((None, 1, C), lambda n: (n, 0, 0))),
        scratch_shapes=[pltpu.VMEM((Mp_out, C), jnp.float32)],
        compiler_params=_cparams(),
        cost_estimate=pl.CostEstimate(
            flops=2 * N * Mp_out * 9 * P * C, transcendentals=0,
            bytes_accessed=(4 * N * R * P + 2 * 9 * P * C
                            + 4 * N * HW * C + 8 * N * C)),
    )(z1f, w_bf16)


def norm_add_relu(y_in, scale, shift, res, tm):
    M, C = y_in.shape
    T = M // tm
    return pl.pallas_call(
        _norm_add_relu_kernel,
        out_shape=jax.ShapeDtypeStruct((M, C), jnp.float32),
        grid=(T,),
        in_specs=[pl.BlockSpec((tm, C), lambda i: (i, 0)),
                  pl.BlockSpec((1, C), lambda i: (0, 0)),
                  pl.BlockSpec((1, C), lambda i: (0, 0)),
                  pl.BlockSpec((tm, C), lambda i: (i, 0))],
        out_specs=pl.BlockSpec((tm, C), lambda i: (i, 0)),
        compiler_params=_cparams(),
        cost_estimate=pl.CostEstimate(
            flops=4 * M * C, transcendentals=0,
            bytes_accessed=12 * M * C + 8 * C),
    )(y_in, scale, shift, res)


# ---------------------------------------------------------------------------
# Block forward
# ---------------------------------------------------------------------------
def _bn_scale_shift(s_part, q_part, count, gamma_p, beta_p):
    # Combine per-tile partials; single-pass var = E[y^2] - mean^2 (f32).
    total = jnp.sum(s_part, axis=(0, 1))
    total_sq = jnp.sum(q_part, axis=(0, 1))
    mean = total / count
    var = jnp.maximum(total_sq / count - mean * mean, 0.0)
    scale = gamma_p * jax.lax.rsqrt(var + EPS)
    shift = beta_p - mean * scale
    return scale.reshape(1, -1), shift.reshape(1, -1)


def bottleneck_block(x_nchw, w1, w2, w3, g1, b1, g2, b2, g3, b3):
    """BottleneckBlock forward (stride=1, downsample=None). NCHW in/out."""
    N, Cin, H, W = x_nchw.shape
    planes = w1.shape[0]
    cout = w3.shape[0]                       # planes * expansion
    assert cout == planes * 4 and Cin == cout
    # TODO(synk): stride>1 / downsample path not implemented (module default).

    cin_p = _round_up(Cin, LANE)
    p_p = _round_up(planes, LANE)
    cout_p = _round_up(cout, LANE)
    M = N * H * W
    tm = _pick_tile(M)

    # flat-padded conv2 geometry: padded image (Hp, Wp) flattened row-major,
    # zero guard rows so every row-shifted tap slice stays in bounds.
    Hp, Wp = H + 2, W + 2
    Mp = Hp * Wp
    Mp_out = _round_up(Mp, 8)
    G = _round_up(Wp + 1, 8)
    R = _round_up(G + Wp + 1 + Mp_out, 8)

    # NCHW -> NHWC -> (M, C); channels zero-padded to the 128-lane boundary.
    x2d = jnp.transpose(x_nchw, (0, 2, 3, 1)).reshape(M, Cin).astype(jnp.float32)
    x2d_pad = jnp.pad(x2d, ((0, 0), (0, cin_p - Cin)))
    x2d_bf16 = x2d_pad.astype(jnp.bfloat16)          # matmul operand (halved DMA)

    # Weights in (k-taps, in, out) matmul layout, zero-padded channels, bf16.
    w1m = jnp.pad(jnp.transpose(w1[:, :, 0, 0]),
                  ((0, cin_p - Cin), (0, p_p - planes))).astype(jnp.bfloat16)
    w2m = jnp.pad(jnp.transpose(w2, (2, 3, 1, 0)).reshape(9, planes, planes),
                  ((0, 0), (0, p_p - planes), (0, p_p - planes))).astype(jnp.bfloat16)
    w3m = jnp.pad(jnp.transpose(w3[:, :, 0, 0]),
                  ((0, p_p - planes), (0, cout_p - cout))).astype(jnp.bfloat16)

    def _padc(v, c):
        v = v.reshape(-1).astype(jnp.float32)
        return jnp.pad(v, (0, c - v.shape[0]))

    g1p, b1p = _padc(g1, p_p), _padc(b1, p_p)
    g2p, b2p = _padc(g2, p_p), _padc(b2, p_p)
    g3p, b3p = _padc(g3, cout_p), _padc(b3, cout_p)

    # stage 1: conv1 (1x1) + partial BN stats
    y1, s1, q1 = conv1x1_stats(x2d_bf16, w1m, tm)
    sc1, sh1 = _bn_scale_shift(s1, q1, M, g1p, b1p)

    # stage 2: bn1+relu folded into the layout/pad pass (XLA fuses the
    # elementwise math with the scatter into the guarded flat-padded buffer),
    # then in-kernel 9-tap shifted-matmul 3x3 conv + partial BN stats.
    z1 = jnp.maximum(y1 * sc1 + sh1, 0.0).reshape(N, H, W, p_p)
    z1p = jnp.pad(z1, ((0, 0), (1, 1), (1, 1), (0, 0))).reshape(N, Mp, p_p)
    z1f = jnp.pad(z1p, ((0, 0), (G, R - G - Mp), (0, 0)))
    y2, s2, q2 = conv3x3_stats(z1f, w2m, H, W, G, Mp_out)
    sc2, sh2 = _bn_scale_shift(s2, q2, M, g2p, b2p)

    # stage 3: bn2+relu fused with conv3 (1x1) + partial BN stats
    y3, s3, q3 = norm_matmul_stats(y2.reshape(M, p_p), sc2, sh2, w3m, tm)
    sc3, sh3 = _bn_scale_shift(s3, q3, M, g3p, b3p)

    # stage 4: bn3 + identity residual + relu
    out_pad = norm_add_relu(y3, sc3, sh3, x2d_pad, tm)

    out = out_pad[:, :cout].reshape(N, H, W, cout)
    return jnp.transpose(out, (0, 3, 1, 2))


# ---------------------------------------------------------------------------
# Pure-JAX reference (training-mode BN, f32 everywhere)
# ---------------------------------------------------------------------------
def _reference(x, w1, w2, w3, g1, b1, g2, b2, g3, b3):
    def conv(x, w, pad):
        return jax.lax.conv_general_dilated(
            x, w, window_strides=(1, 1), padding=[(pad, pad), (pad, pad)],
            dimension_numbers=("NCHW", "OIHW", "NCHW"))

    def bn(y, g, b):
        mean = jnp.mean(y, axis=(0, 2, 3), keepdims=True)
        var = jnp.mean((y - mean) ** 2, axis=(0, 2, 3), keepdims=True)
        yhat = (y - mean) * jax.lax.rsqrt(var + EPS)
        return yhat * g.reshape(1, -1, 1, 1) + b.reshape(1, -1, 1, 1)

    out = jnp.maximum(bn(conv(x, w1, 0), g1, b1), 0.0)
    out = jnp.maximum(bn(conv(out, w2, 1), g2, b2), 0.0)
    out = bn(conv(out, w3, 0), g3, b3)
    return jnp.maximum(out + x, 0.0)


if __name__ == "__main__":
    key = jax.random.PRNGKey(0)
    kx, k1, k2, k3 = jax.random.split(key, 4)

    # small shapes: inplanes must equal planes*expansion since downsample=None
    N, H, W = 2, 16, 16
    planes = 4
    inplanes = planes * 4  # = 16

    x = jax.random.normal(kx, (N, inplanes, H, W), dtype=jnp.float32)
    w1 = 0.1 * jax.random.normal(k1, (planes, inplanes, 1, 1), dtype=jnp.float32)
    w2 = 0.1 * jax.random.normal(k2, (planes, planes, 3, 3), dtype=jnp.float32)
    w3 = 0.1 * jax.random.normal(k3, (planes * 4, planes, 1, 1), dtype=jnp.float32)

    g1 = jnp.ones((planes,), jnp.float32);      b1 = jnp.zeros((planes,), jnp.float32)
    g2 = jnp.ones((planes,), jnp.float32);      b2 = jnp.zeros((planes,), jnp.float32)
    g3 = jnp.ones((planes * 4,), jnp.float32);  b3 = jnp.zeros((planes * 4,), jnp.float32)

    fwd = jax.jit(bottleneck_block)
    out = fwd(x, w1, w2, w3, g1, b1, g2, b2, g3, b3)
    out = jax.block_until_ready(out)

    ref = _reference(x, w1, w2, w3, g1, b1, g2, b2, g3, b3)
    assert out.shape == (N, planes * 4, H, W)
    # bf16 MXU operands vs f32 reference -> relaxed tolerance
    err = float(jnp.max(jnp.abs(out - ref)))
    assert err < 2e-1, f"max abs err {err}"

    print("KERNEL_OK")
</pallas_src>

<mosaic_0001>
module attributes {stable_mosaic.version = 11 : i64} {
  func.func @_matmul_stats_kernel(%arg0: i32, %arg1: memref<256x128xbf16, #tpu.memory_space<vmem>>, %arg2: memref<128x128xbf16, #tpu.memory_space<vmem>>, %arg3: memref<256x128xf32, #tpu.memory_space<vmem>>, %arg4: memref<1x1x128xf32, #tpu.memory_space<vmem>>, %arg5: memref<1x1x128xf32, #tpu.memory_space<vmem>>) attributes {dimension_semantics = [#tpu.dimension_semantics<parallel>], iteration_bounds = array<i64: 2>, scalar_prefetch = 0 : i64, scratch_operands = 0 : i64, tpu.core_type = #tpu.core_type<tc>, window_params = [{transform_indices = @transform_0, window_bounds = array<i64: 256, 128>}, {pipeline_mode = #tpu.pipeline_mode<synchronous>, transform_indices = @transform_1, window_bounds = array<i64: 128, 128>}, {transform_indices = @transform_2, window_bounds = array<i64: 256, 128>}, {transform_indices = @transform_3, window_bounds = array<i64: 1, 1, 128>}, {transform_indices = @transform_4, window_bounds = array<i64: 1, 1, 128>}]} {
    %c0 = arith.constant 0 : index
    %c0_0 = arith.constant 0 : index
    %0 = vector.load %arg1[%c0, %c0_0] : memref<256x128xbf16, #tpu.memory_space<vmem>>, vector<256x128xbf16>
    %c0_1 = arith.constant 0 : index
    %c0_2 = arith.constant 0 : index
    %1 = vector.load %arg2[%c0_1, %c0_2] : memref<128x128xbf16, #tpu.memory_space<vmem>>, vector<128x128xbf16>
    %cst = arith.constant dense<0.000000e+00> : vector<256x128xf32>
    %2 = tpu.matmul %0, %1, %cst {dimension_numbers = #tpu.dot_dimension_numbers<[1], [0], [0], [1], [0, 0, 1, 1], [], []>} : vector<256x128xbf16>, vector<128x128xbf16>, vector<256x128xf32> -> vector<256x128xf32>
    %c0_3 = arith.constant 0 : index
    %c0_4 = arith.constant 0 : index
    %3 = vector.load %arg3[%c0_3, %c0_4] : memref<256x128xf32, #tpu.memory_space<vmem>>, vector<256x128xf32>
    tpu.vector_store %arg3[%c0_3, %c0_4], %2 {strides = array<i32>} : memref<256x128xf32, #tpu.memory_space<vmem>>, vector<256x128xf32>,
    %cst_5 = arith.constant dense<0.000000e+00> : vector<128xf32>
    %4 = vector.multi_reduction <add>, %2, %cst_5 [0] : vector<256x128xf32> to vector<128xf32>
    %5 = vector.shape_cast %4 : vector<128xf32> to vector<1x128xf32>
    %c0_6 = arith.constant 0 : index
    %c0_7 = arith.constant 0 : index
    %c0_8 = arith.constant 0 : index
    %6 = vector.load %arg4[%c0_6, %c0_7, %c0_8] : memref<1x1x128xf32, #tpu.memory_space<vmem>>, vector<1x1x128xf32>
    %7 = vector.shape_cast %6 : vector<1x1x128xf32> to vector<1x128xf32>
    %8 = vector.shape_cast %5 : vector<1x128xf32> to vector<1x1x128xf32>
    tpu.vector_store %arg4[%c0_6, %c0_7, %c0_8], %8 {strides = array<i32>} : memref<1x1x128xf32, #tpu.memory_space<vmem>>, vector<1x1x128xf32>,
    %9 = arith.mulf %2, %2 : vector<256x128xf32>
    %cst_9 = arith.constant dense<0.000000e+00> : vector<128xf32>
    %10 = vector.multi_reduction <add>, %9, %cst_9 [0] : vector<256x128xf32> to vector<128xf32>
    %11 = vector.shape_cast %10 : vector<128xf32> to vector<1x128xf32>
    %c0_10 = arith.constant 0 : index
    %c0_11 = arith.constant 0 : index
    %c0_12 = arith.constant 0 : index
    %12 = vector.load %arg5[%c0_10, %c0_11, %c0_12] : memref<1x1x128xf32, #tpu.memory_space<vmem>>, vector<1x1x128xf32>
    %13 = vector.shape_cast %12 : vector<1x1x128xf32> to vector<1x128xf32>
    %14 = vector.shape_cast %11 : vector<1x128xf32> to vector<1x1x128xf32>
    tpu.vector_store %arg5[%c0_10, %c0_11, %c0_12], %14 {strides = array<i32>} : memref<1x1x128xf32, #tpu.memory_space<vmem>>, vector<1x1x128xf32>,
    return
  }
  func.func @transform_0(%arg0: i32) -> (i32, i32) {
    %c0_i32 = arith.constant 0 : i32
    %c0_i32_0 = arith.constant 0 : i32
    return %arg0, %c0_i32 : i32, i32
  }
  func.func @transform_1(%arg0: i32) -> (i32, i32) {
    %c0_i32 = arith.constant 0 : i32
    %c0_i32_0 = arith.constant 0 : i32
    %c0_i32_1 = arith.constant 0 : i32
    return %c0_i32, %c0_i32_0 : i32, i32
  }
  func.func @transform_2(%arg0: i32) -> (i32, i32) {
    %c0_i32 = arith.constant 0 : i32
    %c0_i32_0 = arith.constant 0 : i32
    return %arg0, %c0_i32 : i32, i32
  }
  func.func @transform_3(%arg0: i32) -> (i32, i32, i32) {
    %c0_i32 = arith.constant 0 : i32
    %c0_i32_0 = arith.constant 0 : i32
    %c0_i32_1 = arith.constant 0 : i32
    return %arg0, %c0_i32, %c0_i32_0 : i32, i32, i32
  }
  func.func @transform_4(%arg0: i32) -> (i32, i32, i32) {
    %c0_i32 = arith.constant 0 : i32
    %c0_i32_0 = arith.constant 0 : i32
    %c0_i32_1 = arith.constant 0 : i32
    return %arg0, %c0_i32, %c0_i32_0 : i32, i32, i32
  }
}

module attributes {stable_mosaic.version = 11 : i64} {
  func.func @_conv3x3_stats_kernel(%arg0: i32, %arg1: memref<1x376x128xf32, #tpu.memory_space<vmem>>, %arg2: memref<9x128x128xbf16, #tpu.memory_space<vmem>>, %arg3: memref<1x256x128xf32, #tpu.memory_space<vmem>>, %arg4: memref<1x1x128xf32, #tpu.memory_space<vmem>>, %arg5: memref<1x1x128xf32, #tpu.memory_space<vmem>>, %arg6: memref<328x128xf32, #tpu.memory_space<vmem>>) attributes {dimension_semantics = [#tpu.dimension_semantics<parallel>], iteration_bounds = array<i64: 2>, scalar_prefetch = 0 : i64, scratch_operands = 1 : i64, tpu.core_type = #tpu.core_type<tc>, window_params = [{transform_indices = @transform_0, window_bounds = array<i64: 1, 376, 128>}, {pipeline_mode = #tpu.pipeline_mode<synchronous>, transform_indices = @transform_1, window_bounds = array<i64: 9, 128, 128>}, {transform_indices = @transform_2, window_bounds = array<i64: 1, 256, 128>}, {transform_indices = @transform_3, window_bounds = array<i64: 1, 1, 128>}, {transform_indices = @transform_4, window_bounds = array<i64: 1, 1, 128>}]} {
    %cst = arith.constant 0.000000e+00 : f32
    %0 = vector.broadcast %cst : f32 to vector<328x128xf32>
    %c0 = arith.constant 0 : index
    %c5 = arith.constant 5 : index
    %c0_0 = arith.constant 0 : index
    %1 = vector.load %arg1[%c0, %c5, %c0_0] : memref<1x376x128xf32, #tpu.memory_space<vmem>>, vector<1x328x128xf32>
    %2 = vector.shape_cast %1 : vector<1x328x128xf32> to vector<328x128xf32>
    %3 = arith.truncf %2 : vector<328x128xf32> to vector<328x128xbf16>
    %c0_1 = arith.constant 0 : index
    %c0_2 = arith.constant 0 : index
    %c0_3 = arith.constant 0 : index
    %4 = vector.load %arg2[%c0_1, %c0_2, %c0_3] : memref<9x128x128xbf16, #tpu.memory_space<vmem>>, vector<1x128x128xbf16>
    %5 = vector.shape_cast %4 : vector<1x128x128xbf16> to vector<128x128xbf16>
    %cst_4 = arith.constant dense<0.000000e+00> : vector<328x128xf32>
    %6 = tpu.matmul %3, %5, %cst_4 {dimension_numbers = #tpu.dot_dimension_numbers<[1], [0], [0], [1], [0, 0, 1, 1], [], []>} : vector<328x128xbf16>, vector<128x128xbf16>, vector<328x128xf32> -> vector<328x128xf32>
    %7 = arith.addf %0, %6 : vector<328x128xf32>
    %c0_5 = arith.constant 0 : index
    %c6 = arith.constant 6 : index
    %c0_6 = arith.constant 0 : index
    %8 = vector.load %arg1[%c0_5, %c6, %c0_6] : memref<1x376x128xf32, #tpu.memory_space<vmem>>, vector<1x328x128xf32>
    %9 = vector.shape_cast %8 : vector<1x328x128xf32> to vector<328x128xf32>
    %10 = arith.truncf %9 : vector<328x128xf32> to vector<328x128xbf16>
    %c1 = arith.constant 1 : index
    %c0_7 = arith.constant 0 : index
    %c0_8 = arith.constant 0 : index
    %11 = vector.load %arg2[%c1, %c0_7, %c0_8] : memref<9x128x128xbf16, #tpu.memory_space<vmem>>, vector<1x128x128xbf16>
    %12 = vector.shape_cast %11 : vector<1x128x128xbf16> to vector<128x128xbf16>
    %cst_9 = arith.constant dense<0.000000e+00> : vector<328x128xf32>
    %13 = tpu.matmul %10, %12, %cst_9 {dimension_numbers = #tpu.dot_dimension_numbers<[1], [0], [0], [1], [0, 0, 1, 1], [], []>} : vector<328x128xbf16>, vector<128x128xbf16>, vector<328x128xf32> -> vector<328x128xf32>
    %14 = arith.addf %7, %13 : vector<328x128xf32>
    %c0_10 = arith.constant 0 : index
    %c7 = arith.constant 7 : index
    %c0_11 = arith.constant 0 : index
    %15 = vector.load %arg1[%c0_10, %c7, %c0_11] : memref<1x376x128xf32, #tpu.memory_space<vmem>>, vector<1x328x128xf32>
    %16 = vector.shape_cast %15 : vector<1x328x128xf32> to vector<328x128xf32>
    %17 = arith.truncf %16 : vector<328x128xf32> to vector<328x128xbf16>
    %c2 = arith.constant 2 : index
    %c0_12 = arith.constant 0 : index
    %c0_13 = arith.constant 0 : index
    %18 = vector.load %arg2[%c2, %c0_12, %c0_13] : memref<9x128x128xbf16, #tpu.memory_space<vmem>>, vector<1x128x128xbf16>
    %19 = vector.shape_cast %18 : vector<1x128x128xbf16> to vector<128x128xbf16>
    %cst_14 = arith.constant dense<0.000000e+00> : vector<328x128xf32>
    %20 = tpu.matmul %17, %19, %cst_14 {dimension_numbers = #tpu.dot_dimension_numbers<[1], [0], [0], [1], [0, 0, 1, 1], [], []>} : vector<328x128xbf16>, vector<128x128xbf16>, vector<328x128xf32> -> vector<328x128xf32>
    %21 = arith.addf %14, %20 : vector<328x128xf32>
    %c0_15 = arith.constant 0 : index
    %c23 = arith.constant 23 : index
    %c0_16 = arith.constant 0 : index
    %22 = vector.load %arg1[%c0_15, %c23, %c0_16] : memref<1x376x128xf32, #tpu.memory_space<vmem>>, vector<1x328x128xf32>
    %23 = vector.shape_cast %22 : vector<1x328x128xf32> to vector<328x128xf32>
    %24 = arith.truncf %23 : vector<328x128xf32> to vector<328x128xbf16>
    %c3 = arith.constant 3 : index
    %c0_17 = arith.constant 0 : index
    %c0_18 = arith.constant 0 : index
    %25 = vector.load %arg2[%c3, %c0_17, %c0_18] : memref<9x128x128xbf16, #tpu.memory_space<vmem>>, vector<1x128x128xbf16>
    %26 = vector.shape_cast %25 : vector<1x128x128xbf16> to vector<128x128xbf16>
    %cst_19 = arith.constant dense<0.000000e+00> : vector<328x128xf32>
    %27 = tpu.matmul %24, %26, %cst_19 {dimension_numbers = #tpu.dot_dimension_numbers<[1], [0], [0], [1], [0, 0, 1, 1], [], []>} : vector<328x128xbf16>, vector<128x128xbf16>, vector<328x128xf32> -> vector<328x128xf32>
    %28 = arith.addf %21, %27 : vector<328x128xf32>
    %c0_20 = arith.constant 0 : index
    %c24 = arith.constant 24 : index
    %c0_21 = arith.constant 0 : index
    %29 = vector.load %arg1[%c0_20, %c24, %c0_21] : memref<1x376x128xf32, #tpu.memory_space<vmem>>, vector<1x328x128xf32>
    %30 = vector.shape_cast %29 : vector<1x328x128xf32> to vector<328x128xf32>
    %31 = arith.truncf %30 : vector<328x128xf32> to vector<328x128xbf16>
    %c4 = arith.constant 4 : index
    %c0_22 = arith.constant 0 : index
    %c0_23 = arith.constant 0 : index
    %32 = vector.load %arg2[%c4, %c0_22, %c0_23] : memref<9x128x128xbf16, #tpu.memory_space<vmem>>, vector<1x128x128xbf16>
    %33 = vector.shape_cast %32 : vector<1x128x128xbf16> to vector<128x128xbf16>
    %cst_24 = arith.constant dense<0.000000e+00> : vector<328x128xf32>
    %34 = tpu.matmul %31, %33, %cst_24 {dimension_numbers = #tpu.dot_dimension_numbers<[1], [0], [0], [1], [0, 0, 1, 1], [], []>} : vector<328x128xbf16>, vector<128x128xbf16>, vector<328x128xf32> -> vector<328x128xf32>
    %35 = arith.addf %28, %34 : vector<328x128xf32>
    %c0_25 = arith.constant 0 : index
    %c25 = arith.constant 25 : index
    %c0_26 = arith.constant 0 : index
    %36 = vector.load %arg1[%c0_25, %c25, %c0_26] : memref<1x376x128xf32, #tpu.memory_space<vmem>>, vector<1x328x128xf32>
    %37 = vector.shape_cast %36 : vector<1x328x128xf32> to vector<328x128xf32>
    %38 = arith.truncf %37 : vector<328x128xf32> to vector<328x128xbf16>
    %c5_27 = arith.constant 5 : index
    %c0_28 = arith.constant 0 : index
    %c0_29 = arith.constant 0 : index
    %39 = vector.load %arg2[%c5_27, %c0_28, %c0_29] : memref<9x128x128xbf16, #tpu.memory_space<vmem>>, vector<1x128x128xbf16>
    %40 = vector.shape_cast %39 : vector<1x128x128xbf16> to vector<128x128xbf16>
    %cst_30 = arith.constant dense<0.000000e+00> : vector<328x128xf32>
    %41 = tpu.matmul %38, %40, %cst_30 {dimension_numbers = #tpu.dot_dimension_numbers<[1], [0], [0], [1], [0, 0, 1, 1], [], []>} : vector<328x128xbf16>, vector<128x128xbf16>, vector<328x128xf32> -> vector<328x128xf32>
    %42 = arith.addf %35, %41 : vector<328x128xf32>
    %c0_31 = arith.constant 0 : index
    %c41 = arith.constant 41 : index
    %c0_32 = arith.constant 0 : index
    %43 = vector.load %arg1[%c0_31, %c41, %c0_32] : memref<1x376x128xf32, #tpu.memory_space<vmem>>, vector<1x328x128xf32>
    %44 = vector.shape_cast %43 : vector<1x328x128xf32> to vector<328x128xf32>
    %45 = arith.truncf %44 : vector<328x128xf32> to vector<328x128xbf16>
    %c6_33 = arith.constant 6 : index
    %c0_34 = arith.constant 0 : index
    %c0_35 = arith.constant 0 : index
    %46 = vector.load %arg2[%c6_33, %c0_34, %c0_35] : memref<9x128x128xbf16, #tpu.memory_space<vmem>>, vector<1x128x128xbf16>
    %47 = vector.shape_cast %46 : vector<1x128x128xbf16> to vector<128x128xbf16>
    %cst_36 = arith.constant dense<0.000000e+00> : vector<328x128xf32>
    %48 = tpu.matmul %45, %47, %cst_36 {dimension_numbers = #tpu.dot_dimension_numbers<[1], [0], [0], [1], [0, 0, 1, 1], [], []>} : vector<328x128xbf16>, vector<128x128xbf16>, vector<328x128xf32> -> vector<328x128xf32>
    %49 = arith.addf %42, %48 : vector<328x128xf32>
    %c0_37 = arith.constant 0 : index
    %c42 = arith.constant 42 : index
    %c0_38 = arith.constant 0 : index
    %50 = vector.load %arg1[%c0_37, %c42, %c0_38] : memref<1x376x128xf32, #tpu.memory_space<vmem>>, vector<1x328x128xf32>
    %51 = vector.shape_cast %50 : vector<1x328x128xf32> to vector<328x128xf32>
    %52 = arith.truncf %51 : vector<328x128xf32> to vector<328x128xbf16>
    %c7_39 = arith.constant 7 : index
    %c0_40 = arith.constant 0 : index
    %c0_41 = arith.constant 0 : index
    %53 = vector.load %arg2[%c7_39, %c0_40, %c0_41] : memref<9x128x128xbf16, #tpu.memory_space<vmem>>, vector<1x128x128xbf16>
    %54 = vector.shape_cast %53 : vector<1x128x128xbf16> to vector<128x128xbf16>
    %cst_42 = arith.constant dense<0.000000e+00> : vector<328x128xf32>
    %55 = tpu.matmul %52, %54, %cst_42 {dimension_numbers = #tpu.dot_dimension_numbers<[1], [0], [0], [1], [0, 0, 1, 1], [], []>} : vector<328x128xbf16>, vector<128x128xbf16>, vector<328x128xf32> -> vector<328x128xf32>
    %56 = arith.addf %49, %55 : vector<328x128xf32>
    %c0_43 = arith.constant 0 : index
    %c43 = arith.constant 43 : index
    %c0_44 = arith.constant 0 : index
    %57 = vector.load %arg1[%c0_43, %c43, %c0_44] : memref<1x376x128xf32, #tpu.memory_space<vmem>>, vector<1x328x128xf32>
    %58 = vector.shape_cast %57 : vector<1x328x128xf32> to vector<328x128xf32>
    %59 = arith.truncf %58 : vector<328x128xf32> to vector<328x128xbf16>
    %c8 = arith.constant 8 : index
    %c0_45 = arith.constant 0 : index
    %c0_46 = arith.constant 0 : index
    %60 = vector.load %arg2[%c8, %c0_45, %c0_46] : memref<9x128x128xbf16, #tpu.memory_space<vmem>>, vector<1x128x128xbf16>
    %61 = vector.shape_cast %60 : vector<1x128x128xbf16> to vector<128x128xbf16>
    %cst_47 = arith.constant dense<0.000000e+00> : vector<328x128xf32>
    %62 = tpu.matmul %59, %61, %cst_47 {dimension_numbers = #tpu.dot_dimension_numbers<[1], [0], [0], [1], [0, 0, 1, 1], [], []>} : vector<328x128xbf16>, vector<128x128xbf16>, vector<328x128xf32> -> vector<328x128xf32>
    %63 = arith.addf %56, %62 : vector<328x128xf32>
    %c0_48 = arith.constant 0 : index
    %c0_49 = arith.constant 0 : index
    %64 = vector.load %arg6[%c0_48, %c0_49] : memref<328x128xf32, #tpu.memory_space<vmem>>, vector<328x128xf32>
    tpu.vector_store %arg6[%c0_48, %c0_49], %63 {strides = array<i32>} : memref<328x128xf32, #tpu.memory_space<vmem>>, vector<328x128xf32>,
    %c19 = arith.constant 19 : index
    %c0_50 = arith.constant 0 : index
    %65 = vector.load %arg6[%c19, %c0_50] : memref<328x128xf32, #tpu.memory_space<vmem>>, vector<16x128xf32>
    %c0_51 = arith.constant 0 : index
    %c0_52 = arith.constant 0 : index
    %c0_53 = arith.constant 0 : index
    %66 = vector.load %arg3[%c0_51, %c0_52, %c0_53] : memref<1x256x128xf32, #tpu.memory_space<vmem>>, vector<1x16x128xf32>
    %67 = vector.shape_cast %66 : vector<1x16x128xf32> to vector<16x128xf32>
    %68 = vector.shape_cast %65 : vector<16x128xf32> to vector<1x16x128xf32>
    tpu.vector_store %arg3[%c0_51, %c0_52, %c0_53], %68 {strides = array<i32>} : memref<1x256x128xf32, #tpu.memory_space<vmem>>, vector<1x16x128xf32>,
    %c37 = arith.constant 37 : index
    %c0_54 = arith.constant 0 : index
    %69 = vector.load %arg6[%c37, %c0_54] : memref<328x128xf32, #tpu.memory_space<vmem>>, vector<16x128xf32>
    %c0_55 = arith.constant 0 : index
    %c16 = arith.constant 16 : index
    %c0_56 = arith.constant 0 : index
    %70 = vector.load %arg3[%c0_55, %c16, %c0_56] : memref<1x256x128xf32, #tpu.memory_space<vmem>>, vector<1x16x128xf32>
    %71 = vector.shape_cast %70 : vector<1x16x128xf32> to vector<16x128xf32>
    %72 = vector.shape_cast %69 : vector<16x128xf32> to vector<1x16x128xf32>
    tpu.vector_store %arg3[%c0_55, %c16, %c0_56], %72 {strides = array<i32>} : memref<1x256x128xf32, #tpu.memory_space<vmem>>, vector<1x16x128xf32>,
    %c55 = arith.constant 55 : index
    %c0_57 = arith.constant 0 : index
    %73 = vector.load %arg6[%c55, %c0_57] : memref<328x128xf32, #tpu.memory_space<vmem>>, vector<16x128xf32>
    %c0_58 = arith.constant 0 : index
    %c32 = arith.constant 32 : index
    %c0_59 = arith.constant 0 : index
    %74 = vector.load %arg3[%c0_58, %c32, %c0_59] : memref<1x256x128xf32, #tpu.memory_space<vmem>>, vector<1x16x128xf32>
    %75 = vector.shape_cast %74 : vector<1x16x128xf32> to vector<16x128xf32>
    %76 = vector.shape_cast %73 : vector<16x128xf32> to vector<1x16x128xf32>
    tpu.vector_store %arg3[%c0_58, %c32, %c0_59], %76 {strides = array<i32>} : memref<1x256x128xf32, #tpu.memory_space<vmem>>, vector<1x16x128xf32>,
    %c73 = arith.constant 73 : index
    %c0_60 = arith.constant 0 : index
    %77 = vector.load %arg6[%c73, %c0_60] : memref<328x128xf32, #tpu.memory_space<vmem>>, vector<16x128xf32>
    %c0_61 = arith.constant 0 : index
    %c48 = arith.constant 48 : index
    %c0_62 = arith.constant 0 : index
    %78 = vector.load %arg3[%c0_61, %c48, %c0_62] : memref<1x256x128xf32, #tpu.memory_space<vmem>>, vector<1x16x128xf32>
    %79 = vector.shape_cast %78 : vector<1x16x128xf32> to vector<16x128xf32>
    %80 = vector.shape_cast %77 : vector<16x128xf32> to vector<1x16x128xf32>
    tpu.vector_store %arg3[%c0_61, %c48, %c0_62], %80 {strides = array<i32>} : memref<1x256x128xf32, #tpu.memory_space<vmem>>, vector<1x16x128xf32>,
    %c91 = arith.constant 91 : index
    %c0_63 = arith.constant 0 : index
    %81 = vector.load %arg6[%c91, %c0_63] : memref<328x128xf32, #tpu.memory_space<vmem>>, vector<16x128xf32>
    %c0_64 = arith.constant 0 : index
    %c64 = arith.constant 64 : index
    %c0_65 = arith.constant 0 : index
    %82 = vector.load %arg3[%c0_64, %c64, %c0_65] : memref<1x256x128xf32, #tpu.memory_space<vmem>>, vector<1x16x128xf32>
    %83 = vector.shape_cast %82 : vector<1x16x128xf32> to vector<16x128xf32>
    %84 = vector.shape_cast %81 : vector<16x128xf32> to vector<1x16x128xf32>
    tpu.vector_store %arg3[%c0_64, %c64, %c0_65], %84 {strides = array<i32>} : memref<1x256x128xf32, #tpu.memory_space<vmem>>, vector<1x16x128xf32>,
    %c109 = arith.constant 109 : index
    %c0_66 = arith.constant 0 : index
    %85 = vector.load %arg6[%c109, %c0_66] : memref<328x128xf32, #tpu.memory_space<vmem>>, vector<16x128xf32>
    %c0_67 = arith.constant 0 : index
    %c80 = arith.constant 80 : index
    %c0_68 = arith.constant 0 : index
    %86 = vector.load %arg3[%c0_67, %c80, %c0_68] : memref<1x256x128xf32, #tpu.memory_space<vmem>>, vector<1x16x128xf32>
    %87 = vector.shape_cast %86 : vector<1x16x128xf32> to vector<16x128xf32>
    %88 = vector.shape_cast %85 : vector<16x128xf32> to vector<1x16x128xf32>
    tpu.vector_store %arg3[%c0_67, %c80, %c0_68], %88 {strides = array<i32>} : memref<1x256x128xf32, #tpu.memory_space<vmem>>, vector<1x16x128xf32>,
    %c127 = arith.constant 127 : index
    %c0_69 = arith.constant 0 : index
    %89 = vector.load %arg6[%c127, %c0_69] : memref<328x128xf32, #tpu.memory_space<vmem>>, vector<16x128xf32>
    %c0_70 = arith.constant 0 : index
    %c96 = arith.constant 96 : index
    %c0_71 = arith.constant 0 : index
    %90 = vector.load %arg3[%c0_70, %c96, %c0_71] : memref<1x256x128xf32, #tpu.memory_space<vmem>>, vector<1x16x128xf32>
    %91 = vector.shape_cast %90 : vector<1x16x128xf32> to vector<16x128xf32>
    %92 = vector.shape_cast %89 : vector<16x128xf32> to vector<1x16x128xf32>
    tpu.vector_store %arg3[%c0_70, %c96, %c0_71], %92 {strides = array<i32>} : memref<1x256x128xf32, #tpu.memory_space<vmem>>, vector<1x16x128xf32>,
    %c145 = arith.constant 145 : index
    %c0_72 = arith.constant 0 : index
    %93 = vector.load %arg6[%c145, %c0_72] : memref<328x128xf32, #tpu.memory_space<vmem>>, vector<16x128xf32>
    %c0_73 = arith.constant 0 : index
    %c112 = arith.constant 112 : index
    %c0_74 = arith.constant 0 : index
    %94 = vector.load %arg3[%c0_73, %c112, %c0_74] : memref<1x256x128xf32, #tpu.memory_space<vmem>>, vector<1x16x128xf32>
    %95 = vector.shape_cast %94 : vector<1x16x128xf32> to vector<16x128xf32>
    %96 = vector.shape_cast %93 : vector<16x128xf32> to vector<1x16x128xf32>
    tpu.vector_store %arg3[%c0_73, %c112, %c0_74], %96 {strides = array<i32>} : memref<1x256x128xf32, #tpu.memory_space<vmem>>, vector<1x16x128xf32>,
    %c163 = arith.constant 163 : index
    %c0_75 = arith.constant 0 : index
    %97 = vector.load %arg6[%c163, %c0_75] : memref<328x128xf32, #tpu.memory_space<vmem>>, vector<16x128xf32>
    %c0_76 = arith.constant 0 : index
    %c128 = arith.constant 128 : index
    %c0_77 = arith.constant 0 : index
    %98 = vector.load %arg3[%c0_76, %c128, %c0_77] : memref<1x256x128xf32, #tpu.memory_space<vmem>>, vector<1x16x128xf32>
    %99 = vector.shape_cast %98 : vector<1x16x128xf32> to vector<16x128xf32>
    %100 = vector.shape_cast %97 : vector<16x128xf32> to vector<1x16x128xf32>
    tpu.vector_store %arg3[%c0_76, %c128, %c0_77], %100 {strides = array<i32>} : memref<1x256x128xf32, #tpu.memory_space<vmem>>, vector<1x16x128xf32>,
    %c181 = arith.constant 181 : index
    %c0_78 = arith.constant 0 : index
    %101 = vector.load %arg6[%c181, %c0_78] : memref<328x128xf32, #tpu.memory_space<vmem>>, vector<16x128xf32>
    %c0_79 = arith.constant 0 : index
    %c144 = arith.constant 144 : index
    %c0_80 = arith.constant 0 : index
    %102 = vector.load %arg3[%c0_79, %c144, %c0_80] : memref<1x256x128xf32, #tpu.memory_space<vmem>>, vector<1x16x128xf32>
    %103 = vector.shape_cast %102 : vector<1x16x128xf32> to vector<16x128xf32>
    %104 = vector.shape_cast %101 : vector<16x128xf32> to vector<1x16x128xf32>
    tpu.vector_store %arg3[%c0_79, %c144, %c0_80], %104 {strides = array<i32>} : memref<1x256x128xf32, #tpu.memory_space<vmem>>, vector<1x16x128xf32>,
    %c199 = arith.constant 199 : index
    %c0_81 = arith.constant 0 : index
    %105 = vector.load %arg6[%c199, %c0_81] : memref<328x128xf32, #tpu.memory_space<vmem>>, vector<16x128xf32>
    %c0_82 = arith.constant 0 : index
    %c160 = arith.constant 160 : index
    %c0_83 = arith.constant 0 : index
    %106 = vector.load %arg3[%c0_82, %c160, %c0_83] : memref<1x256x128xf32, #tpu.memory_space<vmem>>, vector<1x16x128xf32>
    %107 = vector.shape_cast %106 : vector<1x16x128xf32> to vector<16x128xf32>
    %108 = vector.shape_cast %105 : vector<16x128xf32> to vector<1x16x128xf32>
    tpu.vector_store %arg3[%c0_82, %c160, %c0_83], %108 {strides = array<i32>} : memref<1x256x128xf32, #tpu.memory_space<vmem>>, vector<1x16x128xf32>,
    %c217 = arith.constant 217 : index
    %c0_84 = arith.constant 0 : index
    %109 = vector.load %arg6[%c217, %c0_84] : memref<328x128xf32, #tpu.memory_space<vmem>>, vector<16x128xf32>
    %c0_85 = arith.constant 0 : index
    %c176 = arith.constant 176 : index
    %c0_86 = arith.constant 0 : index
    %110 = vector.load %arg3[%c0_85, %c176, %c0_86] : memref<1x256x128xf32, #tpu.memory_space<vmem>>, vector<1x16x128xf32>
    %111 = vector.shape_cast %110 : vector<1x16x128xf32> to vector<16x128xf32>
    %112 = vector.shape_cast %109 : vector<16x128xf32> to vector<1x16x128xf32>
    tpu.vector_store %arg3[%c0_85, %c176, %c0_86], %112 {strides = array<i32>} : memref<1x256x128xf32, #tpu.memory_space<vmem>>, vector<1x16x128xf32>,
    %c235 = arith.constant 235 : index
    %c0_87 = arith.constant 0 : index
    %113 = vector.load %arg6[%c235, %c0_87] : memref<328x128xf32, #tpu.memory_space<vmem>>, vector<16x128xf32>
    %c0_88 = arith.constant 0 : index
    %c192 = arith.constant 192 : index
    %c0_89 = arith.constant 0 : index
    %114 = vector.load %arg3[%c0_88, %c192, %c0_89] : memref<1x256x128xf32, #tpu.memory_space<vmem>>, vector<1x16x128xf32>
    %115 = vector.shape_cast %114 : vector<1x16x128xf32> to vector<16x128xf32>
    %116 = vector.shape_cast %113 : vector<16x128xf32> to vector<1x16x128xf32>
    tpu.vector_store %arg3[%c0_88, %c192, %c0_89], %116 {strides = array<i32>} : memref<1x256x128xf32, #tpu.memory_space<vmem>>, vector<1x16x128xf32>,
    %c253 = arith.constant 253 : index
    %c0_90 = arith.constant 0 : index
    %117 = vector.load %arg6[%c253, %c0_90] : memref<328x128xf32, #tpu.memory_space<vmem>>, vector<16x128xf32>
    %c0_91 = arith.constant 0 : index
    %c208 = arith.constant 208 : index
    %c0_92 = arith.constant 0 : index
    %118 = vector.load %arg3[%c0_91, %c208, %c0_92] : memref<1x256x128xf32, #tpu.memory_space<vmem>>, vector<1x16x128xf32>
    %119 = vector.shape_cast %118 : vector<1x16x128xf32> to vector<16x128xf32>
    %120 = vector.shape_cast %117 : vector<16x128xf32> to vector<1x16x128xf32>
    tpu.vector_store %arg3[%c0_91, %c208, %c0_92], %120 {strides = array<i32>} : memref<1x256x128xf32, #tpu.memory_space<vmem>>, vector<1x16x128xf32>,
    %c271 = arith.constant 271 : index
    %c0_93 = arith.constant 0 : index
    %121 = vector.load %arg6[%c271, %c0_93] : memref<328x128xf32, #tpu.memory_space<vmem>>, vector<16x128xf32>
    %c0_94 = arith.constant 0 : index
    %c224 = arith.constant 224 : index
    %c0_95 = arith.constant 0 : index
    %122 = vector.load %arg3[%c0_94, %c224, %c0_95] : memref<1x256x128xf32, #tpu.memory_space<vmem>>, vector<1x16x128xf32>
    %123 = vector.shape_cast %122 : vector<1x16x128xf32> to vector<16x128xf32>
    %124 = vector.shape_cast %121 : vector<16x128xf32> to vector<1x16x128xf32>
    tpu.vector_store %arg3[%c0_94, %c224, %c0_95], %124 {strides = array<i32>} : memref<1x256x128xf32, #tpu.memory_space<vmem>>, vector<1x16x128xf32>,
    %c289 = arith.constant 289 : index
    %c0_96 = arith.constant 0 : index
    %125 = vector.load %arg6[%c289, %c0_96] : memref<328x128xf32, #tpu.memory_space<vmem>>, vector<16x128xf32>
    %c0_97 = arith.constant 0 : index
    %c240 = arith.constant 240 : index
    %c0_98 = arith.constant 0 : index
    %126 = vector.load %arg3[%c0_97, %c240, %c0_98] : memref<1x256x128xf32, #tpu.memory_space<vmem>>, vector<1x16x128xf32>
    %127 = vector.shape_cast %126 : vector<1x16x128xf32> to vector<16x128xf32>
    %128 = vector.shape_cast %125 : vector<16x128xf32> to vector<1x16x128xf32>
    tpu.vector_store %arg3[%c0_97, %c240, %c0_98], %128 {strides = array<i32>} : memref<1x256x128xf32, #tpu.memory_space<vmem>>, vector<1x16x128xf32>,
    %c0_99 = arith.constant 0 : index
    %c0_100 = arith.constant 0 : index
    %c0_101 = arith.constant 0 : index
    %129 = vector.load %arg3[%c0_99, %c0_100, %c0_101] : memref<1x256x128xf32, #tpu.memory_space<vmem>>, vector<1x256x128xf32>
    %130 = vector.shape_cast %129 : vector<1x256x128xf32> to vector<256x128xf32>
    %cst_102 = arith.constant dense<0.000000e+00> : vector<128xf32>
    %131 = vector.multi_reduction <add>, %130, %cst_102 [0] : vector<256x128xf32> to vector<128xf32>
    %132 = vector.shape_cast %131 : vector<128xf32> to vector<1x128xf32>
    %c0_103 = arith.constant 0 : index
    %c0_104 = arith.constant 0 : index
    %c0_105 = arith.constant 0 : index
    %133 = vector.load %arg4[%c0_103, %c0_104, %c0_105] : memref<1x1x128xf32, #tpu.memory_space<vmem>>, vector<1x1x128xf32>
    %134 = vector.shape_cast %133 : vector<1x1x128xf32> to vector<1x128xf32>
    %135 = vector.shape_cast %132 : vector<1x128xf32> to vector<1x1x128xf32>
    tpu.vector_store %arg4[%c0_103, %c0_104, %c0_105], %135 {strides = array<i32>} : memref<1x1x128xf32, #tpu.memory_space<vmem>>, vector<1x1x128xf32>,
    %136 = arith.mulf %130, %130 : vector<256x128xf32>
    %cst_106 = arith.constant dense<0.000000e+00> : vector<128xf32>
    %137 = vector.multi_reduction <add>, %136, %cst_106 [0] : vector<256x128xf32> to vector<128xf32>
    %138 = vector.shape_cast %137 : vector<128xf32> to vector<1x128xf32>
    %c0_107 = arith.constant 0 : index
    %c0_108 = arith.constant 0 : index
    %c0_109 = arith.constant 0 : index
    %139 = vector.load %arg5[%c0_107, %c0_108, %c0_109] : memref<1x1x128xf32, #tpu.memory_space<vmem>>, vector<1x1x128xf32>
    %140 = vector.shape_cast %139 : vector<1x1x128xf32> to vector<1x128xf32>
    %141 = vector.shape_cast %138 : vector<1x128xf32> to vector<1x1x128xf32>
    tpu.vector_store %arg5[%c0_107, %c0_108, %c0_109], %141 {strides = array<i32>} : memref<1x1x128xf32, #tpu.memory_space<vmem>>, vector<1x1x128xf32>,
    return
  }
  func.func @transform_0(%arg0: i32) -> (i32, i32, i32) {
    %c0_i32 = arith.constant 0 : i32
    %c0_i32_0 = arith.constant 0 : i32
    %c0_i32_1 = arith.constant 0 : i32
    return %arg0, %c0_i32, %c0_i32_0 : i32, i32, i32
  }
  func.func @transform_1(%arg0: i32) -> (i32, i32, i32) {
    %c0_i32 = arith.constant 0 : i32
    %c0_i32_0 = arith.constant 0 : i32
    %c0_i32_1 = arith.constant 0 : i32
    %c0_i32_2 = arith.constant 0 : i32
    return %c0_i32, %c0_i32_0, %c0_i32_1 : i32, i32, i32
  }
  func.func @transform_2(%arg0: i32) -> (i32, i32, i32) {
    %c0_i32 = arith.constant 0 : i32
    %c0_i32_0 = arith.constant 0 : i32
    %c0_i32_1 = arith.constant 0 : i32
    return %arg0, %c0_i32, %c0_i32_0 : i32, i32, i32
  }
  func.func @transform_3(%arg0: i32) -> (i32, i32, i32) {
    %c0_i32 = arith.constant 0 : i32
    %c0_i32_0 = arith.constant 0 : i32
    %c0_i32_1 = arith.constant 0 : i32
    return %arg0, %c0_i32, %c0_i32_0 : i32, i32, i32
  }
  func.func @transform_4(%arg0: i32) -> (i32, i32, i32) {
    %c0_i32 = arith.constant 0 : i32
    %c0_i32_0 = arith.constant 0 : i32
    %c0_i32_1 = arith.constant 0 : i32
    return %arg0, %c0_i32, %c0_i32_0 : i32, i32, i32
  }
}

module attributes {stable_mosaic.version = 11 : i64} {
  func.func @_norm_matmul_stats_kernel(%arg0: i32, %arg1: memref<256x128xf32, #tpu.memory_space<vmem>>, %arg2: memref<1x128xf32, #tpu.memory_space<vmem>>, %arg3: memref<1x128xf32, #tpu.memory_space<vmem>>, %arg4: memref<128x128xbf16, #tpu.memory_space<vmem>>, %arg5: memref<256x128xf32, #tpu.memory_space<vmem>>, %arg6: memref<1x1x128xf32, #tpu.memory_space<vmem>>, %arg7: memref<1x1x128xf32, #tpu.memory_space<vmem>>) attributes {dimension_semantics = [#tpu.dimension_semantics<parallel>], iteration_bounds = array<i64: 2>, scalar_prefetch = 0 : i64, scratch_operands = 0 : i64, tpu.core_type = #tpu.core_type<tc>, window_params = [{transform_indices = @transform_0, window_bounds = array<i64: 256, 128>}, {pipeline_mode = #tpu.pipeline_mode<synchronous>, transform_indices = @transform_1, window_bounds = array<i64: 1, 128>}, {pipeline_mode = #tpu.pipeline_mode<synchronous>, transform_indices = @transform_2, window_bounds = array<i64: 1, 128>}, {pipeline_mode = #tpu.pipeline_mode<synchronous>, transform_indices = @transform_3, window_bounds = array<i64: 128, 128>}, {transform_indices = @transform_4, window_bounds = array<i64: 256, 128>}, {transform_indices = @transform_5, window_bounds = array<i64: 1, 1, 128>}, {transform_indices = @transform_6, window_bounds = array<i64: 1, 1, 128>}]} {
    %c0 = arith.constant 0 : index
    %c0_0 = arith.constant 0 : index
    %0 = vector.load %arg1[%c0, %c0_0] : memref<256x128xf32, #tpu.memory_space<vmem>>, vector<256x128xf32>
    %c0_1 = arith.constant 0 : index
    %c0_2 = arith.constant 0 : index
    %1 = vector.load %arg2[%c0_1, %c0_2] : memref<1x128xf32, #tpu.memory_space<vmem>>, vector<1x128xf32>
    %2 = vector.broadcast %1 : vector<1x128xf32> to vector<256x128xf32>
    %3 = arith.mulf %0, %2 : vector<256x128xf32>
    %c0_3 = arith.constant 0 : index
    %c0_4 = arith.constant 0 : index
    %4 = vector.load %arg3[%c0_3, %c0_4] : memref<1x128xf32, #tpu.memory_space<vmem>>, vector<1x128xf32>
    %5 = vector.broadcast %4 : vector<1x128xf32> to vector<256x128xf32>
    %6 = arith.addf %3, %5 : vector<256x128xf32>
    %cst = arith.constant 0.000000e+00 : f32
    %7 = vector.broadcast %cst : f32 to vector<256x128xf32>
    %8 = arith.maximumf %6, %7 : vector<256x128xf32>
    %9 = arith.truncf %8 : vector<256x128xf32> to vector<256x128xbf16>
    %c0_5 = arith.constant 0 : index
    %c0_6 = arith.constant 0 : index
    %10 = vector.load %arg4[%c0_5, %c0_6] : memref<128x128xbf16, #tpu.memory_space<vmem>>, vector<128x128xbf16>
    %cst_7 = arith.constant dense<0.000000e+00> : vector<256x128xf32>
    %11 = tpu.matmul %9, %10, %cst_7 {dimension_numbers = #tpu.dot_dimension_numbers<[1], [0], [0], [1], [0, 0, 1, 1], [], []>} : vector<256x128xbf16>, vector<128x128xbf16>, vector<256x128xf32> -> vector<256x128xf32>
    %c0_8 = arith.constant 0 : index
    %c0_9 = arith.constant 0 : index
    %12 = vector.load %arg5[%c0_8, %c0_9] : memref<256x128xf32, #tpu.memory_space<vmem>>, vector<256x128xf32>
    tpu.vector_store %arg5[%c0_8, %c0_9], %11 {strides = array<i32>} : memref<256x128xf32, #tpu.memory_space<vmem>>, vector<256x128xf32>,
    %cst_10 = arith.constant dense<0.000000e+00> : vector<128xf32>
    %13 = vector.multi_reduction <add>, %11, %cst_10 [0] : vector<256x128xf32> to vector<128xf32>
    %14 = vector.shape_cast %13 : vector<128xf32> to vector<1x128xf32>
    %c0_11 = arith.constant 0 : index
    %c0_12 = arith.constant 0 : index
    %c0_13 = arith.constant 0 : index
    %15 = vector.load %arg6[%c0_11, %c0_12, %c0_13] : memref<1x1x128xf32, #tpu.memory_space<vmem>>, vector<1x1x128xf32>
    %16 = vector.shape_cast %15 : vector<1x1x128xf32> to vector<1x128xf32>
    %17 = vector.shape_cast %14 : vector<1x128xf32> to vector<1x1x128xf32>
    tpu.vector_store %arg6[%c0_11, %c0_12, %c0_13], %17 {strides = array<i32>} : memref<1x1x128xf32, #tpu.memory_space<vmem>>, vector<1x1x128xf32>,
    %18 = arith.mulf %11, %11 : vector<256x128xf32>
    %cst_14 = arith.constant dense<0.000000e+00> : vector<128xf32>
    %19 = vector.multi_reduction <add>, %18, %cst_14 [0] : vector<256x128xf32> to vector<128xf32>
    %20 = vector.shape_cast %19 : vector<128xf32> to vector<1x128xf32>
    %c0_15 = arith.constant 0 : index
    %c0_16 = arith.constant 0 : index
    %c0_17 = arith.constant 0 : index
    %21 = vector.load %arg7[%c0_15, %c0_16, %c0_17] : memref<1x1x128xf32, #tpu.memory_space<vmem>>, vector<1x1x128xf32>
    %22 = vector.shape_cast %21 : vector<1x1x128xf32> to vector<1x128xf32>
    %23 = vector.shape_cast %20 : vector<1x128xf32> to vector<1x1x128xf32>
    tpu.vector_store %arg7[%c0_15, %c0_16, %c0_17], %23 {strides = array<i32>} : memref<1x1x128xf32, #tpu.memory_space<vmem>>, vector<1x1x128xf32>,
    return
  }
  func.func @transform_0(%arg0: i32) -> (i32, i32) {
    %c0_i32 = arith.constant 0 : i32
    %c0_i32_0 = arith.constant 0 : i32
    return %arg0, %c0_i32 : i32, i32
  }
  func.func @transform_1(%arg0: i32) -> (i32, i32) {
    %c0_i32 = arith.constant 0 : i32
    %c0_i32_0 = arith.constant 0 : i32
    %c0_i32_1 = arith.constant 0 : i32
    return %c0_i32, %c0_i32_0 : i32, i32
  }
  func.func @transform_2(%arg0: i32) -> (i32, i32) {
    %c0_i32 = arith.constant 0 : i32
    %c0_i32_0 = arith.constant 0 : i32
    %c0_i32_1 = arith.constant 0 : i32
    return %c0_i32, %c0_i32_0 : i32, i32
  }
  func.func @transform_3(%arg0: i32) -> (i32, i32) {
    %c0_i32 = arith.constant 0 : i32
    %c0_i32_0 = arith.constant 0 : i32
    %c0_i32_1 = arith.constant 0 : i32
    return %c0_i32, %c0_i32_0 : i32, i32
  }
  func.func @transform_4(%arg0: i32) -> (i32, i32) {
    %c0_i32 = arith.constant 0 : i32
    %c0_i32_0 = arith.constant 0 : i32
    return %arg0, %c0_i32 : i32, i32
  }
  func.func @transform_5(%arg0: i32) -> (i32, i32, i32) {
    %c0_i32 = arith.constant 0 : i32
    %c0_i32_0 = arith.constant 0 : i32
    %c0_i32_1 = arith.constant 0 : i32
    return %arg0, %c0_i32, %c0_i32_0 : i32, i32, i32
  }
  func.func @transform_6(%arg0: i32) -> (i32, i32, i32) {
    %c0_i32 = arith.constant 0 : i32
    %c0_i32_0 = arith.constant 0 : i32
    %c0_i32_1 = arith.constant 0 : i32
    return %arg0, %c0_i32, %c0_i32_0 : i32, i32, i32
  }
}

module attributes {stable_mosaic.version = 11 : i64} {
  func.func @_norm_add_relu_kernel(%arg0: i32, %arg1: memref<256x128xf32, #tpu.memory_space<vmem>>, %arg2: memref<1x128xf32, #tpu.memory_space<vmem>>, %arg3: memref<1x128xf32, #tpu.memory_space<vmem>>, %arg4: memref<256x128xf32, #tpu.memory_space<vmem>>, %arg5: memref<256x128xf32, #tpu.memory_space<vmem>>) attributes {dimension_semantics = [#tpu.dimension_semantics<parallel>], iteration_bounds = array<i64: 2>, scalar_prefetch = 0 : i64, scratch_operands = 0 : i64, tpu.core_type = #tpu.core_type<tc>, window_params = [{transform_indices = @transform_0, window_bounds = array<i64: 256, 128>}, {pipeline_mode = #tpu.pipeline_mode<synchronous>, transform_indices = @transform_1, window_bounds = array<i64: 1, 128>}, {pipeline_mode = #tpu.pipeline_mode<synchronous>, transform_indices = @transform_2, window_bounds = array<i64: 1, 128>}, {transform_indices = @transform_3, window_bounds = array<i64: 256, 128>}, {transform_indices = @transform_4, window_bounds = array<i64: 256, 128>}]} {
    %c0 = arith.constant 0 : index
    %c0_0 = arith.constant 0 : index
    %0 = vector.load %arg1[%c0, %c0_0] : memref<256x128xf32, #tpu.memory_space<vmem>>, vector<256x128xf32>
    %c0_1 = arith.constant 0 : index
    %c0_2 = arith.constant 0 : index
    %1 = vector.load %arg2[%c0_1, %c0_2] : memref<1x128xf32, #tpu.memory_space<vmem>>, vector<1x128xf32>
    %2 = vector.broadcast %1 : vector<1x128xf32> to vector<256x128xf32>
    %3 = arith.mulf %0, %2 : vector<256x128xf32>
    %c0_3 = arith.constant 0 : index
    %c0_4 = arith.constant 0 : index
    %4 = vector.load %arg3[%c0_3, %c0_4] : memref<1x128xf32, #tpu.memory_space<vmem>>, vector<1x128xf32>
    %5 = vector.broadcast %4 : vector<1x128xf32> to vector<256x128xf32>
    %6 = arith.addf %3, %5 : vector<256x128xf32>
    %c0_5 = arith.constant 0 : index
    %c0_6 = arith.constant 0 : index
    %7 = vector.load %arg4[%c0_5, %c0_6] : memref<256x128xf32, #tpu.memory_space<vmem>>, vector<256x128xf32>
    %8 = arith.addf %6, %7 : vector<256x128xf32>
    %cst = arith.constant 0.000000e+00 : f32
    %9 = vector.broadcast %cst : f32 to vector<256x128xf32>
    %10 = arith.maximumf %8, %9 : vector<256x128xf32>
    %c0_7 = arith.constant 0 : index
    %c0_8 = arith.constant 0 : index
    %11 = vector.load %arg5[%c0_7, %c0_8] : memref<256x128xf32, #tpu.memory_space<vmem>>, vector<256x128xf32>
    tpu.vector_store %arg5[%c0_7, %c0_8], %10 {strides = array<i32>} : memref<256x128xf32, #tpu.memory_space<vmem>>, vector<256x128xf32>,
    return
  }
  func.func @transform_0(%arg0: i32) -> (i32, i32) {
    %c0_i32 = arith.constant 0 : i32
    %c0_i32_0 = arith.constant 0 : i32
    return %arg0, %c0_i32 : i32, i32
  }
  func.func @transform_1(%arg0: i32) -> (i32, i32) {
    %c0_i32 = arith.constant 0 : i32
    %c0_i32_0 = arith.constant 0 : i32
    %c0_i32_1 = arith.constant 0 : i32
    return %c0_i32, %c0_i32_0 : i32, i32
  }
  func.func @transform_2(%arg0: i32) -> (i32, i32) {
    %c0_i32 = arith.constant 0 : i32
    %c0_i32_0 = arith.constant 0 : i32
    %c0_i32_1 = arith.constant 0 : i32
    return %c0_i32, %c0_i32_0 : i32, i32
  }
  func.func @transform_3(%arg0: i32) -> (i32, i32) {
    %c0_i32 = arith.constant 0 : i32
    %c0_i32_0 = arith.constant 0 : i32
    return %arg0, %c0_i32 : i32, i32
  }
  func.func @transform_4(%arg0: i32) -> (i32, i32) {
    %c0_i32 = arith.constant 0 : i32
    %c0_i32_0 = arith.constant 0 : i32
    return %arg0, %c0_i32 : i32, i32
  }
}

</mosaic_0001>

<llo_original>
// kernel: bottleneck_block.4
$region0: #{bottleneck_block.4}
  #allocation0 [shape = 'u32[]', space=smem, size = 0x4, offset = 0x4, fixed_abs, tag = 'smem constant byte address 0x4 - core index']
  #allocation1 [shape = 'u32[144,128]{1,0:T(1,128)}', space=vmem, size = 0x12000, scoped, tag = 'internal scratch']
  %s0 = inlined_call_operand.vmem [shape: bf16[512,128], index: 0, kind: input, shape index: {}]
  %s1 = inlined_call_operand.vmem [shape: bf16[128,128], index: 1, kind: input, shape index: {}]
  %s2 = inlined_call_operand.vmem [shape: f32[512,128], index: 2, kind: output, shape index: {0}]
  %s3 = inlined_call_operand.vmem [shape: f32[2,1,128], index: 3, kind: output, shape index: {1}]
  %s4 = inlined_call_operand.vmem [shape: f32[2,1,128], index: 4, kind: output, shape index: {2}]
  %5 = xla_tuple %s2, %s3, %s4
  %s6 = sld [smem:[#allocation0]]
  $region57: #{bottleneck_block.4} parent=0
    _
  %s8 = ssub.s32 1, %s6
  %s9 = scalar_select 0, %s8, %s6
  loop: start=0, step=1, limit=4
  $region2: #{bottleneck_block.4} parent=0 // loop_pre_header
    _
  $region3: #{bottleneck_block.4} parent=0 // loop_header
    %s11 = sphi 0, %s15
    %p12 = scmp.ge.s32.totalorder %s11, 4
    %s21 = sphi 0, %s23
    %s24 = sphi 0, %s21
    %s25 = sphi 0, %s24
    %s41 = sphi 0, %s25
    %s45 = sphi 0, %s45
    %s47 = sphi 0, %s45
    %s48 = sphi 0, %s47
    %s62 = sphi 0, %s48
    %s68 = sphi 0, %s70
    %s71 = sphi 0, %s68
    %s72 = sphi 0, %s71
    %s88 = sphi 0, %s72
    %s94 = sphi 0, %s96
    %s97 = sphi 0, %s94
    %s98 = sphi 0, %s97
    %s114 = sphi 0, %s98
    %s120 = sphi 0, %s122
    %s123 = sphi 0, %s120
    %s124 = sphi 0, %s123
    %s140 = sphi 0, %s124
  $region4: #{bottleneck_block.4} parent=0 // loop_header_branch
    %14 = sbr.rel (%p12) target = $region8
  $region5: #{bottleneck_block.4} parent=0 // loop_body
    %s16 = ssub.s32 %s11, 1
    %s17 = ssub.s32 %s11, 2
    %s18 = sadd.s32 %s11, 1
    %s19 = ssub.s32 %s11, %s18
    %p20 = scmp.eq.s32.totalorder %s19, 0
    %s22 = sadd.s32 %s21, 1
    %s23 = scalar_select %p20, %s21, %s22
    %p26 = pneg %p20
    %p27 = scmp.eq.s32.totalorder %s11, 1
    %p28 = por %p26, %p27
    %p29 = scmp.ne.s32.totalorder %s21, %s24
    %p30 = scmp.eq.s32.totalorder %s11, 0
    %p31 = por %p29, %p30
    %p32 = scmp.ne.s32.totalorder %s21, %s24
    %p33 = scmp.eq.s32.totalorder %s16, 1
    %p34 = por %p32, %p33
    %p35 = scmp.ne.s32.totalorder %s24, %s25
    %p36 = scmp.eq.s32.totalorder %s16, 0
    %p37 = por %p35, %p36
    %p38 = scmp.ne.s32.totalorder %s24, %s25
    %p39 = scmp.eq.s32.totalorder %s17, 1
    %p40 = por %p38, %p39
    %p42 = scmp.ne.s32.totalorder %s25, %s41
    %p43 = scmp.eq.s32.totalorder %s17, 0
    %p44 = por %p42, %p43
    %s46 = sadd.s32 %s45, 1
    %p49 = scmp.eq.s32.totalorder %s11, 1
    %p50 = scmp.ne.s32.totalorder %s45, %s47
    %p51 = scmp.eq.s32.totalorder %s11, 0
    %p52 = por %p50, %p51
    %p53 = scmp.ne.s32.totalorder %s45, %s47
    %p54 = scmp.eq.s32.totalorder %s16, 1
    %p55 = por %p53, %p54
    %p56 = scmp.ne.s32.totalorder %s47, %s48
    %p57 = scmp.eq.s32.totalorder %s16, 0
    %p58 = por %p56, %p57
    %p59 = scmp.ne.s32.totalorder %s47, %s48
    %p60 = scmp.eq.s32.totalorder %s17, 1
    %p61 = por %p59, %p60
    %p63 = scmp.ne.s32.totalorder %s48, %s62
    %p64 = scmp.eq.s32.totalorder %s17, 0
    %p65 = por %p63, %p64
    %s66 = ssub.s32 %s11, %s18
    %p67 = scmp.eq.s32.totalorder %s66, 0
    %s69 = sadd.s32 %s68, 1
    %s70 = scalar_select %p67, %s68, %s69
    %p73 = pneg %p67
    %p74 = scmp.eq.s32.totalorder %s11, 1
    %p75 = por %p73, %p74
    %p76 = scmp.ne.s32.totalorder %s68, %s71
    %p77 = scmp.eq.s32.totalorder %s11, 0
    %p78 = por %p76, %p77
    %p79 = scmp.ne.s32.totalorder %s68, %s71
    %p80 = scmp.eq.s32.totalorder %s16, 1
    %p81 = por %p79, %p80
    %p82 = scmp.ne.s32.totalorder %s71, %s72
    %p83 = scmp.eq.s32.totalorder %s16, 0
    %p84 = por %p82, %p83
    %p85 = scmp.ne.s32.totalorder %s71, %s72
    %p86 = scmp.eq.s32.totalorder %s17, 1
    %p87 = por %p85, %p86
    %p89 = scmp.ne.s32.totalorder %s72, %s88
    %p90 = scmp.eq.s32.totalorder %s17, 0
    %p91 = por %p89, %p90
    %s92 = ssub.s32 %s11, %s18
    %p93 = scmp.eq.s32.totalorder %s92, 0
    %s95 = sadd.s32 %s94, 1
    %s96 = scalar_select %p93, %s94, %s95
    %p99 = pneg %p93
    %p100 = scmp.eq.s32.totalorder %s11, 1
    %p101 = por %p99, %p100
    %p102 = scmp.ne.s32.totalorder %s94, %s97
    %p103 = scmp.eq.s32.totalorder %s11, 0
    %p104 = por %p102, %p103
    %p105 = scmp.ne.s32.totalorder %s94, %s97
    %p106 = scmp.eq.s32.totalorder %s16, 1
    %p107 = por %p105, %p106
    %p108 = scmp.ne.s32.totalorder %s97, %s98
    %p109 = scmp.eq.s32.totalorder %s16, 0
    %p110 = por %p108, %p109
    %p111 = scmp.ne.s32.totalorder %s97, %s98
    %p112 = scmp.eq.s32.totalorder %s17, 1
    %p113 = por %p111, %p112
    %p115 = scmp.ne.s32.totalorder %s98, %s114
    %p116 = scmp.eq.s32.totalorder %s17, 0
    %p117 = por %p115, %p116
    %s118 = ssub.s32 %s11, %s18
    %p119 = scmp.eq.s32.totalorder %s118, 0
    %s121 = sadd.s32 %s120, 1
    %s122 = scalar_select %p119, %s120, %s121
    %p125 = pneg %p119
    %p126 = scmp.eq.s32.totalorder %s11, 1
    %p127 = por %p125, %p126
    %p128 = scmp.ne.s32.totalorder %s120, %s123
    %p129 = scmp.eq.s32.totalorder %s11, 0
    %p130 = por %p128, %p129
    %p131 = scmp.ne.s32.totalorder %s120, %s123
    %p132 = scmp.eq.s32.totalorder %s16, 1
    %p133 = por %p131, %p132
    %p134 = scmp.ne.s32.totalorder %s123, %s124
    %p135 = scmp.eq.s32.totalorder %s16, 0
    %p136 = por %p134, %p135
    %p137 = scmp.ne.s32.totalorder %s123, %s124
    %p138 = scmp.eq.s32.totalorder %s17, 1
    %p139 = por %p137, %p138
    %p141 = scmp.ne.s32.totalorder %s124, %s140
    %p142 = scmp.eq.s32.totalorder %s17, 0
    %p143 = por %p141, %p142
    %p144 = scmp.le.s32.totalorder 1, %s11
    %p145 = scmp.lt.s32.totalorder %s11, 3
    %p146 = pnand %p144, %p145
    %p147 = pneg %p146
    // Predicated region
    $region9: #{bottleneck_block.4} parent=5 // pred_check
      _
    $region10: #{bottleneck_block.4} parent=5 // pred_check_branch
      %149 = sbr.rel (%p146) target = $region12
    $region11: #{bottleneck_block.4} parent=5 // pred_region
      %s150 = ssub.s32 %s11, 1
      // Predicated region
      $region13: #{bottleneck_block.4} parent=11 // pred_check
        %p151 = pneg %p58
      $region14: #{bottleneck_block.4} parent=11 // pred_check_branch
        %153 = sbr.rel (%p151) target = $region16
      $region15: #{bottleneck_block.4} parent=11 // pred_region
        _
      $region16: #{bottleneck_block.4} parent=11 // pred_fallthru
        _
    $region12: #{bottleneck_block.4} parent=5 // pred_fallthru
      _
    %p154 = scmp.lt.s32.totalorder %s11, 2
    // Predicated region
    $region17: #{bottleneck_block.4} parent=5 // pred_check
      %p155 = pneg %p154
    $region18: #{bottleneck_block.4} parent=5 // pred_check_branch
      %157 = sbr.rel (%p155) target = $region20
    $region19: #{bottleneck_block.4} parent=5 // pred_region
      // Predicated region
      $region21: #{bottleneck_block.4} parent=19 // pred_check
        %p158 = pneg %p31
      $region22: #{bottleneck_block.4} parent=19 // pred_check_branch
        %160 = sbr.rel (%p158) target = $region24
      $region23: #{bottleneck_block.4} parent=19 // pred_region
        %s161 = smul.u32 32, %s11
        %p162 = scmp.lt.s32.totalorder %s161, 63
        %s163 = scalar_select %p162, %s161, 63
        %s164 = smul.addr %s163, 4
        %s165 = scalar_lea.vmem %s0, %s164
        %s166 = smul.u32 32, %s11
      $region24: #{bottleneck_block.4} parent=19 // pred_fallthru
        _
    $region20: #{bottleneck_block.4} parent=5 // pred_fallthru
      _
    %p167 = scmp.le.s32.totalorder 1, %s11
    %p168 = scmp.lt.s32.totalorder %s11, 3
    %p169 = pnand %p167, %p168
    %p170 = pneg %p169
    // Predicated region
    $region25: #{bottleneck_block.4} parent=5 // pred_check
      _
    $region26: #{bottleneck_block.4} parent=5 // pred_check_branch
      %172 = sbr.rel (%p169) target = $region28
    $region27: #{bottleneck_block.4} parent=5 // pred_region
      %s173 = ssub.s32 %s11, 1
      %s174 = smul.u32 32, %s16
      %p175 = scmp.lt.s32.totalorder %s174, 63
      %s176 = scalar_select %p175, %s174, 63
      %s177 = smul.addr %s176, 4
      %s178 = scalar_lea.vmem %s0, %s177
      %p179 = pneg %p37
      %p180 = pneg %p34
      %p181 = pneg %p58
      %p182 = pneg %p55
      %p183 = pneg %p84
      %p184 = pneg %p81
      %s185 = smul.u32 32, %s16
      %p186 = scmp.lt.s32.totalorder %s185, 63
      %s187 = scalar_select %p186, %s185, 63
      %s188 = smul.addr %s187, 8
      %s189 = scalar_lea.vmem %s2, %s188
      %p190 = pneg %p110
      %p191 = pneg %p107
      %p192 = scmp.lt.s32.totalorder %s16, 1
      %s193 = scalar_select %p192, %s16, 1
      %s194 = scalar_lea.vmem %s3, %s193
      %p195 = pneg %p136
      %p196 = pneg %p133
      %p197 = scmp.lt.s32.totalorder %s16, 1
      %s198 = scalar_select %p197, %s16, 1
      %s199 = scalar_lea.vmem %s4, %s198
      %s200 = smul.u32 32, %s16
      %p201 = scmp.lt.s32.totalorder %s200, 63
      %s202 = scalar_select %p201, %s200, 63
      %s203 = smul.addr %s202, 4
      %s204 = scalar_lea.vmem %s0, %s203
      %s205 = smul.u32 32, %s16
      %s206 = smul.u32 32, %s16
      %p207 = scmp.lt.s32.totalorder %s206, 63
      %s208 = scalar_select %p207, %s206, 63
      %s209 = smul.addr %s208, 8
      %s210 = scalar_lea.vmem %s2, %s209
      %s211 = smul.u32 32, %s16
      %p212 = scmp.lt.s32.totalorder %s16, 1
      %s213 = scalar_select %p212, %s16, 1
      %s214 = scalar_lea.vmem %s3, %s213
      %p215 = scmp.lt.s32.totalorder %s16, 1
      %s216 = scalar_select %p215, %s16, 1
      %s217 = scalar_lea.vmem %s4, %s216
      %v219 = vld [vmem:[%s204] sm:$0xf]
      %v220 = vld [vmem:[%s204 + $0x4] sm:$0xf]
      %v221 = vld [vmem:[%s204 + $0x8] sm:$0xf]
      %v222 = vld [vmem:[%s204 + $0xc] sm:$0xf]
      %v223 = vld [vmem:[%s204 + $0x10] sm:$0xf]
      %v224 = vld [vmem:[%s204 + $0x14] sm:$0xf]
      %v225 = vld [vmem:[%s204 + $0x18] sm:$0xf]
      %v226 = vld [vmem:[%s204 + $0x1c] sm:$0xf]
      %v227 = vld [vmem:[%s204 + $0x20] sm:$0xf]
      %v228 = vld [vmem:[%s204 + $0x24] sm:$0xf]
      %v229 = vld [vmem:[%s204 + $0x28] sm:$0xf]
      %v230 = vld [vmem:[%s204 + $0x2c] sm:$0xf]
      %v231 = vld [vmem:[%s204 + $0x30] sm:$0xf]
      %v232 = vld [vmem:[%s204 + $0x34] sm:$0xf]
      %v233 = vld [vmem:[%s204 + $0x38] sm:$0xf]
      %v234 = vld [vmem:[%s204 + $0x3c] sm:$0xf]
      %v235 = vld [vmem:[%s204 + $0x40] sm:$0xf]
      %v236 = vld [vmem:[%s204 + $0x44] sm:$0xf]
      %v237 = vld [vmem:[%s204 + $0x48] sm:$0xf]
      %v238 = vld [vmem:[%s204 + $0x4c] sm:$0xf]
      %v239 = vld [vmem:[%s204 + $0x50] sm:$0xf]
      %v240 = vld [vmem:[%s204 + $0x54] sm:$0xf]
      %v241 = vld [vmem:[%s204 + $0x58] sm:$0xf]
      %v242 = vld [vmem:[%s204 + $0x5c] sm:$0xf]
      %v243 = vld [vmem:[%s204 + $0x60] sm:$0xf]
      %v244 = vld [vmem:[%s204 + $0x64] sm:$0xf]
      %v245 = vld [vmem:[%s204 + $0x68] sm:$0xf]
      %v246 = vld [vmem:[%s204 + $0x6c] sm:$0xf]
      %v247 = vld [vmem:[%s204 + $0x70] sm:$0xf]
      %v248 = vld [vmem:[%s204 + $0x74] sm:$0xf]
      %v249 = vld [vmem:[%s204 + $0x78] sm:$0xf]
      %v250 = vld [vmem:[%s204 + $0x7c] sm:$0xf]
      %v251 = vld [vmem:[%s1] sm:$0xf]
      %v252 = vld [vmem:[%s1 + $0x4] sm:$0xf]
      %v253 = vld [vmem:[%s1 + $0x8] sm:$0xf]
      %v254 = vld [vmem:[%s1 + $0xc] sm:$0xf]
      %v255 = vld [vmem:[%s1 + $0x10] sm:$0xf]
      %v256 = vld [vmem:[%s1 + $0x14] sm:$0xf]
      %v257 = vld [vmem:[%s1 + $0x18] sm:$0xf]
      %v258 = vld [vmem:[%s1 + $0x1c] sm:$0xf]
      %v259 = vld [vmem:[%s1 + $0x20] sm:$0xf]
      %v260 = vld [vmem:[%s1 + $0x24] sm:$0xf]
      %v261 = vld [vmem:[%s1 + $0x28] sm:$0xf]
      %v262 = vld [vmem:[%s1 + $0x2c] sm:$0xf]
      %v263 = vld [vmem:[%s1 + $0x30] sm:$0xf]
      %v264 = vld [vmem:[%s1 + $0x34] sm:$0xf]
      %v265 = vld [vmem:[%s1 + $0x38] sm:$0xf]
      %v266 = vld [vmem:[%s1 + $0x3c] sm:$0xf]
      %v299 = vunpack.c.l.b16 %v219
      %v300 = vunpack.c.l.b16 %v220
      %v301 = vunpack.c.l.b16 %v221
      %v302 = vunpack.c.l.b16 %v222
      %v303 = vunpack.c.l.b16 %v223
      %v304 = vunpack.c.l.b16 %v224
      %v305 = vunpack.c.l.b16 %v225
      %v306 = vunpack.c.l.b16 %v226
      %v307 = vunpack.c.l.b16 %v227
      %v308 = vunpack.c.l.b16 %v228
      %v309 = vunpack.c.l.b16 %v229
      %v310 = vunpack.c.l.b16 %v230
      %v311 = vunpack.c.l.b16 %v231
      %v312 = vunpack.c.l.b16 %v232
      %v313 = vunpack.c.l.b16 %v233
      %v314 = vunpack.c.l.b16 %v234
      %v315 = vunpack.c.l.b16 %v235
      %v316 = vunpack.c.l.b16 %v236
      %v317 = vunpack.c.l.b16 %v237
      %v318 = vunpack.c.l.b16 %v238
      %v319 = vunpack.c.l.b16 %v239
      %v320 = vunpack.c.l.b16 %v240
      %v321 = vunpack.c.l.b16 %v241
      %v322 = vunpack.c.l.b16 %v242
      %v323 = vunpack.c.l.b16 %v243
      %v324 = vunpack.c.l.b16 %v244
      %v325 = vunpack.c.l.b16 %v245
      %v326 = vunpack.c.l.b16 %v246
      %v327 = vunpack.c.l.b16 %v247
      %v328 = vunpack.c.l.b16 %v248
      %v329 = vunpack.c.l.b16 %v249
      %v330 = vunpack.c.l.b16 %v250
      %v331 = vpack.c.b16 %v300, %v299
      %v332 = vpack.c.b16 %v302, %v301
      %v333 = vpack.c.b16 %v304, %v303
      %v334 = vpack.c.b16 %v306, %v305
      %v335 = vpack.c.b16 %v308, %v307
      %v336 = vpack.c.b16 %v310, %v309
      %v337 = vpack.c.b16 %v312, %v311
      %v338 = vpack.c.b16 %v314, %v313
      %v339 = vpack.c.b16 %v316, %v315
      %v340 = vpack.c.b16 %v318, %v317
      %v341 = vpack.c.b16 %v320, %v319
      %v342 = vpack.c.b16 %v322, %v321
      %v343 = vpack.c.b16 %v324, %v323
      %v344 = vpack.c.b16 %v326, %v325
      %v345 = vpack.c.b16 %v328, %v327
      %v346 = vpack.c.b16 %v330, %v329
      %v379 = vunpack.c.l.b16 %v251
      %v380 = vunpack.c.l.b16 %v252
      %v381 = vunpack.c.l.b16 %v253
      %v382 = vunpack.c.l.b16 %v254
      %v383 = vunpack.c.l.b16 %v255
      %v384 = vunpack.c.l.b16 %v256
      %v385 = vunpack.c.l.b16 %v257
      %v386 = vunpack.c.l.b16 %v258
      %v387 = vunpack.c.l.b16 %v259
      %v388 = vunpack.c.l.b16 %v260
      %v389 = vunpack.c.l.b16 %v261
      %v390 = vunpack.c.l.b16 %v262
      %v391 = vunpack.c.l.b16 %v263
      %v392 = vunpack.c.l.b16 %v264
      %v393 = vunpack.c.l.b16 %v265
      %v394 = vunpack.c.l.b16 %v266
      %v395 = vpack.c.b16 %v380, %v379
      %v396 = vpack.c.b16 %v382, %v381
      %v397 = vpack.c.b16 %v384, %v383
      %v398 = vpack.c.b16 %v386, %v385
      %v399 = vpack.c.b16 %v388, %v387
      %v400 = vpack.c.b16 %v390, %v389
      %v401 = vpack.c.b16 %v392, %v391
      %v402 = vpack.c.b16 %v394, %v393
      %411 = vmatprep.subr.bf16.mxu0 0
      %412 = vmatpush1.bf16.msra.mxu0 %v395
      %413 = vmatprep.subr.bf16.mxu0 0
      %414 = vmatpush1.bf16.msra.mxu0 %v396
      %415 = vmatprep.subr.bf16.mxu0 0
      %416 = vmatpush1.bf16.msra.mxu0 %v397
      %417 = vmatprep.subr.bf16.mxu0 0
      %418 = vmatpush1.bf16.msra.mxu0 %v398
      %419 = vmatprep.subr.bf16.mxu0 0
      %420 = vmatpush1.bf16.msra.mxu0 %v399
      %421 = vmatprep.subr.bf16.mxu0 0
      %422 = vmatpush1.bf16.msra.mxu0 %v400
      %423 = vmatprep.subr.bf16.mxu0 0
      %424 = vmatpush1.bf16.msra.mxu0 %v401
      %425 = vmatprep.subr.bf16.mxu0 0
      %426 = vmatpush1.bf16.msra.mxu0 %v402
      %427 = vmatprep.subr.bf16.mxu0 0
      %428 = vmatpush1.bf16.msra.mxu0 0
      %429 = vmatprep.subr.bf16.mxu0 0
      %430 = vmatpush1.bf16.msra.mxu0 0
      %431 = vmatprep.subr.bf16.mxu0 0
      %432 = vmatpush1.bf16.msra.mxu0 0
      %433 = vmatprep.subr.bf16.mxu0 0
      %434 = vmatpush1.bf16.msra.mxu0 0
      %435 = vmatprep.subr.bf16.mxu0 0
      %436 = vmatpush1.bf16.msra.mxu0 0
      %437 = vmatprep.subr.bf16.mxu0 0
      %438 = vmatpush1.bf16.msra.mxu0 0
      %439 = vmatprep.subr.bf16.mxu0 0
      %440 = vmatpush1.bf16.msra.mxu0 0
      %441 = vmatprep.subr.bf16.mxu0 0
      %442 = vmatpush1.bf16.msra.mxu0 0
      %443 = vmatprep.mubr.bf16.mxu0 0
      %444 = vmatmul.mubr.bf16.gmra.mrb[0].mxu0 %v331
      %v445 = vpop.f32.mrb[0].mxu0
      %v446 = vadd.f32 0.0, %v445
      %v447 = vpop.f32.mrb[0].mxu0
      %v448 = vpop.f32.mrb[0].mxu0
      %v449 = vadd.f32 0.0, %v448
      %v450 = vpop.f32.mrb[0].mxu0
      %451 = vmatprep.mubr.bf16.mxu0 0
      %452 = vmatmul.mubr.bf16.gmra.mrb[0].mxu0 %v332
      %v453 = vpop.f32.mrb[0].mxu0
      %v454 = vadd.f32 0.0, %v453
      %v455 = vpop.f32.mrb[0].mxu0
      %v456 = vpop.f32.mrb[0].mxu0
      %v457 = vadd.f32 0.0, %v456
      %v458 = vpop.f32.mrb[0].mxu0
      %459 = vmatprep.mubr.bf16.mxu0 0
      %460 = vmatmul.mubr.bf16.gmra.mrb[0].mxu0 %v333
      %v461 = vpop.f32.mrb[0].mxu0
      %v462 = vadd.f32 0.0, %v461
      %v463 = vpop.f32.mrb[0].mxu0
      %v464 = vpop.f32.mrb[0].mxu0
      %v465 = vadd.f32 0.0, %v464
      %v466 = vpop.f32.mrb[0].mxu0
      %467 = vmatprep.mubr.bf16.mxu0 0
      %468 = vmatmul.mubr.bf16.gmra.mrb[0].mxu0 %v334
      %v469 = vpop.f32.mrb[0].mxu0
      %v470 = vadd.f32 0.0, %v469
      %v471 = vpop.f32.mrb[0].mxu0
      %v472 = vpop.f32.mrb[0].mxu0
      %v473 = vadd.f32 0.0, %v472
      %v474 = vpop.f32.mrb[0].mxu0
      %475 = vmatprep.mubr.bf16.mxu0 0
      %476 = vmatmul.mubr.bf16.gmra.mrb[0].mxu0 %v335
      %v477 = vpop.f32.mrb[0].mxu0
      %v478 = vadd.f32 0.0, %v477
      %v479 = vpop.f32.mrb[0].mxu0
      %v480 = vpop.f32.mrb[0].mxu0
      %v481 = vadd.f32 0.0, %v480
      %v482 = vpop.f32.mrb[0].mxu0
      %483 = vmatprep.mubr.bf16.mxu0 0
      %484 = vmatmul.mubr.bf16.gmra.mrb[0].mxu0 %v336
      %v485 = vpop.f32.mrb[0].mxu0
      %v486 = vadd.f32 0.0, %v485
      %v487 = vpop.f32.mrb[0].mxu0
      %v488 = vpop.f32.mrb[0].mxu0
      %v489 = vadd.f32 0.0, %v488
      %v490 = vpop.f32.mrb[0].mxu0
      %491 = vmatprep.mubr.bf16.mxu0 0
      %492 = vmatmul.mubr.bf16.gmra.mrb[0].mxu0 %v337
      %v493 = vpop.f32.mrb[0].mxu0
      %v494 = vadd.f32 0.0, %v493
      %v495 = vpop.f32.mrb[0].mxu0
      %v496 = vpop.f32.mrb[0].mxu0
      %v497 = vadd.f32 0.0, %v496
      %v498 = vpop.f32.mrb[0].mxu0
      %499 = vmatprep.mubr.bf16.mxu0 0
      %500 = vmatmul.mubr.bf16.gmra.mrb[0].mxu0 %v338
      %v501 = vpop.f32.mrb[0].mxu0
      %v502 = vadd.f32 0.0, %v501
      %v503 = vpop.f32.mrb[0].mxu0
      %v504 = vpop.f32.mrb[0].mxu0
      %v505 = vadd.f32 0.0, %v504
      %v506 = vpop.f32.mrb[0].mxu0
      %507 = vmatprep.mubr.bf16.mxu0 0
      %508 = vmatmul.mubr.bf16.gmra.mrb[0].mxu0 %v339
      %v509 = vpop.f32.mrb[0].mxu0
      %v510 = vadd.f32 0.0, %v509
      %v511 = vpop.f32.mrb[0].mxu0
      %v512 = vpop.f32.mrb[0].mxu0
      %v513 = vadd.f32 0.0, %v512
      %v514 = vpop.f32.mrb[0].mxu0
      %515 = vmatprep.mubr.bf16.mxu0 0
      %516 = vmatmul.mubr.bf16.gmra.mrb[0].mxu0 %v340
      %v517 = vpop.f32.mrb[0].mxu0
      %v518 = vadd.f32 0.0, %v517
      %v519 = vpop.f32.mrb[0].mxu0
      %v520 = vpop.f32.mrb[0].mxu0
      %v521 = vadd.f32 0.0, %v520
      %v522 = vpop.f32.mrb[0].mxu0
      %523 = vmatprep.mubr.bf16.mxu0 0
      %524 = vmatmul.mubr.bf16.gmra.mrb[0].mxu0 %v341
      %v525 = vpop.f32.mrb[0].mxu0
      %v526 = vadd.f32 0.0, %v525
      %v527 = vpop.f32.mrb[0].mxu0
      %v528 = vpop.f32.mrb[0].mxu0
      %v529 = vadd.f32 0.0, %v528
      %v530 = vpop.f32.mrb[0].mxu0
      %531 = vmatprep.mubr.bf16.mxu0 0
      %532 = vmatmul.mubr.bf16.gmra.mrb[0].mxu0 %v342
      %v533 = vpop.f32.mrb[0].mxu0
      %v534 = vadd.f32 0.0, %v533
      %v535 = vpop.f32.mrb[0].mxu0
      %v536 = vpop.f32.mrb[0].mxu0
      %v537 = vadd.f32 0.0, %v536
      %v538 = vpop.f32.mrb[0].mxu0
      %539 = vmatprep.mubr.bf16.mxu0 0
      %540 = vmatmul.mubr.bf16.gmra.mrb[0].mxu0 %v343
      %v541 = vpop.f32.mrb[0].mxu0
      %v542 = vadd.f32 0.0, %v541
      %v543 = vpop.f32.mrb[0].mxu0
      %v544 = vpop.f32.mrb[0].mxu0
      %v545 = vadd.f32 0.0, %v544
      %v546 = vpop.f32.mrb[0].mxu0
      %547 = vmatprep.mubr.bf16.mxu0 0
      %548 = vmatmul.mubr.bf16.gmra.mrb[0].mxu0 %v344
      %v549 = vpop.f32.mrb[0].mxu0
      %v550 = vadd.f32 0.0, %v549
      %v551 = vpop.f32.mrb[0].mxu0
      %v552 = vpop.f32.mrb[0].mxu0
      %v553 = vadd.f32 0.0, %v552
      %v554 = vpop.f32.mrb[0].mxu0
      %555 = vmatprep.mubr.bf16.mxu0 0
      %556 = vmatmul.mubr.bf16.gmra.mrb[0].mxu0 %v345
      %v557 = vpop.f32.mrb[0].mxu0
      %v558 = vadd.f32 0.0, %v557
      %v559 = vpop.f32.mrb[0].mxu0
      %v560 = vpop.f32.mrb[0].mxu0
      %v561 = vadd.f32 0.0, %v560
      %v562 = vpop.f32.mrb[0].mxu0
      %563 = vmatprep.mubr.bf16.mxu0 0
      %564 = vmatmul.mubr.bf16.gmra.mrb[0].mxu0 %v346
      %v565 = vpop.f32.mrb[0].mxu0
      %v566 = vadd.f32 0.0, %v565
      %v567 = vpop.f32.mrb[0].mxu0
      %v568 = vpop.f32.mrb[0].mxu0
      %v569 = vadd.f32 0.0, %v568
      %v570 = vpop.f32.mrb[0].mxu0
      %571 = vdwg.mxu0
      %572 = vst [vmem:[%s210] sm:$0xff] %v446
      %573 = vst [vmem:[%s210 + $0x8] sm:$0xff] %v449
      %574 = vst [vmem:[%s210 + $0x10] sm:$0xff] %v454
      %575 = vst [vmem:[%s210 + $0x18] sm:$0xff] %v457
      %576 = vst [vmem:[%s210 + $0x20] sm:$0xff] %v462
      %577 = vst [vmem:[%s210 + $0x28] sm:$0xff] %v465
      %578 = vst [vmem:[%s210 + $0x30] sm:$0xff] %v470
      %579 = vst [vmem:[%s210 + $0x38] sm:$0xff] %v473
      %580 = vst [vmem:[%s210 + $0x40] sm:$0xff] %v478
      %581 = vst [vmem:[%s210 + $0x48] sm:$0xff] %v481
      %582 = vst [vmem:[%s210 + $0x50] sm:$0xff] %v486
      %583 = vst [vmem:[%s210 + $0x58] sm:$0xff] %v489
      %584 = vst [vmem:[%s210 + $0x60] sm:$0xff] %v494
      %585 = vst [vmem:[%s210 + $0x68] sm:$0xff] %v497
      %586 = vst [vmem:[%s210 + $0x70] sm:$0xff] %v502
      %587 = vst [vmem:[%s210 + $0x78] sm:$0xff] %v505
      %588 = vst [vmem:[%s210 + $0x80] sm:$0xff] %v510
      %589 = vst [vmem:[%s210 + $0x88] sm:$0xff] %v513
      %590 = vst [vmem:[%s210 + $0x90] sm:$0xff] %v518
      %591 = vst [vmem:[%s210 + $0x98] sm:$0xff] %v521
      %592 = vst [vmem:[%s210 + $0xa0] sm:$0xff] %v526
      %593 = vst [vmem:[%s210 + $0xa8] sm:$0xff] %v529
      %594 = vst [vmem:[%s210 + $0xb0] sm:$0xff] %v534
      %595 = vst [vmem:[%s210 + $0xb8] sm:$0xff] %v537
      %596 = vst [vmem:[%s210 + $0xc0] sm:$0xff] %v542
      %597 = vst [vmem:[%s210 + $0xc8] sm:$0xff] %v545
      %598 = vst [vmem:[%s210 + $0xd0] sm:$0xff] %v550
      %599 = vst [vmem:[%s210 + $0xd8] sm:$0xff] %v553
      %600 = vst [vmem:[%s210 + $0xe0] sm:$0xff] %v558
      %601 = vst [vmem:[%s210 + $0xe8] sm:$0xff] %v561
      %602 = vst [vmem:[%s210 + $0xf0] sm:$0xff] %v566
      %603 = vst [vmem:[%s210 + $0xf8] sm:$0xff] %v569
      %v604 = vadd.f32 %v446, %v449
      %v605 = vadd.f32 %v604, %v454
      %v606 = vadd.f32 %v605, %v457
      %v607 = vadd.f32 %v606, %v462
      %v608 = vadd.f32 %v607, %v465
      %v609 = vadd.f32 %v608, %v470
      %v610 = vadd.f32 %v609, %v473
      %v611 = vadd.f32 %v610, %v478
      %v612 = vadd.f32 %v611, %v481
      %v613 = vadd.f32 %v612, %v486
      %v614 = vadd.f32 %v613, %v489
      %v615 = vadd.f32 %v614, %v494
      %v616 = vadd.f32 %v615, %v497
      %v617 = vadd.f32 %v616, %v502
      %v618 = vadd.f32 %v617, %v505
      %v619 = vadd.f32 %v618, %v510
      %v620 = vadd.f32 %v619, %v513
      %v621 = vadd.f32 %v620, %v518
      %v622 = vadd.f32 %v621, %v521
      %v623 = vadd.f32 %v622, %v526
      %v624 = vadd.f32 %v623, %v529
      %v625 = vadd.f32 %v624, %v534
      %v626 = vadd.f32 %v625, %v537
      %v627 = vadd.f32 %v626, %v542
      %v628 = vadd.f32 %v627, %v545
      %v629 = vadd.f32 %v628, %v550
      %v630 = vadd.f32 %v629, %v553
      %v631 = vadd.f32 %v630, %v558
      %v632 = vadd.f32 %v631, %v561
      %v633 = vadd.f32 %v632, %v566
      %v634 = vadd.f32 %v633, %v569
      %v635 = vrot.slane %v634, 4
      %v636 = vadd.f32 %v634, %v635
      %v637 = vrot.slane %v636, 2
      %v638 = vadd.f32 %v636, %v637
      %v639 = vrot.slane %v638, 1
      %v640 = vadd.f32 %v638, %v639
      %641 = vst [vmem:[%s214] sm:$0x1] %v640
      %v642 = vmul.f32 %v446, %v446
      %v643 = vmul.f32 %v449, %v449
      %v644 = vmul.f32 %v454, %v454
      %v645 = vmul.f32 %v457, %v457
      %v646 = vmul.f32 %v462, %v462
      %v647 = vmul.f32 %v465, %v465
      %v648 = vmul.f32 %v470, %v470
      %v649 = vmul.f32 %v473, %v473
      %v650 = vmul.f32 %v478, %v478
      %v651 = vmul.f32 %v481, %v481
      %v652 = vmul.f32 %v486, %v486
      %v653 = vmul.f32 %v489, %v489
      %v654 = vmul.f32 %v494, %v494
      %v655 = vmul.f32 %v497, %v497
      %v656 = vmul.f32 %v502, %v502
      %v657 = vmul.f32 %v505, %v505
      %v658 = vmul.f32 %v510, %v510
      %v659 = vmul.f32 %v513, %v513
      %v660 = vmul.f32 %v518, %v518
      %v661 = vmul.f32 %v521, %v521
      %v662 = vmul.f32 %v526, %v526
      %v663 = vmul.f32 %v529, %v529
      %v664 = vmul.f32 %v534, %v534
      %v665 = vmul.f32 %v537, %v537
      %v666 = vmul.f32 %v542, %v542
      %v667 = vmul.f32 %v545, %v545
      %v668 = vmul.f32 %v550, %v550
      %v669 = vmul.f32 %v553, %v553
      %v670 = vmul.f32 %v558, %v558
      %v671 = vmul.f32 %v561, %v561
      %v672 = vmul.f32 %v566, %v566
      %v673 = vmul.f32 %v569, %v569
      %v674 = vadd.f32 %v642, %v643
      %v675 = vadd.f32 %v674, %v644
      %v676 = vadd.f32 %v675, %v645
      %v677 = vadd.f32 %v676, %v646
      %v678 = vadd.f32 %v677, %v647
      %v679 = vadd.f32 %v678, %v648
      %v680 = vadd.f32 %v679, %v649
      %v681 = vadd.f32 %v680, %v650
      %v682 = vadd.f32 %v681, %v651
      %v683 = vadd.f32 %v682, %v652
      %v684 = vadd.f32 %v683, %v653
      %v685 = vadd.f32 %v684, %v654
      %v686 = vadd.f32 %v685, %v655
      %v687 = vadd.f32 %v686, %v656
      %v688 = vadd.f32 %v687, %v657
      %v689 = vadd.f32 %v688, %v658
      %v690 = vadd.f32 %v689, %v659
      %v691 = vadd.f32 %v690, %v660
      %v692 = vadd.f32 %v691, %v661
      %v693 = vadd.f32 %v692, %v662
      %v694 = vadd.f32 %v693, %v663
      %v695 = vadd.f32 %v694, %v664
      %v696 = vadd.f32 %v695, %v665
      %v697 = vadd.f32 %v696, %v666
      %v698 = vadd.f32 %v697, %v667
      %v699 = vadd.f32 %v698, %v668
      %v700 = vadd.f32 %v699, %v669
      %v701 = vadd.f32 %v700, %v670
      %v702 = vadd.f32 %v701, %v671
      %v703 = vadd.f32 %v702, %v672
      %v704 = vadd.f32 %v703, %v673
      %v705 = vrot.slane %v704, 4
      %v706 = vadd.f32 %v704, %v705
      %v707 = vrot.slane %v706, 2
      %v708 = vadd.f32 %v706, %v707
      %v709 = vrot.slane %v708, 1
      %v710 = vadd.f32 %v708, %v709
      %711 = vst [vmem:[%s217] sm:$0x1] %v710
      %s712 = smul.u32 32, %s16
      %p713 = scmp.lt.s32.totalorder %s712, 63
      %s714 = scalar_select %p713, %s712, 63
      %s715 = smul.addr %s714, 8
      %s716 = scalar_lea.vmem %s2, %s715
      %p717 = scmp.lt.s32.totalorder %s16, 1
      %s718 = scalar_select %p717, %s16, 1
      %s719 = scalar_lea.vmem %s3, %s718
      %p720 = scmp.lt.s32.totalorder %s16, 1
      %s721 = scalar_select %p720, %s16, 1
      %s722 = scalar_lea.vmem %s4, %s721
      // Predicated region
      $region29: #{bottleneck_block.4} parent=27 // pred_check
        %p723 = pneg %p81
      $region30: #{bottleneck_block.4} parent=27 // pred_check_branch
        %725 = sbr.rel (%p723) target = $region32
      $region31: #{bottleneck_block.4} parent=27 // pred_region
        %s726 = smul.u32 32, %s16
      $region32: #{bottleneck_block.4} parent=27 // pred_fallthru
        _
      // Predicated region
      $region33: #{bottleneck_block.4} parent=27 // pred_check
        %p727 = pneg %p107
      $region34: #{bottleneck_block.4} parent=27 // pred_check_branch
        %729 = sbr.rel (%p727) target = $region36
      $region35: #{bottleneck_block.4} parent=27 // pred_region
        _
      $region36: #{bottleneck_block.4} parent=27 // pred_fallthru
        _
      // Predicated region
      $region37: #{bottleneck_block.4} parent=27 // pred_check
        %p730 = pneg %p133
      $region38: #{bottleneck_block.4} parent=27 // pred_check_branch
        %732 = sbr.rel (%p730) target = $region40
      $region39: #{bottleneck_block.4} parent=27 // pred_region
        _
      $region40: #{bottleneck_block.4} parent=27 // pred_fallthru
        _
    $region28: #{bottleneck_block.4} parent=5 // pred_fallthru
      _
    %p733 = scmp.le.s32.totalorder 2, %s11
    // Predicated region
    $region41: #{bottleneck_block.4} parent=5 // pred_check
      %p734 = pneg %p733
    $region42: #{bottleneck_block.4} parent=5 // pred_check_branch
      %736 = sbr.rel (%p734) target = $region44
    $region43: #{bottleneck_block.4} parent=5 // pred_region
      %s737 = ssub.s32 %s11, 2
      // Predicated region
      $region45: #{bottleneck_block.4} parent=43 // pred_check
        %p738 = pneg %p87
      $region46: #{bottleneck_block.4} parent=43 // pred_check_branch
        %740 = sbr.rel (%p738) target = $region48
      $region47: #{bottleneck_block.4} parent=43 // pred_region
        %s741 = smul.u32 32, %s17
        %p742 = scmp.lt.s32.totalorder %s741, 63
        %s743 = scalar_select %p742, %s741, 63
        %s744 = smul.addr %s743, 8
        %s745 = scalar_lea.vmem %s2, %s744
      $region48: #{bottleneck_block.4} parent=43 // pred_fallthru
        _
      // Predicated region
      $region49: #{bottleneck_block.4} parent=43 // pred_check
        %p746 = pneg %p113
      $region50: #{bottleneck_block.4} parent=43 // pred_check_branch
        %748 = sbr.rel (%p746) target = $region52
      $region51: #{bottleneck_block.4} parent=43 // pred_region
        %p749 = scmp.lt.s32.totalorder %s17, 1
        %s750 = scalar_select %p749, %s17, 1
        %s751 = scalar_lea.vmem %s3, %s750
      $region52: #{bottleneck_block.4} parent=43 // pred_fallthru
        _
      // Predicated region
      $region53: #{bottleneck_block.4} parent=43 // pred_check
        %p752 = pneg %p139
      $region54: #{bottleneck_block.4} parent=43 // pred_check_branch
        %754 = sbr.rel (%p752) target = $region56
      $region55: #{bottleneck_block.4} parent=43 // pred_region
        %p755 = scmp.lt.s32.totalorder %s17, 1
        %s756 = scalar_select %p755, %s17, 1
        %s757 = scalar_lea.vmem %s4, %s756
      $region56: #{bottleneck_block.4} parent=43 // pred_fallthru
        _
    $region44: #{bottleneck_block.4} parent=5 // pred_fallthru
      _
  $region6: #{bottleneck_block.4} parent=0 // loop_footer
    %s15 = sadd.s32 1, %s11
  $region7: #{bottleneck_block.4} parent=0 // loop_footer_branch
    %10 = sbr.rel target = $region3
  $region8: #{bottleneck_block.4} parent=0 // loop_exit
    _

// kernel: bottleneck_block.6
$region0: #{bottleneck_block.6}
  #allocation0 [shape = 'u32[]', space=smem, size = 0x4, offset = 0x4, fixed_abs, tag = 'smem constant byte address 0x4 - core index']
  #allocation1 [shape = 'u32[144,128]{1,0:T(1,128)}', space=vmem, size = 0x12000, scoped, tag = 'internal scratch']
  %s0 = inlined_call_operand.vmem [shape: f32[512,128], index: 0, kind: input, shape index: {}]
  %s1 = inlined_call_operand.vmem [shape: f32[1,128], index: 1, kind: input, shape index: {}]
  %s2 = inlined_call_operand.vmem [shape: f32[1,128], index: 2, kind: input, shape index: {}]
  %s3 = inlined_call_operand.vmem [shape: bf16[128,128], index: 3, kind: input, shape index: {}]
  %s4 = inlined_call_operand.vmem [shape: f32[512,128], index: 4, kind: output, shape index: {0}]
  %s5 = inlined_call_operand.vmem [shape: f32[2,1,128], index: 5, kind: output, shape index: {1}]
  %s6 = inlined_call_operand.vmem [shape: f32[2,1,128], index: 6, kind: output, shape index: {2}]
  %7 = xla_tuple %s4, %s5, %s6
  %s8 = sld [smem:[#allocation0]]
  $region65: #{bottleneck_block.6} parent=0
    _
  %s10 = ssub.s32 1, %s8
  %s11 = scalar_select 0, %s10, %s8
  loop: start=0, step=1, limit=4
  $region2: #{bottleneck_block.6} parent=0 // loop_pre_header
    _
  $region3: #{bottleneck_block.6} parent=0 // loop_header
    %s13 = sphi 0, %s17
    %p14 = scmp.ge.s32.totalorder %s13, 4
    %s23 = sphi 0, %s25
    %s26 = sphi 0, %s23
    %s27 = sphi 0, %s26
    %s43 = sphi 0, %s27
    %s47 = sphi 0, %s47
    %s49 = sphi 0, %s47
    %s50 = sphi 0, %s49
    %s64 = sphi 0, %s50
    %s68 = sphi 0, %s68
    %s70 = sphi 0, %s68
    %s71 = sphi 0, %s70
    %s85 = sphi 0, %s71
    %s89 = sphi 0, %s89
    %s91 = sphi 0, %s89
    %s92 = sphi 0, %s91
    %s106 = sphi 0, %s92
    %s112 = sphi 0, %s114
    %s115 = sphi 0, %s112
    %s116 = sphi 0, %s115
    %s132 = sphi 0, %s116
    %s138 = sphi 0, %s140
    %s141 = sphi 0, %s138
    %s142 = sphi 0, %s141
    %s158 = sphi 0, %s142
    %s164 = sphi 0, %s166
    %s167 = sphi 0, %s164
    %s168 = sphi 0, %s167
    %s184 = sphi 0, %s168
  $region4: #{bottleneck_block.6} parent=0 // loop_header_branch
    %16 = sbr.rel (%p14) target = $region8
  $region5: #{bottleneck_block.6} parent=0 // loop_body
    %s18 = ssub.s32 %s13, 1
    %s19 = ssub.s32 %s13, 2
    %s20 = sadd.s32 %s13, 1
    %s21 = ssub.s32 %s13, %s20
    %p22 = scmp.eq.s32.totalorder %s21, 0
    %s24 = sadd.s32 %s23, 1
    %s25 = scalar_select %p22, %s23, %s24
    %p28 = pneg %p22
    %p29 = scmp.eq.s32.totalorder %s13, 1
    %p30 = por %p28, %p29
    %p31 = scmp.ne.s32.totalorder %s23, %s26
    %p32 = scmp.eq.s32.totalorder %s13, 0
    %p33 = por %p31, %p32
    %p34 = scmp.ne.s32.totalorder %s23, %s26
    %p35 = scmp.eq.s32.totalorder %s18, 1
    %p36 = por %p34, %p35
    %p37 = scmp.ne.s32.totalorder %s26, %s27
    %p38 = scmp.eq.s32.totalorder %s18, 0
    %p39 = por %p37, %p38
    %p40 = scmp.ne.s32.totalorder %s26, %s27
    %p41 = scmp.eq.s32.totalorder %s19, 1
    %p42 = por %p40, %p41
    %p44 = scmp.ne.s32.totalorder %s27, %s43
    %p45 = scmp.eq.s32.totalorder %s19, 0
    %p46 = por %p44, %p45
    %s48 = sadd.s32 %s47, 1
    %p51 = scmp.eq.s32.totalorder %s13, 1
    %p52 = scmp.ne.s32.totalorder %s47, %s49
    %p53 = scmp.eq.s32.totalorder %s13, 0
    %p54 = por %p52, %p53
    %p55 = scmp.ne.s32.totalorder %s47, %s49
    %p56 = scmp.eq.s32.totalorder %s18, 1
    %p57 = por %p55, %p56
    %p58 = scmp.ne.s32.totalorder %s49, %s50
    %p59 = scmp.eq.s32.totalorder %s18, 0
    %p60 = por %p58, %p59
    %p61 = scmp.ne.s32.totalorder %s49, %s50
    %p62 = scmp.eq.s32.totalorder %s19, 1
    %p63 = por %p61, %p62
    %p65 = scmp.ne.s32.totalorder %s50, %s64
    %p66 = scmp.eq.s32.totalorder %s19, 0
    %p67 = por %p65, %p66
    %s69 = sadd.s32 %s68, 1
    %p72 = scmp.eq.s32.totalorder %s13, 1
    %p73 = scmp.ne.s32.totalorder %s68, %s70
    %p74 = scmp.eq.s32.totalorder %s13, 0
    %p75 = por %p73, %p74
    %p76 = scmp.ne.s32.totalorder %s68, %s70
    %p77 = scmp.eq.s32.totalorder %s18, 1
    %p78 = por %p76, %p77
    %p79 = scmp.ne.s32.totalorder %s70, %s71
    %p80 = scmp.eq.s32.totalorder %s18, 0
    %p81 = por %p79, %p80
    %p82 = scmp.ne.s32.totalorder %s70, %s71
    %p83 = scmp.eq.s32.totalorder %s19, 1
    %p84 = por %p82, %p83
    %p86 = scmp.ne.s32.totalorder %s71, %s85
    %p87 = scmp.eq.s32.totalorder %s19, 0
    %p88 = por %p86, %p87
    %s90 = sadd.s32 %s89, 1
    %p93 = scmp.eq.s32.totalorder %s13, 1
    %p94 = scmp.ne.s32.totalorder %s89, %s91
    %p95 = scmp.eq.s32.totalorder %s13, 0
    %p96 = por %p94, %p95
    %p97 = scmp.ne.s32.totalorder %s89, %s91
    %p98 = scmp.eq.s32.totalorder %s18, 1
    %p99 = por %p97, %p98
    %p100 = scmp.ne.s32.totalorder %s91, %s92
    %p101 = scmp.eq.s32.totalorder %s18, 0
    %p102 = por %p100, %p101
    %p103 = scmp.ne.s32.totalorder %s91, %s92
    %p104 = scmp.eq.s32.totalorder %s19, 1
    %p105 = por %p103, %p104
    %p107 = scmp.ne.s32.totalorder %s92, %s106
    %p108 = scmp.eq.s32.totalorder %s19, 0
    %p109 = por %p107, %p108
    %s110 = ssub.s32 %s13, %s20
    %p111 = scmp.eq.s32.totalorder %s110, 0
    %s113 = sadd.s32 %s112, 1
    %s114 = scalar_select %p111, %s112, %s113
    %p117 = pneg %p111
    %p118 = scmp.eq.s32.totalorder %s13, 1
    %p119 = por %p117, %p118
    %p120 = scmp.ne.s32.totalorder %s112, %s115
    %p121 = scmp.eq.s32.totalorder %s13, 0
    %p122 = por %p120, %p121
    %p123 = scmp.ne.s32.totalorder %s112, %s115
    %p124 = scmp.eq.s32.totalorder %s18, 1
    %p125 = por %p123, %p124
    %p126 = scmp.ne.s32.totalorder %s115, %s116
    %p127 = scmp.eq.s32.totalorder %s18, 0
    %p128 = por %p126, %p127
    %p129 = scmp.ne.s32.totalorder %s115, %s116
    %p130 = scmp.eq.s32.totalorder %s19, 1
    %p131 = por %p129, %p130
    %p133 = scmp.ne.s32.totalorder %s116, %s132
    %p134 = scmp.eq.s32.totalorder %s19, 0
    %p135 = por %p133, %p134
    %s136 = ssub.s32 %s13, %s20
    %p137 = scmp.eq.s32.totalorder %s136, 0
    %s139 = sadd.s32 %s138, 1
    %s140 = scalar_select %p137, %s138, %s139
    %p143 = pneg %p137
    %p144 = scmp.eq.s32.totalorder %s13, 1
    %p145 = por %p143, %p144
    %p146 = scmp.ne.s32.totalorder %s138, %s141
    %p147 = scmp.eq.s32.totalorder %s13, 0
    %p148 = por %p146, %p147
    %p149 = scmp.ne.s32.totalorder %s138, %s141
    %p150 = scmp.eq.s32.totalorder %s18, 1
    %p151 = por %p149, %p150
    %p152 = scmp.ne.s32.totalorder %s141, %s142
    %p153 = scmp.eq.s32.totalorder %s18, 0
    %p154 = por %p152, %p153
    %p155 = scmp.ne.s32.totalorder %s141, %s142
    %p156 = scmp.eq.s32.totalorder %s19, 1
    %p157 = por %p155, %p156
    %p159 = scmp.ne.s32.totalorder %s142, %s158
    %p160 = scmp.eq.s32.totalorder %s19, 0
    %p161 = por %p159, %p160
    %s162 = ssub.s32 %s13, %s20
    %p163 = scmp.eq.s32.totalorder %s162, 0
    %s165 = sadd.s32 %s164, 1
    %s166 = scalar_select %p163, %s164, %s165
    %p169 = pneg %p163
    %p170 = scmp.eq.s32.totalorder %s13, 1
    %p171 = por %p169, %p170
    %p172 = scmp.ne.s32.totalorder %s164, %s167
    %p173 = scmp.eq.s32.totalorder %s13, 0
    %p174 = por %p172, %p173
    %p175 = scmp.ne.s32.totalorder %s164, %s167
    %p176 = scmp.eq.s32.totalorder %s18, 1
    %p177 = por %p175, %p176
    %p178 = scmp.ne.s32.totalorder %s167, %s168
    %p179 = scmp.eq.s32.totalorder %s18, 0
    %p180 = por %p178, %p179
    %p181 = scmp.ne.s32.totalorder %s167, %s168
    %p182 = scmp.eq.s32.totalorder %s19, 1
    %p183 = por %p181, %p182
    %p185 = scmp.ne.s32.totalorder %s168, %s184
    %p186 = scmp.eq.s32.totalorder %s19, 0
    %p187 = por %p185, %p186
    %p188 = scmp.le.s32.totalorder 1, %s13
    %p189 = scmp.lt.s32.totalorder %s13, 3
    %p190 = pnand %p188, %p189
    %p191 = pneg %p190
    // Predicated region
    $region9: #{bottleneck_block.6} parent=5 // pred_check
      _
    $region10: #{bottleneck_block.6} parent=5 // pred_check_branch
      %193 = sbr.rel (%p190) target = $region12
    $region11: #{bottleneck_block.6} parent=5 // pred_region
      %s194 = ssub.s32 %s13, 1
      // Predicated region
      $region13: #{bottleneck_block.6} parent=11 // pred_check
        %p195 = pneg %p60
      $region14: #{bottleneck_block.6} parent=11 // pred_check_branch
        %197 = sbr.rel (%p195) target = $region16
      $region15: #{bottleneck_block.6} parent=11 // pred_region
        _
      $region16: #{bottleneck_block.6} parent=11 // pred_fallthru
        _
      // Predicated region
      $region17: #{bottleneck_block.6} parent=11 // pred_check
        %p198 = pneg %p81
      $region18: #{bottleneck_block.6} parent=11 // pred_check_branch
        %200 = sbr.rel (%p198) target = $region20
      $region19: #{bottleneck_block.6} parent=11 // pred_region
        _
      $region20: #{bottleneck_block.6} parent=11 // pred_fallthru
        _
      // Predicated region
      $region21: #{bottleneck_block.6} parent=11 // pred_check
        %p201 = pneg %p102
      $region22: #{bottleneck_block.6} parent=11 // pred_check_branch
        %203 = sbr.rel (%p201) target = $region24
      $region23: #{bottleneck_block.6} parent=11 // pred_region
        _
      $region24: #{bottleneck_block.6} parent=11 // pred_fallthru
        _
    $region12: #{bottleneck_block.6} parent=5 // pred_fallthru
      _
    %p204 = scmp.lt.s32.totalorder %s13, 2
    // Predicated region
    $region25: #{bottleneck_block.6} parent=5 // pred_check
      %p205 = pneg %p204
    $region26: #{bottleneck_block.6} parent=5 // pred_check_branch
      %207 = sbr.rel (%p205) target = $region28
    $region27: #{bottleneck_block.6} parent=5 // pred_region
      // Predicated region
      $region29: #{bottleneck_block.6} parent=27 // pred_check
        %p208 = pneg %p33
      $region30: #{bottleneck_block.6} parent=27 // pred_check_branch
        %210 = sbr.rel (%p208) target = $region32
      $region31: #{bottleneck_block.6} parent=27 // pred_region
        %s211 = smul.u32 32, %s13
        %p212 = scmp.lt.s32.totalorder %s211, 63
        %s213 = scalar_select %p212, %s211, 63
        %s214 = smul.addr %s213, 8
        %s215 = scalar_lea.vmem %s0, %s214
        %s216 = smul.u32 32, %s13
      $region32: #{bottleneck_block.6} parent=27 // pred_fallthru
        _
    $region28: #{bottleneck_block.6} parent=5 // pred_fallthru
      _
    %p217 = scmp.le.s32.totalorder 1, %s13
    %p218 = scmp.lt.s32.totalorder %s13, 3
    %p219 = pnand %p217, %p218
    %p220 = pneg %p219
    // Predicated region
    $region33: #{bottleneck_block.6} parent=5 // pred_check
      _
    $region34: #{bottleneck_block.6} parent=5 // pred_check_branch
      %222 = sbr.rel (%p219) target = $region36
    $region35: #{bottleneck_block.6} parent=5 // pred_region
      %s223 = ssub.s32 %s13, 1
      %s224 = smul.u32 32, %s18
      %p225 = scmp.lt.s32.totalorder %s224, 63
      %s226 = scalar_select %p225, %s224, 63
      %s227 = smul.addr %s226, 8
      %s228 = scalar_lea.vmem %s0, %s227
      %p229 = pneg %p39
      %p230 = pneg %p36
      %p231 = pneg %p60
      %p232 = pneg %p57
      %p233 = pneg %p81
      %p234 = pneg %p78
      %p235 = pneg %p102
      %p236 = pneg %p99
      %p237 = pneg %p128
      %p238 = pneg %p125
      %s239 = smul.u32 32, %s18
      %p240 = scmp.lt.s32.totalorder %s239, 63
      %s241 = scalar_select %p240, %s239, 63
      %s242 = smul.addr %s241, 8
      %s243 = scalar_lea.vmem %s4, %s242
      %p244 = pneg %p154
      %p245 = pneg %p151
      %p246 = scmp.lt.s32.totalorder %s18, 1
      %s247 = scalar_select %p246, %s18, 1
      %s248 = scalar_lea.vmem %s5, %s247
      %p249 = pneg %p180
      %p250 = pneg %p177
      %p251 = scmp.lt.s32.totalorder %s18, 1
      %s252 = scalar_select %p251, %s18, 1
      %s253 = scalar_lea.vmem %s6, %s252
      %s254 = smul.u32 32, %s18
      %p255 = scmp.lt.s32.totalorder %s254, 63
      %s256 = scalar_select %p255, %s254, 63
      %s257 = smul.addr %s256, 8
      %s258 = scalar_lea.vmem %s0, %s257
      %s259 = smul.u32 32, %s18
      %s260 = smul.u32 32, %s18
      %p261 = scmp.lt.s32.totalorder %s260, 63
      %s262 = scalar_select %p261, %s260, 63
      %s263 = smul.addr %s262, 8
      %s264 = scalar_lea.vmem %s4, %s263
      %s265 = smul.u32 32, %s18
      %p266 = scmp.lt.s32.totalorder %s18, 1
      %s267 = scalar_select %p266, %s18, 1
      %s268 = scalar_lea.vmem %s5, %s267
      %p269 = scmp.lt.s32.totalorder %s18, 1
      %s270 = scalar_select %p269, %s18, 1
      %s271 = scalar_lea.vmem %s6, %s270
      %v273 = vld [vmem:[%s258] sm:$0xff]
      %v274 = vld [vmem:[%s258 + $0x8] sm:$0xff]
      %v275 = vld [vmem:[%s258 + $0x10] sm:$0xff]
      %v276 = vld [vmem:[%s258 + $0x18] sm:$0xff]
      %v277 = vld [vmem:[%s258 + $0x20] sm:$0xff]
      %v278 = vld [vmem:[%s258 + $0x28] sm:$0xff]
      %v279 = vld [vmem:[%s258 + $0x30] sm:$0xff]
      %v280 = vld [vmem:[%s258 + $0x38] sm:$0xff]
      %v281 = vld [vmem:[%s258 + $0x40] sm:$0xff]
      %v282 = vld [vmem:[%s258 + $0x48] sm:$0xff]
      %v283 = vld [vmem:[%s258 + $0x50] sm:$0xff]
      %v284 = vld [vmem:[%s258 + $0x58] sm:$0xff]
      %v285 = vld [vmem:[%s258 + $0x60] sm:$0xff]
      %v286 = vld [vmem:[%s258 + $0x68] sm:$0xff]
      %v287 = vld [vmem:[%s258 + $0x70] sm:$0xff]
      %v288 = vld [vmem:[%s258 + $0x78] sm:$0xff]
      %v289 = vld [vmem:[%s258 + $0x80] sm:$0xff]
      %v290 = vld [vmem:[%s258 + $0x88] sm:$0xff]
      %v291 = vld [vmem:[%s258 + $0x90] sm:$0xff]
      %v292 = vld [vmem:[%s258 + $0x98] sm:$0xff]
      %v293 = vld [vmem:[%s258 + $0xa0] sm:$0xff]
      %v294 = vld [vmem:[%s258 + $0xa8] sm:$0xff]
      %v295 = vld [vmem:[%s258 + $0xb0] sm:$0xff]
      %v296 = vld [vmem:[%s258 + $0xb8] sm:$0xff]
      %v297 = vld [vmem:[%s258 + $0xc0] sm:$0xff]
      %v298 = vld [vmem:[%s258 + $0xc8] sm:$0xff]
      %v299 = vld [vmem:[%s258 + $0xd0] sm:$0xff]
      %v300 = vld [vmem:[%s258 + $0xd8] sm:$0xff]
      %v301 = vld [vmem:[%s258 + $0xe0] sm:$0xff]
      %v302 = vld [vmem:[%s258 + $0xe8] sm:$0xff]
      %v303 = vld [vmem:[%s258 + $0xf0] sm:$0xff]
      %v304 = vld [vmem:[%s258 + $0xf8] sm:$0xff]
      %v305 = vld [vmem:[%s1] sm:$0x1]
      %v307 = vlaneseq
      %v308 = vshrl.u32 %v307, 7
      %v309 = vsub.s32 0, %v308
      %v310 = vrot.slane %v305, %v309
      %v312 = vmul.f32 %v273, %v310
      %v313 = vmul.f32 %v274, %v310
      %v314 = vmul.f32 %v275, %v310
      %v315 = vmul.f32 %v276, %v310
      %v316 = vmul.f32 %v277, %v310
      %v317 = vmul.f32 %v278, %v310
      %v318 = vmul.f32 %v279, %v310
      %v319 = vmul.f32 %v280, %v310
      %v320 = vmul.f32 %v281, %v310
      %v321 = vmul.f32 %v282, %v310
      %v322 = vmul.f32 %v283, %v310
      %v323 = vmul.f32 %v284, %v310
      %v324 = vmul.f32 %v285, %v310
      %v325 = vmul.f32 %v286, %v310
      %v326 = vmul.f32 %v287, %v310
      %v327 = vmul.f32 %v288, %v310
      %v328 = vmul.f32 %v289, %v310
      %v329 = vmul.f32 %v290, %v310
      %v330 = vmul.f32 %v291, %v310
      %v331 = vmul.f32 %v292, %v310
      %v332 = vmul.f32 %v293, %v310
      %v333 = vmul.f32 %v294, %v310
      %v334 = vmul.f32 %v295, %v310
      %v335 = vmul.f32 %v296, %v310
      %v336 = vmul.f32 %v297, %v310
      %v337 = vmul.f32 %v298, %v310
      %v338 = vmul.f32 %v299, %v310
      %v339 = vmul.f32 %v300, %v310
      %v340 = vmul.f32 %v301, %v310
      %v341 = vmul.f32 %v302, %v310
      %v342 = vmul.f32 %v303, %v310
      %v343 = vmul.f32 %v304, %v310
      %v344 = vld [vmem:[%s2] sm:$0x1]
      %v346 = vlaneseq
      %v347 = vshrl.u32 %v346, 7
      %v348 = vsub.s32 0, %v347
      %v349 = vrot.slane %v344, %v348
      %v351 = vadd.f32 %v312, %v349
      %v352 = vadd.f32 %v313, %v349
      %v353 = vadd.f32 %v314, %v349
      %v354 = vadd.f32 %v315, %v349
      %v355 = vadd.f32 %v316, %v349
      %v356 = vadd.f32 %v317, %v349
      %v357 = vadd.f32 %v318, %v349
      %v358 = vadd.f32 %v319, %v349
      %v359 = vadd.f32 %v320, %v349
      %v360 = vadd.f32 %v321, %v349
      %v361 = vadd.f32 %v322, %v349
      %v362 = vadd.f32 %v323, %v349
      %v363 = vadd.f32 %v324, %v349
      %v364 = vadd.f32 %v325, %v349
      %v365 = vadd.f32 %v326, %v349
      %v366 = vadd.f32 %v327, %v349
      %v367 = vadd.f32 %v328, %v349
      %v368 = vadd.f32 %v329, %v349
      %v369 = vadd.f32 %v330, %v349
      %v370 = vadd.f32 %v331, %v349
      %v371 = vadd.f32 %v332, %v349
      %v372 = vadd.f32 %v333, %v349
      %v373 = vadd.f32 %v334, %v349
      %v374 = vadd.f32 %v335, %v349
      %v375 = vadd.f32 %v336, %v349
      %v376 = vadd.f32 %v337, %v349
      %v377 = vadd.f32 %v338, %v349
      %v378 = vadd.f32 %v339, %v349
      %v379 = vadd.f32 %v340, %v349
      %v380 = vadd.f32 %v341, %v349
      %v381 = vadd.f32 %v342, %v349
      %v382 = vadd.f32 %v343, %v349
      %v383 = vmax.f32 %v351, 0.0
      %v384 = vmax.f32 %v352, 0.0
      %v385 = vmax.f32 %v353, 0.0
      %v386 = vmax.f32 %v354, 0.0
      %v387 = vmax.f32 %v355, 0.0
      %v388 = vmax.f32 %v356, 0.0
      %v389 = vmax.f32 %v357, 0.0
      %v390 = vmax.f32 %v358, 0.0
      %v391 = vmax.f32 %v359, 0.0
      %v392 = vmax.f32 %v360, 0.0
      %v393 = vmax.f32 %v361, 0.0
      %v394 = vmax.f32 %v362, 0.0
      %v395 = vmax.f32 %v363, 0.0
      %v396 = vmax.f32 %v364, 0.0
      %v397 = vmax.f32 %v365, 0.0
      %v398 = vmax.f32 %v366, 0.0
      %v399 = vmax.f32 %v367, 0.0
      %v400 = vmax.f32 %v368, 0.0
      %v401 = vmax.f32 %v369, 0.0
      %v402 = vmax.f32 %v370, 0.0
      %v403 = vmax.f32 %v371, 0.0
      %v404 = vmax.f32 %v372, 0.0
      %v405 = vmax.f32 %v373, 0.0
      %v406 = vmax.f32 %v374, 0.0
      %v407 = vmax.f32 %v375, 0.0
      %v408 = vmax.f32 %v376, 0.0
      %v409 = vmax.f32 %v377, 0.0
      %v410 = vmax.f32 %v378, 0.0
      %v411 = vmax.f32 %v379, 0.0
      %v412 = vmax.f32 %v380, 0.0
      %v413 = vmax.f32 %v381, 0.0
      %v414 = vmax.f32 %v382, 0.0
      %v415 = vpack.c.bf16 %v384, %v383
      %v416 = vpack.c.bf16 %v386, %v385
      %v417 = vpack.c.bf16 %v388, %v387
      %v418 = vpack.c.bf16 %v390, %v389
      %v419 = vpack.c.bf16 %v392, %v391
      %v420 = vpack.c.bf16 %v394, %v393
      %v421 = vpack.c.bf16 %v396, %v395
      %v422 = vpack.c.bf16 %v398, %v397
      %v423 = vpack.c.bf16 %v400, %v399
      %v424 = vpack.c.bf16 %v402, %v401
      %v425 = vpack.c.bf16 %v404, %v403
      %v426 = vpack.c.bf16 %v406, %v405
      %v427 = vpack.c.bf16 %v408, %v407
      %v428 = vpack.c.bf16 %v410, %v409
      %v429 = vpack.c.bf16 %v412, %v411
      %v430 = vpack.c.bf16 %v414, %v413
      %v431 = vld [vmem:[%s3] sm:$0xf]
      %v432 = vld [vmem:[%s3 + $0x4] sm:$0xf]
      %v433 = vld [vmem:[%s3 + $0x8] sm:$0xf]
      %v434 = vld [vmem:[%s3 + $0xc] sm:$0xf]
      %v435 = vld [vmem:[%s3 + $0x10] sm:$0xf]
      %v436 = vld [vmem:[%s3 + $0x14] sm:$0xf]
      %v437 = vld [vmem:[%s3 + $0x18] sm:$0xf]
      %v438 = vld [vmem:[%s3 + $0x1c] sm:$0xf]
      %v439 = vld [vmem:[%s3 + $0x20] sm:$0xf]
      %v440 = vld [vmem:[%s3 + $0x24] sm:$0xf]
      %v441 = vld [vmem:[%s3 + $0x28] sm:$0xf]
      %v442 = vld [vmem:[%s3 + $0x2c] sm:$0xf]
      %v443 = vld [vmem:[%s3 + $0x30] sm:$0xf]
      %v444 = vld [vmem:[%s3 + $0x34] sm:$0xf]
      %v445 = vld [vmem:[%s3 + $0x38] sm:$0xf]
      %v446 = vld [vmem:[%s3 + $0x3c] sm:$0xf]
      %v463 = vunpack.c.l.b16 %v431
      %v464 = vunpack.c.l.b16 %v432
      %v465 = vunpack.c.l.b16 %v433
      %v466 = vunpack.c.l.b16 %v434
      %v467 = vunpack.c.l.b16 %v435
      %v468 = vunpack.c.l.b16 %v436
      %v469 = vunpack.c.l.b16 %v437
      %v470 = vunpack.c.l.b16 %v438
      %v471 = vunpack.c.l.b16 %v439
      %v472 = vunpack.c.l.b16 %v440
      %v473 = vunpack.c.l.b16 %v441
      %v474 = vunpack.c.l.b16 %v442
      %v475 = vunpack.c.l.b16 %v443
      %v476 = vunpack.c.l.b16 %v444
      %v477 = vunpack.c.l.b16 %v445
      %v478 = vunpack.c.l.b16 %v446
      %v479 = vpack.c.b16 %v464, %v463
      %v480 = vpack.c.b16 %v466, %v465
      %v481 = vpack.c.b16 %v468, %v467
      %v482 = vpack.c.b16 %v470, %v469
      %v483 = vpack.c.b16 %v472, %v471
      %v484 = vpack.c.b16 %v474, %v473
      %v485 = vpack.c.b16 %v476, %v475
      %v486 = vpack.c.b16 %v478, %v477
      %495 = vmatprep.subr.bf16.mxu0 0
      %496 = vmatpush1.bf16.msra.mxu0 %v479
      %497 = vmatprep.subr.bf16.mxu0 0
      %498 = vmatpush1.bf16.msra.mxu0 %v480
      %499 = vmatprep.subr.bf16.mxu0 0
      %500 = vmatpush1.bf16.msra.mxu0 %v481
      %501 = vmatprep.subr.bf16.mxu0 0
      %502 = vmatpush1.bf16.msra.mxu0 %v482
      %503 = vmatprep.subr.bf16.mxu0 0
      %504 = vmatpush1.bf16.msra.mxu0 %v483
      %505 = vmatprep.subr.bf16.mxu0 0
      %506 = vmatpush1.bf16.msra.mxu0 %v484
      %507 = vmatprep.subr.bf16.mxu0 0
      %508 = vmatpush1.bf16.msra.mxu0 %v485
      %509 = vmatprep.subr.bf16.mxu0 0
      %510 = vmatpush1.bf16.msra.mxu0 %v486
      %511 = vmatprep.subr.bf16.mxu0 0
      %512 = vmatpush1.bf16.msra.mxu0 0
      %513 = vmatprep.subr.bf16.mxu0 0
      %514 = vmatpush1.bf16.msra.mxu0 0
      %515 = vmatprep.subr.bf16.mxu0 0
      %516 = vmatpush1.bf16.msra.mxu0 0
      %517 = vmatprep.subr.bf16.mxu0 0
      %518 = vmatpush1.bf16.msra.mxu0 0
      %519 = vmatprep.subr.bf16.mxu0 0
      %520 = vmatpush1.bf16.msra.mxu0 0
      %521 = vmatprep.subr.bf16.mxu0 0
      %522 = vmatpush1.bf16.msra.mxu0 0
      %523 = vmatprep.subr.bf16.mxu0 0
      %524 = vmatpush1.bf16.msra.mxu0 0
      %525 = vmatprep.subr.bf16.mxu0 0
      %526 = vmatpush1.bf16.msra.mxu0 0
      %527 = vmatprep.mubr.bf16.mxu0 0
      %528 = vmatmul.mubr.bf16.gmra.mrb[0].mxu0 %v415
      %v529 = vpop.f32.mrb[0].mxu0
      %v530 = vadd.f32 0.0, %v529
      %v531 = vpop.f32.mrb[0].mxu0
      %v532 = vpop.f32.mrb[0].mxu0
      %v533 = vadd.f32 0.0, %v532
      %v534 = vpop.f32.mrb[0].mxu0
      %535 = vmatprep.mubr.bf16.mxu0 0
      %536 = vmatmul.mubr.bf16.gmra.mrb[0].mxu0 %v416
      %v537 = vpop.f32.mrb[0].mxu0
      %v538 = vadd.f32 0.0, %v537
      %v539 = vpop.f32.mrb[0].mxu0
      %v540 = vpop.f32.mrb[0].mxu0
      %v541 = vadd.f32 0.0, %v540
      %v542 = vpop.f32.mrb[0].mxu0
      %543 = vmatprep.mubr.bf16.mxu0 0
      %544 = vmatmul.mubr.bf16.gmra.mrb[0].mxu0 %v417
      %v545 = vpop.f32.mrb[0].mxu0
      %v546 = vadd.f32 0.0, %v545
      %v547 = vpop.f32.mrb[0].mxu0
      %v548 = vpop.f32.mrb[0].mxu0
      %v549 = vadd.f32 0.0, %v548
      %v550 = vpop.f32.mrb[0].mxu0
      %551 = vmatprep.mubr.bf16.mxu0 0
      %552 = vmatmul.mubr.bf16.gmra.mrb[0].mxu0 %v418
      %v553 = vpop.f32.mrb[0].mxu0
      %v554 = vadd.f32 0.0, %v553
      %v555 = vpop.f32.mrb[0].mxu0
      %v556 = vpop.f32.mrb[0].mxu0
      %v557 = vadd.f32 0.0, %v556
      %v558 = vpop.f32.mrb[0].mxu0
      %559 = vmatprep.mubr.bf16.mxu0 0
      %560 = vmatmul.mubr.bf16.gmra.mrb[0].mxu0 %v419
      %v561 = vpop.f32.mrb[0].mxu0
      %v562 = vadd.f32 0.0, %v561
      %v563 = vpop.f32.mrb[0].mxu0
      %v564 = vpop.f32.mrb[0].mxu0
      %v565 = vadd.f32 0.0, %v564
      %v566 = vpop.f32.mrb[0].mxu0
      %567 = vmatprep.mubr.bf16.mxu0 0
      %568 = vmatmul.mubr.bf16.gmra.mrb[0].mxu0 %v420
      %v569 = vpop.f32.mrb[0].mxu0
      %v570 = vadd.f32 0.0, %v569
      %v571 = vpop.f32.mrb[0].mxu0
      %v572 = vpop.f32.mrb[0].mxu0
      %v573 = vadd.f32 0.0, %v572
      %v574 = vpop.f32.mrb[0].mxu0
      %575 = vmatprep.mubr.bf16.mxu0 0
      %576 = vmatmul.mubr.bf16.gmra.mrb[0].mxu0 %v421
      %v577 = vpop.f32.mrb[0].mxu0
      %v578 = vadd.f32 0.0, %v577
      %v579 = vpop.f32.mrb[0].mxu0
      %v580 = vpop.f32.mrb[0].mxu0
      %v581 = vadd.f32 0.0, %v580
      %v582 = vpop.f32.mrb[0].mxu0
      %583 = vmatprep.mubr.bf16.mxu0 0
      %584 = vmatmul.mubr.bf16.gmra.mrb[0].mxu0 %v422
      %v585 = vpop.f32.mrb[0].mxu0
      %v586 = vadd.f32 0.0, %v585
      %v587 = vpop.f32.mrb[0].mxu0
      %v588 = vpop.f32.mrb[0].mxu0
      %v589 = vadd.f32 0.0, %v588
      %v590 = vpop.f32.mrb[0].mxu0
      %591 = vmatprep.mubr.bf16.mxu0 0
      %592 = vmatmul.mubr.bf16.gmra.mrb[0].mxu0 %v423
      %v593 = vpop.f32.mrb[0].mxu0
      %v594 = vadd.f32 0.0, %v593
      %v595 = vpop.f32.mrb[0].mxu0
      %v596 = vpop.f32.mrb[0].mxu0
      %v597 = vadd.f32 0.0, %v596
      %v598 = vpop.f32.mrb[0].mxu0
      %599 = vmatprep.mubr.bf16.mxu0 0
      %600 = vmatmul.mubr.bf16.gmra.mrb[0].mxu0 %v424
      %v601 = vpop.f32.mrb[0].mxu0
      %v602 = vadd.f32 0.0, %v601
      %v603 = vpop.f32.mrb[0].mxu0
      %v604 = vpop.f32.mrb[0].mxu0
      %v605 = vadd.f32 0.0, %v604
      %v606 = vpop.f32.mrb[0].mxu0
      %607 = vmatprep.mubr.bf16.mxu0 0
      %608 = vmatmul.mubr.bf16.gmra.mrb[0].mxu0 %v425
      %v609 = vpop.f32.mrb[0].mxu0
      %v610 = vadd.f32 0.0, %v609
      %v611 = vpop.f32.mrb[0].mxu0
      %v612 = vpop.f32.mrb[0].mxu0
      %v613 = vadd.f32 0.0, %v612
      %v614 = vpop.f32.mrb[0].mxu0
      %615 = vmatprep.mubr.bf16.mxu0 0
      %616 = vmatmul.mubr.bf16.gmra.mrb[0].mxu0 %v426
      %v617 = vpop.f32.mrb[0].mxu0
      %v618 = vadd.f32 0.0, %v617
      %v619 = vpop.f32.mrb[0].mxu0
      %v620 = vpop.f32.mrb[0].mxu0
      %v621 = vadd.f32 0.0, %v620
      %v622 = vpop.f32.mrb[0].mxu0
      %623 = vmatprep.mubr.bf16.mxu0 0
      %624 = vmatmul.mubr.bf16.gmra.mrb[0].mxu0 %v427
      %v625 = vpop.f32.mrb[0].mxu0
      %v626 = vadd.f32 0.0, %v625
      %v627 = vpop.f32.mrb[0].mxu0
      %v628 = vpop.f32.mrb[0].mxu0
      %v629 = vadd.f32 0.0, %v628
      %v630 = vpop.f32.mrb[0].mxu0
      %631 = vmatprep.mubr.bf16.mxu0 0
      %632 = vmatmul.mubr.bf16.gmra.mrb[0].mxu0 %v428
      %v633 = vpop.f32.mrb[0].mxu0
      %v634 = vadd.f32 0.0, %v633
      %v635 = vpop.f32.mrb[0].mxu0
      %v636 = vpop.f32.mrb[0].mxu0
      %v637 = vadd.f32 0.0, %v636
      %v638 = vpop.f32.mrb[0].mxu0
      %639 = vmatprep.mubr.bf16.mxu0 0
      %640 = vmatmul.mubr.bf16.gmra.mrb[0].mxu0 %v429
      %v641 = vpop.f32.mrb[0].mxu0
      %v642 = vadd.f32 0.0, %v641
      %v643 = vpop.f32.mrb[0].mxu0
      %v644 = vpop.f32.mrb[0].mxu0
      %v645 = vadd.f32 0.0, %v644
      %v646 = vpop.f32.mrb[0].mxu0
      %647 = vmatprep.mubr.bf16.mxu0 0
      %648 = vmatmul.mubr.bf16.gmra.mrb[0].mxu0 %v430
      %v649 = vpop.f32.mrb[0].mxu0
      %v650 = vadd.f32 0.0, %v649
      %v651 = vpop.f32.mrb[0].mxu0
      %v652 = vpop.f32.mrb[0].mxu0
      %v653 = vadd.f32 0.0, %v652
      %v654 = vpop.f32.mrb[0].mxu0
      %655 = vdwg.mxu0
      %656 = vst [vmem:[%s264] sm:$0xff] %v530
      %657 = vst [vmem:[%s264 + $0x8] sm:$0xff] %v533
      %658 = vst [vmem:[%s264 + $0x10] sm:$0xff] %v538
      %659 = vst [vmem:[%s264 + $0x18] sm:$0xff] %v541
      %660 = vst [vmem:[%s264 + $0x20] sm:$0xff] %v546
      %661 = vst [vmem:[%s264 + $0x28] sm:$0xff] %v549
      %662 = vst [vmem:[%s264 + $0x30] sm:$0xff] %v554
      %663 = vst [vmem:[%s264 + $0x38] sm:$0xff] %v557
      %664 = vst [vmem:[%s264 + $0x40] sm:$0xff] %v562
      %665 = vst [vmem:[%s264 + $0x48] sm:$0xff] %v565
      %666 = vst [vmem:[%s264 + $0x50] sm:$0xff] %v570
      %667 = vst [vmem:[%s264 + $0x58] sm:$0xff] %v573
      %668 = vst [vmem:[%s264 + $0x60] sm:$0xff] %v578
      %669 = vst [vmem:[%s264 + $0x68] sm:$0xff] %v581
      %670 = vst [vmem:[%s264 + $0x70] sm:$0xff] %v586
      %671 = vst [vmem:[%s264 + $0x78] sm:$0xff] %v589
      %672 = vst [vmem:[%s264 + $0x80] sm:$0xff] %v594
      %673 = vst [vmem:[%s264 + $0x88] sm:$0xff] %v597
      %674 = vst [vmem:[%s264 + $0x90] sm:$0xff] %v602
      %675 = vst [vmem:[%s264 + $0x98] sm:$0xff] %v605
      %676 = vst [vmem:[%s264 + $0xa0] sm:$0xff] %v610
      %677 = vst [vmem:[%s264 + $0xa8] sm:$0xff] %v613
      %678 = vst [vmem:[%s264 + $0xb0] sm:$0xff] %v618
      %679 = vst [vmem:[%s264 + $0xb8] sm:$0xff] %v621
      %680 = vst [vmem:[%s264 + $0xc0] sm:$0xff] %v626
      %681 = vst [vmem:[%s264 + $0xc8] sm:$0xff] %v629
      %682 = vst [vmem:[%s264 + $0xd0] sm:$0xff] %v634
      %683 = vst [vmem:[%s264 + $0xd8] sm:$0xff] %v637
      %684 = vst [vmem:[%s264 + $0xe0] sm:$0xff] %v642
      %685 = vst [vmem:[%s264 + $0xe8] sm:$0xff] %v645
      %686 = vst [vmem:[%s264 + $0xf0] sm:$0xff] %v650
      %687 = vst [vmem:[%s264 + $0xf8] sm:$0xff] %v653
      %v688 = vadd.f32 %v530, %v533
      %v689 = vadd.f32 %v688, %v538
      %v690 = vadd.f32 %v689, %v541
      %v691 = vadd.f32 %v690, %v546
      %v692 = vadd.f32 %v691, %v549
      %v693 = vadd.f32 %v692, %v554
      %v694 = vadd.f32 %v693, %v557
      %v695 = vadd.f32 %v694, %v562
      %v696 = vadd.f32 %v695, %v565
      %v697 = vadd.f32 %v696, %v570
      %v698 = vadd.f32 %v697, %v573
      %v699 = vadd.f32 %v698, %v578
      %v700 = vadd.f32 %v699, %v581
      %v701 = vadd.f32 %v700, %v586
      %v702 = vadd.f32 %v701, %v589
      %v703 = vadd.f32 %v702, %v594
      %v704 = vadd.f32 %v703, %v597
      %v705 = vadd.f32 %v704, %v602
      %v706 = vadd.f32 %v705, %v605
      %v707 = vadd.f32 %v706, %v610
      %v708 = vadd.f32 %v707, %v613
      %v709 = vadd.f32 %v708, %v618
      %v710 = vadd.f32 %v709, %v621
      %v711 = vadd.f32 %v710, %v626
      %v712 = vadd.f32 %v711, %v629
      %v713 = vadd.f32 %v712, %v634
      %v714 = vadd.f32 %v713, %v637
      %v715 = vadd.f32 %v714, %v642
      %v716 = vadd.f32 %v715, %v645
      %v717 = vadd.f32 %v716, %v650
      %v718 = vadd.f32 %v717, %v653
      %v719 = vrot.slane %v718, 4
      %v720 = vadd.f32 %v718, %v719
      %v721 = vrot.slane %v720, 2
      %v722 = vadd.f32 %v720, %v721
      %v723 = vrot.slane %v722, 1
      %v724 = vadd.f32 %v722, %v723
      %725 = vst [vmem:[%s268] sm:$0x1] %v724
      %v726 = vmul.f32 %v530, %v530
      %v727 = vmul.f32 %v533, %v533
      %v728 = vmul.f32 %v538, %v538
      %v729 = vmul.f32 %v541, %v541
      %v730 = vmul.f32 %v546, %v546
      %v731 = vmul.f32 %v549, %v549
      %v732 = vmul.f32 %v554, %v554
      %v733 = vmul.f32 %v557, %v557
      %v734 = vmul.f32 %v562, %v562
      %v735 = vmul.f32 %v565, %v565
      %v736 = vmul.f32 %v570, %v570
      %v737 = vmul.f32 %v573, %v573
      %v738 = vmul.f32 %v578, %v578
      %v739 = vmul.f32 %v581, %v581
      %v740 = vmul.f32 %v586, %v586
      %v741 = vmul.f32 %v589, %v589
      %v742 = vmul.f32 %v594, %v594
      %v743 = vmul.f32 %v597, %v597
      %v744 = vmul.f32 %v602, %v602
      %v745 = vmul.f32 %v605, %v605
      %v746 = vmul.f32 %v610, %v610
      %v747 = vmul.f32 %v613, %v613
      %v748 = vmul.f32 %v618, %v618
      %v749 = vmul.f32 %v621, %v621
      %v750 = vmul.f32 %v626, %v626
      %v751 = vmul.f32 %v629, %v629
      %v752 = vmul.f32 %v634, %v634
      %v753 = vmul.f32 %v637, %v637
      %v754 = vmul.f32 %v642, %v642
      %v755 = vmul.f32 %v645, %v645
      %v756 = vmul.f32 %v650, %v650
      %v757 = vmul.f32 %v653, %v653
      %v758 = vadd.f32 %v726, %v727
      %v759 = vadd.f32 %v758, %v728
      %v760 = vadd.f32 %v759, %v729
      %v761 = vadd.f32 %v760, %v730
      %v762 = vadd.f32 %v761, %v731
      %v763 = vadd.f32 %v762, %v732
      %v764 = vadd.f32 %v763, %v733
      %v765 = vadd.f32 %v764, %v734
      %v766 = vadd.f32 %v765, %v735
      %v767 = vadd.f32 %v766, %v736
      %v768 = vadd.f32 %v767, %v737
      %v769 = vadd.f32 %v768, %v738
      %v770 = vadd.f32 %v769, %v739
      %v771 = vadd.f32 %v770, %v740
      %v772 = vadd.f32 %v771, %v741
      %v773 = vadd.f32 %v772, %v742
      %v774 = vadd.f32 %v773, %v743
      %v775 = vadd.f32 %v774, %v744
      %v776 = vadd.f32 %v775, %v745
      %v777 = vadd.f32 %v776, %v746
      %v778 = vadd.f32 %v777, %v747
      %v779 = vadd.f32 %v778, %v748
      %v780 = vadd.f32 %v779, %v749
      %v781 = vadd.f32 %v780, %v750
      %v782 = vadd.f32 %v781, %v751
      %v783 = vadd.f32 %v782, %v752
      %v784 = vadd.f32 %v783, %v753
      %v785 = vadd.f32 %v784, %v754
      %v786 = vadd.f32 %v785, %v755
      %v787 = vadd.f32 %v786, %v756
      %v788 = vadd.f32 %v787, %v757
      %v789 = vrot.slane %v788, 4
      %v790 = vadd.f32 %v788, %v789
      %v791 = vrot.slane %v790, 2
      %v792 = vadd.f32 %v790, %v791
      %v793 = vrot.slane %v792, 1
      %v794 = vadd.f32 %v792, %v793
      %795 = vst [vmem:[%s271] sm:$0x1] %v794
      %s796 = smul.u32 32, %s18
      %p797 = scmp.lt.s32.totalorder %s796, 63
      %s798 = scalar_select %p797, %s796, 63
      %s799 = smul.addr %s798, 8
      %s800 = scalar_lea.vmem %s4, %s799
      %p801 = scmp.lt.s32.totalorder %s18, 1
      %s802 = scalar_select %p801, %s18, 1
      %s803 = scalar_lea.vmem %s5, %s802
      %p804 = scmp.lt.s32.totalorder %s18, 1
      %s805 = scalar_select %p804, %s18, 1
      %s806 = scalar_lea.vmem %s6, %s805
      // Predicated region
      $region37: #{bottleneck_block.6} parent=35 // pred_check
        %p807 = pneg %p125
      $region38: #{bottleneck_block.6} parent=35 // pred_check_branch
        %809 = sbr.rel (%p807) target = $region40
      $region39: #{bottleneck_block.6} parent=35 // pred_region
        %s810 = smul.u32 32, %s18
      $region40: #{bottleneck_block.6} parent=35 // pred_fallthru
        _
      // Predicated region
      $region41: #{bottleneck_block.6} parent=35 // pred_check
        %p811 = pneg %p151
      $region42: #{bottleneck_block.6} parent=35 // pred_check_branch
        %813 = sbr.rel (%p811) target = $region44
      $region43: #{bottleneck_block.6} parent=35 // pred_region
        _
      $region44: #{bottleneck_block.6} parent=35 // pred_fallthru
        _
      // Predicated region
      $region45: #{bottleneck_block.6} parent=35 // pred_check
        %p814 = pneg %p177
      $region46: #{bottleneck_block.6} parent=35 // pred_check_branch
        %816 = sbr.rel (%p814) target = $region48
      $region47: #{bottleneck_block.6} parent=35 // pred_region
        _
      $region48: #{bottleneck_block.6} parent=35 // pred_fallthru
        _
    $region36: #{bottleneck_block.6} parent=5 // pred_fallthru
      _
    %p817 = scmp.le.s32.totalorder 2, %s13
    // Predicated region
    $region49: #{bottleneck_block.6} parent=5 // pred_check
      %p818 = pneg %p817
    $region50: #{bottleneck_block.6} parent=5 // pred_check_branch
      %820 = sbr.rel (%p818) target = $region52
    $region51: #{bottleneck_block.6} parent=5 // pred_region
      %s821 = ssub.s32 %s13, 2
      // Predicated region
      $region53: #{bottleneck_block.6} parent=51 // pred_check
        %p822 = pneg %p131
      $region54: #{bottleneck_block.6} parent=51 // pred_check_branch
        %824 = sbr.rel (%p822) target = $region56
      $region55: #{bottleneck_block.6} parent=51 // pred_region
        %s825 = smul.u32 32, %s19
        %p826 = scmp.lt.s32.totalorder %s825, 63
        %s827 = scalar_select %p826, %s825, 63
        %s828 = smul.addr %s827, 8
        %s829 = scalar_lea.vmem %s4, %s828
      $region56: #{bottleneck_block.6} parent=51 // pred_fallthru
        _
      // Predicated region
      $region57: #{bottleneck_block.6} parent=51 // pred_check
        %p830 = pneg %p157
      $region58: #{bottleneck_block.6} parent=51 // pred_check_branch
        %832 = sbr.rel (%p830) target = $region60
      $region59: #{bottleneck_block.6} parent=51 // pred_region
        %p833 = scmp.lt.s32.totalorder %s19, 1
        %s834 = scalar_select %p833, %s19, 1
        %s835 = scalar_lea.vmem %s5, %s834
      $region60: #{bottleneck_block.6} parent=51 // pred_fallthru
        _
      // Predicated region
      $region61: #{bottleneck_block.6} parent=51 // pred_check
        %p836 = pneg %p183
      $region62: #{bottleneck_block.6} parent=51 // pred_check_branch
        %838 = sbr.rel (%p836) target = $region64
      $region63: #{bottleneck_block.6} parent=51 // pred_region
        %p839 = scmp.lt.s32.totalorder %s19, 1
        %s840 = scalar_select %p839, %s19, 1
        %s841 = scalar_lea.vmem %s6, %s840
      $region64: #{bottleneck_block.6} parent=51 // pred_fallthru
        _
    $region52: #{bottleneck_block.6} parent=5 // pred_fallthru
      _
  $region6: #{bottleneck_block.6} parent=0 // loop_footer
    %s17 = sadd.s32 1, %s13
  $region7: #{bottleneck_block.6} parent=0 // loop_footer_branch
    %12 = sbr.rel target = $region3
  $region8: #{bottleneck_block.6} parent=0 // loop_exit
    _

// kernel: bottleneck_block.7
$region0: #{bottleneck_block.7}
  #allocation0 [shape = 'u32[]', space=smem, size = 0x4, offset = 0x4, fixed_abs, tag = 'smem constant byte address 0x4 - core index']
  #allocation1 [shape = 'u32[144,128]{1,0:T(1,128)}', space=vmem, size = 0x12000, scoped, tag = 'internal scratch']
  %s0 = inlined_call_operand.vmem [shape: f32[512,128], index: 0, kind: input, shape index: {}]
  %s1 = inlined_call_operand.vmem [shape: f32[1,128], index: 1, kind: input, shape index: {}]
  %s2 = inlined_call_operand.vmem [shape: f32[1,128], index: 2, kind: input, shape index: {}]
  %s3 = inlined_call_operand.vmem [shape: f32[512,128], index: 3, kind: input, shape index: {}]
  %s4 = inlined_call_operand.vmem [shape: f32[512,128], index: 4, kind: output, shape index: {}]
  %s5 = sld [smem:[#allocation0]]
  $region49: #{bottleneck_block.7} parent=0
    _
  %s7 = ssub.s32 1, %s5
  %s8 = scalar_select 0, %s7, %s5
  loop: start=0, step=1, limit=4
  $region2: #{bottleneck_block.7} parent=0 // loop_pre_header
    _
  $region3: #{bottleneck_block.7} parent=0 // loop_header
    %s10 = sphi 0, %s14
    %p11 = scmp.ge.s32.totalorder %s10, 4
    %s20 = sphi 0, %s22
    %s23 = sphi 0, %s20
    %s24 = sphi 0, %s23
    %s40 = sphi 0, %s24
    %s44 = sphi 0, %s44
    %s46 = sphi 0, %s44
    %s47 = sphi 0, %s46
    %s61 = sphi 0, %s47
    %s65 = sphi 0, %s65
    %s67 = sphi 0, %s65
    %s68 = sphi 0, %s67
    %s82 = sphi 0, %s68
    %s88 = sphi 0, %s90
    %s91 = sphi 0, %s88
    %s92 = sphi 0, %s91
    %s108 = sphi 0, %s92
    %s114 = sphi 0, %s116
    %s117 = sphi 0, %s114
    %s118 = sphi 0, %s117
    %s134 = sphi 0, %s118
  $region4: #{bottleneck_block.7} parent=0 // loop_header_branch
    %13 = sbr.rel (%p11) target = $region8
  $region5: #{bottleneck_block.7} parent=0 // loop_body
    %s15 = ssub.s32 %s10, 1
    %s16 = ssub.s32 %s10, 2
    %s17 = sadd.s32 %s10, 1
    %s18 = ssub.s32 %s10, %s17
    %p19 = scmp.eq.s32.totalorder %s18, 0
    %s21 = sadd.s32 %s20, 1
    %s22 = scalar_select %p19, %s20, %s21
    %p25 = pneg %p19
    %p26 = scmp.eq.s32.totalorder %s10, 1
    %p27 = por %p25, %p26
    %p28 = scmp.ne.s32.totalorder %s20, %s23
    %p29 = scmp.eq.s32.totalorder %s10, 0
    %p30 = por %p28, %p29
    %p31 = scmp.ne.s32.totalorder %s20, %s23
    %p32 = scmp.eq.s32.totalorder %s15, 1
    %p33 = por %p31, %p32
    %p34 = scmp.ne.s32.totalorder %s23, %s24
    %p35 = scmp.eq.s32.totalorder %s15, 0
    %p36 = por %p34, %p35
    %p37 = scmp.ne.s32.totalorder %s23, %s24
    %p38 = scmp.eq.s32.totalorder %s16, 1
    %p39 = por %p37, %p38
    %p41 = scmp.ne.s32.totalorder %s24, %s40
    %p42 = scmp.eq.s32.totalorder %s16, 0
    %p43 = por %p41, %p42
    %s45 = sadd.s32 %s44, 1
    %p48 = scmp.eq.s32.totalorder %s10, 1
    %p49 = scmp.ne.s32.totalorder %s44, %s46
    %p50 = scmp.eq.s32.totalorder %s10, 0
    %p51 = por %p49, %p50
    %p52 = scmp.ne.s32.totalorder %s44, %s46
    %p53 = scmp.eq.s32.totalorder %s15, 1
    %p54 = por %p52, %p53
    %p55 = scmp.ne.s32.totalorder %s46, %s47
    %p56 = scmp.eq.s32.totalorder %s15, 0
    %p57 = por %p55, %p56
    %p58 = scmp.ne.s32.totalorder %s46, %s47
    %p59 = scmp.eq.s32.totalorder %s16, 1
    %p60 = por %p58, %p59
    %p62 = scmp.ne.s32.totalorder %s47, %s61
    %p63 = scmp.eq.s32.totalorder %s16, 0
    %p64 = por %p62, %p63
    %s66 = sadd.s32 %s65, 1
    %p69 = scmp.eq.s32.totalorder %s10, 1
    %p70 = scmp.ne.s32.totalorder %s65, %s67
    %p71 = scmp.eq.s32.totalorder %s10, 0
    %p72 = por %p70, %p71
    %p73 = scmp.ne.s32.totalorder %s65, %s67
    %p74 = scmp.eq.s32.totalorder %s15, 1
    %p75 = por %p73, %p74
    %p76 = scmp.ne.s32.totalorder %s67, %s68
    %p77 = scmp.eq.s32.totalorder %s15, 0
    %p78 = por %p76, %p77
    %p79 = scmp.ne.s32.totalorder %s67, %s68
    %p80 = scmp.eq.s32.totalorder %s16, 1
    %p81 = por %p79, %p80
    %p83 = scmp.ne.s32.totalorder %s68, %s82
    %p84 = scmp.eq.s32.totalorder %s16, 0
    %p85 = por %p83, %p84
    %s86 = ssub.s32 %s10, %s17
    %p87 = scmp.eq.s32.totalorder %s86, 0
    %s89 = sadd.s32 %s88, 1
    %s90 = scalar_select %p87, %s88, %s89
    %p93 = pneg %p87
    %p94 = scmp.eq.s32.totalorder %s10, 1
    %p95 = por %p93, %p94
    %p96 = scmp.ne.s32.totalorder %s88, %s91
    %p97 = scmp.eq.s32.totalorder %s10, 0
    %p98 = por %p96, %p97
    %p99 = scmp.ne.s32.totalorder %s88, %s91
    %p100 = scmp.eq.s32.totalorder %s15, 1
    %p101 = por %p99, %p100
    %p102 = scmp.ne.s32.totalorder %s91, %s92
    %p103 = scmp.eq.s32.totalorder %s15, 0
    %p104 = por %p102, %p103
    %p105 = scmp.ne.s32.totalorder %s91, %s92
    %p106 = scmp.eq.s32.totalorder %s16, 1
    %p107 = por %p105, %p106
    %p109 = scmp.ne.s32.totalorder %s92, %s108
    %p110 = scmp.eq.s32.totalorder %s16, 0
    %p111 = por %p109, %p110
    %s112 = ssub.s32 %s10, %s17
    %p113 = scmp.eq.s32.totalorder %s112, 0
    %s115 = sadd.s32 %s114, 1
    %s116 = scalar_select %p113, %s114, %s115
    %p119 = pneg %p113
    %p120 = scmp.eq.s32.totalorder %s10, 1
    %p121 = por %p119, %p120
    %p122 = scmp.ne.s32.totalorder %s114, %s117
    %p123 = scmp.eq.s32.totalorder %s10, 0
    %p124 = por %p122, %p123
    %p125 = scmp.ne.s32.totalorder %s114, %s117
    %p126 = scmp.eq.s32.totalorder %s15, 1
    %p127 = por %p125, %p126
    %p128 = scmp.ne.s32.totalorder %s117, %s118
    %p129 = scmp.eq.s32.totalorder %s15, 0
    %p130 = por %p128, %p129
    %p131 = scmp.ne.s32.totalorder %s117, %s118
    %p132 = scmp.eq.s32.totalorder %s16, 1
    %p133 = por %p131, %p132
    %p135 = scmp.ne.s32.totalorder %s118, %s134
    %p136 = scmp.eq.s32.totalorder %s16, 0
    %p137 = por %p135, %p136
    %p138 = scmp.le.s32.totalorder 1, %s10
    %p139 = scmp.lt.s32.totalorder %s10, 3
    %p140 = pnand %p138, %p139
    %p141 = pneg %p140
    // Predicated region
    $region9: #{bottleneck_block.7} parent=5 // pred_check
      _
    $region10: #{bottleneck_block.7} parent=5 // pred_check_branch
      %143 = sbr.rel (%p140) target = $region12
    $region11: #{bottleneck_block.7} parent=5 // pred_region
      %s144 = ssub.s32 %s10, 1
      // Predicated region
      $region13: #{bottleneck_block.7} parent=11 // pred_check
        %p145 = pneg %p57
      $region14: #{bottleneck_block.7} parent=11 // pred_check_branch
        %147 = sbr.rel (%p145) target = $region16
      $region15: #{bottleneck_block.7} parent=11 // pred_region
        _
      $region16: #{bottleneck_block.7} parent=11 // pred_fallthru
        _
      // Predicated region
      $region17: #{bottleneck_block.7} parent=11 // pred_check
        %p148 = pneg %p78
      $region18: #{bottleneck_block.7} parent=11 // pred_check_branch
        %150 = sbr.rel (%p148) target = $region20
      $region19: #{bottleneck_block.7} parent=11 // pred_region
        _
      $region20: #{bottleneck_block.7} parent=11 // pred_fallthru
        _
    $region12: #{bottleneck_block.7} parent=5 // pred_fallthru
      _
    %p151 = scmp.lt.s32.totalorder %s10, 2
    // Predicated region
    $region21: #{bottleneck_block.7} parent=5 // pred_check
      %p152 = pneg %p151
    $region22: #{bottleneck_block.7} parent=5 // pred_check_branch
      %154 = sbr.rel (%p152) target = $region24
    $region23: #{bottleneck_block.7} parent=5 // pred_region
      // Predicated region
      $region25: #{bottleneck_block.7} parent=23 // pred_check
        %p155 = pneg %p30
      $region26: #{bottleneck_block.7} parent=23 // pred_check_branch
        %157 = sbr.rel (%p155) target = $region28
      $region27: #{bottleneck_block.7} parent=23 // pred_region
        %s158 = smul.u32 32, %s10
        %p159 = scmp.lt.s32.totalorder %s158, 63
        %s160 = scalar_select %p159, %s158, 63
        %s161 = smul.addr %s160, 8
        %s162 = scalar_lea.vmem %s0, %s161
        %s163 = smul.u32 32, %s10
      $region28: #{bottleneck_block.7} parent=23 // pred_fallthru
        _
      // Predicated region
      $region29: #{bottleneck_block.7} parent=23 // pred_check
        %p164 = pneg %p98
      $region30: #{bottleneck_block.7} parent=23 // pred_check_branch
        %166 = sbr.rel (%p164) target = $region32
      $region31: #{bottleneck_block.7} parent=23 // pred_region
        %s167 = smul.u32 32, %s10
        %p168 = scmp.lt.s32.totalorder %s167, 63
        %s169 = scalar_select %p168, %s167, 63
        %s170 = smul.addr %s169, 8
        %s171 = scalar_lea.vmem %s3, %s170
        %s172 = smul.u32 32, %s10
      $region32: #{bottleneck_block.7} parent=23 // pred_fallthru
        _
    $region24: #{bottleneck_block.7} parent=5 // pred_fallthru
      _
    %p173 = scmp.le.s32.totalorder 1, %s10
    %p174 = scmp.lt.s32.totalorder %s10, 3
    %p175 = pnand %p173, %p174
    %p176 = pneg %p175
    // Predicated region
    $region33: #{bottleneck_block.7} parent=5 // pred_check
      _
    $region34: #{bottleneck_block.7} parent=5 // pred_check_branch
      %178 = sbr.rel (%p175) target = $region36
    $region35: #{bottleneck_block.7} parent=5 // pred_region
      %s179 = ssub.s32 %s10, 1
      %s180 = smul.u32 32, %s15
      %p181 = scmp.lt.s32.totalorder %s180, 63
      %s182 = scalar_select %p181, %s180, 63
      %s183 = smul.addr %s182, 8
      %s184 = scalar_lea.vmem %s0, %s183
      %p185 = pneg %p36
      %p186 = pneg %p33
      %p187 = pneg %p57
      %p188 = pneg %p54
      %p189 = pneg %p78
      %p190 = pneg %p75
      %s191 = smul.u32 32, %s15
      %p192 = scmp.lt.s32.totalorder %s191, 63
      %s193 = scalar_select %p192, %s191, 63
      %s194 = smul.addr %s193, 8
      %s195 = scalar_lea.vmem %s3, %s194
      %p196 = pneg %p104
      %p197 = pneg %p101
      %p198 = pneg %p130
      %p199 = pneg %p127
      %s200 = smul.u32 32, %s15
      %p201 = scmp.lt.s32.totalorder %s200, 63
      %s202 = scalar_select %p201, %s200, 63
      %s203 = smul.addr %s202, 8
      %s204 = scalar_lea.vmem %s4, %s203
      %s205 = smul.u32 32, %s15
      %p206 = scmp.lt.s32.totalorder %s205, 63
      %s207 = scalar_select %p206, %s205, 63
      %s208 = smul.addr %s207, 8
      %s209 = scalar_lea.vmem %s0, %s208
      %s210 = smul.u32 32, %s15
      %s211 = smul.u32 32, %s15
      %p212 = scmp.lt.s32.totalorder %s211, 63
      %s213 = scalar_select %p212, %s211, 63
      %s214 = smul.addr %s213, 8
      %s215 = scalar_lea.vmem %s3, %s214
      %s216 = smul.u32 32, %s15
      %s217 = smul.u32 32, %s15
      %p218 = scmp.lt.s32.totalorder %s217, 63
      %s219 = scalar_select %p218, %s217, 63
      %s220 = smul.addr %s219, 8
      %s221 = scalar_lea.vmem %s4, %s220
      %s222 = smul.u32 32, %s15
      %v223 = vld [vmem:[%s209] sm:$0xff]
      %v224 = vld [vmem:[%s209 + $0x8] sm:$0xff]
      %v225 = vld [vmem:[%s209 + $0x10] sm:$0xff]
      %v226 = vld [vmem:[%s209 + $0x18] sm:$0xff]
      %v227 = vld [vmem:[%s209 + $0x20] sm:$0xff]
      %v228 = vld [vmem:[%s209 + $0x28] sm:$0xff]
      %v229 = vld [vmem:[%s209 + $0x30] sm:$0xff]
      %v230 = vld [vmem:[%s209 + $0x38] sm:$0xff]
      %v231 = vld [vmem:[%s209 + $0x40] sm:$0xff]
      %v232 = vld [vmem:[%s209 + $0x48] sm:$0xff]
      %v233 = vld [vmem:[%s209 + $0x50] sm:$0xff]
      %v234 = vld [vmem:[%s209 + $0x58] sm:$0xff]
      %v235 = vld [vmem:[%s209 + $0x60] sm:$0xff]
      %v236 = vld [vmem:[%s209 + $0x68] sm:$0xff]
      %v237 = vld [vmem:[%s209 + $0x70] sm:$0xff]
      %v238 = vld [vmem:[%s209 + $0x78] sm:$0xff]
      %v239 = vld [vmem:[%s209 + $0x80] sm:$0xff]
      %v240 = vld [vmem:[%s209 + $0x88] sm:$0xff]
      %v241 = vld [vmem:[%s209 + $0x90] sm:$0xff]
      %v242 = vld [vmem:[%s209 + $0x98] sm:$0xff]
      %v243 = vld [vmem:[%s209 + $0xa0] sm:$0xff]
      %v244 = vld [vmem:[%s209 + $0xa8] sm:$0xff]
      %v245 = vld [vmem:[%s209 + $0xb0] sm:$0xff]
      %v246 = vld [vmem:[%s209 + $0xb8] sm:$0xff]
      %v247 = vld [vmem:[%s209 + $0xc0] sm:$0xff]
      %v248 = vld [vmem:[%s209 + $0xc8] sm:$0xff]
      %v249 = vld [vmem:[%s209 + $0xd0] sm:$0xff]
      %v250 = vld [vmem:[%s209 + $0xd8] sm:$0xff]
      %v251 = vld [vmem:[%s209 + $0xe0] sm:$0xff]
      %v252 = vld [vmem:[%s209 + $0xe8] sm:$0xff]
      %v253 = vld [vmem:[%s209 + $0xf0] sm:$0xff]
      %v254 = vld [vmem:[%s209 + $0xf8] sm:$0xff]
      %v255 = vld [vmem:[%s1] sm:$0x1]
      %v257 = vlaneseq
      %v258 = vshrl.u32 %v257, 7
      %v259 = vsub.s32 0, %v258
      %v260 = vrot.slane %v255, %v259
      %v262 = vmul.f32 %v223, %v260
      %v263 = vmul.f32 %v224, %v260
      %v264 = vmul.f32 %v225, %v260
      %v265 = vmul.f32 %v226, %v260
      %v266 = vmul.f32 %v227, %v260
      %v267 = vmul.f32 %v228, %v260
      %v268 = vmul.f32 %v229, %v260
      %v269 = vmul.f32 %v230, %v260
      %v270 = vmul.f32 %v231, %v260
      %v271 = vmul.f32 %v232, %v260
      %v272 = vmul.f32 %v233, %v260
      %v273 = vmul.f32 %v234, %v260
      %v274 = vmul.f32 %v235, %v260
      %v275 = vmul.f32 %v236, %v260
      %v276 = vmul.f32 %v237, %v260
      %v277 = vmul.f32 %v238, %v260
      %v278 = vmul.f32 %v239, %v260
      %v279 = vmul.f32 %v240, %v260
      %v280 = vmul.f32 %v241, %v260
      %v281 = vmul.f32 %v242, %v260
      %v282 = vmul.f32 %v243, %v260
      %v283 = vmul.f32 %v244, %v260
      %v284 = vmul.f32 %v245, %v260
      %v285 = vmul.f32 %v246, %v260
      %v286 = vmul.f32 %v247, %v260
      %v287 = vmul.f32 %v248, %v260
      %v288 = vmul.f32 %v249, %v260
      %v289 = vmul.f32 %v250, %v260
      %v290 = vmul.f32 %v251, %v260
      %v291 = vmul.f32 %v252, %v260
      %v292 = vmul.f32 %v253, %v260
      %v293 = vmul.f32 %v254, %v260
      %v294 = vld [vmem:[%s2] sm:$0x1]
      %v296 = vlaneseq
      %v297 = vshrl.u32 %v296, 7
      %v298 = vsub.s32 0, %v297
      %v299 = vrot.slane %v294, %v298
      %v301 = vadd.f32 %v262, %v299
      %v302 = vadd.f32 %v263, %v299
      %v303 = vadd.f32 %v264, %v299
      %v304 = vadd.f32 %v265, %v299
      %v305 = vadd.f32 %v266, %v299
      %v306 = vadd.f32 %v267, %v299
      %v307 = vadd.f32 %v268, %v299
      %v308 = vadd.f32 %v269, %v299
      %v309 = vadd.f32 %v270, %v299
      %v310 = vadd.f32 %v271, %v299
      %v311 = vadd.f32 %v272, %v299
      %v312 = vadd.f32 %v273, %v299
      %v313 = vadd.f32 %v274, %v299
      %v314 = vadd.f32 %v275, %v299
      %v315 = vadd.f32 %v276, %v299
      %v316 = vadd.f32 %v277, %v299
      %v317 = vadd.f32 %v278, %v299
      %v318 = vadd.f32 %v279, %v299
      %v319 = vadd.f32 %v280, %v299
      %v320 = vadd.f32 %v281, %v299
      %v321 = vadd.f32 %v282, %v299
      %v322 = vadd.f32 %v283, %v299
      %v323 = vadd.f32 %v284, %v299
      %v324 = vadd.f32 %v285, %v299
      %v325 = vadd.f32 %v286, %v299
      %v326 = vadd.f32 %v287, %v299
      %v327 = vadd.f32 %v288, %v299
      %v328 = vadd.f32 %v289, %v299
      %v329 = vadd.f32 %v290, %v299
      %v330 = vadd.f32 %v291, %v299
      %v331 = vadd.f32 %v292, %v299
      %v332 = vadd.f32 %v293, %v299
      %v333 = vld [vmem:[%s215] sm:$0xff]
      %v334 = vld [vmem:[%s215 + $0x8] sm:$0xff]
      %v335 = vld [vmem:[%s215 + $0x10] sm:$0xff]
      %v336 = vld [vmem:[%s215 + $0x18] sm:$0xff]
      %v337 = vld [vmem:[%s215 + $0x20] sm:$0xff]
      %v338 = vld [vmem:[%s215 + $0x28] sm:$0xff]
      %v339 = vld [vmem:[%s215 + $0x30] sm:$0xff]
      %v340 = vld [vmem:[%s215 + $0x38] sm:$0xff]
      %v341 = vld [vmem:[%s215 + $0x40] sm:$0xff]
      %v342 = vld [vmem:[%s215 + $0x48] sm:$0xff]
      %v343 = vld [vmem:[%s215 + $0x50] sm:$0xff]
      %v344 = vld [vmem:[%s215 + $0x58] sm:$0xff]
      %v345 = vld [vmem:[%s215 + $0x60] sm:$0xff]
      %v346 = vld [vmem:[%s215 + $0x68] sm:$0xff]
      %v347 = vld [vmem:[%s215 + $0x70] sm:$0xff]
      %v348 = vld [vmem:[%s215 + $0x78] sm:$0xff]
      %v349 = vld [vmem:[%s215 + $0x80] sm:$0xff]
      %v350 = vld [vmem:[%s215 + $0x88] sm:$0xff]
      %v351 = vld [vmem:[%s215 + $0x90] sm:$0xff]
      %v352 = vld [vmem:[%s215 + $0x98] sm:$0xff]
      %v353 = vld [vmem:[%s215 + $0xa0] sm:$0xff]
      %v354 = vld [vmem:[%s215 + $0xa8] sm:$0xff]
      %v355 = vld [vmem:[%s215 + $0xb0] sm:$0xff]
      %v356 = vld [vmem:[%s215 + $0xb8] sm:$0xff]
      %v357 = vld [vmem:[%s215 + $0xc0] sm:$0xff]
      %v358 = vld [vmem:[%s215 + $0xc8] sm:$0xff]
      %v359 = vld [vmem:[%s215 + $0xd0] sm:$0xff]
      %v360 = vld [vmem:[%s215 + $0xd8] sm:$0xff]
      %v361 = vld [vmem:[%s215 + $0xe0] sm:$0xff]
      %v362 = vld [vmem:[%s215 + $0xe8] sm:$0xff]
      %v363 = vld [vmem:[%s215 + $0xf0] sm:$0xff]
      %v364 = vld [vmem:[%s215 + $0xf8] sm:$0xff]
      %v365 = vadd.f32 %v301, %v333
      %v366 = vadd.f32 %v302, %v334
      %v367 = vadd.f32 %v303, %v335
      %v368 = vadd.f32 %v304, %v336
      %v369 = vadd.f32 %v305, %v337
      %v370 = vadd.f32 %v306, %v338
      %v371 = vadd.f32 %v307, %v339
      %v372 = vadd.f32 %v308, %v340
      %v373 = vadd.f32 %v309, %v341
      %v374 = vadd.f32 %v310, %v342
      %v375 = vadd.f32 %v311, %v343
      %v376 = vadd.f32 %v312, %v344
      %v377 = vadd.f32 %v313, %v345
      %v378 = vadd.f32 %v314, %v346
      %v379 = vadd.f32 %v315, %v347
      %v380 = vadd.f32 %v316, %v348
      %v381 = vadd.f32 %v317, %v349
      %v382 = vadd.f32 %v318, %v350
      %v383 = vadd.f32 %v319, %v351
      %v384 = vadd.f32 %v320, %v352
      %v385 = vadd.f32 %v321, %v353
      %v386 = vadd.f32 %v322, %v354
      %v387 = vadd.f32 %v323, %v355
      %v388 = vadd.f32 %v324, %v356
      %v389 = vadd.f32 %v325, %v357
      %v390 = vadd.f32 %v326, %v358
      %v391 = vadd.f32 %v327, %v359
      %v392 = vadd.f32 %v328, %v360
      %v393 = vadd.f32 %v329, %v361
      %v394 = vadd.f32 %v330, %v362
      %v395 = vadd.f32 %v331, %v363
      %v396 = vadd.f32 %v332, %v364
      %v397 = vmax.f32 %v365, 0.0
      %v398 = vmax.f32 %v366, 0.0
      %v399 = vmax.f32 %v367, 0.0
      %v400 = vmax.f32 %v368, 0.0
      %v401 = vmax.f32 %v369, 0.0
      %v402 = vmax.f32 %v370, 0.0
      %v403 = vmax.f32 %v371, 0.0
      %v404 = vmax.f32 %v372, 0.0
      %v405 = vmax.f32 %v373, 0.0
      %v406 = vmax.f32 %v374, 0.0
      %v407 = vmax.f32 %v375, 0.0
      %v408 = vmax.f32 %v376, 0.0
      %v409 = vmax.f32 %v377, 0.0
      %v410 = vmax.f32 %v378, 0.0
      %v411 = vmax.f32 %v379, 0.0
      %v412 = vmax.f32 %v380, 0.0
      %v413 = vmax.f32 %v381, 0.0
      %v414 = vmax.f32 %v382, 0.0
      %v415 = vmax.f32 %v383, 0.0
      %v416 = vmax.f32 %v384, 0.0
      %v417 = vmax.f32 %v385, 0.0
      %v418 = vmax.f32 %v386, 0.0
      %v419 = vmax.f32 %v387, 0.0
      %v420 = vmax.f32 %v388, 0.0
      %v421 = vmax.f32 %v389, 0.0
      %v422 = vmax.f32 %v390, 0.0
      %v423 = vmax.f32 %v391, 0.0
      %v424 = vmax.f32 %v392, 0.0
      %v425 = vmax.f32 %v393, 0.0
      %v426 = vmax.f32 %v394, 0.0
      %v427 = vmax.f32 %v395, 0.0
      %v428 = vmax.f32 %v396, 0.0
      %429 = vst [vmem:[%s221] sm:$0xff] %v397
      %430 = vst [vmem:[%s221 + $0x8] sm:$0xff] %v398
      %431 = vst [vmem:[%s221 + $0x10] sm:$0xff] %v399
      %432 = vst [vmem:[%s221 + $0x18] sm:$0xff] %v400
      %433 = vst [vmem:[%s221 + $0x20] sm:$0xff] %v401
      %434 = vst [vmem:[%s221 + $0x28] sm:$0xff] %v402
      %435 = vst [vmem:[%s221 + $0x30] sm:$0xff] %v403
      %436 = vst [vmem:[%s221 + $0x38] sm:$0xff] %v404
      %437 = vst [vmem:[%s221 + $0x40] sm:$0xff] %v405
      %438 = vst [vmem:[%s221 + $0x48] sm:$0xff] %v406
      %439 = vst [vmem:[%s221 + $0x50] sm:$0xff] %v407
      %440 = vst [vmem:[%s221 + $0x58] sm:$0xff] %v408
      %441 = vst [vmem:[%s221 + $0x60] sm:$0xff] %v409
      %442 = vst [vmem:[%s221 + $0x68] sm:$0xff] %v410
      %443 = vst [vmem:[%s221 + $0x70] sm:$0xff] %v411
      %444 = vst [vmem:[%s221 + $0x78] sm:$0xff] %v412
      %445 = vst [vmem:[%s221 + $0x80] sm:$0xff] %v413
      %446 = vst [vmem:[%s221 + $0x88] sm:$0xff] %v414
      %447 = vst [vmem:[%s221 + $0x90] sm:$0xff] %v415
      %448 = vst [vmem:[%s221 + $0x98] sm:$0xff] %v416
      %449 = vst [vmem:[%s221 + $0xa0] sm:$0xff] %v417
      %450 = vst [vmem:[%s221 + $0xa8] sm:$0xff] %v418
      %451 = vst [vmem:[%s221 + $0xb0] sm:$0xff] %v419
      %452 = vst [vmem:[%s221 + $0xb8] sm:$0xff] %v420
      %453 = vst [vmem:[%s221 + $0xc0] sm:$0xff] %v421
      %454 = vst [vmem:[%s221 + $0xc8] sm:$0xff] %v422
      %455 = vst [vmem:[%s221 + $0xd0] sm:$0xff] %v423
      %456 = vst [vmem:[%s221 + $0xd8] sm:$0xff] %v424
      %457 = vst [vmem:[%s221 + $0xe0] sm:$0xff] %v425
      %458 = vst [vmem:[%s221 + $0xe8] sm:$0xff] %v426
      %459 = vst [vmem:[%s221 + $0xf0] sm:$0xff] %v427
      %460 = vst [vmem:[%s221 + $0xf8] sm:$0xff] %v428
      %s461 = smul.u32 32, %s15
      %p462 = scmp.lt.s32.totalorder %s461, 63
      %s463 = scalar_select %p462, %s461, 63
      %s464 = smul.addr %s463, 8
      %s465 = scalar_lea.vmem %s4, %s464
      // Predicated region
      $region37: #{bottleneck_block.7} parent=35 // pred_check
        %p466 = pneg %p127
      $region38: #{bottleneck_block.7} parent=35 // pred_check_branch
        %468 = sbr.rel (%p466) target = $region40
      $region39: #{bottleneck_block.7} parent=35 // pred_region
        %s469 = smul.u32 32, %s15
      $region40: #{bottleneck_block.7} parent=35 // pred_fallthru
        _
    $region36: #{bottleneck_block.7} parent=5 // pred_fallthru
      _
    %p470 = scmp.le.s32.totalorder 2, %s10
    // Predicated region
    $region41: #{bottleneck_block.7} parent=5 // pred_check
      %p471 = pneg %p470
    $region42: #{bottleneck_block.7} parent=5 // pred_check_branch
      %473 = sbr.rel (%p471) target = $region44
    $region43: #{bottleneck_block.7} parent=5 // pred_region
      %s474 = ssub.s32 %s10, 2
      // Predicated region
      $region45: #{bottleneck_block.7} parent=43 // pred_check
        %p475 = pneg %p133
      $region46: #{bottleneck_block.7} parent=43 // pred_check_branch
        %477 = sbr.rel (%p475) target = $region48
      $region47: #{bottleneck_block.7} parent=43 // pred_region
        %s478 = smul.u32 32, %s16
        %p479 = scmp.lt.s32.totalorder %s478, 63
        %s480 = scalar_select %p479, %s478, 63
        %s481 = smul.addr %s480, 8
        %s482 = scalar_lea.vmem %s4, %s481
      $region48: #{bottleneck_block.7} parent=43 // pred_fallthru
        _
    $region44: #{bottleneck_block.7} parent=5 // pred_fallthru
      _
  $region6: #{bottleneck_block.7} parent=0 // loop_footer
    %s14 = sadd.s32 1, %s10
  $region7: #{bottleneck_block.7} parent=0 // loop_footer_branch
    %9 = sbr.rel target = $region3
  $region8: #{bottleneck_block.7} parent=0 // loop_exit
    _

// kernel: bottleneck_block.5
$region0: #{bottleneck_block.5}
  #allocation0 [shape = 'u32[]', space=smem, size = 0x4, offset = 0x4, fixed_abs, tag = 'smem constant byte address 0x4 - core index']
  #allocation1 [shape = 'u32[144,128]{1,0:T(1,128)}', space=vmem, size = 0x12000, scoped, tag = 'internal scratch']
  #allocation2 [shape = 'f32[328,128]{1,0:T(8,128)}', space=vmem, size = 0x29000, scoped, tag = 'scratch operand']
  %s0 = inlined_call_operand.vmem [shape: f32[2,376,128], index: 0, kind: input, shape index: {}]
  %s1 = inlined_call_operand.vmem [shape: bf16[9,128,128], index: 1, kind: input, shape index: {}]
  %s2 = inlined_call_operand.vmem [shape: f32[2,256,128], index: 2, kind: output, shape index: {0}]
  %s3 = inlined_call_operand.vmem [shape: f32[2,1,128], index: 3, kind: output, shape index: {1}]
  %s4 = inlined_call_operand.vmem [shape: f32[2,1,128], index: 4, kind: output, shape index: {2}]
  %5 = xla_tuple %s2, %s3, %s4
  %s6 = sld [smem:[#allocation0]]
  $region57: #{bottleneck_block.5} parent=0
    _
  %s8 = ssub.s32 1, %s6
  %s9 = scalar_select 0, %s8, %s6
  loop: start=0, step=1, limit=4
  $region2: #{bottleneck_block.5} parent=0 // loop_pre_header
    _
  $region3: #{bottleneck_block.5} parent=0 // loop_header
    %s11 = sphi 0, %s15
    %p12 = scmp.ge.s32.totalorder %s11, 4
    %s21 = sphi 0, %s23
    %s24 = sphi 0, %s21
    %s25 = sphi 0, %s24
    %s41 = sphi 0, %s25
    %s45 = sphi 0, %s45
    %s47 = sphi 0, %s45
    %s48 = sphi 0, %s47
    %s62 = sphi 0, %s48
    %s68 = sphi 0, %s70
    %s71 = sphi 0, %s68
    %s72 = sphi 0, %s71
    %s88 = sphi 0, %s72
    %s94 = sphi 0, %s96
    %s97 = sphi 0, %s94
    %s98 = sphi 0, %s97
    %s114 = sphi 0, %s98
    %s120 = sphi 0, %s122
    %s123 = sphi 0, %s120
    %s124 = sphi 0, %s123
    %s140 = sphi 0, %s124
  $region4: #{bottleneck_block.5} parent=0 // loop_header_branch
    %14 = sbr.rel (%p12) target = $region8
  $region5: #{bottleneck_block.5} parent=0 // loop_body
    %s16 = ssub.s32 %s11, 1
    %s17 = ssub.s32 %s11, 2
    %s18 = sadd.s32 %s11, 1
    %s19 = ssub.s32 %s11, %s18
    %p20 = scmp.eq.s32.totalorder %s19, 0
    %s22 = sadd.s32 %s21, 1
    %s23 = scalar_select %p20, %s21, %s22
    %p26 = pneg %p20
    %p27 = scmp.eq.s32.totalorder %s11, 1
    %p28 = por %p26, %p27
    %p29 = scmp.ne.s32.totalorder %s21, %s24
    %p30 = scmp.eq.s32.totalorder %s11, 0
    %p31 = por %p29, %p30
    %p32 = scmp.ne.s32.totalorder %s21, %s24
    %p33 = scmp.eq.s32.totalorder %s16, 1
    %p34 = por %p32, %p33
    %p35 = scmp.ne.s32.totalorder %s24, %s25
    %p36 = scmp.eq.s32.totalorder %s16, 0
    %p37 = por %p35, %p36
    %p38 = scmp.ne.s32.totalorder %s24, %s25
    %p39 = scmp.eq.s32.totalorder %s17, 1
    %p40 = por %p38, %p39
    %p42 = scmp.ne.s32.totalorder %s25, %s41
    %p43 = scmp.eq.s32.totalorder %s17, 0
    %p44 = por %p42, %p43
    %s46 = sadd.s32 %s45, 1
    %p49 = scmp.eq.s32.totalorder %s11, 1
    %p50 = scmp.ne.s32.totalorder %s45, %s47
    %p51 = scmp.eq.s32.totalorder %s11, 0
    %p52 = por %p50, %p51
    %p53 = scmp.ne.s32.totalorder %s45, %s47
    %p54 = scmp.eq.s32.totalorder %s16, 1
    %p55 = por %p53, %p54
    %p56 = scmp.ne.s32.totalorder %s47, %s48
    %p57 = scmp.eq.s32.totalorder %s16, 0
    %p58 = por %p56, %p57
    %p59 = scmp.ne.s32.totalorder %s47, %s48
    %p60 = scmp.eq.s32.totalorder %s17, 1
    %p61 = por %p59, %p60
    %p63 = scmp.ne.s32.totalorder %s48, %s62
    %p64 = scmp.eq.s32.totalorder %s17, 0
    %p65 = por %p63, %p64
    %s66 = ssub.s32 %s11, %s18
    %p67 = scmp.eq.s32.totalorder %s66, 0
    %s69 = sadd.s32 %s68, 1
    %s70 = scalar_select %p67, %s68, %s69
    %p73 = pneg %p67
    %p74 = scmp.eq.s32.totalorder %s11, 1
    %p75 = por %p73, %p74
    %p76 = scmp.ne.s32.totalorder %s68, %s71
    %p77 = scmp.eq.s32.totalorder %s11, 0
    %p78 = por %p76, %p77
    %p79 = scmp.ne.s32.totalorder %s68, %s71
    %p80 = scmp.eq.s32.totalorder %s16, 1
    %p81 = por %p79, %p80
    %p82 = scmp.ne.s32.totalorder %s71, %s72
    %p83 = scmp.eq.s32.totalorder %s16, 0
    %p84 = por %p82, %p83
    %p85 = scmp.ne.s32.totalorder %s71, %s72
    %p86 = scmp.eq.s32.totalorder %s17, 1
    %p87 = por %p85, %p86
    %p89 = scmp.ne.s32.totalorder %s72, %s88
    %p90 = scmp.eq.s32.totalorder %s17, 0
    %p91 = por %p89, %p90
    %s92 = ssub.s32 %s11, %s18
    %p93 = scmp.eq.s32.totalorder %s92, 0
    %s95 = sadd.s32 %s94, 1
    %s96 = scalar_select %p93, %s94, %s95
    %p99 = pneg %p93
    %p100 = scmp.eq.s32.totalorder %s11, 1
    %p101 = por %p99, %p100
    %p102 = scmp.ne.s32.totalorder %s94, %s97
    %p103 = scmp.eq.s32.totalorder %s11, 0
    %p104 = por %p102, %p103
    %p105 = scmp.ne.s32.totalorder %s94, %s97
    %p106 = scmp.eq.s32.totalorder %s16, 1
    %p107 = por %p105, %p106
    %p108 = scmp.ne.s32.totalorder %s97, %s98
    %p109 = scmp.eq.s32.totalorder %s16, 0
    %p110 = por %p108, %p109
    %p111 = scmp.ne.s32.totalorder %s97, %s98
    %p112 = scmp.eq.s32.totalorder %s17, 1
    %p113 = por %p111, %p112
    %p115 = scmp.ne.s32.totalorder %s98, %s114
    %p116 = scmp.eq.s32.totalorder %s17, 0
    %p117 = por %p115, %p116
    %s118 = ssub.s32 %s11, %s18
    %p119 = scmp.eq.s32.totalorder %s118, 0
    %s121 = sadd.s32 %s120, 1
    %s122 = scalar_select %p119, %s120, %s121
    %p125 = pneg %p119
    %p126 = scmp.eq.s32.totalorder %s11, 1
    %p127 = por %p125, %p126
    %p128 = scmp.ne.s32.totalorder %s120, %s123
    %p129 = scmp.eq.s32.totalorder %s11, 0
    %p130 = por %p128, %p129
    %p131 = scmp.ne.s32.totalorder %s120, %s123
    %p132 = scmp.eq.s32.totalorder %s16, 1
    %p133 = por %p131, %p132
    %p134 = scmp.ne.s32.totalorder %s123, %s124
    %p135 = scmp.eq.s32.totalorder %s16, 0
    %p136 = por %p134, %p135
    %p137 = scmp.ne.s32.totalorder %s123, %s124
    %p138 = scmp.eq.s32.totalorder %s17, 1
    %p139 = por %p137, %p138
    %p141 = scmp.ne.s32.totalorder %s124, %s140
    %p142 = scmp.eq.s32.totalorder %s17, 0
    %p143 = por %p141, %p142
    %p144 = scmp.le.s32.totalorder 1, %s11
    %p145 = scmp.lt.s32.totalorder %s11, 3
    %p146 = pnand %p144, %p145
    %p147 = pneg %p146
    // Predicated region
    $region9: #{bottleneck_block.5} parent=5 // pred_check
      _
    $region10: #{bottleneck_block.5} parent=5 // pred_check_branch
      %149 = sbr.rel (%p146) target = $region12
    $region11: #{bottleneck_block.5} parent=5 // pred_region
      %s150 = ssub.s32 %s11, 1
      // Predicated region
      $region13: #{bottleneck_block.5} parent=11 // pred_check
        %p151 = pneg %p58
      $region14: #{bottleneck_block.5} parent=11 // pred_check_branch
        %153 = sbr.rel (%p151) target = $region16
      $region15: #{bottleneck_block.5} parent=11 // pred_region
        _
      $region16: #{bottleneck_block.5} parent=11 // pred_fallthru
        _
    $region12: #{bottleneck_block.5} parent=5 // pred_fallthru
      _
    %p154 = scmp.lt.s32.totalorder %s11, 2
    // Predicated region
    $region17: #{bottleneck_block.5} parent=5 // pred_check
      %p155 = pneg %p154
    $region18: #{bottleneck_block.5} parent=5 // pred_check_branch
      %157 = sbr.rel (%p155) target = $region20
    $region19: #{bottleneck_block.5} parent=5 // pred_region
      // Predicated region
      $region21: #{bottleneck_block.5} parent=19 // pred_check
        %p158 = pneg %p31
      $region22: #{bottleneck_block.5} parent=19 // pred_check_branch
        %160 = sbr.rel (%p158) target = $region24
      $region23: #{bottleneck_block.5} parent=19 // pred_region
        %p161 = scmp.lt.s32.totalorder %s11, 1
        %s162 = scalar_select %p161, %s11, 1
        %s163 = smul.addr %s162, 47
        %s164 = smul.addr %s163, 8
        %s165 = scalar_lea.vmem %s0, %s164
      $region24: #{bottleneck_block.5} parent=19 // pred_fallthru
        _
    $region20: #{bottleneck_block.5} parent=5 // pred_fallthru
      _
    %p166 = scmp.le.s32.totalorder 1, %s11
    %p167 = scmp.lt.s32.totalorder %s11, 3
    %p168 = pnand %p166, %p167
    %p169 = pneg %p168
    // Predicated region
    $region25: #{bottleneck_block.5} parent=5 // pred_check
      _
    $region26: #{bottleneck_block.5} parent=5 // pred_check_branch
      %171 = sbr.rel (%p168) target = $region28
    $region27: #{bottleneck_block.5} parent=5 // pred_region
      %s172 = ssub.s32 %s11, 1
      %p173 = scmp.lt.s32.totalorder %s16, 1
      %s174 = scalar_select %p173, %s16, 1
      %s175 = smul.addr %s174, 47
      %s176 = smul.addr %s175, 8
      %s177 = scalar_lea.vmem %s0, %s176
      %p178 = pneg %p37
      %p179 = pneg %p34
      %p180 = pneg %p58
      %p181 = pneg %p55
      %p182 = pneg %p84
      %p183 = pneg %p81
      %p184 = scmp.lt.s32.totalorder %s16, 1
      %s185 = scalar_select %p184, %s16, 1
      %s186 = smul.addr %s185, 32
      %s187 = smul.addr %s186, 8
      %s188 = scalar_lea.vmem %s2, %s187
      %p189 = pneg %p110
      %p190 = pneg %p107
      %p191 = scmp.lt.s32.totalorder %s16, 1
      %s192 = scalar_select %p191, %s16, 1
      %s193 = scalar_lea.vmem %s3, %s192
      %p194 = pneg %p136
      %p195 = pneg %p133
      %p196 = scmp.lt.s32.totalorder %s16, 1
      %s197 = scalar_select %p196, %s16, 1
      %s198 = scalar_lea.vmem %s4, %s197
      %p199 = scmp.lt.s32.totalorder %s16, 1
      %s200 = scalar_select %p199, %s16, 1
      %s201 = smul.addr %s200, 47
      %s202 = smul.addr %s201, 8
      %s203 = scalar_lea.vmem %s0, %s202
      %p204 = scmp.lt.s32.totalorder %s16, 1
      %s205 = scalar_select %p204, %s16, 1
      %s206 = smul.addr %s205, 32
      %s207 = smul.addr %s206, 8
      %s208 = scalar_lea.vmem %s2, %s207
      %p209 = scmp.lt.s32.totalorder %s16, 1
      %s210 = scalar_select %p209, %s16, 1
      %s211 = scalar_lea.vmem %s3, %s210
      %p212 = scmp.lt.s32.totalorder %s16, 1
      %s213 = scalar_select %p212, %s16, 1
      %s214 = scalar_lea.vmem %s4, %s213
      %v216 = vld [vmem:[%s203 + $0x5] sm:$0xff]
      %v217 = vld [vmem:[%s203 + $0xd] sm:$0xff]
      %v218 = vld [vmem:[%s203 + $0x15] sm:$0xff]
      %v219 = vld [vmem:[%s203 + $0x1d] sm:$0xff]
      %v220 = vld [vmem:[%s203 + $0x25] sm:$0xff]
      %v221 = vld [vmem:[%s203 + $0x2d] sm:$0xff]
      %v222 = vld [vmem:[%s203 + $0x35] sm:$0xff]
      %v223 = vld [vmem:[%s203 + $0x3d] sm:$0xff]
      %v224 = vld [vmem:[%s203 + $0x45] sm:$0xff]
      %v225 = vld [vmem:[%s203 + $0x4d] sm:$0xff]
      %v226 = vld [vmem:[%s203 + $0x55] sm:$0xff]
      %v227 = vld [vmem:[%s203 + $0x5d] sm:$0xff]
      %v228 = vld [vmem:[%s203 + $0x65] sm:$0xff]
      %v229 = vld [vmem:[%s203 + $0x6d] sm:$0xff]
      %v230 = vld [vmem:[%s203 + $0x75] sm:$0xff]
      %v231 = vld [vmem:[%s203 + $0x7d] sm:$0xff]
      %v232 = vld [vmem:[%s203 + $0x85] sm:$0xff]
      %v233 = vld [vmem:[%s203 + $0x8d] sm:$0xff]
      %v234 = vld [vmem:[%s203 + $0x95] sm:$0xff]
      %v235 = vld [vmem:[%s203 + $0x9d] sm:$0xff]
      %v236 = vld [vmem:[%s203 + $0xa5] sm:$0xff]
      %v237 = vld [vmem:[%s203 + $0xad] sm:$0xff]
      %v238 = vld [vmem:[%s203 + $0xb5] sm:$0xff]
      %v239 = vld [vmem:[%s203 + $0xbd] sm:$0xff]
      %v240 = vld [vmem:[%s203 + $0xc5] sm:$0xff]
      %v241 = vld [vmem:[%s203 + $0xcd] sm:$0xff]
      %v242 = vld [vmem:[%s203 + $0xd5] sm:$0xff]
      %v243 = vld [vmem:[%s203 + $0xdd] sm:$0xff]
      %v244 = vld [vmem:[%s203 + $0xe5] sm:$0xff]
      %v245 = vld [vmem:[%s203 + $0xed] sm:$0xff]
      %v246 = vld [vmem:[%s203 + $0xf5] sm:$0xff]
      %v247 = vld [vmem:[%s203 + $0xfd] sm:$0xff]
      %v248 = vld [vmem:[%s203 + $0x105] sm:$0xff]
      %v249 = vld [vmem:[%s203 + $0x10d] sm:$0xff]
      %v250 = vld [vmem:[%s203 + $0x115] sm:$0xff]
      %v251 = vld [vmem:[%s203 + $0x11d] sm:$0xff]
      %v252 = vld [vmem:[%s203 + $0x125] sm:$0xff]
      %v253 = vld [vmem:[%s203 + $0x12d] sm:$0xff]
      %v254 = vld [vmem:[%s203 + $0x135] sm:$0xff]
      %v255 = vld [vmem:[%s203 + $0x13d] sm:$0xff]
      %v256 = vld [vmem:[%s203 + $0x145] sm:$0xff]
      %v257 = vpack.c.bf16 %v217, %v216
      %v258 = vpack.c.bf16 %v219, %v218
      %v259 = vpack.c.bf16 %v221, %v220
      %v260 = vpack.c.bf16 %v223, %v222
      %v261 = vpack.c.bf16 %v225, %v224
      %v262 = vpack.c.bf16 %v227, %v226
      %v263 = vpack.c.bf16 %v229, %v228
      %v264 = vpack.c.bf16 %v231, %v230
      %v265 = vpack.c.bf16 %v233, %v232
      %v266 = vpack.c.bf16 %v235, %v234
      %v267 = vpack.c.bf16 %v237, %v236
      %v268 = vpack.c.bf16 %v239, %v238
      %v269 = vpack.c.bf16 %v241, %v240
      %v270 = vpack.c.bf16 %v243, %v242
      %v271 = vpack.c.bf16 %v245, %v244
      %v272 = vpack.c.bf16 %v247, %v246
      %v273 = vpack.c.bf16 %v249, %v248
      %v274 = vpack.c.bf16 %v251, %v250
      %v275 = vpack.c.bf16 %v253, %v252
      %v276 = vpack.c.bf16 %v255, %v254
      %v277 = vpack.c.bf16 %v256, %v256
      %v278 = vld [vmem:[%s1] sm:$0xf]
      %v279 = vld [vmem:[%s1 + $0x4] sm:$0xf]
      %v280 = vld [vmem:[%s1 + $0x8] sm:$0xf]
      %v281 = vld [vmem:[%s1 + $0xc] sm:$0xf]
      %v282 = vld [vmem:[%s1 + $0x10] sm:$0xf]
      %v283 = vld [vmem:[%s1 + $0x14] sm:$0xf]
      %v284 = vld [vmem:[%s1 + $0x18] sm:$0xf]
      %v285 = vld [vmem:[%s1 + $0x1c] sm:$0xf]
      %v286 = vld [vmem:[%s1 + $0x20] sm:$0xf]
      %v287 = vld [vmem:[%s1 + $0x24] sm:$0xf]
      %v288 = vld [vmem:[%s1 + $0x28] sm:$0xf]
      %v289 = vld [vmem:[%s1 + $0x2c] sm:$0xf]
      %v290 = vld [vmem:[%s1 + $0x30] sm:$0xf]
      %v291 = vld [vmem:[%s1 + $0x34] sm:$0xf]
      %v292 = vld [vmem:[%s1 + $0x38] sm:$0xf]
      %v293 = vld [vmem:[%s1 + $0x3c] sm:$0xf]
      %v294 = vld [vmem:[%s203 + $0x6] sm:$0xff]
      %v295 = vld [vmem:[%s203 + $0xe] sm:$0xff]
      %v296 = vld [vmem:[%s203 + $0x16] sm:$0xff]
      %v297 = vld [vmem:[%s203 + $0x1e] sm:$0xff]
      %v298 = vld [vmem:[%s203 + $0x26] sm:$0xff]
      %v299 = vld [vmem:[%s203 + $0x2e] sm:$0xff]
      %v300 = vld [vmem:[%s203 + $0x36] sm:$0xff]
      %v301 = vld [vmem:[%s203 + $0x3e] sm:$0xff]
      %v302 = vld [vmem:[%s203 + $0x46] sm:$0xff]
      %v303 = vld [vmem:[%s203 + $0x4e] sm:$0xff]
      %v304 = vld [vmem:[%s203 + $0x56] sm:$0xff]
      %v305 = vld [vmem:[%s203 + $0x5e] sm:$0xff]
      %v306 = vld [vmem:[%s203 + $0x66] sm:$0xff]
      %v307 = vld [vmem:[%s203 + $0x6e] sm:$0xff]
      %v308 = vld [vmem:[%s203 + $0x76] sm:$0xff]
      %v309 = vld [vmem:[%s203 + $0x7e] sm:$0xff]
      %v310 = vld [vmem:[%s203 + $0x86] sm:$0xff]
      %v311 = vld [vmem:[%s203 + $0x8e] sm:$0xff]
      %v312 = vld [vmem:[%s203 + $0x96] sm:$0xff]
      %v313 = vld [vmem:[%s203 + $0x9e] sm:$0xff]
      %v314 = vld [vmem:[%s203 + $0xa6] sm:$0xff]
      %v315 = vld [vmem:[%s203 + $0xae] sm:$0xff]
      %v316 = vld [vmem:[%s203 + $0xb6] sm:$0xff]
      %v317 = vld [vmem:[%s203 + $0xbe] sm:$0xff]
      %v318 = vld [vmem:[%s203 + $0xc6] sm:$0xff]
      %v319 = vld [vmem:[%s203 + $0xce] sm:$0xff]
      %v320 = vld [vmem:[%s203 + $0xd6] sm:$0xff]
      %v321 = vld [vmem:[%s203 + $0xde] sm:$0xff]
      %v322 = vld [vmem:[%s203 + $0xe6] sm:$0xff]
      %v323 = vld [vmem:[%s203 + $0xee] sm:$0xff]
      %v324 = vld [vmem:[%s203 + $0xf6] sm:$0xff]
      %v325 = vld [vmem:[%s203 + $0xfe] sm:$0xff]
      %v326 = vld [vmem:[%s203 + $0x106] sm:$0xff]
      %v327 = vld [vmem:[%s203 + $0x10e] sm:$0xff]
      %v328 = vld [vmem:[%s203 + $0x116] sm:$0xff]
      %v329 = vld [vmem:[%s203 + $0x11e] sm:$0xff]
      %v330 = vld [vmem:[%s203 + $0x126] sm:$0xff]
      %v331 = vld [vmem:[%s203 + $0x12e] sm:$0xff]
      %v332 = vld [vmem:[%s203 + $0x136] sm:$0xff]
      %v333 = vld [vmem:[%s203 + $0x13e] sm:$0xff]
      %v334 = vld [vmem:[%s203 + $0x146] sm:$0xff]
      %v335 = vpack.c.bf16 %v295, %v294
      %v336 = vpack.c.bf16 %v297, %v296
      %v337 = vpack.c.bf16 %v299, %v298
      %v338 = vpack.c.bf16 %v301, %v300
      %v339 = vpack.c.bf16 %v303, %v302
      %v340 = vpack.c.bf16 %v305, %v304
      %v341 = vpack.c.bf16 %v307, %v306
      %v342 = vpack.c.bf16 %v309, %v308
      %v343 = vpack.c.bf16 %v311, %v310
      %v344 = vpack.c.bf16 %v313, %v312
      %v345 = vpack.c.bf16 %v315, %v314
      %v346 = vpack.c.bf16 %v317, %v316
      %v347 = vpack.c.bf16 %v319, %v318
      %v348 = vpack.c.bf16 %v321, %v320
      %v349 = vpack.c.bf16 %v323, %v322
      %v350 = vpack.c.bf16 %v325, %v324
      %v351 = vpack.c.bf16 %v327, %v326
      %v352 = vpack.c.bf16 %v329, %v328
      %v353 = vpack.c.bf16 %v331, %v330
      %v354 = vpack.c.bf16 %v333, %v332
      %v355 = vpack.c.bf16 %v334, %v334
      %s356 = scalar_lea.vmem %s1, 64
      %v357 = vld [vmem:[%s356] sm:$0xf]
      %v358 = vld [vmem:[%s356 + $0x4] sm:$0xf]
      %v359 = vld [vmem:[%s356 + $0x8] sm:$0xf]
      %v360 = vld [vmem:[%s356 + $0xc] sm:$0xf]
      %v361 = vld [vmem:[%s356 + $0x10] sm:$0xf]
      %v362 = vld [vmem:[%s356 + $0x14] sm:$0xf]
      %v363 = vld [vmem:[%s356 + $0x18] sm:$0xf]
      %v364 = vld [vmem:[%s356 + $0x1c] sm:$0xf]
      %v365 = vld [vmem:[%s356 + $0x20] sm:$0xf]
      %v366 = vld [vmem:[%s356 + $0x24] sm:$0xf]
      %v367 = vld [vmem:[%s356 + $0x28] sm:$0xf]
      %v368 = vld [vmem:[%s356 + $0x2c] sm:$0xf]
      %v369 = vld [vmem:[%s356 + $0x30] sm:$0xf]
      %v370 = vld [vmem:[%s356 + $0x34] sm:$0xf]
      %v371 = vld [vmem:[%s356 + $0x38] sm:$0xf]
      %v372 = vld [vmem:[%s356 + $0x3c] sm:$0xf]
      %v389 = vunpack.c.l.b16 %v357
      %v390 = vunpack.c.l.b16 %v358
      %v391 = vunpack.c.l.b16 %v359
      %v392 = vunpack.c.l.b16 %v360
      %v393 = vunpack.c.l.b16 %v361
      %v394 = vunpack.c.l.b16 %v362
      %v395 = vunpack.c.l.b16 %v363
      %v396 = vunpack.c.l.b16 %v364
      %v397 = vunpack.c.l.b16 %v365
      %v398 = vunpack.c.l.b16 %v366
      %v399 = vunpack.c.l.b16 %v367
      %v400 = vunpack.c.l.b16 %v368
      %v401 = vunpack.c.l.b16 %v369
      %v402 = vunpack.c.l.b16 %v370
      %v403 = vunpack.c.l.b16 %v371
      %v404 = vunpack.c.l.b16 %v372
      %v405 = vpack.c.b16 %v390, %v389
      %v406 = vpack.c.b16 %v392, %v391
      %v407 = vpack.c.b16 %v394, %v393
      %v408 = vpack.c.b16 %v396, %v395
      %v409 = vpack.c.b16 %v398, %v397
      %v410 = vpack.c.b16 %v400, %v399
      %v411 = vpack.c.b16 %v402, %v401
      %v412 = vpack.c.b16 %v404, %v403
      %421 = vmatprep.subr.bf16.mxu0 0
      %422 = vmatpush1.bf16.msra.mxu0 %v405
      %423 = vmatprep.subr.bf16.mxu0 0
      %424 = vmatpush1.bf16.msra.mxu0 %v406
      %425 = vmatprep.subr.bf16.mxu0 0
      %426 = vmatpush1.bf16.msra.mxu0 %v407
      %427 = vmatprep.subr.bf16.mxu0 0
      %428 = vmatpush1.bf16.msra.mxu0 %v408
      %429 = vmatprep.subr.bf16.mxu0 0
      %430 = vmatpush1.bf16.msra.mxu0 %v409
      %431 = vmatprep.subr.bf16.mxu0 0
      %432 = vmatpush1.bf16.msra.mxu0 %v410
      %433 = vmatprep.subr.bf16.mxu0 0
      %434 = vmatpush1.bf16.msra.mxu0 %v411
      %435 = vmatprep.subr.bf16.mxu0 0
      %436 = vmatpush1.bf16.msra.mxu0 %v412
      %437 = vmatprep.subr.bf16.mxu0 0
      %438 = vmatpush1.bf16.msra.mxu0 0
      %439 = vmatprep.subr.bf16.mxu0 0
      %440 = vmatpush1.bf16.msra.mxu0 0
      %441 = vmatprep.subr.bf16.mxu0 0
      %442 = vmatpush1.bf16.msra.mxu0 0
      %443 = vmatprep.subr.bf16.mxu0 0
      %444 = vmatpush1.bf16.msra.mxu0 0
      %445 = vmatprep.subr.bf16.mxu0 0
      %446 = vmatpush1.bf16.msra.mxu0 0
      %447 = vmatprep.subr.bf16.mxu0 0
      %448 = vmatpush1.bf16.msra.mxu0 0
      %449 = vmatprep.subr.bf16.mxu0 0
      %450 = vmatpush1.bf16.msra.mxu0 0
      %451 = vmatprep.subr.bf16.mxu0 0
      %452 = vmatpush1.bf16.msra.mxu0 0
      %453 = vmatprep.mubr.bf16.mxu0 0
      %454 = vmatmul.mubr.bf16.gmra.mrb[0].mxu0 %v335
      %v455 = vpop.f32.mrb[0].mxu0
      %v456 = vadd.f32 0.0, %v455
      %v457 = vpop.f32.mrb[0].mxu0
      %v458 = vpop.f32.mrb[0].mxu0
      %v459 = vadd.f32 0.0, %v458
      %v460 = vpop.f32.mrb[0].mxu0
      %461 = vmatprep.mubr.bf16.mxu0 0
      %462 = vmatmul.mubr.bf16.gmra.mrb[0].mxu0 %v336
      %v463 = vpop.f32.mrb[0].mxu0
      %v464 = vadd.f32 0.0, %v463
      %v465 = vpop.f32.mrb[0].mxu0
      %v466 = vpop.f32.mrb[0].mxu0
      %v467 = vadd.f32 0.0, %v466
      %v468 = vpop.f32.mrb[0].mxu0
      %469 = vmatprep.mubr.bf16.mxu0 0
      %470 = vmatmul.mubr.bf16.gmra.mrb[0].mxu0 %v337
      %v471 = vpop.f32.mrb[0].mxu0
      %v472 = vadd.f32 0.0, %v471
      %v473 = vpop.f32.mrb[0].mxu0
      %v474 = vpop.f32.mrb[0].mxu0
      %v475 = vadd.f32 0.0, %v474
      %v476 = vpop.f32.mrb[0].mxu0
      %477 = vmatprep.mubr.bf16.mxu0 0
      %478 = vmatmul.mubr.bf16.gmra.mrb[0].mxu0 %v338
      %v479 = vpop.f32.mrb[0].mxu0
      %v480 = vadd.f32 0.0, %v479
      %v481 = vpop.f32.mrb[0].mxu0
      %v482 = vpop.f32.mrb[0].mxu0
      %v483 = vadd.f32 0.0, %v482
      %v484 = vpop.f32.mrb[0].mxu0
      %485 = vmatprep.mubr.bf16.mxu0 0
      %486 = vmatmul.mubr.bf16.gmra.mrb[0].mxu0 %v339
      %v487 = vpop.f32.mrb[0].mxu0
      %v488 = vadd.f32 0.0, %v487
      %v489 = vpop.f32.mrb[0].mxu0
      %v490 = vpop.f32.mrb[0].mxu0
      %v491 = vadd.f32 0.0, %v490
      %v492 = vpop.f32.mrb[0].mxu0
      %493 = vmatprep.mubr.bf16.mxu0 0
      %494 = vmatmul.mubr.bf16.gmra.mrb[0].mxu0 %v340
      %v495 = vpop.f32.mrb[0].mxu0
      %v496 = vadd.f32 0.0, %v495
      %v497 = vpop.f32.mrb[0].mxu0
      %v498 = vpop.f32.mrb[0].mxu0
      %v499 = vadd.f32 0.0, %v498
      %v500 = vpop.f32.mrb[0].mxu0
      %501 = vmatprep.mubr.bf16.mxu0 0
      %502 = vmatmul.mubr.bf16.gmra.mrb[0].mxu0 %v341
      %v503 = vpop.f32.mrb[0].mxu0
      %v504 = vadd.f32 0.0, %v503
      %v505 = vpop.f32.mrb[0].mxu0
      %v506 = vpop.f32.mrb[0].mxu0
      %v507 = vadd.f32 0.0, %v506
      %v508 = vpop.f32.mrb[0].mxu0
      %509 = vmatprep.mubr.bf16.mxu0 0
      %510 = vmatmul.mubr.bf16.gmra.mrb[0].mxu0 %v342
      %v511 = vpop.f32.mrb[0].mxu0
      %v512 = vadd.f32 0.0, %v511
      %v513 = vpop.f32.mrb[0].mxu0
      %v514 = vpop.f32.mrb[0].mxu0
      %v515 = vadd.f32 0.0, %v514
      %v516 = vpop.f32.mrb[0].mxu0
      %517 = vmatprep.mubr.bf16.mxu0 0
      %518 = vmatmul.mubr.bf16.gmra.mrb[0].mxu0 %v343
      %v519 = vpop.f32.mrb[0].mxu0
      %v520 = vadd.f32 0.0, %v519
      %v521 = vpop.f32.mrb[0].mxu0
      %v522 = vpop.f32.mrb[0].mxu0
      %v523 = vadd.f32 0.0, %v522
      %v524 = vpop.f32.mrb[0].mxu0
      %525 = vmatprep.mubr.bf16.mxu0 0
      %526 = vmatmul.mubr.bf16.gmra.mrb[0].mxu0 %v344
      %v527 = vpop.f32.mrb[0].mxu0
      %v528 = vadd.f32 0.0, %v527
      %v529 = vpop.f32.mrb[0].mxu0
      %v530 = vpop.f32.mrb[0].mxu0
      %v531 = vadd.f32 0.0, %v530
      %v532 = vpop.f32.mrb[0].mxu0
      %533 = vmatprep.mubr.bf16.mxu0 0
      %534 = vmatmul.mubr.bf16.gmra.mrb[0].mxu0 %v345
      %v535 = vpop.f32.mrb[0].mxu0
      %v536 = vadd.f32 0.0, %v535
      %v537 = vpop.f32.mrb[0].mxu0
      %v538 = vpop.f32.mrb[0].mxu0
      %v539 = vadd.f32 0.0, %v538
      %v540 = vpop.f32.mrb[0].mxu0
      %541 = vmatprep.mubr.bf16.mxu0 0
      %542 = vmatmul.mubr.bf16.gmra.mrb[0].mxu0 %v346
      %v543 = vpop.f32.mrb[0].mxu0
      %v544 = vadd.f32 0.0, %v543
      %v545 = vpop.f32.mrb[0].mxu0
      %v546 = vpop.f32.mrb[0].mxu0
      %v547 = vadd.f32 0.0, %v546
      %v548 = vpop.f32.mrb[0].mxu0
      %549 = vmatprep.mubr.bf16.mxu0 0
      %550 = vmatmul.mubr.bf16.gmra.mrb[0].mxu0 %v347
      %v551 = vpop.f32.mrb[0].mxu0
      %v552 = vadd.f32 0.0, %v551
      %v553 = vpop.f32.mrb[0].mxu0
      %v554 = vpop.f32.mrb[0].mxu0
      %v555 = vadd.f32 0.0, %v554
      %v556 = vpop.f32.mrb[0].mxu0
      %557 = vmatprep.mubr.bf16.mxu0 0
      %558 = vmatmul.mubr.bf16.gmra.mrb[0].mxu0 %v348
      %v559 = vpop.f32.mrb[0].mxu0
      %v560 = vadd.f32 0.0, %v559
      %v561 = vpop.f32.mrb[0].mxu0
      %v562 = vpop.f32.mrb[0].mxu0
      %v563 = vadd.f32 0.0, %v562
      %v564 = vpop.f32.mrb[0].mxu0
      %565 = vmatprep.mubr.bf16.mxu0 0
      %566 = vmatmul.mubr.bf16.gmra.mrb[0].mxu0 %v349
      %v567 = vpop.f32.mrb[0].mxu0
      %v568 = vadd.f32 0.0, %v567
      %v569 = vpop.f32.mrb[0].mxu0
      %v570 = vpop.f32.mrb[0].mxu0
      %v571 = vadd.f32 0.0, %v570
      %v572 = vpop.f32.mrb[0].mxu0
      %573 = vmatprep.mubr.bf16.mxu0 0
      %574 = vmatmul.mubr.bf16.gmra.mrb[0].mxu0 %v350
      %v575 = vpop.f32.mrb[0].mxu0
      %v576 = vadd.f32 0.0, %v575
      %v577 = vpop.f32.mrb[0].mxu0
      %v578 = vpop.f32.mrb[0].mxu0
      %v579 = vadd.f32 0.0, %v578
      %v580 = vpop.f32.mrb[0].mxu0
      %581 = vmatprep.mubr.bf16.mxu0 0
      %582 = vmatmul.mubr.bf16.gmra.mrb[0].mxu0 %v351
      %v583 = vpop.f32.mrb[0].mxu0
      %v584 = vadd.f32 0.0, %v583
      %v585 = vpop.f32.mrb[0].mxu0
      %v586 = vpop.f32.mrb[0].mxu0
      %v587 = vadd.f32 0.0, %v586
      %v588 = vpop.f32.mrb[0].mxu0
      %589 = vmatprep.mubr.bf16.mxu0 0
      %590 = vmatmul.mubr.bf16.gmra.mrb[0].mxu0 %v352
      %v591 = vpop.f32.mrb[0].mxu0
      %v592 = vadd.f32 0.0, %v591
      %v593 = vpop.f32.mrb[0].mxu0
      %v594 = vpop.f32.mrb[0].mxu0
      %v595 = vadd.f32 0.0, %v594
      %v596 = vpop.f32.mrb[0].mxu0
      %597 = vmatprep.mubr.bf16.mxu0 0
      %598 = vmatmul.mubr.bf16.gmra.mrb[0].mxu0 %v353
      %v599 = vpop.f32.mrb[0].mxu0
      %v600 = vadd.f32 0.0, %v599
      %v601 = vpop.f32.mrb[0].mxu0
      %v602 = vpop.f32.mrb[0].mxu0
      %v603 = vadd.f32 0.0, %v602
      %v604 = vpop.f32.mrb[0].mxu0
      %605 = vmatprep.mubr.bf16.mxu0 0
      %606 = vmatmul.mubr.bf16.gmra.mrb[0].mxu0 %v354
      %v607 = vpop.f32.mrb[0].mxu0
      %v608 = vadd.f32 0.0, %v607
      %v609 = vpop.f32.mrb[0].mxu0
      %v610 = vpop.f32.mrb[0].mxu0
      %v611 = vadd.f32 0.0, %v610
      %v612 = vpop.f32.mrb[0].mxu0
      %613 = vmatprep.mubr.bf16.mxu0 0
      %614 = vmatmul.mubr.bf16.gmra.mrb[0].mxu0 %v355
      %v615 = vpop.f32.mrb[0].mxu0
      %v616 = vadd.f32 0.0, %v615
      %v617 = vpop.f32.mrb[0].mxu0
      %v618 = vpop.f32.mrb[0].mxu0
      %v619 = vpop.f32.mrb[0].mxu0
      %620 = vdwg.mxu0
      %v637 = vunpack.c.l.b16 %v278
      %v638 = vunpack.c.l.b16 %v279
      %v639 = vunpack.c.l.b16 %v280
      %v640 = vunpack.c.l.b16 %v281
      %v641 = vunpack.c.l.b16 %v282
      %v642 = vunpack.c.l.b16 %v283
      %v643 = vunpack.c.l.b16 %v284
      %v644 = vunpack.c.l.b16 %v285
      %v645 = vunpack.c.l.b16 %v286
      %v646 = vunpack.c.l.b16 %v287
      %v647 = vunpack.c.l.b16 %v288
      %v648 = vunpack.c.l.b16 %v289
      %v649 = vunpack.c.l.b16 %v290
      %v650 = vunpack.c.l.b16 %v291
      %v651 = vunpack.c.l.b16 %v292
      %v652 = vunpack.c.l.b16 %v293
      %v653 = vpack.c.b16 %v638, %v637
      %v654 = vpack.c.b16 %v640, %v639
      %v655 = vpack.c.b16 %v642, %v641
      %v656 = vpack.c.b16 %v644, %v643
      %v657 = vpack.c.b16 %v646, %v645
      %v658 = vpack.c.b16 %v648, %v647
      %v659 = vpack.c.b16 %v650, %v649
      %v660 = vpack.c.b16 %v652, %v651
      %669 = vmatprep.subr.bf16.mxu0 0
      %670 = vmatpush1.bf16.msra.mxu0 %v653
      %671 = vmatprep.subr.bf16.mxu0 0
      %672 = vmatpush1.bf16.msra.mxu0 %v654
      %673 = vmatprep.subr.bf16.mxu0 0
      %674 = vmatpush1.bf16.msra.mxu0 %v655
      %675 = vmatprep.subr.bf16.mxu0 0
      %676 = vmatpush1.bf16.msra.mxu0 %v656
      %677 = vmatprep.subr.bf16.mxu0 0
      %678 = vmatpush1.bf16.msra.mxu0 %v657
      %679 = vmatprep.subr.bf16.mxu0 0
      %680 = vmatpush1.bf16.msra.mxu0 %v658
      %681 = vmatprep.subr.bf16.mxu0 0
      %682 = vmatpush1.bf16.msra.mxu0 %v659
      %683 = vmatprep.subr.bf16.mxu0 0
      %684 = vmatpush1.bf16.msra.mxu0 %v660
      %685 = vmatprep.subr.bf16.mxu0 0
      %686 = vmatpush1.bf16.msra.mxu0 0
      %687 = vmatprep.subr.bf16.mxu0 0
      %688 = vmatpush1.bf16.msra.mxu0 0
      %689 = vmatprep.subr.bf16.mxu0 0
      %690 = vmatpush1.bf16.msra.mxu0 0
      %691 = vmatprep.subr.bf16.mxu0 0
      %692 = vmatpush1.bf16.msra.mxu0 0
      %693 = vmatprep.subr.bf16.mxu0 0
      %694 = vmatpush1.bf16.msra.mxu0 0
      %695 = vmatprep.subr.bf16.mxu0 0
      %696 = vmatpush1.bf16.msra.mxu0 0
      %697 = vmatprep.subr.bf16.mxu0 0
      %698 = vmatpush1.bf16.msra.mxu0 0
      %699 = vmatprep.subr.bf16.mxu0 0
      %700 = vmatpush1.bf16.msra.mxu0 0
      %701 = vmatprep.mubr.bf16.mxu0 0
      %702 = vmatmul.mubr.bf16.gmra.mrb[0].mxu0 %v257
      %v703 = vpop.f32.mrb[0].mxu0
      %v704 = vadd.f32 %v456, %v703
      %v705 = vpop.f32.mrb[0].mxu0
      %v706 = vpop.f32.mrb[0].mxu0
      %v707 = vadd.f32 %v459, %v706
      %v708 = vpop.f32.mrb[0].mxu0
      %709 = vmatprep.mubr.bf16.mxu0 0
      %710 = vmatmul.mubr.bf16.gmra.mrb[0].mxu0 %v258
      %v711 = vpop.f32.mrb[0].mxu0
      %v712 = vadd.f32 %v464, %v711
      %v713 = vpop.f32.mrb[0].mxu0
      %v714 = vpop.f32.mrb[0].mxu0
      %v715 = vadd.f32 %v467, %v714
      %v716 = vpop.f32.mrb[0].mxu0
      %717 = vmatprep.mubr.bf16.mxu0 0
      %718 = vmatmul.mubr.bf16.gmra.mrb[0].mxu0 %v259
      %v719 = vpop.f32.mrb[0].mxu0
      %v720 = vadd.f32 %v472, %v719
      %v721 = vpop.f32.mrb[0].mxu0
      %v722 = vpop.f32.mrb[0].mxu0
      %v723 = vadd.f32 %v475, %v722
      %v724 = vpop.f32.mrb[0].mxu0
      %725 = vmatprep.mubr.bf16.mxu0 0
      %726 = vmatmul.mubr.bf16.gmra.mrb[0].mxu0 %v260
      %v727 = vpop.f32.mrb[0].mxu0
      %v728 = vadd.f32 %v480, %v727
      %v729 = vpop.f32.mrb[0].mxu0
      %v730 = vpop.f32.mrb[0].mxu0
      %v731 = vadd.f32 %v483, %v730
      %v732 = vpop.f32.mrb[0].mxu0
      %733 = vmatprep.mubr.bf16.mxu0 0
      %734 = vmatmul.mubr.bf16.gmra.mrb[0].mxu0 %v261
      %v735 = vpop.f32.mrb[0].mxu0
      %v736 = vadd.f32 %v488, %v735
      %v737 = vpop.f32.mrb[0].mxu0
      %v738 = vpop.f32.mrb[0].mxu0
      %v739 = vadd.f32 %v491, %v738
      %v740 = vpop.f32.mrb[0].mxu0
      %741 = vmatprep.mubr.bf16.mxu0 0
      %742 = vmatmul.mubr.bf16.gmra.mrb[0].mxu0 %v262
      %v743 = vpop.f32.mrb[0].mxu0
      %v744 = vadd.f32 %v496, %v743
      %v745 = vpop.f32.mrb[0].mxu0
      %v746 = vpop.f32.mrb[0].mxu0
      %v747 = vadd.f32 %v499, %v746
      %v748 = vpop.f32.mrb[0].mxu0
      %749 = vmatprep.mubr.bf16.mxu0 0
      %750 = vmatmul.mubr.bf16.gmra.mrb[0].mxu0 %v263
      %v751 = vpop.f32.mrb[0].mxu0
      %v752 = vadd.f32 %v504, %v751
      %v753 = vpop.f32.mrb[0].mxu0
      %v754 = vpop.f32.mrb[0].mxu0
      %v755 = vadd.f32 %v507, %v754
      %v756 = vpop.f32.mrb[0].mxu0
      %757 = vmatprep.mubr.bf16.mxu0 0
      %758 = vmatmul.mubr.bf16.gmra.mrb[0].mxu0 %v264
      %v759 = vpop.f32.mrb[0].mxu0
      %v760 = vadd.f32 %v512, %v759
      %v761 = vpop.f32.mrb[0].mxu0
      %v762 = vpop.f32.mrb[0].mxu0
      %v763 = vadd.f32 %v515, %v762
      %v764 = vpop.f32.mrb[0].mxu0
      %765 = vmatprep.mubr.bf16.mxu0 0
      %766 = vmatmul.mubr.bf16.gmra.mrb[0].mxu0 %v265
      %v767 = vpop.f32.mrb[0].mxu0
      %v768 = vadd.f32 %v520, %v767
      %v769 = vpop.f32.mrb[0].mxu0
      %v770 = vpop.f32.mrb[0].mxu0
      %v771 = vadd.f32 %v523, %v770
      %v772 = vpop.f32.mrb[0].mxu0
      %773 = vmatprep.mubr.bf16.mxu0 0
      %774 = vmatmul.mubr.bf16.gmra.mrb[0].mxu0 %v266
      %v775 = vpop.f32.mrb[0].mxu0
      %v776 = vadd.f32 %v528, %v775
      %v777 = vpop.f32.mrb[0].mxu0
      %v778 = vpop.f32.mrb[0].mxu0
      %v779 = vadd.f32 %v531, %v778
      %v780 = vpop.f32.mrb[0].mxu0
      %781 = vmatprep.mubr.bf16.mxu0 0
      %782 = vmatmul.mubr.bf16.gmra.mrb[0].mxu0 %v267
      %v783 = vpop.f32.mrb[0].mxu0
      %v784 = vadd.f32 %v536, %v783
      %v785 = vpop.f32.mrb[0].mxu0
      %v786 = vpop.f32.mrb[0].mxu0
      %v787 = vadd.f32 %v539, %v786
      %v788 = vpop.f32.mrb[0].mxu0
      %789 = vmatprep.mubr.bf16.mxu0 0
      %790 = vmatmul.mubr.bf16.gmra.mrb[0].mxu0 %v268
      %v791 = vpop.f32.mrb[0].mxu0
      %v792 = vadd.f32 %v544, %v791
      %v793 = vpop.f32.mrb[0].mxu0
      %v794 = vpop.f32.mrb[0].mxu0
      %v795 = vadd.f32 %v547, %v794
      %v796 = vpop.f32.mrb[0].mxu0
      %797 = vmatprep.mubr.bf16.mxu0 0
      %798 = vmatmul.mubr.bf16.gmra.mrb[0].mxu0 %v269
      %v799 = vpop.f32.mrb[0].mxu0
      %v800 = vadd.f32 %v552, %v799
      %v801 = vpop.f32.mrb[0].mxu0
      %v802 = vpop.f32.mrb[0].mxu0
      %v803 = vadd.f32 %v555, %v802
      %v804 = vpop.f32.mrb[0].mxu0
      %805 = vmatprep.mubr.bf16.mxu0 0
      %806 = vmatmul.mubr.bf16.gmra.mrb[0].mxu0 %v270
      %v807 = vpop.f32.mrb[0].mxu0
      %v808 = vadd.f32 %v560, %v807
      %v809 = vpop.f32.mrb[0].mxu0
      %v810 = vpop.f32.mrb[0].mxu0
      %v811 = vadd.f32 %v563, %v810
      %v812 = vpop.f32.mrb[0].mxu0
      %813 = vmatprep.mubr.bf16.mxu0 0
      %814 = vmatmul.mubr.bf16.gmra.mrb[0].mxu0 %v271
      %v815 = vpop.f32.mrb[0].mxu0
      %v816 = vadd.f32 %v568, %v815
      %v817 = vpop.f32.mrb[0].mxu0
      %v818 = vpop.f32.mrb[0].mxu0
      %v819 = vadd.f32 %v571, %v818
      %v820 = vpop.f32.mrb[0].mxu0
      %821 = vmatprep.mubr.bf16.mxu0 0
      %822 = vmatmul.mubr.bf16.gmra.mrb[0].mxu0 %v272
      %v823 = vpop.f32.mrb[0].mxu0
      %v824 = vadd.f32 %v576, %v823
      %v825 = vpop.f32.mrb[0].mxu0
      %v826 = vpop.f32.mrb[0].mxu0
      %v827 = vadd.f32 %v579, %v826
      %v828 = vpop.f32.mrb[0].mxu0
      %829 = vmatprep.mubr.bf16.mxu0 0
      %830 = vmatmul.mubr.bf16.gmra.mrb[0].mxu0 %v273
      %v831 = vpop.f32.mrb[0].mxu0
      %v832 = vadd.f32 %v584, %v831
      %v833 = vpop.f32.mrb[0].mxu0
      %v834 = vpop.f32.mrb[0].mxu0
      %v835 = vadd.f32 %v587, %v834
      %v836 = vpop.f32.mrb[0].mxu0
      %837 = vmatprep.mubr.bf16.mxu0 0
      %838 = vmatmul.mubr.bf16.gmra.mrb[0].mxu0 %v274
      %v839 = vpop.f32.mrb[0].mxu0
      %v840 = vadd.f32 %v592, %v839
      %v841 = vpop.f32.mrb[0].mxu0
      %v842 = vpop.f32.mrb[0].mxu0
      %v843 = vadd.f32 %v595, %v842
      %v844 = vpop.f32.mrb[0].mxu0
      %845 = vmatprep.mubr.bf16.mxu0 0
      %846 = vmatmul.mubr.bf16.gmra.mrb[0].mxu0 %v275
      %v847 = vpop.f32.mrb[0].mxu0
      %v848 = vadd.f32 %v600, %v847
      %v849 = vpop.f32.mrb[0].mxu0
      %v850 = vpop.f32.mrb[0].mxu0
      %v851 = vadd.f32 %v603, %v850
      %v852 = vpop.f32.mrb[0].mxu0
      %853 = vmatprep.mubr.bf16.mxu0 0
      %854 = vmatmul.mubr.bf16.gmra.mrb[0].mxu0 %v276
      %v855 = vpop.f32.mrb[0].mxu0
      %v856 = vadd.f32 %v608, %v855
      %v857 = vpop.f32.mrb[0].mxu0
      %v858 = vpop.f32.mrb[0].mxu0
      %v859 = vadd.f32 %v611, %v858
      %v860 = vpop.f32.mrb[0].mxu0
      %861 = vmatprep.mubr.bf16.mxu0 0
      %862 = vmatmul.mubr.bf16.gmra.mrb[0].mxu0 %v277
      %v863 = vpop.f32.mrb[0].mxu0
      %v864 = vadd.f32 %v616, %v863
      %v865 = vpop.f32.mrb[0].mxu0
      %v866 = vpop.f32.mrb[0].mxu0
      %v867 = vpop.f32.mrb[0].mxu0
      %868 = vdwg.mxu0
      %v869 = vld [vmem:[%s203 + $0x7] sm:$0xff]
      %v870 = vld [vmem:[%s203 + $0xf] sm:$0xff]
      %v871 = vld [vmem:[%s203 + $0x17] sm:$0xff]
      %v872 = vld [vmem:[%s203 + $0x1f] sm:$0xff]
      %v873 = vld [vmem:[%s203 + $0x27] sm:$0xff]
      %v874 = vld [vmem:[%s203 + $0x2f] sm:$0xff]
      %v875 = vld [vmem:[%s203 + $0x37] sm:$0xff]
      %v876 = vld [vmem:[%s203 + $0x3f] sm:$0xff]
      %v877 = vld [vmem:[%s203 + $0x47] sm:$0xff]
      %v878 = vld [vmem:[%s203 + $0x4f] sm:$0xff]
      %v879 = vld [vmem:[%s203 + $0x57] sm:$0xff]
      %v880 = vld [vmem:[%s203 + $0x5f] sm:$0xff]
      %v881 = vld [vmem:[%s203 + $0x67] sm:$0xff]
      %v882 = vld [vmem:[%s203 + $0x6f] sm:$0xff]
      %v883 = vld [vmem:[%s203 + $0x77] sm:$0xff]
      %v884 = vld [vmem:[%s203 + $0x7f] sm:$0xff]
      %v885 = vld [vmem:[%s203 + $0x87] sm:$0xff]
      %v886 = vld [vmem:[%s203 + $0x8f] sm:$0xff]
      %v887 = vld [vmem:[%s203 + $0x97] sm:$0xff]
      %v888 = vld [vmem:[%s203 + $0x9f] sm:$0xff]
      %v889 = vld [vmem:[%s203 + $0xa7] sm:$0xff]
      %v890 = vld [vmem:[%s203 + $0xaf] sm:$0xff]
      %v891 = vld [vmem:[%s203 + $0xb7] sm:$0xff]
      %v892 = vld [vmem:[%s203 + $0xbf] sm:$0xff]
      %v893 = vld [vmem:[%s203 + $0xc7] sm:$0xff]
      %v894 = vld [vmem:[%s203 + $0xcf] sm:$0xff]
      %v895 = vld [vmem:[%s203 + $0xd7] sm:$0xff]
      %v896 = vld [vmem:[%s203 + $0xdf] sm:$0xff]
      %v897 = vld [vmem:[%s203 + $0xe7] sm:$0xff]
      %v898 = vld [vmem:[%s203 + $0xef] sm:$0xff]
      %v899 = vld [vmem:[%s203 + $0xf7] sm:$0xff]
      %v900 = vld [vmem:[%s203 + $0xff] sm:$0xff]
      %v901 = vld [vmem:[%s203 + $0x107] sm:$0xff]
      %v902 = vld [vmem:[%s203 + $0x10f] sm:$0xff]
      %v903 = vld [vmem:[%s203 + $0x117] sm:$0xff]
      %v904 = vld [vmem:[%s203 + $0x11f] sm:$0xff]
      %v905 = vld [vmem:[%s203 + $0x127] sm:$0xff]
      %v906 = vld [vmem:[%s203 + $0x12f] sm:$0xff]
      %v907 = vld [vmem:[%s203 + $0x137] sm:$0xff]
      %v908 = vld [vmem:[%s203 + $0x13f] sm:$0xff]
      %v909 = vld [vmem:[%s203 + $0x147] sm:$0xff]
      %v910 = vpack.c.bf16 %v870, %v869
      %v911 = vpack.c.bf16 %v872, %v871
      %v912 = vpack.c.bf16 %v874, %v873
      %v913 = vpack.c.bf16 %v876, %v875
      %v914 = vpack.c.bf16 %v878, %v877
      %v915 = vpack.c.bf16 %v880, %v879
      %v916 = vpack.c.bf16 %v882, %v881
      %v917 = vpack.c.bf16 %v884, %v883
      %v918 = vpack.c.bf16 %v886, %v885
      %v919 = vpack.c.bf16 %v888, %v887
      %v920 = vpack.c.bf16 %v890, %v889
      %v921 = vpack.c.bf16 %v892, %v891
      %v922 = vpack.c.bf16 %v894, %v893
      %v923 = vpack.c.bf16 %v896, %v895
      %v924 = vpack.c.bf16 %v898, %v897
      %v925 = vpack.c.bf16 %v900, %v899
      %v926 = vpack.c.bf16 %v902, %v901
      %v927 = vpack.c.bf16 %v904, %v903
      %v928 = vpack.c.bf16 %v906, %v905
      %v929 = vpack.c.bf16 %v908, %v907
      %v930 = vpack.c.bf16 %v909, %v909
      %s931 = scalar_lea.vmem %s1, 128
      %v932 = vld [vmem:[%s931] sm:$0xf]
      %v933 = vld [vmem:[%s931 + $0x4] sm:$0xf]
      %v934 = vld [vmem:[%s931 + $0x8] sm:$0xf]
      %v935 = vld [vmem:[%s931 + $0xc] sm:$0xf]
      %v936 = vld [vmem:[%s931 + $0x10] sm:$0xf]
      %v937 = vld [vmem:[%s931 + $0x14] sm:$0xf]
      %v938 = vld [vmem:[%s931 + $0x18] sm:$0xf]
      %v939 = vld [vmem:[%s931 + $0x1c] sm:$0xf]
      %v940 = vld [vmem:[%s931 + $0x20] sm:$0xf]
      %v941 = vld [vmem:[%s931 + $0x24] sm:$0xf]
      %v942 = vld [vmem:[%s931 + $0x28] sm:$0xf]
      %v943 = vld [vmem:[%s931 + $0x2c] sm:$0xf]
      %v944 = vld [vmem:[%s931 + $0x30] sm:$0xf]
      %v945 = vld [vmem:[%s931 + $0x34] sm:$0xf]
      %v946 = vld [vmem:[%s931 + $0x38] sm:$0xf]
      %v947 = vld [vmem:[%s931 + $0x3c] sm:$0xf]
      %v964 = vunpack.c.l.b16 %v932
      %v965 = vunpack.c.l.b16 %v933
      %v966 = vunpack.c.l.b16 %v934
      %v967 = vunpack.c.l.b16 %v935
      %v968 = vunpack.c.l.b16 %v936
      %v969 = vunpack.c.l.b16 %v937
      %v970 = vunpack.c.l.b16 %v938
      %v971 = vunpack.c.l.b16 %v939
      %v972 = vunpack.c.l.b16 %v940
      %v973 = vunpack.c.l.b16 %v941
      %v974 = vunpack.c.l.b16 %v942
      %v975 = vunpack.c.l.b16 %v943
      %v976 = vunpack.c.l.b16 %v944
      %v977 = vunpack.c.l.b16 %v945
      %v978 = vunpack.c.l.b16 %v946
      %v979 = vunpack.c.l.b16 %v947
      %v980 = vpack.c.b16 %v965, %v964
      %v981 = vpack.c.b16 %v967, %v966
      %v982 = vpack.c.b16 %v969, %v968
      %v983 = vpack.c.b16 %v971, %v970
      %v984 = vpack.c.b16 %v973, %v972
      %v985 = vpack.c.b16 %v975, %v974
      %v986 = vpack.c.b16 %v977, %v976
      %v987 = vpack.c.b16 %v979, %v978
      %996 = vmatprep.subr.bf16.mxu0 0
      %997 = vmatpush1.bf16.msra.mxu0 %v980
      %998 = vmatprep.subr.bf16.mxu0 0
      %999 = vmatpush1.bf16.msra.mxu0 %v981
      %1000 = vmatprep.subr.bf16.mxu0 0
      %1001 = vmatpush1.bf16.msra.mxu0 %v982
      %1002 = vmatprep.subr.bf16.mxu0 0
      %1003 = vmatpush1.bf16.msra.mxu0 %v983
      %1004 = vmatprep.subr.bf16.mxu0 0
      %1005 = vmatpush1.bf16.msra.mxu0 %v984
      %1006 = vmatprep.subr.bf16.mxu0 0
      %1007 = vmatpush1.bf16.msra.mxu0 %v985
      %1008 = vmatprep.subr.bf16.mxu0 0
      %1009 = vmatpush1.bf16.msra.mxu0 %v986
      %1010 = vmatprep.subr.bf16.mxu0 0
      %1011 = vmatpush1.bf16.msra.mxu0 %v987
      %1012 = vmatprep.subr.bf16.mxu0 0
      %1013 = vmatpush1.bf16.msra.mxu0 0
      %1014 = vmatprep.subr.bf16.mxu0 0
      %1015 = vmatpush1.bf16.msra.mxu0 0
      %1016 = vmatprep.subr.bf16.mxu0 0
      %1017 = vmatpush1.bf16.msra.mxu0 0
      %1018 = vmatprep.subr.bf16.mxu0 0
      %1019 = vmatpush1.bf16.msra.mxu0 0
      %1020 = vmatprep.subr.bf16.mxu0 0
      %1021 = vmatpush1.bf16.msra.mxu0 0
      %1022 = vmatprep.subr.bf16.mxu0 0
      %1023 = vmatpush1.bf16.msra.mxu0 0
      %1024 = vmatprep.subr.bf16.mxu0 0
      %1025 = vmatpush1.bf16.msra.mxu0 0
      %1026 = vmatprep.subr.bf16.mxu0 0
      %1027 = vmatpush1.bf16.msra.mxu0 0
      %1028 = vmatprep.mubr.bf16.mxu0 0
      %1029 = vmatmul.mubr.bf16.gmra.mrb[0].mxu0 %v910
      %v1030 = vpop.f32.mrb[0].mxu0
      %v1031 = vadd.f32 0.0, %v1030
      %v1032 = vpop.f32.mrb[0].mxu0
      %v1033 = vpop.f32.mrb[0].mxu0
      %v1034 = vadd.f32 0.0, %v1033
      %v1035 = vpop.f32.mrb[0].mxu0
      %1036 = vmatprep.mubr.bf16.mxu0 0
      %1037 = vmatmul.mubr.bf16.gmra.mrb[0].mxu0 %v911
      %v1038 = vpop.f32.mrb[0].mxu0
      %v1039 = vadd.f32 0.0, %v1038
      %v1040 = vpop.f32.mrb[0].mxu0
      %v1041 = vpop.f32.mrb[0].mxu0
      %v1042 = vadd.f32 0.0, %v1041
      %v1043 = vpop.f32.mrb[0].mxu0
      %1044 = vmatprep.mubr.bf16.mxu0 0
      %1045 = vmatmul.mubr.bf16.gmra.mrb[0].mxu0 %v912
      %v1046 = vpop.f32.mrb[0].mxu0
      %v1047 = vadd.f32 0.0, %v1046
      %v1048 = vpop.f32.mrb[0].mxu0
      %v1049 = vpop.f32.mrb[0].mxu0
      %v1050 = vadd.f32 0.0, %v1049
      %v1051 = vpop.f32.mrb[0].mxu0
      %1052 = vmatprep.mubr.bf16.mxu0 0
      %1053 = vmatmul.mubr.bf16.gmra.mrb[0].mxu0 %v913
      %v1054 = vpop.f32.mrb[0].mxu0
      %v1055 = vadd.f32 0.0, %v1054
      %v1056 = vpop.f32.mrb[0].mxu0
      %v1057 = vpop.f32.mrb[0].mxu0
      %v1058 = vadd.f32 0.0, %v1057
      %v1059 = vpop.f32.mrb[0].mxu0
      %1060 = vmatprep.mubr.bf16.mxu0 0
      %1061 = vmatmul.mubr.bf16.gmra.mrb[0].mxu0 %v914
      %v1062 = vpop.f32.mrb[0].mxu0
      %v1063 = vadd.f32 0.0, %v1062
      %v1064 = vpop.f32.mrb[0].mxu0
      %v1065 = vpop.f32.mrb[0].mxu0
      %v1066 = vadd.f32 0.0, %v1065
      %v1067 = vpop.f32.mrb[0].mxu0
      %1068 = vmatprep.mubr.bf16.mxu0 0
      %1069 = vmatmul.mubr.bf16.gmra.mrb[0].mxu0 %v915
      %v1070 = vpop.f32.mrb[0].mxu0
      %v1071 = vadd.f32 0.0, %v1070
      %v1072 = vpop.f32.mrb[0].mxu0
      %v1073 = vpop.f32.mrb[0].mxu0
      %v1074 = vadd.f32 0.0, %v1073
      %v1075 = vpop.f32.mrb[0].mxu0
      %1076 = vmatprep.mubr.bf16.mxu0 0
      %1077 = vmatmul.mubr.bf16.gmra.mrb[0].mxu0 %v916
      %v1078 = vpop.f32.mrb[0].mxu0
      %v1079 = vadd.f32 0.0, %v1078
      %v1080 = vpop.f32.mrb[0].mxu0
      %v1081 = vpop.f32.mrb[0].mxu0
      %v1082 = vadd.f32 0.0, %v1081
      %v1083 = vpop.f32.mrb[0].mxu0
      %1084 = vmatprep.mubr.bf16.mxu0 0
      %1085 = vmatmul.mubr.bf16.gmra.mrb[0].mxu0 %v917
      %v1086 = vpop.f32.mrb[0].mxu0
      %v1087 = vadd.f32 0.0, %v1086
      %v1088 = vpop.f32.mrb[0].mxu0
      %v1089 = vpop.f32.mrb[0].mxu0
      %v1090 = vadd.f32 0.0, %v1089
      %v1091 = vpop.f32.mrb[0].mxu0
      %1092 = vmatprep.mubr.bf16.mxu0 0
      %1093 = vmatmul.mubr.bf16.gmra.mrb[0].mxu0 %v918
      %v1094 = vpop.f32.mrb[0].mxu0
      %v1095 = vadd.f32 0.0, %v1094
      %v1096 = vpop.f32.mrb[0].mxu0
      %v1097 = vpop.f32.mrb[0].mxu0
      %v1098 = vadd.f32 0.0, %v1097
      %v1099 = vpop.f32.mrb[0].mxu0
      %1100 = vmatprep.mubr.bf16.mxu0 0
      %1101 = vmatmul.mubr.bf16.gmra.mrb[0].mxu0 %v919
      %v1102 = vpop.f32.mrb[0].mxu0
      %v1103 = vadd.f32 0.0, %v1102
      %v1104 = vpop.f32.mrb[0].mxu0
      %v1105 = vpop.f32.mrb[0].mxu0
      %v1106 = vadd.f32 0.0, %v1105
      %v1107 = vpop.f32.mrb[0].mxu0
      %1108 = vmatprep.mubr.bf16.mxu0 0
      %1109 = vmatmul.mubr.bf16.gmra.mrb[0].mxu0 %v920
      %v1110 = vpop.f32.mrb[0].mxu0
      %v1111 = vadd.f32 0.0, %v1110
      %v1112 = vpop.f32.mrb[0].mxu0
      %v1113 = vpop.f32.mrb[0].mxu0
      %v1114 = vadd.f32 0.0, %v1113
      %v1115 = vpop.f32.mrb[0].mxu0
      %1116 = vmatprep.mubr.bf16.mxu0 0
      %1117 = vmatmul.mubr.bf16.gmra.mrb[0].mxu0 %v921
      %v1118 = vpop.f32.mrb[0].mxu0
      %v1119 = vadd.f32 0.0, %v1118
      %v1120 = vpop.f32.mrb[0].mxu0
      %v1121 = vpop.f32.mrb[0].mxu0
      %v1122 = vadd.f32 0.0, %v1121
      %v1123 = vpop.f32.mrb[0].mxu0
      %1124 = vmatprep.mubr.bf16.mxu0 0
      %1125 = vmatmul.mubr.bf16.gmra.mrb[0].mxu0 %v922
      %v1126 = vpop.f32.mrb[0].mxu0
      %v1127 = vadd.f32 0.0, %v1126
      %v1128 = vpop.f32.mrb[0].mxu0
      %v1129 = vpop.f32.mrb[0].mxu0
      %v1130 = vadd.f32 0.0, %v1129
      %v1131 = vpop.f32.mrb[0].mxu0
      %1132 = vmatprep.mubr.bf16.mxu0 0
      %1133 = vmatmul.mubr.bf16.gmra.mrb[0].mxu0 %v923
      %v1134 = vpop.f32.mrb[0].mxu0
      %v1135 = vadd.f32 0.0, %v1134
      %v1136 = vpop.f32.mrb[0].mxu0
      %v1137 = vpop.f32.mrb[0].mxu0
      %v1138 = vadd.f32 0.0, %v1137
      %v1139 = vpop.f32.mrb[0].mxu0
      %1140 = vmatprep.mubr.bf16.mxu0 0
      %1141 = vmatmul.mubr.bf16.gmra.mrb[0].mxu0 %v924
      %v1142 = vpop.f32.mrb[0].mxu0
      %v1143 = vadd.f32 0.0, %v1142
      %v1144 = vpop.f32.mrb[0].mxu0
      %v1145 = vpop.f32.mrb[0].mxu0
      %v1146 = vadd.f32 0.0, %v1145
      %v1147 = vpop.f32.mrb[0].mxu0
      %1148 = vmatprep.mubr.bf16.mxu0 0
      %1149 = vmatmul.mubr.bf16.gmra.mrb[0].mxu0 %v925
      %v1150 = vpop.f32.mrb[0].mxu0
      %v1151 = vadd.f32 0.0, %v1150
      %v1152 = vpop.f32.mrb[0].mxu0
      %v1153 = vpop.f32.mrb[0].mxu0
      %v1154 = vadd.f32 0.0, %v1153
      %v1155 = vpop.f32.mrb[0].mxu0
      %1156 = vmatprep.mubr.bf16.mxu0 0
      %1157 = vmatmul.mubr.bf16.gmra.mrb[0].mxu0 %v926
      %v1158 = vpop.f32.mrb[0].mxu0
      %v1159 = vadd.f32 0.0, %v1158
      %v1160 = vpop.f32.mrb[0].mxu0
      %v1161 = vpop.f32.mrb[0].mxu0
      %v1162 = vadd.f32 0.0, %v1161
      %v1163 = vpop.f32.mrb[0].mxu0
      %1164 = vmatprep.mubr.bf16.mxu0 0
      %1165 = vmatmul.mubr.bf16.gmra.mrb[0].mxu0 %v927
      %v1166 = vpop.f32.mrb[0].mxu0
      %v1167 = vadd.f32 0.0, %v1166
      %v1168 = vpop.f32.mrb[0].mxu0
      %v1169 = vpop.f32.mrb[0].mxu0
      %v1170 = vadd.f32 0.0, %v1169
      %v1171 = vpop.f32.mrb[0].mxu0
      %1172 = vmatprep.mubr.bf16.mxu0 0
      %1173 = vmatmul.mubr.bf16.gmra.mrb[0].mxu0 %v928
      %v1174 = vpop.f32.mrb[0].mxu0
      %v1175 = vadd.f32 0.0, %v1174
      %v1176 = vpop.f32.mrb[0].mxu0
      %v1177 = vpop.f32.mrb[0].mxu0
      %v1178 = vadd.f32 0.0, %v1177
      %v1179 = vpop.f32.mrb[0].mxu0
      %1180 = vmatprep.mubr.bf16.mxu0 0
      %1181 = vmatmul.mubr.bf16.gmra.mrb[0].mxu0 %v929
      %v1182 = vpop.f32.mrb[0].mxu0
      %v1183 = vadd.f32 0.0, %v1182
      %v1184 = vpop.f32.mrb[0].mxu0
      %v1185 = vpop.f32.mrb[0].mxu0
      %v1186 = vadd.f32 0.0, %v1185
      %v1187 = vpop.f32.mrb[0].mxu0
      %1188 = vmatprep.mubr.bf16.mxu0 0
      %1189 = vmatmul.mubr.bf16.gmra.mrb[0].mxu0 %v930
      %v1190 = vpop.f32.mrb[0].mxu0
      %v1191 = vadd.f32 0.0, %v1190
      %v1192 = vpop.f32.mrb[0].mxu0
      %v1193 = vpop.f32.mrb[0].mxu0
      %v1194 = vpop.f32.mrb[0].mxu0
      %1195 = vdwg.mxu0
      %v1196 = vadd.f32 %v704, %v1031
      %v1197 = vadd.f32 %v707, %v1034
      %v1198 = vadd.f32 %v712, %v1039
      %v1199 = vadd.f32 %v715, %v1042
      %v1200 = vadd.f32 %v720, %v1047
      %v1201 = vadd.f32 %v723, %v1050
      %v1202 = vadd.f32 %v728, %v1055
      %v1203 = vadd.f32 %v731, %v1058
      %v1204 = vadd.f32 %v736, %v1063
      %v1205 = vadd.f32 %v739, %v1066
      %v1206 = vadd.f32 %v744, %v1071
      %v1207 = vadd.f32 %v747, %v1074
      %v1208 = vadd.f32 %v752, %v1079
      %v1209 = vadd.f32 %v755, %v1082
      %v1210 = vadd.f32 %v760, %v1087
      %v1211 = vadd.f32 %v763, %v1090
      %v1212 = vadd.f32 %v768, %v1095
      %v1213 = vadd.f32 %v771, %v1098
      %v1214 = vadd.f32 %v776, %v1103
      %v1215 = vadd.f32 %v779, %v1106
      %v1216 = vadd.f32 %v784, %v1111
      %v1217 = vadd.f32 %v787, %v1114
      %v1218 = vadd.f32 %v792, %v1119
      %v1219 = vadd.f32 %v795, %v1122
      %v1220 = vadd.f32 %v800, %v1127
      %v1221 = vadd.f32 %v803, %v1130
      %v1222 = vadd.f32 %v808, %v1135
      %v1223 = vadd.f32 %v811, %v1138
      %v1224 = vadd.f32 %v816, %v1143
      %v1225 = vadd.f32 %v819, %v1146
      %v1226 = vadd.f32 %v824, %v1151
      %v1227 = vadd.f32 %v827, %v1154
      %v1228 = vadd.f32 %v832, %v1159
      %v1229 = vadd.f32 %v835, %v1162
      %v1230 = vadd.f32 %v840, %v1167
      %v1231 = vadd.f32 %v843, %v1170
      %v1232 = vadd.f32 %v848, %v1175
      %v1233 = vadd.f32 %v851, %v1178
      %v1234 = vadd.f32 %v856, %v1183
      %v1235 = vadd.f32 %v859, %v1186
      %v1236 = vadd.f32 %v864, %v1191
      %v1237 = vld [vmem:[%s203 + $0x17] sm:$0xff]
      %v1238 = vld [vmem:[%s203 + $0x1f] sm:$0xff]
      %v1239 = vld [vmem:[%s203 + $0x27] sm:$0xff]
      %v1240 = vld [vmem:[%s203 + $0x2f] sm:$0xff]
      %v1241 = vld [vmem:[%s203 + $0x37] sm:$0xff]
      %v1242 = vld [vmem:[%s203 + $0x3f] sm:$0xff]
      %v1243 = vld [vmem:[%s203 + $0x47] sm:$0xff]
      %v1244 = vld [vmem:[%s203 + $0x4f] sm:$0xff]
      %v1245 = vld [vmem:[%s203 + $0x57] sm:$0xff]
      %v1246 = vld [vmem:[%s203 + $0x5f] sm:$0xff]
      %v1247 = vld [vmem:[%s203 + $0x67] sm:$0xff]
      %v1248 = vld [vmem:[%s203 + $0x6f] sm:$0xff]
      %v1249 = vld [vmem:[%s203 + $0x77] sm:$0xff]
      %v1250 = vld [vmem:[%s203 + $0x7f] sm:$0xff]
      %v1251 = vld [vmem:[%s203 + $0x87] sm:$0xff]
      %v1252 = vld [vmem:[%s203 + $0x8f] sm:$0xff]
      %v1253 = vld [vmem:[%s203 + $0x97] sm:$0xff]
      %v1254 = vld [vmem:[%s203 + $0x9f] sm:$0xff]
      %v1255 = vld [vmem:[%s203 + $0xa7] sm:$0xff]
      %v1256 = vld [vmem:[%s203 + $0xaf] sm:$0xff]
      %v1257 = vld [vmem:[%s203 + $0xb7] sm:$0xff]
      %v1258 = vld [vmem:[%s203 + $0xbf] sm:$0xff]
      %v1259 = vld [vmem:[%s203 + $0xc7] sm:$0xff]
      %v1260 = vld [vmem:[%s203 + $0xcf] sm:$0xff]
      %v1261 = vld [vmem:[%s203 + $0xd7] sm:$0xff]
      %v1262 = vld [vmem:[%s203 + $0xdf] sm:$0xff]
      %v1263 = vld [vmem:[%s203 + $0xe7] sm:$0xff]
      %v1264 = vld [vmem:[%s203 + $0xef] sm:$0xff]
      %v1265 = vld [vmem:[%s203 + $0xf7] sm:$0xff]
      %v1266 = vld [vmem:[%s203 + $0xff] sm:$0xff]
      %v1267 = vld [vmem:[%s203 + $0x107] sm:$0xff]
      %v1268 = vld [vmem:[%s203 + $0x10f] sm:$0xff]
      %v1269 = vld [vmem:[%s203 + $0x117] sm:$0xff]
      %v1270 = vld [vmem:[%s203 + $0x11f] sm:$0xff]
      %v1271 = vld [vmem:[%s203 + $0x127] sm:$0xff]
      %v1272 = vld [vmem:[%s203 + $0x12f] sm:$0xff]
      %v1273 = vld [vmem:[%s203 + $0x137] sm:$0xff]
      %v1274 = vld [vmem:[%s203 + $0x13f] sm:$0xff]
      %v1275 = vld [vmem:[%s203 + $0x147] sm:$0xff]
      %v1276 = vld [vmem:[%s203 + $0x14f] sm:$0xff]
      %v1277 = vld [vmem:[%s203 + $0x157] sm:$0xff]
      %v1278 = vpack.c.bf16 %v1238, %v1237
      %v1279 = vpack.c.bf16 %v1240, %v1239
      %v1280 = vpack.c.bf16 %v1242, %v1241
      %v1281 = vpack.c.bf16 %v1244, %v1243
      %v1282 = vpack.c.bf16 %v1246, %v1245
      %v1283 = vpack.c.bf16 %v1248, %v1247
      %v1284 = vpack.c.bf16 %v1250, %v1249
      %v1285 = vpack.c.bf16 %v1252, %v1251
      %v1286 = vpack.c.bf16 %v1254, %v1253
      %v1287 = vpack.c.bf16 %v1256, %v1255
      %v1288 = vpack.c.bf16 %v1258, %v1257
      %v1289 = vpack.c.bf16 %v1260, %v1259
      %v1290 = vpack.c.bf16 %v1262, %v1261
      %v1291 = vpack.c.bf16 %v1264, %v1263
      %v1292 = vpack.c.bf16 %v1266, %v1265
      %v1293 = vpack.c.bf16 %v1268, %v1267
      %v1294 = vpack.c.bf16 %v1270, %v1269
      %v1295 = vpack.c.bf16 %v1272, %v1271
      %v1296 = vpack.c.bf16 %v1274, %v1273
      %v1297 = vpack.c.bf16 %v1276, %v1275
      %v1298 = vpack.c.bf16 %v1277, %v1277
      %s1299 = scalar_lea.vmem %s1, 192
      %v1300 = vld [vmem:[%s1299] sm:$0xf]
      %v1301 = vld [vmem:[%s1299 + $0x4] sm:$0xf]
      %v1302 = vld [vmem:[%s1299 + $0x8] sm:$0xf]
      %v1303 = vld [vmem:[%s1299 + $0xc] sm:$0xf]
      %v1304 = vld [vmem:[%s1299 + $0x10] sm:$0xf]
      %v1305 = vld [vmem:[%s1299 + $0x14] sm:$0xf]
      %v1306 = vld [vmem:[%s1299 + $0x18] sm:$0xf]
      %v1307 = vld [vmem:[%s1299 + $0x1c] sm:$0xf]
      %v1308 = vld [vmem:[%s1299 + $0x20] sm:$0xf]
      %v1309 = vld [vmem:[%s1299 + $0x24] sm:$0xf]
      %v1310 = vld [vmem:[%s1299 + $0x28] sm:$0xf]
      %v1311 = vld [vmem:[%s1299 + $0x2c] sm:$0xf]
      %v1312 = vld [vmem:[%s1299 + $0x30] sm:$0xf]
      %v1313 = vld [vmem:[%s1299 + $0x34] sm:$0xf]
      %v1314 = vld [vmem:[%s1299 + $0x38] sm:$0xf]
      %v1315 = vld [vmem:[%s1299 + $0x3c] sm:$0xf]
      %v1332 = vunpack.c.l.b16 %v1300
      %v1333 = vunpack.c.l.b16 %v1301
      %v1334 = vunpack.c.l.b16 %v1302
      %v1335 = vunpack.c.l.b16 %v1303
      %v1336 = vunpack.c.l.b16 %v1304
      %v1337 = vunpack.c.l.b16 %v1305
      %v1338 = vunpack.c.l.b16 %v1306
      %v1339 = vunpack.c.l.b16 %v1307
      %v1340 = vunpack.c.l.b16 %v1308
      %v1341 = vunpack.c.l.b16 %v1309
      %v1342 = vunpack.c.l.b16 %v1310
      %v1343 = vunpack.c.l.b16 %v1311
      %v1344 = vunpack.c.l.b16 %v1312
      %v1345 = vunpack.c.l.b16 %v1313
      %v1346 = vunpack.c.l.b16 %v1314
      %v1347 = vunpack.c.l.b16 %v1315
      %v1348 = vpack.c.b16 %v1333, %v1332
      %v1349 = vpack.c.b16 %v1335, %v1334
      %v1350 = vpack.c.b16 %v1337, %v1336
      %v1351 = vpack.c.b16 %v1339, %v1338
      %v1352 = vpack.c.b16 %v1341, %v1340
      %v1353 = vpack.c.b16 %v1343, %v1342
      %v1354 = vpack.c.b16 %v1345, %v1344
      %v1355 = vpack.c.b16 %v1347, %v1346
      %1364 = vmatprep.subr.bf16.mxu0 0
      %1365 = vmatpush1.bf16.msra.mxu0 %v1348
      %1366 = vmatprep.subr.bf16.mxu0 0
      %1367 = vmatpush1.bf16.msra.mxu0 %v1349
      %1368 = vmatprep.subr.bf16.mxu0 0
      %1369 = vmatpush1.bf16.msra.mxu0 %v1350
      %1370 = vmatprep.subr.bf16.mxu0 0
      %1371 = vmatpush1.bf16.msra.mxu0 %v1351
      %1372 = vmatprep.subr.bf16.mxu0 0
      %1373 = vmatpush1.bf16.msra.mxu0 %v1352
      %1374 = vmatprep.subr.bf16.mxu0 0
      %1375 = vmatpush1.bf16.msra.mxu0 %v1353
      %1376 = vmatprep.subr.bf16.mxu0 0
      %1377 = vmatpush1.bf16.msra.mxu0 %v1354
      %1378 = vmatprep.subr.bf16.mxu0 0
      %1379 = vmatpush1.bf16.msra.mxu0 %v1355
      %1380 = vmatprep.subr.bf16.mxu0 0
      %1381 = vmatpush1.bf16.msra.mxu0 0
      %1382 = vmatprep.subr.bf16.mxu0 0
      %1383 = vmatpush1.bf16.msra.mxu0 0
      %1384 = vmatprep.subr.bf16.mxu0 0
      %1385 = vmatpush1.bf16.msra.mxu0 0
      %1386 = vmatprep.subr.bf16.mxu0 0
      %1387 = vmatpush1.bf16.msra.mxu0 0
      %1388 = vmatprep.subr.bf16.mxu0 0
      %1389 = vmatpush1.bf16.msra.mxu0 0
      %1390 = vmatprep.subr.bf16.mxu0 0
      %1391 = vmatpush1.bf16.msra.mxu0 0
      %1392 = vmatprep.subr.bf16.mxu0 0
      %1393 = vmatpush1.bf16.msra.mxu0 0
      %1394 = vmatprep.subr.bf16.mxu0 0
      %1395 = vmatpush1.bf16.msra.mxu0 0
      %1396 = vmatprep.mubr.bf16.mxu0 0
      %1397 = vmatmul.mubr.bf16.gmra.mrb[0].mxu0 %v1278
      %v1398 = vpop.f32.mrb[0].mxu0
      %v1399 = vadd.f32 0.0, %v1398
      %v1400 = vpop.f32.mrb[0].mxu0
      %v1401 = vpop.f32.mrb[0].mxu0
      %v1402 = vadd.f32 0.0, %v1401
      %v1403 = vpop.f32.mrb[0].mxu0
      %1404 = vmatprep.mubr.bf16.mxu0 0
      %1405 = vmatmul.mubr.bf16.gmra.mrb[0].mxu0 %v1279
      %v1406 = vpop.f32.mrb[0].mxu0
      %v1407 = vadd.f32 0.0, %v1406
      %v1408 = vpop.f32.mrb[0].mxu0
      %v1409 = vpop.f32.mrb[0].mxu0
      %v1410 = vadd.f32 0.0, %v1409
      %v1411 = vpop.f32.mrb[0].mxu0
      %1412 = vmatprep.mubr.bf16.mxu0 0
      %1413 = vmatmul.mubr.bf16.gmra.mrb[0].mxu0 %v1280
      %v1414 = vpop.f32.mrb[0].mxu0
      %v1415 = vadd.f32 0.0, %v1414
      %v1416 = vpop.f32.mrb[0].mxu0
      %v1417 = vpop.f32.mrb[0].mxu0
      %v1418 = vadd.f32 0.0, %v1417
      %v1419 = vpop.f32.mrb[0].mxu0
      %1420 = vmatprep.mubr.bf16.mxu0 0
      %1421 = vmatmul.mubr.bf16.gmra.mrb[0].mxu0 %v1281
      %v1422 = vpop.f32.mrb[0].mxu0
      %v1423 = vadd.f32 0.0, %v1422
      %v1424 = vpop.f32.mrb[0].mxu0
      %v1425 = vpop.f32.mrb[0].mxu0
      %v1426 = vadd.f32 0.0, %v1425
      %v1427 = vpop.f32.mrb[0].mxu0
      %1428 = vmatprep.mubr.bf16.mxu0 0
      %1429 = vmatmul.mubr.bf16.gmra.mrb[0].mxu0 %v1282
      %v1430 = vpop.f32.mrb[0].mxu0
      %v1431 = vadd.f32 0.0, %v1430
      %v1432 = vpop.f32.mrb[0].mxu0
      %v1433 = vpop.f32.mrb[0].mxu0
      %v1434 = vadd.f32 0.0, %v1433
      %v1435 = vpop.f32.mrb[0].mxu0
      %1436 = vmatprep.mubr.bf16.mxu0 0
      %1437 = vmatmul.mubr.bf16.gmra.mrb[0].mxu0 %v1283
      %v1438 = vpop.f32.mrb[0].mxu0
      %v1439 = vadd.f32 0.0, %v1438
      %v1440 = vpop.f32.mrb[0].mxu0
      %v1441 = vpop.f32.mrb[0].mxu0
      %v1442 = vadd.f32 0.0, %v1441
      %v1443 = vpop.f32.mrb[0].mxu0
      %1444 = vmatprep.mubr.bf16.mxu0 0
      %1445 = vmatmul.mubr.bf16.gmra.mrb[0].mxu0 %v1284
      %v1446 = vpop.f32.mrb[0].mxu0
      %v1447 = vadd.f32 0.0, %v1446
      %v1448 = vpop.f32.mrb[0].mxu0
      %v1449 = vpop.f32.mrb[0].mxu0
      %v1450 = vadd.f32 0.0, %v1449
      %v1451 = vpop.f32.mrb[0].mxu0
      %1452 = vmatprep.mubr.bf16.mxu0 0
      %1453 = vmatmul.mubr.bf16.gmra.mrb[0].mxu0 %v1285
      %v1454 = vpop.f32.mrb[0].mxu0
      %v1455 = vadd.f32 0.0, %v1454
      %v1456 = vpop.f32.mrb[0].mxu0
      %v1457 = vpop.f32.mrb[0].mxu0
      %v1458 = vadd.f32 0.0, %v1457
      %v1459 = vpop.f32.mrb[0].mxu0
      %1460 = vmatprep.mubr.bf16.mxu0 0
      %1461 = vmatmul.mubr.bf16.gmra.mrb[0].mxu0 %v1286
      %v1462 = vpop.f32.mrb[0].mxu0
      %v1463 = vadd.f32 0.0, %v1462
      %v1464 = vpop.f32.mrb[0].mxu0
      %v1465 = vpop.f32.mrb[0].mxu0
      %v1466 = vadd.f32 0.0, %v1465
      %v1467 = vpop.f32.mrb[0].mxu0
      %1468 = vmatprep.mubr.bf16.mxu0 0
      %1469 = vmatmul.mubr.bf16.gmra.mrb[0].mxu0 %v1287
      %v1470 = vpop.f32.mrb[0].mxu0
      %v1471 = vadd.f32 0.0, %v1470
      %v1472 = vpop.f32.mrb[0].mxu0
      %v1473 = vpop.f32.mrb[0].mxu0
      %v1474 = vadd.f32 0.0, %v1473
      %v1475 = vpop.f32.mrb[0].mxu0
      %1476 = vmatprep.mubr.bf16.mxu0 0
      %1477 = vmatmul.mubr.bf16.gmra.mrb[0].mxu0 %v1288
      %v1478 = vpop.f32.mrb[0].mxu0
      %v1479 = vadd.f32 0.0, %v1478
      %v1480 = vpop.f32.mrb[0].mxu0
      %v1481 = vpop.f32.mrb[0].mxu0
      %v1482 = vadd.f32 0.0, %v1481
      %v1483 = vpop.f32.mrb[0].mxu0
      %1484 = vmatprep.mubr.bf16.mxu0 0
      %1485 = vmatmul.mubr.bf16.gmra.mrb[0].mxu0 %v1289
      %v1486 = vpop.f32.mrb[0].mxu0
      %v1487 = vadd.f32 0.0, %v1486
      %v1488 = vpop.f32.mrb[0].mxu0
      %v1489 = vpop.f32.mrb[0].mxu0
      %v1490 = vadd.f32 0.0, %v1489
      %v1491 = vpop.f32.mrb[0].mxu0
      %1492 = vmatprep.mubr.bf16.mxu0 0
      %1493 = vmatmul.mubr.bf16.gmra.mrb[0].mxu0 %v1290
      %v1494 = vpop.f32.mrb[0].mxu0
      %v1495 = vadd.f32 0.0, %v1494
      %v1496 = vpop.f32.mrb[0].mxu0
      %v1497 = vpop.f32.mrb[0].mxu0
      %v1498 = vadd.f32 0.0, %v1497
      %v1499 = vpop.f32.mrb[0].mxu0
      %1500 = vmatprep.mubr.bf16.mxu0 0
      %1501 = vmatmul.mubr.bf16.gmra.mrb[0].mxu0 %v1291
      %v1502 = vpop.f32.mrb[0].mxu0
      %v1503 = vadd.f32 0.0, %v1502
      %v1504 = vpop.f32.mrb[0].mxu0
      %v1505 = vpop.f32.mrb[0].mxu0
      %v1506 = vadd.f32 0.0, %v1505
      %v1507 = vpop.f32.mrb[0].mxu0
      %1508 = vmatprep.mubr.bf16.mxu0 0
      %1509 = vmatmul.mubr.bf16.gmra.mrb[0].mxu0 %v1292
      %v1510 = vpop.f32.mrb[0].mxu0
      %v1511 = vadd.f32 0.0, %v1510
      %v1512 = vpop.f32.mrb[0].mxu0
      %v1513 = vpop.f32.mrb[0].mxu0
      %v1514 = vadd.f32 0.0, %v1513
      %v1515 = vpop.f32.mrb[0].mxu0
      %1516 = vmatprep.mubr.bf16.mxu0 0
      %1517 = vmatmul.mubr.bf16.gmra.mrb[0].mxu0 %v1293
      %v1518 = vpop.f32.mrb[0].mxu0
      %v1519 = vadd.f32 0.0, %v1518
      %v1520 = vpop.f32.mrb[0].mxu0
      %v1521 = vpop.f32.mrb[0].mxu0
      %v1522 = vadd.f32 0.0, %v1521
      %v1523 = vpop.f32.mrb[0].mxu0
      %1524 = vmatprep.mubr.bf16.mxu0 0
      %1525 = vmatmul.mubr.bf16.gmra.mrb[0].mxu0 %v1294
      %v1526 = vpop.f32.mrb[0].mxu0
      %v1527 = vadd.f32 0.0, %v1526
      %v1528 = vpop.f32.mrb[0].mxu0
      %v1529 = vpop.f32.mrb[0].mxu0
      %v1530 = vadd.f32 0.0, %v1529
      %v1531 = vpop.f32.mrb[0].mxu0
      %1532 = vmatprep.mubr.bf16.mxu0 0
      %1533 = vmatmul.mubr.bf16.gmra.mrb[0].mxu0 %v1295
      %v1534 = vpop.f32.mrb[0].mxu0
      %v1535 = vadd.f32 0.0, %v1534
      %v1536 = vpop.f32.mrb[0].mxu0
      %v1537 = vpop.f32.mrb[0].mxu0
      %v1538 = vadd.f32 0.0, %v1537
      %v1539 = vpop.f32.mrb[0].mxu0
      %1540 = vmatprep.mubr.bf16.mxu0 0
      %1541 = vmatmul.mubr.bf16.gmra.mrb[0].mxu0 %v1296
      %v1542 = vpop.f32.mrb[0].mxu0
      %v1543 = vadd.f32 0.0, %v1542
      %v1544 = vpop.f32.mrb[0].mxu0
      %v1545 = vpop.f32.mrb[0].mxu0
      %v1546 = vadd.f32 0.0, %v1545
      %v1547 = vpop.f32.mrb[0].mxu0
      %1548 = vmatprep.mubr.bf16.mxu0 0
      %1549 = vmatmul.mubr.bf16.gmra.mrb[0].mxu0 %v1297
      %v1550 = vpop.f32.mrb[0].mxu0
      %v1551 = vadd.f32 0.0, %v1550
      %v1552 = vpop.f32.mrb[0].mxu0
      %v1553 = vpop.f32.mrb[0].mxu0
      %v1554 = vadd.f32 0.0, %v1553
      %v1555 = vpop.f32.mrb[0].mxu0
      %1556 = vmatprep.mubr.bf16.mxu0 0
      %1557 = vmatmul.mubr.bf16.gmra.mrb[0].mxu0 %v1298
      %v1558 = vpop.f32.mrb[0].mxu0
      %v1559 = vadd.f32 0.0, %v1558
      %v1560 = vpop.f32.mrb[0].mxu0
      %v1561 = vpop.f32.mrb[0].mxu0
      %v1562 = vpop.f32.mrb[0].mxu0
      %1563 = vdwg.mxu0
      %v1564 = vadd.f32 %v1196, %v1399
      %v1565 = vadd.f32 %v1197, %v1402
      %v1566 = vadd.f32 %v1198, %v1407
      %v1567 = vadd.f32 %v1199, %v1410
      %v1568 = vadd.f32 %v1200, %v1415
      %v1569 = vadd.f32 %v1201, %v1418
      %v1570 = vadd.f32 %v1202, %v1423
      %v1571 = vadd.f32 %v1203, %v1426
      %v1572 = vadd.f32 %v1204, %v1431
      %v1573 = vadd.f32 %v1205, %v1434
      %v1574 = vadd.f32 %v1206, %v1439
      %v1575 = vadd.f32 %v1207, %v1442
      %v1576 = vadd.f32 %v1208, %v1447
      %v1577 = vadd.f32 %v1209, %v1450
      %v1578 = vadd.f32 %v1210, %v1455
      %v1579 = vadd.f32 %v1211, %v1458
      %v1580 = vadd.f32 %v1212, %v1463
      %v1581 = vadd.f32 %v1213, %v1466
      %v1582 = vadd.f32 %v1214, %v1471
      %v1583 = vadd.f32 %v1215, %v1474
      %v1584 = vadd.f32 %v1216, %v1479
      %v1585 = vadd.f32 %v1217, %v1482
      %v1586 = vadd.f32 %v1218, %v1487
      %v1587 = vadd.f32 %v1219, %v1490
      %v1588 = vadd.f32 %v1220, %v1495
      %v1589 = vadd.f32 %v1221, %v1498
      %v1590 = vadd.f32 %v1222, %v1503
      %v1591 = vadd.f32 %v1223, %v1506
      %v1592 = vadd.f32 %v1224, %v1511
      %v1593 = vadd.f32 %v1225, %v1514
      %v1594 = vadd.f32 %v1226, %v1519
      %v1595 = vadd.f32 %v1227, %v1522
      %v1596 = vadd.f32 %v1228, %v1527
      %v1597 = vadd.f32 %v1229, %v1530
      %v1598 = vadd.f32 %v1230, %v1535
      %v1599 = vadd.f32 %v1231, %v1538
      %v1600 = vadd.f32 %v1232, %v1543
      %v1601 = vadd.f32 %v1233, %v1546
      %v1602 = vadd.f32 %v1234, %v1551
      %v1603 = vadd.f32 %v1235, %v1554
      %v1604 = vadd.f32 %v1236, %v1559
      %v1605 = vld [vmem:[%s203 + $0x18] sm:$0xff]
      %v1606 = vld [vmem:[%s203 + $0x20] sm:$0xff]
      %v1607 = vld [vmem:[%s203 + $0x28] sm:$0xff]
      %v1608 = vld [vmem:[%s203 + $0x30] sm:$0xff]
      %v1609 = vld [vmem:[%s203 + $0x38] sm:$0xff]
      %v1610 = vld [vmem:[%s203 + $0x40] sm:$0xff]
      %v1611 = vld [vmem:[%s203 + $0x48] sm:$0xff]
      %v1612 = vld [vmem:[%s203 + $0x50] sm:$0xff]
      %v1613 = vld [vmem:[%s203 + $0x58] sm:$0xff]
      %v1614 = vld [vmem:[%s203 + $0x60] sm:$0xff]
      %v1615 = vld [vmem:[%s203 + $0x68] sm:$0xff]
      %v1616 = vld [vmem:[%s203 + $0x70] sm:$0xff]
      %v1617 = vld [vmem:[%s203 + $0x78] sm:$0xff]
      %v1618 = vld [vmem:[%s203 + $0x80] sm:$0xff]
      %v1619 = vld [vmem:[%s203 + $0x88] sm:$0xff]
      %v1620 = vld [vmem:[%s203 + $0x90] sm:$0xff]
      %v1621 = vld [vmem:[%s203 + $0x98] sm:$0xff]
      %v1622 = vld [vmem:[%s203 + $0xa0] sm:$0xff]
      %v1623 = vld [vmem:[%s203 + $0xa8] sm:$0xff]
      %v1624 = vld [vmem:[%s203 + $0xb0] sm:$0xff]
      %v1625 = vld [vmem:[%s203 + $0xb8] sm:$0xff]
      %v1626 = vld [vmem:[%s203 + $0xc0] sm:$0xff]
      %v1627 = vld [vmem:[%s203 + $0xc8] sm:$0xff]
      %v1628 = vld [vmem:[%s203 + $0xd0] sm:$0xff]
      %v1629 = vld [vmem:[%s203 + $0xd8] sm:$0xff]
      %v1630 = vld [vmem:[%s203 + $0xe0] sm:$0xff]
      %v1631 = vld [vmem:[%s203 + $0xe8] sm:$0xff]
      %v1632 = vld [vmem:[%s203 + $0xf0] sm:$0xff]
      %v1633 = vld [vmem:[%s203 + $0xf8] sm:$0xff]
      %v1634 = vld [vmem:[%s203 + $0x100] sm:$0xff]
      %v1635 = vld [vmem:[%s203 + $0x108] sm:$0xff]
      %v1636 = vld [vmem:[%s203 + $0x110] sm:$0xff]
      %v1637 = vld [vmem:[%s203 + $0x118] sm:$0xff]
      %v1638 = vld [vmem:[%s203 + $0x120] sm:$0xff]
      %v1639 = vld [vmem:[%s203 + $0x128] sm:$0xff]
      %v1640 = vld [vmem:[%s203 + $0x130] sm:$0xff]
      %v1641 = vld [vmem:[%s203 + $0x138] sm:$0xff]
      %v1642 = vld [vmem:[%s203 + $0x140] sm:$0xff]
      %v1643 = vld [vmem:[%s203 + $0x148] sm:$0xff]
      %v1644 = vld [vmem:[%s203 + $0x150] sm:$0xff]
      %v1645 = vld [vmem:[%s203 + $0x158] sm:$0xff]
      %v1646 = vpack.c.bf16 %v1606, %v1605
      %v1647 = vpack.c.bf16 %v1608, %v1607
      %v1648 = vpack.c.bf16 %v1610, %v1609
      %v1649 = vpack.c.bf16 %v1612, %v1611
      %v1650 = vpack.c.bf16 %v1614, %v1613
      %v1651 = vpack.c.bf16 %v1616, %v1615
      %v1652 = vpack.c.bf16 %v1618, %v1617
      %v1653 = vpack.c.bf16 %v1620, %v1619
      %v1654 = vpack.c.bf16 %v1622, %v1621
      %v1655 = vpack.c.bf16 %v1624, %v1623
      %v1656 = vpack.c.bf16 %v1626, %v1625
      %v1657 = vpack.c.bf16 %v1628, %v1627
      %v1658 = vpack.c.bf16 %v1630, %v1629
      %v1659 = vpack.c.bf16 %v1632, %v1631
      %v1660 = vpack.c.bf16 %v1634, %v1633
      %v1661 = vpack.c.bf16 %v1636, %v1635
      %v1662 = vpack.c.bf16 %v1638, %v1637
      %v1663 = vpack.c.bf16 %v1640, %v1639
      %v1664 = vpack.c.bf16 %v1642, %v1641
      %v1665 = vpack.c.bf16 %v1644, %v1643
      %v1666 = vpack.c.bf16 %v1645, %v1645
      %s1667 = scalar_lea.vmem %s1, 256
      %v1668 = vld [vmem:[%s1667] sm:$0xf]
      %v1669 = vld [vmem:[%s1667 + $0x4] sm:$0xf]
      %v1670 = vld [vmem:[%s1667 + $0x8] sm:$0xf]
      %v1671 = vld [vmem:[%s1667 + $0xc] sm:$0xf]
      %v1672 = vld [vmem:[%s1667 + $0x10] sm:$0xf]
      %v1673 = vld [vmem:[%s1667 + $0x14] sm:$0xf]
      %v1674 = vld [vmem:[%s1667 + $0x18] sm:$0xf]
      %v1675 = vld [vmem:[%s1667 + $0x1c] sm:$0xf]
      %v1676 = vld [vmem:[%s1667 + $0x20] sm:$0xf]
      %v1677 = vld [vmem:[%s1667 + $0x24] sm:$0xf]
      %v1678 = vld [vmem:[%s1667 + $0x28] sm:$0xf]
      %v1679 = vld [vmem:[%s1667 + $0x2c] sm:$0xf]
      %v1680 = vld [vmem:[%s1667 + $0x30] sm:$0xf]
      %v1681 = vld [vmem:[%s1667 + $0x34] sm:$0xf]
      %v1682 = vld [vmem:[%s1667 + $0x38] sm:$0xf]
      %v1683 = vld [vmem:[%s1667 + $0x3c] sm:$0xf]
      %v1700 = vunpack.c.l.b16 %v1668
      %v1701 = vunpack.c.l.b16 %v1669
      %v1702 = vunpack.c.l.b16 %v1670
      %v1703 = vunpack.c.l.b16 %v1671
      %v1704 = vunpack.c.l.b16 %v1672
      %v1705 = vunpack.c.l.b16 %v1673
      %v1706 = vunpack.c.l.b16 %v1674
      %v1707 = vunpack.c.l.b16 %v1675
      %v1708 = vunpack.c.l.b16 %v1676
      %v1709 = vunpack.c.l.b16 %v1677
      %v1710 = vunpack.c.l.b16 %v1678
      %v1711 = vunpack.c.l.b16 %v1679
      %v1712 = vunpack.c.l.b16 %v1680
      %v1713 = vunpack.c.l.b16 %v1681
      %v1714 = vunpack.c.l.b16 %v1682
      %v1715 = vunpack.c.l.b16 %v1683
      %v1716 = vpack.c.b16 %v1701, %v1700
      %v1717 = vpack.c.b16 %v1703, %v1702
      %v1718 = vpack.c.b16 %v1705, %v1704
      %v1719 = vpack.c.b16 %v1707, %v1706
      %v1720 = vpack.c.b16 %v1709, %v1708
      %v1721 = vpack.c.b16 %v1711, %v1710
      %v1722 = vpack.c.b16 %v1713, %v1712
      %v1723 = vpack.c.b16 %v1715, %v1714
      %1732 = vmatprep.subr.bf16.mxu0 0
      %1733 = vmatpush1.bf16.msra.mxu0 %v1716
      %1734 = vmatprep.subr.bf16.mxu0 0
      %1735 = vmatpush1.bf16.msra.mxu0 %v1717
      %1736 = vmatprep.subr.bf16.mxu0 0
      %1737 = vmatpush1.bf16.msra.mxu0 %v1718
      %1738 = vmatprep.subr.bf16.mxu0 0
      %1739 = vmatpush1.bf16.msra.mxu0 %v1719
      %1740 = vmatprep.subr.bf16.mxu0 0
      %1741 = vmatpush1.bf16.msra.mxu0 %v1720
      %1742 = vmatprep.subr.bf16.mxu0 0
      %1743 = vmatpush1.bf16.msra.mxu0 %v1721
      %1744 = vmatprep.subr.bf16.mxu0 0
      %1745 = vmatpush1.bf16.msra.mxu0 %v1722
      %1746 = vmatprep.subr.bf16.mxu0 0
      %1747 = vmatpush1.bf16.msra.mxu0 %v1723
      %1748 = vmatprep.subr.bf16.mxu0 0
      %1749 = vmatpush1.bf16.msra.mxu0 0
      %1750 = vmatprep.subr.bf16.mxu0 0
      %1751 = vmatpush1.bf16.msra.mxu0 0
      %1752 = vmatprep.subr.bf16.mxu0 0
      %1753 = vmatpush1.bf16.msra.mxu0 0
      %1754 = vmatprep.subr.bf16.mxu0 0
      %1755 = vmatpush1.bf16.msra.mxu0 0
      %1756 = vmatprep.subr.bf16.mxu0 0
      %1757 = vmatpush1.bf16.msra.mxu0 0
      %1758 = vmatprep.subr.bf16.mxu0 0
      %1759 = vmatpush1.bf16.msra.mxu0 0
      %1760 = vmatprep.subr.bf16.mxu0 0
      %1761 = vmatpush1.bf16.msra.mxu0 0
      %1762 = vmatprep.subr.bf16.mxu0 0
      %1763 = vmatpush1.bf16.msra.mxu0 0
      %1764 = vmatprep.mubr.bf16.mxu0 0
      %1765 = vmatmul.mubr.bf16.gmra.mrb[0].mxu0 %v1646
      %v1766 = vpop.f32.mrb[0].mxu0
      %v1767 = vadd.f32 0.0, %v1766
      %v1768 = vpop.f32.mrb[0].mxu0
      %v1769 = vpop.f32.mrb[0].mxu0
      %v1770 = vadd.f32 0.0, %v1769
      %v1771 = vpop.f32.mrb[0].mxu0
      %1772 = vmatprep.mubr.bf16.mxu0 0
      %1773 = vmatmul.mubr.bf16.gmra.mrb[0].mxu0 %v1647
      %v1774 = vpop.f32.mrb[0].mxu0
      %v1775 = vadd.f32 0.0, %v1774
      %v1776 = vpop.f32.mrb[0].mxu0
      %v1777 = vpop.f32.mrb[0].mxu0
      %v1778 = vadd.f32 0.0, %v1777
      %v1779 = vpop.f32.mrb[0].mxu0
      %1780 = vmatprep.mubr.bf16.mxu0 0
      %1781 = vmatmul.mubr.bf16.gmra.mrb[0].mxu0 %v1648
      %v1782 = vpop.f32.mrb[0].mxu0
      %v1783 = vadd.f32 0.0, %v1782
      %v1784 = vpop.f32.mrb[0].mxu0
      %v1785 = vpop.f32.mrb[0].mxu0
      %v1786 = vadd.f32 0.0, %v1785
      %v1787 = vpop.f32.mrb[0].mxu0
      %1788 = vmatprep.mubr.bf16.mxu0 0
      %1789 = vmatmul.mubr.bf16.gmra.mrb[0].mxu0 %v1649
      %v1790 = vpop.f32.mrb[0].mxu0
      %v1791 = vadd.f32 0.0, %v1790
      %v1792 = vpop.f32.mrb[0].mxu0
      %v1793 = vpop.f32.mrb[0].mxu0
      %v1794 = vadd.f32 0.0, %v1793
      %v1795 = vpop.f32.mrb[0].mxu0
      %1796 = vmatprep.mubr.bf16.mxu0 0
      %1797 = vmatmul.mubr.bf16.gmra.mrb[0].mxu0 %v1650
      %v1798 = vpop.f32.mrb[0].mxu0
      %v1799 = vadd.f32 0.0, %v1798
      %v1800 = vpop.f32.mrb[0].mxu0
      %v1801 = vpop.f32.mrb[0].mxu0
      %v1802 = vadd.f32 0.0, %v1801
      %v1803 = vpop.f32.mrb[0].mxu0
      %1804 = vmatprep.mubr.bf16.mxu0 0
      %1805 = vmatmul.mubr.bf16.gmra.mrb[0].mxu0 %v1651
      %v1806 = vpop.f32.mrb[0].mxu0
      %v1807 = vadd.f32 0.0, %v1806
      %v1808 = vpop.f32.mrb[0].mxu0
      %v1809 = vpop.f32.mrb[0].mxu0
      %v1810 = vadd.f32 0.0, %v1809
      %v1811 = vpop.f32.mrb[0].mxu0
      %1812 = vmatprep.mubr.bf16.mxu0 0
      %1813 = vmatmul.mubr.bf16.gmra.mrb[0].mxu0 %v1652
      %v1814 = vpop.f32.mrb[0].mxu0
      %v1815 = vadd.f32 0.0, %v1814
      %v1816 = vpop.f32.mrb[0].mxu0
      %v1817 = vpop.f32.mrb[0].mxu0
      %v1818 = vadd.f32 0.0, %v1817
      %v1819 = vpop.f32.mrb[0].mxu0
      %1820 = vmatprep.mubr.bf16.mxu0 0
      %1821 = vmatmul.mubr.bf16.gmra.mrb[0].mxu0 %v1653
      %v1822 = vpop.f32.mrb[0].mxu0
      %v1823 = vadd.f32 0.0, %v1822
      %v1824 = vpop.f32.mrb[0].mxu0
      %v1825 = vpop.f32.mrb[0].mxu0
      %v1826 = vadd.f32 0.0, %v1825
      %v1827 = vpop.f32.mrb[0].mxu0
      %1828 = vmatprep.mubr.bf16.mxu0 0
      %1829 = vmatmul.mubr.bf16.gmra.mrb[0].mxu0 %v1654
      %v1830 = vpop.f32.mrb[0].mxu0
      %v1831 = vadd.f32 0.0, %v1830
      %v1832 = vpop.f32.mrb[0].mxu0
      %v1833 = vpop.f32.mrb[0].mxu0
      %v1834 = vadd.f32 0.0, %v1833
      %v1835 = vpop.f32.mrb[0].mxu0
      %1836 = vmatprep.mubr.bf16.mxu0 0
      %1837 = vmatmul.mubr.bf16.gmra.mrb[0].mxu0 %v1655
      %v1838 = vpop.f32.mrb[0].mxu0
      %v1839 = vadd.f32 0.0, %v1838
      %v1840 = vpop.f32.mrb[0].mxu0
      %v1841 = vpop.f32.mrb[0].mxu0
      %v1842 = vadd.f32 0.0, %v1841
      %v1843 = vpop.f32.mrb[0].mxu0
      %1844 = vmatprep.mubr.bf16.mxu0 0
      %1845 = vmatmul.mubr.bf16.gmra.mrb[0].mxu0 %v1656
      %v1846 = vpop.f32.mrb[0].mxu0
      %v1847 = vadd.f32 0.0, %v1846
      %v1848 = vpop.f32.mrb[0].mxu0
      %v1849 = vpop.f32.mrb[0].mxu0
      %v1850 = vadd.f32 0.0, %v1849
      %v1851 = vpop.f32.mrb[0].mxu0
      %1852 = vmatprep.mubr.bf16.mxu0 0
      %1853 = vmatmul.mubr.bf16.gmra.mrb[0].mxu0 %v1657
      %v1854 = vpop.f32.mrb[0].mxu0
      %v1855 = vadd.f32 0.0, %v1854
      %v1856 = vpop.f32.mrb[0].mxu0
      %v1857 = vpop.f32.mrb[0].mxu0
      %v1858 = vadd.f32 0.0, %v1857
      %v1859 = vpop.f32.mrb[0].mxu0
      %1860 = vmatprep.mubr.bf16.mxu0 0
      %1861 = vmatmul.mubr.bf16.gmra.mrb[0].mxu0 %v1658
      %v1862 = vpop.f32.mrb[0].mxu0
      %v1863 = vadd.f32 0.0, %v1862
      %v1864 = vpop.f32.mrb[0].mxu0
      %v1865 = vpop.f32.mrb[0].mxu0
      %v1866 = vadd.f32 0.0, %v1865
      %v1867 = vpop.f32.mrb[0].mxu0
      %1868 = vmatprep.mubr.bf16.mxu0 0
      %1869 = vmatmul.mubr.bf16.gmra.mrb[0].mxu0 %v1659
      %v1870 = vpop.f32.mrb[0].mxu0
      %v1871 = vadd.f32 0.0, %v1870
      %v1872 = vpop.f32.mrb[0].mxu0
      %v1873 = vpop.f32.mrb[0].mxu0
      %v1874 = vadd.f32 0.0, %v1873
      %v1875 = vpop.f32.mrb[0].mxu0
      %1876 = vmatprep.mubr.bf16.mxu0 0
      %1877 = vmatmul.mubr.bf16.gmra.mrb[0].mxu0 %v1660
      %v1878 = vpop.f32.mrb[0].mxu0
      %v1879 = vadd.f32 0.0, %v1878
      %v1880 = vpop.f32.mrb[0].mxu0
      %v1881 = vpop.f32.mrb[0].mxu0
      %v1882 = vadd.f32 0.0, %v1881
      %v1883 = vpop.f32.mrb[0].mxu0
      %1884 = vmatprep.mubr.bf16.mxu0 0
      %1885 = vmatmul.mubr.bf16.gmra.mrb[0].mxu0 %v1661
      %v1886 = vpop.f32.mrb[0].mxu0
      %v1887 = vadd.f32 0.0, %v1886
      %v1888 = vpop.f32.mrb[0].mxu0
      %v1889 = vpop.f32.mrb[0].mxu0
      %v1890 = vadd.f32 0.0, %v1889
      %v1891 = vpop.f32.mrb[0].mxu0
      %1892 = vmatprep.mubr.bf16.mxu0 0
      %1893 = vmatmul.mubr.bf16.gmra.mrb[0].mxu0 %v1662
      %v1894 = vpop.f32.mrb[0].mxu0
      %v1895 = vadd.f32 0.0, %v1894
      %v1896 = vpop.f32.mrb[0].mxu0
      %v1897 = vpop.f32.mrb[0].mxu0
      %v1898 = vadd.f32 0.0, %v1897
      %v1899 = vpop.f32.mrb[0].mxu0
      %1900 = vmatprep.mubr.bf16.mxu0 0
      %1901 = vmatmul.mubr.bf16.gmra.mrb[0].mxu0 %v1663
      %v1902 = vpop.f32.mrb[0].mxu0
      %v1903 = vadd.f32 0.0, %v1902
      %v1904 = vpop.f32.mrb[0].mxu0
      %v1905 = vpop.f32.mrb[0].mxu0
      %v1906 = vadd.f32 0.0, %v1905
      %v1907 = vpop.f32.mrb[0].mxu0
      %1908 = vmatprep.mubr.bf16.mxu0 0
      %1909 = vmatmul.mubr.bf16.gmra.mrb[0].mxu0 %v1664
      %v1910 = vpop.f32.mrb[0].mxu0
      %v1911 = vadd.f32 0.0, %v1910
      %v1912 = vpop.f32.mrb[0].mxu0
      %v1913 = vpop.f32.mrb[0].mxu0
      %v1914 = vadd.f32 0.0, %v1913
      %v1915 = vpop.f32.mrb[0].mxu0
      %1916 = vmatprep.mubr.bf16.mxu0 0
      %1917 = vmatmul.mubr.bf16.gmra.mrb[0].mxu0 %v1665
      %v1918 = vpop.f32.mrb[0].mxu0
      %v1919 = vadd.f32 0.0, %v1918
      %v1920 = vpop.f32.mrb[0].mxu0
      %v1921 = vpop.f32.mrb[0].mxu0
      %v1922 = vadd.f32 0.0, %v1921
      %v1923 = vpop.f32.mrb[0].mxu0
      %1924 = vmatprep.mubr.bf16.mxu0 0
      %1925 = vmatmul.mubr.bf16.gmra.mrb[0].mxu0 %v1666
      %v1926 = vpop.f32.mrb[0].mxu0
      %v1927 = vadd.f32 0.0, %v1926
      %v1928 = vpop.f32.mrb[0].mxu0
      %v1929 = vpop.f32.mrb[0].mxu0
      %v1930 = vpop.f32.mrb[0].mxu0
      %1931 = vdwg.mxu0
      %v1932 = vadd.f32 %v1564, %v1767
      %v1933 = vadd.f32 %v1565, %v1770
      %v1934 = vadd.f32 %v1566, %v1775
      %v1935 = vadd.f32 %v1567, %v1778
      %v1936 = vadd.f32 %v1568, %v1783
      %v1937 = vadd.f32 %v1569, %v1786
      %v1938 = vadd.f32 %v1570, %v1791
      %v1939 = vadd.f32 %v1571, %v1794
      %v1940 = vadd.f32 %v1572, %v1799
      %v1941 = vadd.f32 %v1573, %v1802
      %v1942 = vadd.f32 %v1574, %v1807
      %v1943 = vadd.f32 %v1575, %v1810
      %v1944 = vadd.f32 %v1576, %v1815
      %v1945 = vadd.f32 %v1577, %v1818
      %v1946 = vadd.f32 %v1578, %v1823
      %v1947 = vadd.f32 %v1579, %v1826
      %v1948 = vadd.f32 %v1580, %v1831
      %v1949 = vadd.f32 %v1581, %v1834
      %v1950 = vadd.f32 %v1582, %v1839
      %v1951 = vadd.f32 %v1583, %v1842
      %v1952 = vadd.f32 %v1584, %v1847
      %v1953 = vadd.f32 %v1585, %v1850
      %v1954 = vadd.f32 %v1586, %v1855
      %v1955 = vadd.f32 %v1587, %v1858
      %v1956 = vadd.f32 %v1588, %v1863
      %v1957 = vadd.f32 %v1589, %v1866
      %v1958 = vadd.f32 %v1590, %v1871
      %v1959 = vadd.f32 %v1591, %v1874
      %v1960 = vadd.f32 %v1592, %v1879
      %v1961 = vadd.f32 %v1593, %v1882
      %v1962 = vadd.f32 %v1594, %v1887
      %v1963 = vadd.f32 %v1595, %v1890
      %v1964 = vadd.f32 %v1596, %v1895
      %v1965 = vadd.f32 %v1597, %v1898
      %v1966 = vadd.f32 %v1598, %v1903
      %v1967 = vadd.f32 %v1599, %v1906
      %v1968 = vadd.f32 %v1600, %v1911
      %v1969 = vadd.f32 %v1601, %v1914
      %v1970 = vadd.f32 %v1602, %v1919
      %v1971 = vadd.f32 %v1603, %v1922
      %v1972 = vadd.f32 %v1604, %v1927
      %v1973 = vld [vmem:[%s203 + $0x19] sm:$0xff]
      %v1974 = vld [vmem:[%s203 + $0x21] sm:$0xff]
      %v1975 = vld [vmem:[%s203 + $0x29] sm:$0xff]
      %v1976 = vld [vmem:[%s203 + $0x31] sm:$0xff]
      %v1977 = vld [vmem:[%s203 + $0x39] sm:$0xff]
      %v1978 = vld [vmem:[%s203 + $0x41] sm:$0xff]
      %v1979 = vld [vmem:[%s203 + $0x49] sm:$0xff]
      %v1980 = vld [vmem:[%s203 + $0x51] sm:$0xff]
      %v1981 = vld [vmem:[%s203 + $0x59] sm:$0xff]
      %v1982 = vld [vmem:[%s203 + $0x61] sm:$0xff]
      %v1983 = vld [vmem:[%s203 + $0x69] sm:$0xff]
      %v1984 = vld [vmem:[%s203 + $0x71] sm:$0xff]
      %v1985 = vld [vmem:[%s203 + $0x79] sm:$0xff]
      %v1986 = vld [vmem:[%s203 + $0x81] sm:$0xff]
      %v1987 = vld [vmem:[%s203 + $0x89] sm:$0xff]
      %v1988 = vld [vmem:[%s203 + $0x91] sm:$0xff]
      %v1989 = vld [vmem:[%s203 + $0x99] sm:$0xff]
      %v1990 = vld [vmem:[%s203 + $0xa1] sm:$0xff]
      %v1991 = vld [vmem:[%s203 + $0xa9] sm:$0xff]
      %v1992 = vld [vmem:[%s203 + $0xb1] sm:$0xff]
      %v1993 = vld [vmem:[%s203 + $0xb9] sm:$0xff]
      %v1994 = vld [vmem:[%s203 + $0xc1] sm:$0xff]
      %v1995 = vld [vmem:[%s203 + $0xc9] sm:$0xff]
      %v1996 = vld [vmem:[%s203 + $0xd1] sm:$0xff]
      %v1997 = vld [vmem:[%s203 + $0xd9] sm:$0xff]
      %v1998 = vld [vmem:[%s203 + $0xe1] sm:$0xff]
      %v1999 = vld [vmem:[%s203 + $0xe9] sm:$0xff]
      %v2000 = vld [vmem:[%s203 + $0xf1] sm:$0xff]
      %v2001 = vld [vmem:[%s203 + $0xf9] sm:$0xff]
      %v2002 = vld [vmem:[%s203 + $0x101] sm:$0xff]
      %v2003 = vld [vmem:[%s203 + $0x109] sm:$0xff]
      %v2004 = vld [vmem:[%s203 + $0x111] sm:$0xff]
      %v2005 = vld [vmem:[%s203 + $0x119] sm:$0xff]
      %v2006 = vld [vmem:[%s203 + $0x121] sm:$0xff]
      %v2007 = vld [vmem:[%s203 + $0x129] sm:$0xff]
      %v2008 = vld [vmem:[%s203 + $0x131] sm:$0xff]
      %v2009 = vld [vmem:[%s203 + $0x139] sm:$0xff]
      %v2010 = vld [vmem:[%s203 + $0x141] sm:$0xff]
      %v2011 = vld [vmem:[%s203 + $0x149] sm:$0xff]
      %v2012 = vld [vmem:[%s203 + $0x151] sm:$0xff]
      %v2013 = vld [vmem:[%s203 + $0x159] sm:$0xff]
      %v2014 = vpack.c.bf16 %v1974, %v1973
      %v2015 = vpack.c.bf16 %v1976, %v1975
      %v2016 = vpack.c.bf16 %v1978, %v1977
      %v2017 = vpack.c.bf16 %v1980, %v1979
      %v2018 = vpack.c.bf16 %v1982, %v1981
      %v2019 = vpack.c.bf16 %v1984, %v1983
      %v2020 = vpack.c.bf16 %v1986, %v1985
      %v2021 = vpack.c.bf16 %v1988, %v1987
      %v2022 = vpack.c.bf16 %v1990, %v1989
      %v2023 = vpack.c.bf16 %v1992, %v1991
      %v2024 = vpack.c.bf16 %v1994, %v1993
      %v2025 = vpack.c.bf16 %v1996, %v1995
      %v2026 = vpack.c.bf16 %v1998, %v1997
      %v2027 = vpack.c.bf16 %v2000, %v1999
      %v2028 = vpack.c.bf16 %v2002, %v2001
      %v2029 = vpack.c.bf16 %v2004, %v2003
      %v2030 = vpack.c.bf16 %v2006, %v2005
      %v2031 = vpack.c.bf16 %v2008, %v2007
      %v2032 = vpack.c.bf16 %v2010, %v2009
      %v2033 = vpack.c.bf16 %v2012, %v2011
      %v2034 = vpack.c.bf16 %v2013, %v2013
      %s2035 = scalar_lea.vmem %s1, 320
      %v2036 = vld [vmem:[%s2035] sm:$0xf]
      %v2037 = vld [vmem:[%s2035 + $0x4] sm:$0xf]
      %v2038 = vld [vmem:[%s2035 + $0x8] sm:$0xf]
      %v2039 = vld [vmem:[%s2035 + $0xc] sm:$0xf]
      %v2040 = vld [vmem:[%s2035 + $0x10] sm:$0xf]
      %v2041 = vld [vmem:[%s2035 + $0x14] sm:$0xf]
      %v2042 = vld [vmem:[%s2035 + $0x18] sm:$0xf]
      %v2043 = vld [vmem:[%s2035 + $0x1c] sm:$0xf]
      %v2044 = vld [vmem:[%s2035 + $0x20] sm:$0xf]
      %v2045 = vld [vmem:[%s2035 + $0x24] sm:$0xf]
      %v2046 = vld [vmem:[%s2035 + $0x28] sm:$0xf]
      %v2047 = vld [vmem:[%s2035 + $0x2c] sm:$0xf]
      %v2048 = vld [vmem:[%s2035 + $0x30] sm:$0xf]
      %v2049 = vld [vmem:[%s2035 + $0x34] sm:$0xf]
      %v2050 = vld [vmem:[%s2035 + $0x38] sm:$0xf]
      %v2051 = vld [vmem:[%s2035 + $0x3c] sm:$0xf]
      %v2068 = vunpack.c.l.b16 %v2036
      %v2069 = vunpack.c.l.b16 %v2037
      %v2070 = vunpack.c.l.b16 %v2038
      %v2071 = vunpack.c.l.b16 %v2039
      %v2072 = vunpack.c.l.b16 %v2040
      %v2073 = vunpack.c.l.b16 %v2041
      %v2074 = vunpack.c.l.b16 %v2042
      %v2075 = vunpack.c.l.b16 %v2043
      %v2076 = vunpack.c.l.b16 %v2044
      %v2077 = vunpack.c.l.b16 %v2045
      %v2078 = vunpack.c.l.b16 %v2046
      %v2079 = vunpack.c.l.b16 %v2047
      %v2080 = vunpack.c.l.b16 %v2048
      %v2081 = vunpack.c.l.b16 %v2049
      %v2082 = vunpack.c.l.b16 %v2050
      %v2083 = vunpack.c.l.b16 %v2051
      %v2084 = vpack.c.b16 %v2069, %v2068
      %v2085 = vpack.c.b16 %v2071, %v2070
      %v2086 = vpack.c.b16 %v2073, %v2072
      %v2087 = vpack.c.b16 %v2075, %v2074
      %v2088 = vpack.c.b16 %v2077, %v2076
      %v2089 = vpack.c.b16 %v2079, %v2078
      %v2090 = vpack.c.b16 %v2081, %v2080
      %v2091 = vpack.c.b16 %v2083, %v2082
      %2100 = vmatprep.subr.bf16.mxu0 0
      %2101 = vmatpush1.bf16.msra.mxu0 %v2084
      %2102 = vmatprep.subr.bf16.mxu0 0
      %2103 = vmatpush1.bf16.msra.mxu0 %v2085
      %2104 = vmatprep.subr.bf16.mxu0 0
      %2105 = vmatpush1.bf16.msra.mxu0 %v2086
      %2106 = vmatprep.subr.bf16.mxu0 0
      %2107 = vmatpush1.bf16.msra.mxu0 %v2087
      %2108 = vmatprep.subr.bf16.mxu0 0
      %2109 = vmatpush1.bf16.msra.mxu0 %v2088
      %2110 = vmatprep.subr.bf16.mxu0 0
      %2111 = vmatpush1.bf16.msra.mxu0 %v2089
      %2112 = vmatprep.subr.bf16.mxu0 0
      %2113 = vmatpush1.bf16.msra.mxu0 %v2090
      %2114 = vmatprep.subr.bf16.mxu0 0
      %2115 = vmatpush1.bf16.msra.mxu0 %v2091
      %2116 = vmatprep.subr.bf16.mxu0 0
      %2117 = vmatpush1.bf16.msra.mxu0 0
      %2118 = vmatprep.subr.bf16.mxu0 0
      %2119 = vmatpush1.bf16.msra.mxu0 0
      %2120 = vmatprep.subr.bf16.mxu0 0
      %2121 = vmatpush1.bf16.msra.mxu0 0
      %2122 = vmatprep.subr.bf16.mxu0 0
      %2123 = vmatpush1.bf16.msra.mxu0 0
      %2124 = vmatprep.subr.bf16.mxu0 0
      %2125 = vmatpush1.bf16.msra.mxu0 0
      %2126 = vmatprep.subr.bf16.mxu0 0
      %2127 = vmatpush1.bf16.msra.mxu0 0
      %2128 = vmatprep.subr.bf16.mxu0 0
      %2129 = vmatpush1.bf16.msra.mxu0 0
      %2130 = vmatprep.subr.bf16.mxu0 0
      %2131 = vmatpush1.bf16.msra.mxu0 0
      %2132 = vmatprep.mubr.bf16.mxu0 0
      %2133 = vmatmul.mubr.bf16.gmra.mrb[0].mxu0 %v2014
      %v2134 = vpop.f32.mrb[0].mxu0
      %v2135 = vadd.f32 0.0, %v2134
      %v2136 = vpop.f32.mrb[0].mxu0
      %v2137 = vpop.f32.mrb[0].mxu0
      %v2138 = vadd.f32 0.0, %v2137
      %v2139 = vpop.f32.mrb[0].mxu0
      %2140 = vmatprep.mubr.bf16.mxu0 0
      %2141 = vmatmul.mubr.bf16.gmra.mrb[0].mxu0 %v2015
      %v2142 = vpop.f32.mrb[0].mxu0
      %v2143 = vadd.f32 0.0, %v2142
      %v2144 = vpop.f32.mrb[0].mxu0
      %v2145 = vpop.f32.mrb[0].mxu0
      %v2146 = vadd.f32 0.0, %v2145
      %v2147 = vpop.f32.mrb[0].mxu0
      %2148 = vmatprep.mubr.bf16.mxu0 0
      %2149 = vmatmul.mubr.bf16.gmra.mrb[0].mxu0 %v2016
      %v2150 = vpop.f32.mrb[0].mxu0
      %v2151 = vadd.f32 0.0, %v2150
      %v2152 = vpop.f32.mrb[0].mxu0
      %v2153 = vpop.f32.mrb[0].mxu0
      %v2154 = vadd.f32 0.0, %v2153
      %v2155 = vpop.f32.mrb[0].mxu0
      %2156 = vmatprep.mubr.bf16.mxu0 0
      %2157 = vmatmul.mubr.bf16.gmra.mrb[0].mxu0 %v2017
      %v2158 = vpop.f32.mrb[0].mxu0
      %v2159 = vadd.f32 0.0, %v2158
      %v2160 = vpop.f32.mrb[0].mxu0
      %v2161 = vpop.f32.mrb[0].mxu0
      %v2162 = vadd.f32 0.0, %v2161
      %v2163 = vpop.f32.mrb[0].mxu0
      %2164 = vmatprep.mubr.bf16.mxu0 0
      %2165 = vmatmul.mubr.bf16.gmra.mrb[0].mxu0 %v2018
      %v2166 = vpop.f32.mrb[0].mxu0
      %v2167 = vadd.f32 0.0, %v2166
      %v2168 = vpop.f32.mrb[0].mxu0
      %v2169 = vpop.f32.mrb[0].mxu0
      %v2170 = vadd.f32 0.0, %v2169
      %v2171 = vpop.f32.mrb[0].mxu0
      %2172 = vmatprep.mubr.bf16.mxu0 0
      %2173 = vmatmul.mubr.bf16.gmra.mrb[0].mxu0 %v2019
      %v2174 = vpop.f32.mrb[0].mxu0
      %v2175 = vadd.f32 0.0, %v2174
      %v2176 = vpop.f32.mrb[0].mxu0
      %v2177 = vpop.f32.mrb[0].mxu0
      %v2178 = vadd.f32 0.0, %v2177
      %v2179 = vpop.f32.mrb[0].mxu0
      %2180 = vmatprep.mubr.bf16.mxu0 0
      %2181 = vmatmul.mubr.bf16.gmra.mrb[0].mxu0 %v2020
      %v2182 = vpop.f32.mrb[0].mxu0
      %v2183 = vadd.f32 0.0, %v2182
      %v2184 = vpop.f32.mrb[0].mxu0
      %v2185 = vpop.f32.mrb[0].mxu0
      %v2186 = vadd.f32 0.0, %v2185
      %v2187 = vpop.f32.mrb[0].mxu0
      %2188 = vmatprep.mubr.bf16.mxu0 0
      %2189 = vmatmul.mubr.bf16.gmra.mrb[0].mxu0 %v2021
      %v2190 = vpop.f32.mrb[0].mxu0
      %v2191 = vadd.f32 0.0, %v2190
      %v2192 = vpop.f32.mrb[0].mxu0
      %v2193 = vpop.f32.mrb[0].mxu0
      %v2194 = vadd.f32 0.0, %v2193
      %v2195 = vpop.f32.mrb[0].mxu0
      %2196 = vmatprep.mubr.bf16.mxu0 0
      %2197 = vmatmul.mubr.bf16.gmra.mrb[0].mxu0 %v2022
      %v2198 = vpop.f32.mrb[0].mxu0
      %v2199 = vadd.f32 0.0, %v2198
      %v2200 = vpop.f32.mrb[0].mxu0
      %v2201 = vpop.f32.mrb[0].mxu0
      %v2202 = vadd.f32 0.0, %v2201
      %v2203 = vpop.f32.mrb[0].mxu0
      %2204 = vmatprep.mubr.bf16.mxu0 0
      %2205 = vmatmul.mubr.bf16.gmra.mrb[0].mxu0 %v2023
      %v2206 = vpop.f32.mrb[0].mxu0
      %v2207 = vadd.f32 0.0, %v2206
      %v2208 = vpop.f32.mrb[0].mxu0
      %v2209 = vpop.f32.mrb[0].mxu0
      %v2210 = vadd.f32 0.0, %v2209
      %v2211 = vpop.f32.mrb[0].mxu0
      %2212 = vmatprep.mubr.bf16.mxu0 0
      %2213 = vmatmul.mubr.bf16.gmra.mrb[0].mxu0 %v2024
      %v2214 = vpop.f32.mrb[0].mxu0
      %v2215 = vadd.f32 0.0, %v2214
      %v2216 = vpop.f32.mrb[0].mxu0
      %v2217 = vpop.f32.mrb[0].mxu0
      %v2218 = vadd.f32 0.0, %v2217
      %v2219 = vpop.f32.mrb[0].mxu0
      %2220 = vmatprep.mubr.bf16.mxu0 0
      %2221 = vmatmul.mubr.bf16.gmra.mrb[0].mxu0 %v2025
      %v2222 = vpop.f32.mrb[0].mxu0
      %v2223 = vadd.f32 0.0, %v2222
      %v2224 = vpop.f32.mrb[0].mxu0
      %v2225 = vpop.f32.mrb[0].mxu0
      %v2226 = vadd.f32 0.0, %v2225
      %v2227 = vpop.f32.mrb[0].mxu0
      %2228 = vmatprep.mubr.bf16.mxu0 0
      %2229 = vmatmul.mubr.bf16.gmra.mrb[0].mxu0 %v2026
      %v2230 = vpop.f32.mrb[0].mxu0
      %v2231 = vadd.f32 0.0, %v2230
      %v2232 = vpop.f32.mrb[0].mxu0
      %v2233 = vpop.f32.mrb[0].mxu0
      %v2234 = vadd.f32 0.0, %v2233
      %v2235 = vpop.f32.mrb[0].mxu0
      %2236 = vmatprep.mubr.bf16.mxu0 0
      %2237 = vmatmul.mubr.bf16.gmra.mrb[0].mxu0 %v2027
      %v2238 = vpop.f32.mrb[0].mxu0
      %v2239 = vadd.f32 0.0, %v2238
      %v2240 = vpop.f32.mrb[0].mxu0
      %v2241 = vpop.f32.mrb[0].mxu0
      %v2242 = vadd.f32 0.0, %v2241
      %v2243 = vpop.f32.mrb[0].mxu0
      %2244 = vmatprep.mubr.bf16.mxu0 0
      %2245 = vmatmul.mubr.bf16.gmra.mrb[0].mxu0 %v2028
      %v2246 = vpop.f32.mrb[0].mxu0
      %v2247 = vadd.f32 0.0, %v2246
      %v2248 = vpop.f32.mrb[0].mxu0
      %v2249 = vpop.f32.mrb[0].mxu0
      %v2250 = vadd.f32 0.0, %v2249
      %v2251 = vpop.f32.mrb[0].mxu0
      %2252 = vmatprep.mubr.bf16.mxu0 0
      %2253 = vmatmul.mubr.bf16.gmra.mrb[0].mxu0 %v2029
      %v2254 = vpop.f32.mrb[0].mxu0
      %v2255 = vadd.f32 0.0, %v2254
      %v2256 = vpop.f32.mrb[0].mxu0
      %v2257 = vpop.f32.mrb[0].mxu0
      %v2258 = vadd.f32 0.0, %v2257
      %v2259 = vpop.f32.mrb[0].mxu0
      %2260 = vmatprep.mubr.bf16.mxu0 0
      %2261 = vmatmul.mubr.bf16.gmra.mrb[0].mxu0 %v2030
      %v2262 = vpop.f32.mrb[0].mxu0
      %v2263 = vadd.f32 0.0, %v2262
      %v2264 = vpop.f32.mrb[0].mxu0
      %v2265 = vpop.f32.mrb[0].mxu0
      %v2266 = vadd.f32 0.0, %v2265
      %v2267 = vpop.f32.mrb[0].mxu0
      %2268 = vmatprep.mubr.bf16.mxu0 0
      %2269 = vmatmul.mubr.bf16.gmra.mrb[0].mxu0 %v2031
      %v2270 = vpop.f32.mrb[0].mxu0
      %v2271 = vadd.f32 0.0, %v2270
      %v2272 = vpop.f32.mrb[0].mxu0
      %v2273 = vpop.f32.mrb[0].mxu0
      %v2274 = vadd.f32 0.0, %v2273
      %v2275 = vpop.f32.mrb[0].mxu0
      %2276 = vmatprep.mubr.bf16.mxu0 0
      %2277 = vmatmul.mubr.bf16.gmra.mrb[0].mxu0 %v2032
      %v2278 = vpop.f32.mrb[0].mxu0
      %v2279 = vadd.f32 0.0, %v2278
      %v2280 = vpop.f32.mrb[0].mxu0
      %v2281 = vpop.f32.mrb[0].mxu0
      %v2282 = vadd.f32 0.0, %v2281
      %v2283 = vpop.f32.mrb[0].mxu0
      %2284 = vmatprep.mubr.bf16.mxu0 0
      %2285 = vmatmul.mubr.bf16.gmra.mrb[0].mxu0 %v2033
      %v2286 = vpop.f32.mrb[0].mxu0
      %v2287 = vadd.f32 0.0, %v2286
      %v2288 = vpop.f32.mrb[0].mxu0
      %v2289 = vpop.f32.mrb[0].mxu0
      %v2290 = vadd.f32 0.0, %v2289
      %v2291 = vpop.f32.mrb[0].mxu0
      %2292 = vmatprep.mubr.bf16.mxu0 0
      %2293 = vmatmul.mubr.bf16.gmra.mrb[0].mxu0 %v2034
      %v2294 = vpop.f32.mrb[0].mxu0
      %v2295 = vadd.f32 0.0, %v2294
      %v2296 = vpop.f32.mrb[0].mxu0
      %v2297 = vpop.f32.mrb[0].mxu0
      %v2298 = vpop.f32.mrb[0].mxu0
      %2299 = vdwg.mxu0
      %v2300 = vadd.f32 %v1932, %v2135
      %v2301 = vadd.f32 %v1933, %v2138
      %v2302 = vadd.f32 %v1934, %v2143
      %v2303 = vadd.f32 %v1935, %v2146
      %v2304 = vadd.f32 %v1936, %v2151
      %v2305 = vadd.f32 %v1937, %v2154
      %v2306 = vadd.f32 %v1938, %v2159
      %v2307 = vadd.f32 %v1939, %v2162
      %v2308 = vadd.f32 %v1940, %v2167
      %v2309 = vadd.f32 %v1941, %v2170
      %v2310 = vadd.f32 %v1942, %v2175
      %v2311 = vadd.f32 %v1943, %v2178
      %v2312 = vadd.f32 %v1944, %v2183
      %v2313 = vadd.f32 %v1945, %v2186
      %v2314 = vadd.f32 %v1946, %v2191
      %v2315 = vadd.f32 %v1947, %v2194
      %v2316 = vadd.f32 %v1948, %v2199
      %v2317 = vadd.f32 %v1949, %v2202
      %v2318 = vadd.f32 %v1950, %v2207
      %v2319 = vadd.f32 %v1951, %v2210
      %v2320 = vadd.f32 %v1952, %v2215
      %v2321 = vadd.f32 %v1953, %v2218
      %v2322 = vadd.f32 %v1954, %v2223
      %v2323 = vadd.f32 %v1955, %v2226
      %v2324 = vadd.f32 %v1956, %v2231
      %v2325 = vadd.f32 %v1957, %v2234
      %v2326 = vadd.f32 %v1958, %v2239
      %v2327 = vadd.f32 %v1959, %v2242
      %v2328 = vadd.f32 %v1960, %v2247
      %v2329 = vadd.f32 %v1961, %v2250
      %v2330 = vadd.f32 %v1962, %v2255
      %v2331 = vadd.f32 %v1963, %v2258
      %v2332 = vadd.f32 %v1964, %v2263
      %v2333 = vadd.f32 %v1965, %v2266
      %v2334 = vadd.f32 %v1966, %v2271
      %v2335 = vadd.f32 %v1967, %v2274
      %v2336 = vadd.f32 %v1968, %v2279
      %v2337 = vadd.f32 %v1969, %v2282
      %v2338 = vadd.f32 %v1970, %v2287
      %v2339 = vadd.f32 %v1971, %v2290
      %v2340 = vadd.f32 %v1972, %v2295
      %v2341 = vld [vmem:[%s203 + $0x29] sm:$0xff]
      %v2342 = vld [vmem:[%s203 + $0x31] sm:$0xff]
      %v2343 = vld [vmem:[%s203 + $0x39] sm:$0xff]
      %v2344 = vld [vmem:[%s203 + $0x41] sm:$0xff]
      %v2345 = vld [vmem:[%s203 + $0x49] sm:$0xff]
      %v2346 = vld [vmem:[%s203 + $0x51] sm:$0xff]
      %v2347 = vld [vmem:[%s203 + $0x59] sm:$0xff]
      %v2348 = vld [vmem:[%s203 + $0x61] sm:$0xff]
      %v2349 = vld [vmem:[%s203 + $0x69] sm:$0xff]
      %v2350 = vld [vmem:[%s203 + $0x71] sm:$0xff]
      %v2351 = vld [vmem:[%s203 + $0x79] sm:$0xff]
      %v2352 = vld [vmem:[%s203 + $0x81] sm:$0xff]
      %v2353 = vld [vmem:[%s203 + $0x89] sm:$0xff]
      %v2354 = vld [vmem:[%s203 + $0x91] sm:$0xff]
      %v2355 = vld [vmem:[%s203 + $0x99] sm:$0xff]
      %v2356 = vld [vmem:[%s203 + $0xa1] sm:$0xff]
      %v2357 = vld [vmem:[%s203 + $0xa9] sm:$0xff]
      %v2358 = vld [vmem:[%s203 + $0xb1] sm:$0xff]
      %v2359 = vld [vmem:[%s203 + $0xb9] sm:$0xff]
      %v2360 = vld [vmem:[%s203 + $0xc1] sm:$0xff]
      %v2361 = vld [vmem:[%s203 + $0xc9] sm:$0xff]
      %v2362 = vld [vmem:[%s203 + $0xd1] sm:$0xff]
      %v2363 = vld [vmem:[%s203 + $0xd9] sm:$0xff]
      %v2364 = vld [vmem:[%s203 + $0xe1] sm:$0xff]
      %v2365 = vld [vmem:[%s203 + $0xe9] sm:$0xff]
      %v2366 = vld [vmem:[%s203 + $0xf1] sm:$0xff]
      %v2367 = vld [vmem:[%s203 + $0xf9] sm:$0xff]
      %v2368 = vld [vmem:[%s203 + $0x101] sm:$0xff]
      %v2369 = vld [vmem:[%s203 + $0x109] sm:$0xff]
      %v2370 = vld [vmem:[%s203 + $0x111] sm:$0xff]
      %v2371 = vld [vmem:[%s203 + $0x119] sm:$0xff]
      %v2372 = vld [vmem:[%s203 + $0x121] sm:$0xff]
      %v2373 = vld [vmem:[%s203 + $0x129] sm:$0xff]
      %v2374 = vld [vmem:[%s203 + $0x131] sm:$0xff]
      %v2375 = vld [vmem:[%s203 + $0x139] sm:$0xff]
      %v2376 = vld [vmem:[%s203 + $0x141] sm:$0xff]
      %v2377 = vld [vmem:[%s203 + $0x149] sm:$0xff]
      %v2378 = vld [vmem:[%s203 + $0x151] sm:$0xff]
      %v2379 = vld [vmem:[%s203 + $0x159] sm:$0xff]
      %v2380 = vld [vmem:[%s203 + $0x161] sm:$0xff]
      %v2381 = vld [vmem:[%s203 + $0x169] sm:$0xff]
      %v2382 = vpack.c.bf16 %v2342, %v2341
      %v2383 = vpack.c.bf16 %v2344, %v2343
      %v2384 = vpack.c.bf16 %v2346, %v2345
      %v2385 = vpack.c.bf16 %v2348, %v2347
      %v2386 = vpack.c.bf16 %v2350, %v2349
      %v2387 = vpack.c.bf16 %v2352, %v2351
      %v2388 = vpack.c.bf16 %v2354, %v2353
      %v2389 = vpack.c.bf16 %v2356, %v2355
      %v2390 = vpack.c.bf16 %v2358, %v2357
      %v2391 = vpack.c.bf16 %v2360, %v2359
      %v2392 = vpack.c.bf16 %v2362, %v2361
      %v2393 = vpack.c.bf16 %v2364, %v2363
      %v2394 = vpack.c.bf16 %v2366, %v2365
      %v2395 = vpack.c.bf16 %v2368, %v2367
      %v2396 = vpack.c.bf16 %v2370, %v2369
      %v2397 = vpack.c.bf16 %v2372, %v2371
      %v2398 = vpack.c.bf16 %v2374, %v2373
      %v2399 = vpack.c.bf16 %v2376, %v2375
      %v2400 = vpack.c.bf16 %v2378, %v2377
      %v2401 = vpack.c.bf16 %v2380, %v2379
      %v2402 = vpack.c.bf16 %v2381, %v2381
      %s2403 = scalar_lea.vmem %s1, 384
      %v2404 = vld [vmem:[%s2403] sm:$0xf]
      %v2405 = vld [vmem:[%s2403 + $0x4] sm:$0xf]
      %v2406 = vld [vmem:[%s2403 + $0x8] sm:$0xf]
      %v2407 = vld [vmem:[%s2403 + $0xc] sm:$0xf]
      %v2408 = vld [vmem:[%s2403 + $0x10] sm:$0xf]
      %v2409 = vld [vmem:[%s2403 + $0x14] sm:$0xf]
      %v2410 = vld [vmem:[%s2403 + $0x18] sm:$0xf]
      %v2411 = vld [vmem:[%s2403 + $0x1c] sm:$0xf]
      %v2412 = vld [vmem:[%s2403 + $0x20] sm:$0xf]
      %v2413 = vld [vmem:[%s2403 + $0x24] sm:$0xf]
      %v2414 = vld [vmem:[%s2403 + $0x28] sm:$0xf]
      %v2415 = vld [vmem:[%s2403 + $0x2c] sm:$0xf]
      %v2416 = vld [vmem:[%s2403 + $0x30] sm:$0xf]
      %v2417 = vld [vmem:[%s2403 + $0x34] sm:$0xf]
      %v2418 = vld [vmem:[%s2403 + $0x38] sm:$0xf]
      %v2419 = vld [vmem:[%s2403 + $0x3c] sm:$0xf]
      %v2436 = vunpack.c.l.b16 %v2404
      %v2437 = vunpack.c.l.b16 %v2405
      %v2438 = vunpack.c.l.b16 %v2406
      %v2439 = vunpack.c.l.b16 %v2407
      %v2440 = vunpack.c.l.b16 %v2408
      %v2441 = vunpack.c.l.b16 %v2409
      %v2442 = vunpack.c.l.b16 %v2410
      %v2443 = vunpack.c.l.b16 %v2411
      %v2444 = vunpack.c.l.b16 %v2412
      %v2445 = vunpack.c.l.b16 %v2413
      %v2446 = vunpack.c.l.b16 %v2414
      %v2447 = vunpack.c.l.b16 %v2415
      %v2448 = vunpack.c.l.b16 %v2416
      %v2449 = vunpack.c.l.b16 %v2417
      %v2450 = vunpack.c.l.b16 %v2418
      %v2451 = vunpack.c.l.b16 %v2419
      %v2452 = vpack.c.b16 %v2437, %v2436
      %v2453 = vpack.c.b16 %v2439, %v2438
      %v2454 = vpack.c.b16 %v2441, %v2440
      %v2455 = vpack.c.b16 %v2443, %v2442
      %v2456 = vpack.c.b16 %v2445, %v2444
      %v2457 = vpack.c.b16 %v2447, %v2446
      %v2458 = vpack.c.b16 %v2449, %v2448
      %v2459 = vpack.c.b16 %v2451, %v2450
      %2468 = vmatprep.subr.bf16.mxu0 0
      %2469 = vmatpush1.bf16.msra.mxu0 %v2452
      %2470 = vmatprep.subr.bf16.mxu0 0
      %2471 = vmatpush1.bf16.msra.mxu0 %v2453
      %2472 = vmatprep.subr.bf16.mxu0 0
      %2473 = vmatpush1.bf16.msra.mxu0 %v2454
      %2474 = vmatprep.subr.bf16.mxu0 0
      %2475 = vmatpush1.bf16.msra.mxu0 %v2455
      %2476 = vmatprep.subr.bf16.mxu0 0
      %2477 = vmatpush1.bf16.msra.mxu0 %v2456
      %2478 = vmatprep.subr.bf16.mxu0 0
      %2479 = vmatpush1.bf16.msra.mxu0 %v2457
      %2480 = vmatprep.subr.bf16.mxu0 0
      %2481 = vmatpush1.bf16.msra.mxu0 %v2458
      %2482 = vmatprep.subr.bf16.mxu0 0
      %2483 = vmatpush1.bf16.msra.mxu0 %v2459
      %2484 = vmatprep.subr.bf16.mxu0 0
      %2485 = vmatpush1.bf16.msra.mxu0 0
      %2486 = vmatprep.subr.bf16.mxu0 0
      %2487 = vmatpush1.bf16.msra.mxu0 0
      %2488 = vmatprep.subr.bf16.mxu0 0
      %2489 = vmatpush1.bf16.msra.mxu0 0
      %2490 = vmatprep.subr.bf16.mxu0 0
      %2491 = vmatpush1.bf16.msra.mxu0 0
      %2492 = vmatprep.subr.bf16.mxu0 0
      %2493 = vmatpush1.bf16.msra.mxu0 0
      %2494 = vmatprep.subr.bf16.mxu0 0
      %2495 = vmatpush1.bf16.msra.mxu0 0
      %2496 = vmatprep.subr.bf16.mxu0 0
      %2497 = vmatpush1.bf16.msra.mxu0 0
      %2498 = vmatprep.subr.bf16.mxu0 0
      %2499 = vmatpush1.bf16.msra.mxu0 0
      %2500 = vmatprep.mubr.bf16.mxu0 0
      %2501 = vmatmul.mubr.bf16.gmra.mrb[0].mxu0 %v2382
      %v2502 = vpop.f32.mrb[0].mxu0
      %v2503 = vadd.f32 0.0, %v2502
      %v2504 = vpop.f32.mrb[0].mxu0
      %v2505 = vpop.f32.mrb[0].mxu0
      %v2506 = vadd.f32 0.0, %v2505
      %v2507 = vpop.f32.mrb[0].mxu0
      %2508 = vmatprep.mubr.bf16.mxu0 0
      %2509 = vmatmul.mubr.bf16.gmra.mrb[0].mxu0 %v2383
      %v2510 = vpop.f32.mrb[0].mxu0
      %v2511 = vadd.f32 0.0, %v2510
      %v2512 = vpop.f32.mrb[0].mxu0
      %v2513 = vpop.f32.mrb[0].mxu0
      %v2514 = vadd.f32 0.0, %v2513
      %v2515 = vpop.f32.mrb[0].mxu0
      %2516 = vmatprep.mubr.bf16.mxu0 0
      %2517 = vmatmul.mubr.bf16.gmra.mrb[0].mxu0 %v2384
      %v2518 = vpop.f32.mrb[0].mxu0
      %v2519 = vadd.f32 0.0, %v2518
      %v2520 = vpop.f32.mrb[0].mxu0
      %v2521 = vpop.f32.mrb[0].mxu0
      %v2522 = vadd.f32 0.0, %v2521
      %v2523 = vpop.f32.mrb[0].mxu0
      %2524 = vmatprep.mubr.bf16.mxu0 0
      %2525 = vmatmul.mubr.bf16.gmra.mrb[0].mxu0 %v2385
      %v2526 = vpop.f32.mrb[0].mxu0
      %v2527 = vadd.f32 0.0, %v2526
      %v2528 = vpop.f32.mrb[0].mxu0
      %v2529 = vpop.f32.mrb[0].mxu0
      %v2530 = vadd.f32 0.0, %v2529
      %v2531 = vpop.f32.mrb[0].mxu0
      %2532 = vmatprep.mubr.bf16.mxu0 0
      %2533 = vmatmul.mubr.bf16.gmra.mrb[0].mxu0 %v2386
      %v2534 = vpop.f32.mrb[0].mxu0
      %v2535 = vadd.f32 0.0, %v2534
      %v2536 = vpop.f32.mrb[0].mxu0
      %v2537 = vpop.f32.mrb[0].mxu0
      %v2538 = vadd.f32 0.0, %v2537
      %v2539 = vpop.f32.mrb[0].mxu0
      %2540 = vmatprep.mubr.bf16.mxu0 0
      %2541 = vmatmul.mubr.bf16.gmra.mrb[0].mxu0 %v2387
      %v2542 = vpop.f32.mrb[0].mxu0
      %v2543 = vadd.f32 0.0, %v2542
      %v2544 = vpop.f32.mrb[0].mxu0
      %v2545 = vpop.f32.mrb[0].mxu0
      %v2546 = vadd.f32 0.0, %v2545
      %v2547 = vpop.f32.mrb[0].mxu0
      %2548 = vmatprep.mubr.bf16.mxu0 0
      %2549 = vmatmul.mubr.bf16.gmra.mrb[0].mxu0 %v2388
      %v2550 = vpop.f32.mrb[0].mxu0
      %v2551 = vadd.f32 0.0, %v2550
      %v2552 = vpop.f32.mrb[0].mxu0
      %v2553 = vpop.f32.mrb[0].mxu0
      %v2554 = vadd.f32 0.0, %v2553
      %v2555 = vpop.f32.mrb[0].mxu0
      %2556 = vmatprep.mubr.bf16.mxu0 0
      %2557 = vmatmul.mubr.bf16.gmra.mrb[0].mxu0 %v2389
      %v2558 = vpop.f32.mrb[0].mxu0
      %v2559 = vadd.f32 0.0, %v2558
      %v2560 = vpop.f32.mrb[0].mxu0
      %v2561 = vpop.f32.mrb[0].mxu0
      %v2562 = vadd.f32 0.0, %v2561
      %v2563 = vpop.f32.mrb[0].mxu0
      %2564 = vmatprep.mubr.bf16.mxu0 0
      %2565 = vmatmul.mubr.bf16.gmra.mrb[0].mxu0 %v2390
      %v2566 = vpop.f32.mrb[0].mxu0
      %v2567 = vadd.f32 0.0, %v2566
      %v2568 = vpop.f32.mrb[0].mxu0
      %v2569 = vpop.f32.mrb[0].mxu0
      %v2570 = vadd.f32 0.0, %v2569
      %v2571 = vpop.f32.mrb[0].mxu0
      %2572 = vmatprep.mubr.bf16.mxu0 0
      %2573 = vmatmul.mubr.bf16.gmra.mrb[0].mxu0 %v2391
      %v2574 = vpop.f32.mrb[0].mxu0
      %v2575 = vadd.f32 0.0, %v2574
      %v2576 = vpop.f32.mrb[0].mxu0
      %v2577 = vpop.f32.mrb[0].mxu0
      %v2578 = vadd.f32 0.0, %v2577
      %v2579 = vpop.f32.mrb[0].mxu0
      %2580 = vmatprep.mubr.bf16.mxu0 0
      %2581 = vmatmul.mubr.bf16.gmra.mrb[0].mxu0 %v2392
      %v2582 = vpop.f32.mrb[0].mxu0
      %v2583 = vadd.f32 0.0, %v2582
      %v2584 = vpop.f32.mrb[0].mxu0
      %v2585 = vpop.f32.mrb[0].mxu0
      %v2586 = vadd.f32 0.0, %v2585
      %v2587 = vpop.f32.mrb[0].mxu0
      %2588 = vmatprep.mubr.bf16.mxu0 0
      %2589 = vmatmul.mubr.bf16.gmra.mrb[0].mxu0 %v2393
      %v2590 = vpop.f32.mrb[0].mxu0
      %v2591 = vadd.f32 0.0, %v2590
      %v2592 = vpop.f32.mrb[0].mxu0
      %v2593 = vpop.f32.mrb[0].mxu0
      %v2594 = vadd.f32 0.0, %v2593
      %v2595 = vpop.f32.mrb[0].mxu0
      %2596 = vmatprep.mubr.bf16.mxu0 0
      %2597 = vmatmul.mubr.bf16.gmra.mrb[0].mxu0 %v2394
      %v2598 = vpop.f32.mrb[0].mxu0
      %v2599 = vadd.f32 0.0, %v2598
      %v2600 = vpop.f32.mrb[0].mxu0
      %v2601 = vpop.f32.mrb[0].mxu0
      %v2602 = vadd.f32 0.0, %v2601
      %v2603 = vpop.f32.mrb[0].mxu0
      %2604 = vmatprep.mubr.bf16.mxu0 0
      %2605 = vmatmul.mubr.bf16.gmra.mrb[0].mxu0 %v2395
      %v2606 = vpop.f32.mrb[0].mxu0
      %v2607 = vadd.f32 0.0, %v2606
      %v2608 = vpop.f32.mrb[0].mxu0
      %v2609 = vpop.f32.mrb[0].mxu0
      %v2610 = vadd.f32 0.0, %v2609
      %v2611 = vpop.f32.mrb[0].mxu0
      %2612 = vmatprep.mubr.bf16.mxu0 0
      %2613 = vmatmul.mubr.bf16.gmra.mrb[0].mxu0 %v2396
      %v2614 = vpop.f32.mrb[0].mxu0
      %v2615 = vadd.f32 0.0, %v2614
      %v2616 = vpop.f32.mrb[0].mxu0
      %v2617 = vpop.f32.mrb[0].mxu0
      %v2618 = vadd.f32 0.0, %v2617
      %v2619 = vpop.f32.mrb[0].mxu0
      %2620 = vmatprep.mubr.bf16.mxu0 0
      %2621 = vmatmul.mubr.bf16.gmra.mrb[0].mxu0 %v2397
      %v2622 = vpop.f32.mrb[0].mxu0
      %v2623 = vadd.f32 0.0, %v2622
      %v2624 = vpop.f32.mrb[0].mxu0
      %v2625 = vpop.f32.mrb[0].mxu0
      %v2626 = vadd.f32 0.0, %v2625
      %v2627 = vpop.f32.mrb[0].mxu0
      %2628 = vmatprep.mubr.bf16.mxu0 0
      %2629 = vmatmul.mubr.bf16.gmra.mrb[0].mxu0 %v2398
      %v2630 = vpop.f32.mrb[0].mxu0
      %v2631 = vadd.f32 0.0, %v2630
      %v2632 = vpop.f32.mrb[0].mxu0
      %v2633 = vpop.f32.mrb[0].mxu0
      %v2634 = vadd.f32 0.0, %v2633
      %v2635 = vpop.f32.mrb[0].mxu0
      %2636 = vmatprep.mubr.bf16.mxu0 0
      %2637 = vmatmul.mubr.bf16.gmra.mrb[0].mxu0 %v2399
      %v2638 = vpop.f32.mrb[0].mxu0
      %v2639 = vadd.f32 0.0, %v2638
      %v2640 = vpop.f32.mrb[0].mxu0
      %v2641 = vpop.f32.mrb[0].mxu0
      %v2642 = vadd.f32 0.0, %v2641
      %v2643 = vpop.f32.mrb[0].mxu0
      %2644 = vmatprep.mubr.bf16.mxu0 0
      %2645 = vmatmul.mubr.bf16.gmra.mrb[0].mxu0 %v2400
      %v2646 = vpop.f32.mrb[0].mxu0
      %v2647 = vadd.f32 0.0, %v2646
      %v2648 = vpop.f32.mrb[0].mxu0
      %v2649 = vpop.f32.mrb[0].mxu0
      %v2650 = vadd.f32 0.0, %v2649
      %v2651 = vpop.f32.mrb[0].mxu0
      %2652 = vmatprep.mubr.bf16.mxu0 0
      %2653 = vmatmul.mubr.bf16.gmra.mrb[0].mxu0 %v2401
      %v2654 = vpop.f32.mrb[0].mxu0
      %v2655 = vadd.f32 0.0, %v2654
      %v2656 = vpop.f32.mrb[0].mxu0
      %v2657 = vpop.f32.mrb[0].mxu0
      %v2658 = vadd.f32 0.0, %v2657
      %v2659 = vpop.f32.mrb[0].mxu0
      %2660 = vmatprep.mubr.bf16.mxu0 0
      %2661 = vmatmul.mubr.bf16.gmra.mrb[0].mxu0 %v2402
      %v2662 = vpop.f32.mrb[0].mxu0
      %v2663 = vadd.f32 0.0, %v2662
      %v2664 = vpop.f32.mrb[0].mxu0
      %v2665 = vpop.f32.mrb[0].mxu0
      %v2666 = vpop.f32.mrb[0].mxu0
      %2667 = vdwg.mxu0
      %v2668 = vadd.f32 %v2300, %v2503
      %v2669 = vadd.f32 %v2301, %v2506
      %v2670 = vadd.f32 %v2302, %v2511
      %v2671 = vadd.f32 %v2303, %v2514
      %v2672 = vadd.f32 %v2304, %v2519
      %v2673 = vadd.f32 %v2305, %v2522
      %v2674 = vadd.f32 %v2306, %v2527
      %v2675 = vadd.f32 %v2307, %v2530
      %v2676 = vadd.f32 %v2308, %v2535
      %v2677 = vadd.f32 %v2309, %v2538
      %v2678 = vadd.f32 %v2310, %v2543
      %v2679 = vadd.f32 %v2311, %v2546
      %v2680 = vadd.f32 %v2312, %v2551
      %v2681 = vadd.f32 %v2313, %v2554
      %v2682 = vadd.f32 %v2314, %v2559
      %v2683 = vadd.f32 %v2315, %v2562
      %v2684 = vadd.f32 %v2316, %v2567
      %v2685 = vadd.f32 %v2317, %v2570
      %v2686 = vadd.f32 %v2318, %v2575
      %v2687 = vadd.f32 %v2319, %v2578
      %v2688 = vadd.f32 %v2320, %v2583
      %v2689 = vadd.f32 %v2321, %v2586
      %v2690 = vadd.f32 %v2322, %v2591
      %v2691 = vadd.f32 %v2323, %v2594
      %v2692 = vadd.f32 %v2324, %v2599
      %v2693 = vadd.f32 %v2325, %v2602
      %v2694 = vadd.f32 %v2326, %v2607
      %v2695 = vadd.f32 %v2327, %v2610
      %v2696 = vadd.f32 %v2328, %v2615
      %v2697 = vadd.f32 %v2329, %v2618
      %v2698 = vadd.f32 %v2330, %v2623
      %v2699 = vadd.f32 %v2331, %v2626
      %v2700 = vadd.f32 %v2332, %v2631
      %v2701 = vadd.f32 %v2333, %v2634
      %v2702 = vadd.f32 %v2334, %v2639
      %v2703 = vadd.f32 %v2335, %v2642
      %v2704 = vadd.f32 %v2336, %v2647
      %v2705 = vadd.f32 %v2337, %v2650
      %v2706 = vadd.f32 %v2338, %v2655
      %v2707 = vadd.f32 %v2339, %v2658
      %v2708 = vadd.f32 %v2340, %v2663
      %v2709 = vld [vmem:[%s203 + $0x2a] sm:$0xff]
      %v2710 = vld [vmem:[%s203 + $0x32] sm:$0xff]
      %v2711 = vld [vmem:[%s203 + $0x3a] sm:$0xff]
      %v2712 = vld [vmem:[%s203 + $0x42] sm:$0xff]
      %v2713 = vld [vmem:[%s203 + $0x4a] sm:$0xff]
      %v2714 = vld [vmem:[%s203 + $0x52] sm:$0xff]
      %v2715 = vld [vmem:[%s203 + $0x5a] sm:$0xff]
      %v2716 = vld [vmem:[%s203 + $0x62] sm:$0xff]
      %v2717 = vld [vmem:[%s203 + $0x6a] sm:$0xff]
      %v2718 = vld [vmem:[%s203 + $0x72] sm:$0xff]
      %v2719 = vld [vmem:[%s203 + $0x7a] sm:$0xff]
      %v2720 = vld [vmem:[%s203 + $0x82] sm:$0xff]
      %v2721 = vld [vmem:[%s203 + $0x8a] sm:$0xff]
      %v2722 = vld [vmem:[%s203 + $0x92] sm:$0xff]
      %v2723 = vld [vmem:[%s203 + $0x9a] sm:$0xff]
      %v2724 = vld [vmem:[%s203 + $0xa2] sm:$0xff]
      %v2725 = vld [vmem:[%s203 + $0xaa] sm:$0xff]
      %v2726 = vld [vmem:[%s203 + $0xb2] sm:$0xff]
      %v2727 = vld [vmem:[%s203 + $0xba] sm:$0xff]
      %v2728 = vld [vmem:[%s203 + $0xc2] sm:$0xff]
      %v2729 = vld [vmem:[%s203 + $0xca] sm:$0xff]
      %v2730 = vld [vmem:[%s203 + $0xd2] sm:$0xff]
      %v2731 = vld [vmem:[%s203 + $0xda] sm:$0xff]
      %v2732 = vld [vmem:[%s203 + $0xe2] sm:$0xff]
      %v2733 = vld [vmem:[%s203 + $0xea] sm:$0xff]
      %v2734 = vld [vmem:[%s203 + $0xf2] sm:$0xff]
      %v2735 = vld [vmem:[%s203 + $0xfa] sm:$0xff]
      %v2736 = vld [vmem:[%s203 + $0x102] sm:$0xff]
      %v2737 = vld [vmem:[%s203 + $0x10a] sm:$0xff]
      %v2738 = vld [vmem:[%s203 + $0x112] sm:$0xff]
      %v2739 = vld [vmem:[%s203 + $0x11a] sm:$0xff]
      %v2740 = vld [vmem:[%s203 + $0x122] sm:$0xff]
      %v2741 = vld [vmem:[%s203 + $0x12a] sm:$0xff]
      %v2742 = vld [vmem:[%s203 + $0x132] sm:$0xff]
      %v2743 = vld [vmem:[%s203 + $0x13a] sm:$0xff]
      %v2744 = vld [vmem:[%s203 + $0x142] sm:$0xff]
      %v2745 = vld [vmem:[%s203 + $0x14a] sm:$0xff]
      %v2746 = vld [vmem:[%s203 + $0x152] sm:$0xff]
      %v2747 = vld [vmem:[%s203 + $0x15a] sm:$0xff]
      %v2748 = vld [vmem:[%s203 + $0x162] sm:$0xff]
      %v2749 = vld [vmem:[%s203 + $0x16a] sm:$0xff]
      %v2750 = vpack.c.bf16 %v2710, %v2709
      %v2751 = vpack.c.bf16 %v2712, %v2711
      %v2752 = vpack.c.bf16 %v2714, %v2713
      %v2753 = vpack.c.bf16 %v2716, %v2715
      %v2754 = vpack.c.bf16 %v2718, %v2717
      %v2755 = vpack.c.bf16 %v2720, %v2719
      %v2756 = vpack.c.bf16 %v2722, %v2721
      %v2757 = vpack.c.bf16 %v2724, %v2723
      %v2758 = vpack.c.bf16 %v2726, %v2725
      %v2759 = vpack.c.bf16 %v2728, %v2727
      %v2760 = vpack.c.bf16 %v2730, %v2729
      %v2761 = vpack.c.bf16 %v2732, %v2731
      %v2762 = vpack.c.bf16 %v2734, %v2733
      %v2763 = vpack.c.bf16 %v2736, %v2735
      %v2764 = vpack.c.bf16 %v2738, %v2737
      %v2765 = vpack.c.bf16 %v2740, %v2739
      %v2766 = vpack.c.bf16 %v2742, %v2741
      %v2767 = vpack.c.bf16 %v2744, %v2743
      %v2768 = vpack.c.bf16 %v2746, %v2745
      %v2769 = vpack.c.bf16 %v2748, %v2747
      %v2770 = vpack.c.bf16 %v2749, %v2749
      %s2771 = scalar_lea.vmem %s1, 448
      %v2772 = vld [vmem:[%s2771] sm:$0xf]
      %v2773 = vld [vmem:[%s2771 + $0x4] sm:$0xf]
      %v2774 = vld [vmem:[%s2771 + $0x8] sm:$0xf]
      %v2775 = vld [vmem:[%s2771 + $0xc] sm:$0xf]
      %v2776 = vld [vmem:[%s2771 + $0x10] sm:$0xf]
      %v2777 = vld [vmem:[%s2771 + $0x14] sm:$0xf]
      %v2778 = vld [vmem:[%s2771 + $0x18] sm:$0xf]
      %v2779 = vld [vmem:[%s2771 + $0x1c] sm:$0xf]
      %v2780 = vld [vmem:[%s2771 + $0x20] sm:$0xf]
      %v2781 = vld [vmem:[%s2771 + $0x24] sm:$0xf]
      %v2782 = vld [vmem:[%s2771 + $0x28] sm:$0xf]
      %v2783 = vld [vmem:[%s2771 + $0x2c] sm:$0xf]
      %v2784 = vld [vmem:[%s2771 + $0x30] sm:$0xf]
      %v2785 = vld [vmem:[%s2771 + $0x34] sm:$0xf]
      %v2786 = vld [vmem:[%s2771 + $0x38] sm:$0xf]
      %v2787 = vld [vmem:[%s2771 + $0x3c] sm:$0xf]
      %v2804 = vunpack.c.l.b16 %v2772
      %v2805 = vunpack.c.l.b16 %v2773
      %v2806 = vunpack.c.l.b16 %v2774
      %v2807 = vunpack.c.l.b16 %v2775
      %v2808 = vunpack.c.l.b16 %v2776
      %v2809 = vunpack.c.l.b16 %v2777
      %v2810 = vunpack.c.l.b16 %v2778
      %v2811 = vunpack.c.l.b16 %v2779
      %v2812 = vunpack.c.l.b16 %v2780
      %v2813 = vunpack.c.l.b16 %v2781
      %v2814 = vunpack.c.l.b16 %v2782
      %v2815 = vunpack.c.l.b16 %v2783
      %v2816 = vunpack.c.l.b16 %v2784
      %v2817 = vunpack.c.l.b16 %v2785
      %v2818 = vunpack.c.l.b16 %v2786
      %v2819 = vunpack.c.l.b16 %v2787
      %v2820 = vpack.c.b16 %v2805, %v2804
      %v2821 = vpack.c.b16 %v2807, %v2806
      %v2822 = vpack.c.b16 %v2809, %v2808
      %v2823 = vpack.c.b16 %v2811, %v2810
      %v2824 = vpack.c.b16 %v2813, %v2812
      %v2825 = vpack.c.b16 %v2815, %v2814
      %v2826 = vpack.c.b16 %v2817, %v2816
      %v2827 = vpack.c.b16 %v2819, %v2818
      %2836 = vmatprep.subr.bf16.mxu0 0
      %2837 = vmatpush1.bf16.msra.mxu0 %v2820
      %2838 = vmatprep.subr.bf16.mxu0 0
      %2839 = vmatpush1.bf16.msra.mxu0 %v2821
      %2840 = vmatprep.subr.bf16.mxu0 0
      %2841 = vmatpush1.bf16.msra.mxu0 %v2822
      %2842 = vmatprep.subr.bf16.mxu0 0
      %2843 = vmatpush1.bf16.msra.mxu0 %v2823
      %2844 = vmatprep.subr.bf16.mxu0 0
      %2845 = vmatpush1.bf16.msra.mxu0 %v2824
      %2846 = vmatprep.subr.bf16.mxu0 0
      %2847 = vmatpush1.bf16.msra.mxu0 %v2825
      %2848 = vmatprep.subr.bf16.mxu0 0
      %2849 = vmatpush1.bf16.msra.mxu0 %v2826
      %2850 = vmatprep.subr.bf16.mxu0 0
      %2851 = vmatpush1.bf16.msra.mxu0 %v2827
      %2852 = vmatprep.subr.bf16.mxu0 0
      %2853 = vmatpush1.bf16.msra.mxu0 0
      %2854 = vmatprep.subr.bf16.mxu0 0
      %2855 = vmatpush1.bf16.msra.mxu0 0
      %2856 = vmatprep.subr.bf16.mxu0 0
      %2857 = vmatpush1.bf16.msra.mxu0 0
      %2858 = vmatprep.subr.bf16.mxu0 0
      %2859 = vmatpush1.bf16.msra.mxu0 0
      %2860 = vmatprep.subr.bf16.mxu0 0
      %2861 = vmatpush1.bf16.msra.mxu0 0
      %2862 = vmatprep.subr.bf16.mxu0 0
      %2863 = vmatpush1.bf16.msra.mxu0 0
      %2864 = vmatprep.subr.bf16.mxu0 0
      %2865 = vmatpush1.bf16.msra.mxu0 0
      %2866 = vmatprep.subr.bf16.mxu0 0
      %2867 = vmatpush1.bf16.msra.mxu0 0
      %2868 = vmatprep.mubr.bf16.mxu0 0
      %2869 = vmatmul.mubr.bf16.gmra.mrb[0].mxu0 %v2750
      %v2870 = vpop.f32.mrb[0].mxu0
      %v2871 = vadd.f32 0.0, %v2870
      %v2872 = vpop.f32.mrb[0].mxu0
      %v2873 = vpop.f32.mrb[0].mxu0
      %v2874 = vadd.f32 0.0, %v2873
      %v2875 = vpop.f32.mrb[0].mxu0
      %2876 = vmatprep.mubr.bf16.mxu0 0
      %2877 = vmatmul.mubr.bf16.gmra.mrb[0].mxu0 %v2751
      %v2878 = vpop.f32.mrb[0].mxu0
      %v2879 = vadd.f32 0.0, %v2878
      %v2880 = vpop.f32.mrb[0].mxu0
      %v2881 = vpop.f32.mrb[0].mxu0
      %v2882 = vadd.f32 0.0, %v2881
      %v2883 = vpop.f32.mrb[0].mxu0
      %2884 = vmatprep.mubr.bf16.mxu0 0
      %2885 = vmatmul.mubr.bf16.gmra.mrb[0].mxu0 %v2752
      %v2886 = vpop.f32.mrb[0].mxu0
      %v2887 = vadd.f32 0.0, %v2886
      %v2888 = vpop.f32.mrb[0].mxu0
      %v2889 = vpop.f32.mrb[0].mxu0
      %v2890 = vadd.f32 0.0, %v2889
      %v2891 = vpop.f32.mrb[0].mxu0
      %2892 = vmatprep.mubr.bf16.mxu0 0
      %2893 = vmatmul.mubr.bf16.gmra.mrb[0].mxu0 %v2753
      %v2894 = vpop.f32.mrb[0].mxu0
      %v2895 = vadd.f32 0.0, %v2894
      %v2896 = vpop.f32.mrb[0].mxu0
      %v2897 = vpop.f32.mrb[0].mxu0
      %v2898 = vadd.f32 0.0, %v2897
      %v2899 = vpop.f32.mrb[0].mxu0
      %2900 = vmatprep.mubr.bf16.mxu0 0
      %2901 = vmatmul.mubr.bf16.gmra.mrb[0].mxu0 %v2754
      %v2902 = vpop.f32.mrb[0].mxu0
      %v2903 = vadd.f32 0.0, %v2902
      %v2904 = vpop.f32.mrb[0].mxu0
      %v2905 = vpop.f32.mrb[0].mxu0
      %v2906 = vadd.f32 0.0, %v2905
      %v2907 = vpop.f32.mrb[0].mxu0
      %2908 = vmatprep.mubr.bf16.mxu0 0
      %2909 = vmatmul.mubr.bf16.gmra.mrb[0].mxu0 %v2755
      %v2910 = vpop.f32.mrb[0].mxu0
      %v2911 = vadd.f32 0.0, %v2910
      %v2912 = vpop.f32.mrb[0].mxu0
      %v2913 = vpop.f32.mrb[0].mxu0
      %v2914 = vadd.f32 0.0, %v2913
      %v2915 = vpop.f32.mrb[0].mxu0
      %2916 = vmatprep.mubr.bf16.mxu0 0
      %2917 = vmatmul.mubr.bf16.gmra.mrb[0].mxu0 %v2756
      %v2918 = vpop.f32.mrb[0].mxu0
      %v2919 = vadd.f32 0.0, %v2918
      %v2920 = vpop.f32.mrb[0].mxu0
      %v2921 = vpop.f32.mrb[0].mxu0
      %v2922 = vadd.f32 0.0, %v2921
      %v2923 = vpop.f32.mrb[0].mxu0
      %2924 = vmatprep.mubr.bf16.mxu0 0
      %2925 = vmatmul.mubr.bf16.gmra.mrb[0].mxu0 %v2757
      %v2926 = vpop.f32.mrb[0].mxu0
      %v2927 = vadd.f32 0.0, %v2926
      %v2928 = vpop.f32.mrb[0].mxu0
      %v2929 = vpop.f32.mrb[0].mxu0
      %v2930 = vadd.f32 0.0, %v2929
      %v2931 = vpop.f32.mrb[0].mxu0
      %2932 = vmatprep.mubr.bf16.mxu0 0
      %2933 = vmatmul.mubr.bf16.gmra.mrb[0].mxu0 %v2758
      %v2934 = vpop.f32.mrb[0].mxu0
      %v2935 = vadd.f32 0.0, %v2934
      %v2936 = vpop.f32.mrb[0].mxu0
      %v2937 = vpop.f32.mrb[0].mxu0
      %v2938 = vadd.f32 0.0, %v2937
      %v2939 = vpop.f32.mrb[0].mxu0
      %2940 = vmatprep.mubr.bf16.mxu0 0
      %2941 = vmatmul.mubr.bf16.gmra.mrb[0].mxu0 %v2759
      %v2942 = vpop.f32.mrb[0].mxu0
      %v2943 = vadd.f32 0.0, %v2942
      %v2944 = vpop.f32.mrb[0].mxu0
      %v2945 = vpop.f32.mrb[0].mxu0
      %v2946 = vadd.f32 0.0, %v2945
      %v2947 = vpop.f32.mrb[0].mxu0
      %2948 = vmatprep.mubr.bf16.mxu0 0
      %2949 = vmatmul.mubr.bf16.gmra.mrb[0].mxu0 %v2760
      %v2950 = vpop.f32.mrb[0].mxu0
      %v2951 = vadd.f32 0.0, %v2950
      %v2952 = vpop.f32.mrb[0].mxu0
      %v2953 = vpop.f32.mrb[0].mxu0
      %v2954 = vadd.f32 0.0, %v2953
      %v2955 = vpop.f32.mrb[0].mxu0
      %2956 = vmatprep.mubr.bf16.mxu0 0
      %2957 = vmatmul.mubr.bf16.gmra.mrb[0].mxu0 %v2761
      %v2958 = vpop.f32.mrb[0].mxu0
      %v2959 = vadd.f32 0.0, %v2958
      %v2960 = vpop.f32.mrb[0].mxu0
      %v2961 = vpop.f32.mrb[0].mxu0
      %v2962 = vadd.f32 0.0, %v2961
      %v2963 = vpop.f32.mrb[0].mxu0
      %2964 = vmatprep.mubr.bf16.mxu0 0
      %2965 = vmatmul.mubr.bf16.gmra.mrb[0].mxu0 %v2762
      %v2966 = vpop.f32.mrb[0].mxu0
      %v2967 = vadd.f32 0.0, %v2966
      %v2968 = vpop.f32.mrb[0].mxu0
      %v2969 = vpop.f32.mrb[0].mxu0
      %v2970 = vadd.f32 0.0, %v2969
      %v2971 = vpop.f32.mrb[0].mxu0
      %2972 = vmatprep.mubr.bf16.mxu0 0
      %2973 = vmatmul.mubr.bf16.gmra.mrb[0].mxu0 %v2763
      %v2974 = vpop.f32.mrb[0].mxu0
      %v2975 = vadd.f32 0.0, %v2974
      %v2976 = vpop.f32.mrb[0].mxu0
      %v2977 = vpop.f32.mrb[0].mxu0
      %v2978 = vadd.f32 0.0, %v2977
      %v2979 = vpop.f32.mrb[0].mxu0
      %2980 = vmatprep.mubr.bf16.mxu0 0
      %2981 = vmatmul.mubr.bf16.gmra.mrb[0].mxu0 %v2764
      %v2982 = vpop.f32.mrb[0].mxu0
      %v2983 = vadd.f32 0.0, %v2982
      %v2984 = vpop.f32.mrb[0].mxu0
      %v2985 = vpop.f32.mrb[0].mxu0
      %v2986 = vadd.f32 0.0, %v2985
      %v2987 = vpop.f32.mrb[0].mxu0
      %2988 = vmatprep.mubr.bf16.mxu0 0
      %2989 = vmatmul.mubr.bf16.gmra.mrb[0].mxu0 %v2765
      %v2990 = vpop.f32.mrb[0].mxu0
      %v2991 = vadd.f32 0.0, %v2990
      %v2992 = vpop.f32.mrb[0].mxu0
      %v2993 = vpop.f32.mrb[0].mxu0
      %v2994 = vadd.f32 0.0, %v2993
      %v2995 = vpop.f32.mrb[0].mxu0
      %2996 = vmatprep.mubr.bf16.mxu0 0
      %2997 = vmatmul.mubr.bf16.gmra.mrb[0].mxu0 %v2766
      %v2998 = vpop.f32.mrb[0].mxu0
      %v2999 = vadd.f32 0.0, %v2998
      %v3000 = vpop.f32.mrb[0].mxu0
      %v3001 = vpop.f32.mrb[0].mxu0
      %v3002 = vadd.f32 0.0, %v3001
      %v3003 = vpop.f32.mrb[0].mxu0
      %3004 = vmatprep.mubr.bf16.mxu0 0
      %3005 = vmatmul.mubr.bf16.gmra.mrb[0].mxu0 %v2767
      %v3006 = vpop.f32.mrb[0].mxu0
      %v3007 = vadd.f32 0.0, %v3006
      %v3008 = vpop.f32.mrb[0].mxu0
      %v3009 = vpop.f32.mrb[0].mxu0
      %v3010 = vadd.f32 0.0, %v3009
      %v3011 = vpop.f32.mrb[0].mxu0
      %3012 = vmatprep.mubr.bf16.mxu0 0
      %3013 = vmatmul.mubr.bf16.gmra.mrb[0].mxu0 %v2768
      %v3014 = vpop.f32.mrb[0].mxu0
      %v3015 = vadd.f32 0.0, %v3014
      %v3016 = vpop.f32.mrb[0].mxu0
      %v3017 = vpop.f32.mrb[0].mxu0
      %v3018 = vadd.f32 0.0, %v3017
      %v3019 = vpop.f32.mrb[0].mxu0
      %3020 = vmatprep.mubr.bf16.mxu0 0
      %3021 = vmatmul.mubr.bf16.gmra.mrb[0].mxu0 %v2769
      %v3022 = vpop.f32.mrb[0].mxu0
      %v3023 = vadd.f32 0.0, %v3022
      %v3024 = vpop.f32.mrb[0].mxu0
      %v3025 = vpop.f32.mrb[0].mxu0
      %v3026 = vadd.f32 0.0, %v3025
      %v3027 = vpop.f32.mrb[0].mxu0
      %3028 = vmatprep.mubr.bf16.mxu0 0
      %3029 = vmatmul.mubr.bf16.gmra.mrb[0].mxu0 %v2770
      %v3030 = vpop.f32.mrb[0].mxu0
      %v3031 = vadd.f32 0.0, %v3030
      %v3032 = vpop.f32.mrb[0].mxu0
      %v3033 = vpop.f32.mrb[0].mxu0
      %v3034 = vpop.f32.mrb[0].mxu0
      %3035 = vdwg.mxu0
      %v3036 = vadd.f32 %v2668, %v2871
      %v3037 = vadd.f32 %v2669, %v2874
      %v3038 = vadd.f32 %v2670, %v2879
      %v3039 = vadd.f32 %v2671, %v2882
      %v3040 = vadd.f32 %v2672, %v2887
      %v3041 = vadd.f32 %v2673, %v2890
      %v3042 = vadd.f32 %v2674, %v2895
      %v3043 = vadd.f32 %v2675, %v2898
      %v3044 = vadd.f32 %v2676, %v2903
      %v3045 = vadd.f32 %v2677, %v2906
      %v3046 = vadd.f32 %v2678, %v2911
      %v3047 = vadd.f32 %v2679, %v2914
      %v3048 = vadd.f32 %v2680, %v2919
      %v3049 = vadd.f32 %v2681, %v2922
      %v3050 = vadd.f32 %v2682, %v2927
      %v3051 = vadd.f32 %v2683, %v2930
      %v3052 = vadd.f32 %v2684, %v2935
      %v3053 = vadd.f32 %v2685, %v2938
      %v3054 = vadd.f32 %v2686, %v2943
      %v3055 = vadd.f32 %v2687, %v2946
      %v3056 = vadd.f32 %v2688, %v2951
      %v3057 = vadd.f32 %v2689, %v2954
      %v3058 = vadd.f32 %v2690, %v2959
      %v3059 = vadd.f32 %v2691, %v2962
      %v3060 = vadd.f32 %v2692, %v2967
      %v3061 = vadd.f32 %v2693, %v2970
      %v3062 = vadd.f32 %v2694, %v2975
      %v3063 = vadd.f32 %v2695, %v2978
      %v3064 = vadd.f32 %v2696, %v2983
      %v3065 = vadd.f32 %v2697, %v2986
      %v3066 = vadd.f32 %v2698, %v2991
      %v3067 = vadd.f32 %v2699, %v2994
      %v3068 = vadd.f32 %v2700, %v2999
      %v3069 = vadd.f32 %v2701, %v3002
      %v3070 = vadd.f32 %v2702, %v3007
      %v3071 = vadd.f32 %v2703, %v3010
      %v3072 = vadd.f32 %v2704, %v3015
      %v3073 = vadd.f32 %v2705, %v3018
      %v3074 = vadd.f32 %v2706, %v3023
      %v3075 = vadd.f32 %v2707, %v3026
      %v3076 = vadd.f32 %v2708, %v3031
      %v3077 = vld [vmem:[%s203 + $0x2b] sm:$0xff]
      %v3078 = vld [vmem:[%s203 + $0x33] sm:$0xff]
      %v3079 = vld [vmem:[%s203 + $0x3b] sm:$0xff]
      %v3080 = vld [vmem:[%s203 + $0x43] sm:$0xff]
      %v3081 = vld [vmem:[%s203 + $0x4b] sm:$0xff]
      %v3082 = vld [vmem:[%s203 + $0x53] sm:$0xff]
      %v3083 = vld [vmem:[%s203 + $0x5b] sm:$0xff]
      %v3084 = vld [vmem:[%s203 + $0x63] sm:$0xff]
      %v3085 = vld [vmem:[%s203 + $0x6b] sm:$0xff]
      %v3086 = vld [vmem:[%s203 + $0x73] sm:$0xff]
      %v3087 = vld [vmem:[%s203 + $0x7b] sm:$0xff]
      %v3088 = vld [vmem:[%s203 + $0x83] sm:$0xff]
      %v3089 = vld [vmem:[%s203 + $0x8b] sm:$0xff]
      %v3090 = vld [vmem:[%s203 + $0x93] sm:$0xff]
      %v3091 = vld [vmem:[%s203 + $0x9b] sm:$0xff]
      %v3092 = vld [vmem:[%s203 + $0xa3] sm:$0xff]
      %v3093 = vld [vmem:[%s203 + $0xab] sm:$0xff]
      %v3094 = vld [vmem:[%s203 + $0xb3] sm:$0xff]
      %v3095 = vld [vmem:[%s203 + $0xbb] sm:$0xff]
      %v3096 = vld [vmem:[%s203 + $0xc3] sm:$0xff]
      %v3097 = vld [vmem:[%s203 + $0xcb] sm:$0xff]
      %v3098 = vld [vmem:[%s203 + $0xd3] sm:$0xff]
      %v3099 = vld [vmem:[%s203 + $0xdb] sm:$0xff]
      %v3100 = vld [vmem:[%s203 + $0xe3] sm:$0xff]
      %v3101 = vld [vmem:[%s203 + $0xeb] sm:$0xff]
      %v3102 = vld [vmem:[%s203 + $0xf3] sm:$0xff]
      %v3103 = vld [vmem:[%s203 + $0xfb] sm:$0xff]
      %v3104 = vld [vmem:[%s203 + $0x103] sm:$0xff]
      %v3105 = vld [vmem:[%s203 + $0x10b] sm:$0xff]
      %v3106 = vld [vmem:[%s203 + $0x113] sm:$0xff]
      %v3107 = vld [vmem:[%s203 + $0x11b] sm:$0xff]
      %v3108 = vld [vmem:[%s203 + $0x123] sm:$0xff]
      %v3109 = vld [vmem:[%s203 + $0x12b] sm:$0xff]
      %v3110 = vld [vmem:[%s203 + $0x133] sm:$0xff]
      %v3111 = vld [vmem:[%s203 + $0x13b] sm:$0xff]
      %v3112 = vld [vmem:[%s203 + $0x143] sm:$0xff]
      %v3113 = vld [vmem:[%s203 + $0x14b] sm:$0xff]
      %v3114 = vld [vmem:[%s203 + $0x153] sm:$0xff]
      %v3115 = vld [vmem:[%s203 + $0x15b] sm:$0xff]
      %v3116 = vld [vmem:[%s203 + $0x163] sm:$0xff]
      %v3117 = vld [vmem:[%s203 + $0x16b] sm:$0xff]
      %v3118 = vpack.c.bf16 %v3078, %v3077
      %v3119 = vpack.c.bf16 %v3080, %v3079
      %v3120 = vpack.c.bf16 %v3082, %v3081
      %v3121 = vpack.c.bf16 %v3084, %v3083
      %v3122 = vpack.c.bf16 %v3086, %v3085
      %v3123 = vpack.c.bf16 %v3088, %v3087
      %v3124 = vpack.c.bf16 %v3090, %v3089
      %v3125 = vpack.c.bf16 %v3092, %v3091
      %v3126 = vpack.c.bf16 %v3094, %v3093
      %v3127 = vpack.c.bf16 %v3096, %v3095
      %v3128 = vpack.c.bf16 %v3098, %v3097
      %v3129 = vpack.c.bf16 %v3100, %v3099
      %v3130 = vpack.c.bf16 %v3102, %v3101
      %v3131 = vpack.c.bf16 %v3104, %v3103
      %v3132 = vpack.c.bf16 %v3106, %v3105
      %v3133 = vpack.c.bf16 %v3108, %v3107
      %v3134 = vpack.c.bf16 %v3110, %v3109
      %v3135 = vpack.c.bf16 %v3112, %v3111
      %v3136 = vpack.c.bf16 %v3114, %v3113
      %v3137 = vpack.c.bf16 %v3116, %v3115
      %v3138 = vpack.c.bf16 %v3117, %v3117
      %s3139 = scalar_lea.vmem %s1, 512
      %v3140 = vld [vmem:[%s3139] sm:$0xf]
      %v3141 = vld [vmem:[%s3139 + $0x4] sm:$0xf]
      %v3142 = vld [vmem:[%s3139 + $0x8] sm:$0xf]
      %v3143 = vld [vmem:[%s3139 + $0xc] sm:$0xf]
      %v3144 = vld [vmem:[%s3139 + $0x10] sm:$0xf]
      %v3145 = vld [vmem:[%s3139 + $0x14] sm:$0xf]
      %v3146 = vld [vmem:[%s3139 + $0x18] sm:$0xf]
      %v3147 = vld [vmem:[%s3139 + $0x1c] sm:$0xf]
      %v3148 = vld [vmem:[%s3139 + $0x20] sm:$0xf]
      %v3149 = vld [vmem:[%s3139 + $0x24] sm:$0xf]
      %v3150 = vld [vmem:[%s3139 + $0x28] sm:$0xf]
      %v3151 = vld [vmem:[%s3139 + $0x2c] sm:$0xf]
      %v3152 = vld [vmem:[%s3139 + $0x30] sm:$0xf]
      %v3153 = vld [vmem:[%s3139 + $0x34] sm:$0xf]
      %v3154 = vld [vmem:[%s3139 + $0x38] sm:$0xf]
      %v3155 = vld [vmem:[%s3139 + $0x3c] sm:$0xf]
      %v3172 = vunpack.c.l.b16 %v3140
      %v3173 = vunpack.c.l.b16 %v3141
      %v3174 = vunpack.c.l.b16 %v3142
      %v3175 = vunpack.c.l.b16 %v3143
      %v3176 = vunpack.c.l.b16 %v3144
      %v3177 = vunpack.c.l.b16 %v3145
      %v3178 = vunpack.c.l.b16 %v3146
      %v3179 = vunpack.c.l.b16 %v3147
      %v3180 = vunpack.c.l.b16 %v3148
      %v3181 = vunpack.c.l.b16 %v3149
      %v3182 = vunpack.c.l.b16 %v3150
      %v3183 = vunpack.c.l.b16 %v3151
      %v3184 = vunpack.c.l.b16 %v3152
      %v3185 = vunpack.c.l.b16 %v3153
      %v3186 = vunpack.c.l.b16 %v3154
      %v3187 = vunpack.c.l.b16 %v3155
      %v3188 = vpack.c.b16 %v3173, %v3172
      %v3189 = vpack.c.b16 %v3175, %v3174
      %v3190 = vpack.c.b16 %v3177, %v3176
      %v3191 = vpack.c.b16 %v3179, %v3178
      %v3192 = vpack.c.b16 %v3181, %v3180
      %v3193 = vpack.c.b16 %v3183, %v3182
      %v3194 = vpack.c.b16 %v3185, %v3184
      %v3195 = vpack.c.b16 %v3187, %v3186
      %3204 = vmatprep.subr.bf16.mxu0 0
      %3205 = vmatpush1.bf16.msra.mxu0 %v3188
      %3206 = vmatprep.subr.bf16.mxu0 0
      %3207 = vmatpush1.bf16.msra.mxu0 %v3189
      %3208 = vmatprep.subr.bf16.mxu0 0
      %3209 = vmatpush1.bf16.msra.mxu0 %v3190
      %3210 = vmatprep.subr.bf16.mxu0 0
      %3211 = vmatpush1.bf16.msra.mxu0 %v3191
      %3212 = vmatprep.subr.bf16.mxu0 0
      %3213 = vmatpush1.bf16.msra.mxu0 %v3192
      %3214 = vmatprep.subr.bf16.mxu0 0
      %3215 = vmatpush1.bf16.msra.mxu0 %v3193
      %3216 = vmatprep.subr.bf16.mxu0 0
      %3217 = vmatpush1.bf16.msra.mxu0 %v3194
      %3218 = vmatprep.subr.bf16.mxu0 0
      %3219 = vmatpush1.bf16.msra.mxu0 %v3195
      %3220 = vmatprep.subr.bf16.mxu0 0
      %3221 = vmatpush1.bf16.msra.mxu0 0
      %3222 = vmatprep.subr.bf16.mxu0 0
      %3223 = vmatpush1.bf16.msra.mxu0 0
      %3224 = vmatprep.subr.bf16.mxu0 0
      %3225 = vmatpush1.bf16.msra.mxu0 0
      %3226 = vmatprep.subr.bf16.mxu0 0
      %3227 = vmatpush1.bf16.msra.mxu0 0
      %3228 = vmatprep.subr.bf16.mxu0 0
      %3229 = vmatpush1.bf16.msra.mxu0 0
      %3230 = vmatprep.subr.bf16.mxu0 0
      %3231 = vmatpush1.bf16.msra.mxu0 0
      %3232 = vmatprep.subr.bf16.mxu0 0
      %3233 = vmatpush1.bf16.msra.mxu0 0
      %3234 = vmatprep.subr.bf16.mxu0 0
      %3235 = vmatpush1.bf16.msra.mxu0 0
      %3236 = vmatprep.mubr.bf16.mxu0 0
      %3237 = vmatmul.mubr.bf16.gmra.mrb[0].mxu0 %v3118
      %v3238 = vpop.f32.mrb[0].mxu0
      %v3239 = vadd.f32 0.0, %v3238
      %v3240 = vpop.f32.mrb[0].mxu0
      %v3241 = vpop.f32.mrb[0].mxu0
      %v3242 = vadd.f32 0.0, %v3241
      %v3243 = vpop.f32.mrb[0].mxu0
      %3244 = vmatprep.mubr.bf16.mxu0 0
      %3245 = vmatmul.mubr.bf16.gmra.mrb[0].mxu0 %v3119
      %v3246 = vpop.f32.mrb[0].mxu0
      %v3247 = vadd.f32 0.0, %v3246
      %v3248 = vpop.f32.mrb[0].mxu0
      %v3249 = vpop.f32.mrb[0].mxu0
      %v3250 = vadd.f32 0.0, %v3249
      %v3251 = vpop.f32.mrb[0].mxu0
      %3252 = vmatprep.mubr.bf16.mxu0 0
      %3253 = vmatmul.mubr.bf16.gmra.mrb[0].mxu0 %v3120
      %v3254 = vpop.f32.mrb[0].mxu0
      %v3255 = vadd.f32 0.0, %v3254
      %v3256 = vpop.f32.mrb[0].mxu0
      %v3257 = vpop.f32.mrb[0].mxu0
      %v3258 = vadd.f32 0.0, %v3257
      %v3259 = vpop.f32.mrb[0].mxu0
      %3260 = vmatprep.mubr.bf16.mxu0 0
      %3261 = vmatmul.mubr.bf16.gmra.mrb[0].mxu0 %v3121
      %v3262 = vpop.f32.mrb[0].mxu0
      %v3263 = vadd.f32 0.0, %v3262
      %v3264 = vpop.f32.mrb[0].mxu0
      %v3265 = vpop.f32.mrb[0].mxu0
      %v3266 = vadd.f32 0.0, %v3265
      %v3267 = vpop.f32.mrb[0].mxu0
      %3268 = vmatprep.mubr.bf16.mxu0 0
      %3269 = vmatmul.mubr.bf16.gmra.mrb[0].mxu0 %v3122
      %v3270 = vpop.f32.mrb[0].mxu0
      %v3271 = vadd.f32 0.0, %v3270
      %v3272 = vpop.f32.mrb[0].mxu0
      %v3273 = vpop.f32.mrb[0].mxu0
      %v3274 = vadd.f32 0.0, %v3273
      %v3275 = vpop.f32.mrb[0].mxu0
      %3276 = vmatprep.mubr.bf16.mxu0 0
      %3277 = vmatmul.mubr.bf16.gmra.mrb[0].mxu0 %v3123
      %v3278 = vpop.f32.mrb[0].mxu0
      %v3279 = vadd.f32 0.0, %v3278
      %v3280 = vpop.f32.mrb[0].mxu0
      %v3281 = vpop.f32.mrb[0].mxu0
      %v3282 = vadd.f32 0.0, %v3281
      %v3283 = vpop.f32.mrb[0].mxu0
      %3284 = vmatprep.mubr.bf16.mxu0 0
      %3285 = vmatmul.mubr.bf16.gmra.mrb[0].mxu0 %v3124
      %v3286 = vpop.f32.mrb[0].mxu0
      %v3287 = vadd.f32 0.0, %v3286
      %v3288 = vpop.f32.mrb[0].mxu0
      %v3289 = vpop.f32.mrb[0].mxu0
      %v3290 = vadd.f32 0.0, %v3289
      %v3291 = vpop.f32.mrb[0].mxu0
      %3292 = vmatprep.mubr.bf16.mxu0 0
      %3293 = vmatmul.mubr.bf16.gmra.mrb[0].mxu0 %v3125
      %v3294 = vpop.f32.mrb[0].mxu0
      %v3295 = vadd.f32 0.0, %v3294
      %v3296 = vpop.f32.mrb[0].mxu0
      %v3297 = vpop.f32.mrb[0].mxu0
      %v3298 = vadd.f32 0.0, %v3297
      %v3299 = vpop.f32.mrb[0].mxu0
      %3300 = vmatprep.mubr.bf16.mxu0 0
      %3301 = vmatmul.mubr.bf16.gmra.mrb[0].mxu0 %v3126
      %v3302 = vpop.f32.mrb[0].mxu0
      %v3303 = vadd.f32 0.0, %v3302
      %v3304 = vpop.f32.mrb[0].mxu0
      %v3305 = vpop.f32.mrb[0].mxu0
      %v3306 = vadd.f32 0.0, %v3305
      %v3307 = vpop.f32.mrb[0].mxu0
      %3308 = vmatprep.mubr.bf16.mxu0 0
      %3309 = vmatmul.mubr.bf16.gmra.mrb[0].mxu0 %v3127
      %v3310 = vpop.f32.mrb[0].mxu0
      %v3311 = vadd.f32 0.0, %v3310
      %v3312 = vpop.f32.mrb[0].mxu0
      %v3313 = vpop.f32.mrb[0].mxu0
      %v3314 = vadd.f32 0.0, %v3313
      %v3315 = vpop.f32.mrb[0].mxu0
      %3316 = vmatprep.mubr.bf16.mxu0 0
      %3317 = vmatmul.mubr.bf16.gmra.mrb[0].mxu0 %v3128
      %v3318 = vpop.f32.mrb[0].mxu0
      %v3319 = vadd.f32 0.0, %v3318
      %v3320 = vpop.f32.mrb[0].mxu0
      %v3321 = vpop.f32.mrb[0].mxu0
      %v3322 = vadd.f32 0.0, %v3321
      %v3323 = vpop.f32.mrb[0].mxu0
      %3324 = vmatprep.mubr.bf16.mxu0 0
      %3325 = vmatmul.mubr.bf16.gmra.mrb[0].mxu0 %v3129
      %v3326 = vpop.f32.mrb[0].mxu0
      %v3327 = vadd.f32 0.0, %v3326
      %v3328 = vpop.f32.mrb[0].mxu0
      %v3329 = vpop.f32.mrb[0].mxu0
      %v3330 = vadd.f32 0.0, %v3329
      %v3331 = vpop.f32.mrb[0].mxu0
      %3332 = vmatprep.mubr.bf16.mxu0 0
      %3333 = vmatmul.mubr.bf16.gmra.mrb[0].mxu0 %v3130
      %v3334 = vpop.f32.mrb[0].mxu0
      %v3335 = vadd.f32 0.0, %v3334
      %v3336 = vpop.f32.mrb[0].mxu0
      %v3337 = vpop.f32.mrb[0].mxu0
      %v3338 = vadd.f32 0.0, %v3337
      %v3339 = vpop.f32.mrb[0].mxu0
      %3340 = vmatprep.mubr.bf16.mxu0 0
      %3341 = vmatmul.mubr.bf16.gmra.mrb[0].mxu0 %v3131
      %v3342 = vpop.f32.mrb[0].mxu0
      %v3343 = vadd.f32 0.0, %v3342
      %v3344 = vpop.f32.mrb[0].mxu0
      %v3345 = vpop.f32.mrb[0].mxu0
      %v3346 = vadd.f32 0.0, %v3345
      %v3347 = vpop.f32.mrb[0].mxu0
      %3348 = vmatprep.mubr.bf16.mxu0 0
      %3349 = vmatmul.mubr.bf16.gmra.mrb[0].mxu0 %v3132
      %v3350 = vpop.f32.mrb[0].mxu0
      %v3351 = vadd.f32 0.0, %v3350
      %v3352 = vpop.f32.mrb[0].mxu0
      %v3353 = vpop.f32.mrb[0].mxu0
      %v3354 = vadd.f32 0.0, %v3353
      %v3355 = vpop.f32.mrb[0].mxu0
      %3356 = vmatprep.mubr.bf16.mxu0 0
      %3357 = vmatmul.mubr.bf16.gmra.mrb[0].mxu0 %v3133
      %v3358 = vpop.f32.mrb[0].mxu0
      %v3359 = vadd.f32 0.0, %v3358
      %v3360 = vpop.f32.mrb[0].mxu0
      %v3361 = vpop.f32.mrb[0].mxu0
      %v3362 = vadd.f32 0.0, %v3361
      %v3363 = vpop.f32.mrb[0].mxu0
      %3364 = vmatprep.mubr.bf16.mxu0 0
      %3365 = vmatmul.mubr.bf16.gmra.mrb[0].mxu0 %v3134
      %v3366 = vpop.f32.mrb[0].mxu0
      %v3367 = vadd.f32 0.0, %v3366
      %v3368 = vpop.f32.mrb[0].mxu0
      %v3369 = vpop.f32.mrb[0].mxu0
      %v3370 = vadd.f32 0.0, %v3369
      %v3371 = vpop.f32.mrb[0].mxu0
      %3372 = vmatprep.mubr.bf16.mxu0 0
      %3373 = vmatmul.mubr.bf16.gmra.mrb[0].mxu0 %v3135
      %v3374 = vpop.f32.mrb[0].mxu0
      %v3375 = vadd.f32 0.0, %v3374
      %v3376 = vpop.f32.mrb[0].mxu0
      %v3377 = vpop.f32.mrb[0].mxu0
      %v3378 = vadd.f32 0.0, %v3377
      %v3379 = vpop.f32.mrb[0].mxu0
      %3380 = vmatprep.mubr.bf16.mxu0 0
      %3381 = vmatmul.mubr.bf16.gmra.mrb[0].mxu0 %v3136
      %v3382 = vpop.f32.mrb[0].mxu0
      %v3383 = vadd.f32 0.0, %v3382
      %v3384 = vpop.f32.mrb[0].mxu0
      %v3385 = vpop.f32.mrb[0].mxu0
      %v3386 = vadd.f32 0.0, %v3385
      %v3387 = vpop.f32.mrb[0].mxu0
      %3388 = vmatprep.mubr.bf16.mxu0 0
      %3389 = vmatmul.mubr.bf16.gmra.mrb[0].mxu0 %v3137
      %v3390 = vpop.f32.mrb[0].mxu0
      %v3391 = vadd.f32 0.0, %v3390
      %v3392 = vpop.f32.mrb[0].mxu0
      %v3393 = vpop.f32.mrb[0].mxu0
      %v3394 = vadd.f32 0.0, %v3393
      %v3395 = vpop.f32.mrb[0].mxu0
      %3396 = vmatprep.mubr.bf16.mxu0 0
      %3397 = vmatmul.mubr.bf16.gmra.mrb[0].mxu0 %v3138
      %v3398 = vpop.f32.mrb[0].mxu0
      %v3399 = vadd.f32 0.0, %v3398
      %v3400 = vpop.f32.mrb[0].mxu0
      %v3401 = vpop.f32.mrb[0].mxu0
      %v3402 = vpop.f32.mrb[0].mxu0
      %3403 = vdwg.mxu0
      %v3404 = vadd.f32 %v3036, %v3239
      %v3405 = vadd.f32 %v3037, %v3242
      %v3406 = vadd.f32 %v3038, %v3247
      %v3407 = vadd.f32 %v3039, %v3250
      %v3408 = vadd.f32 %v3040, %v3255
      %v3409 = vadd.f32 %v3041, %v3258
      %v3410 = vadd.f32 %v3042, %v3263
      %v3411 = vadd.f32 %v3043, %v3266
      %v3412 = vadd.f32 %v3044, %v3271
      %v3413 = vadd.f32 %v3045, %v3274
      %v3414 = vadd.f32 %v3046, %v3279
      %v3415 = vadd.f32 %v3047, %v3282
      %v3416 = vadd.f32 %v3048, %v3287
      %v3417 = vadd.f32 %v3049, %v3290
      %v3418 = vadd.f32 %v3050, %v3295
      %v3419 = vadd.f32 %v3051, %v3298
      %v3420 = vadd.f32 %v3052, %v3303
      %v3421 = vadd.f32 %v3053, %v3306
      %v3422 = vadd.f32 %v3054, %v3311
      %v3423 = vadd.f32 %v3055, %v3314
      %v3424 = vadd.f32 %v3056, %v3319
      %v3425 = vadd.f32 %v3057, %v3322
      %v3426 = vadd.f32 %v3058, %v3327
      %v3427 = vadd.f32 %v3059, %v3330
      %v3428 = vadd.f32 %v3060, %v3335
      %v3429 = vadd.f32 %v3061, %v3338
      %v3430 = vadd.f32 %v3062, %v3343
      %v3431 = vadd.f32 %v3063, %v3346
      %v3432 = vadd.f32 %v3064, %v3351
      %v3433 = vadd.f32 %v3065, %v3354
      %v3434 = vadd.f32 %v3066, %v3359
      %v3435 = vadd.f32 %v3067, %v3362
      %v3436 = vadd.f32 %v3068, %v3367
      %v3437 = vadd.f32 %v3069, %v3370
      %v3438 = vadd.f32 %v3070, %v3375
      %v3439 = vadd.f32 %v3071, %v3378
      %v3440 = vadd.f32 %v3072, %v3383
      %v3441 = vadd.f32 %v3073, %v3386
      %v3442 = vadd.f32 %v3074, %v3391
      %v3443 = vadd.f32 %v3075, %v3394
      %v3444 = vadd.f32 %v3076, %v3399
      %3445 = vst [vmem:[#allocation2] sm:$0xff] %v3404
      %3446 = vst [vmem:[#allocation2 + $0x8] sm:$0xff] %v3405
      %3447 = vst [vmem:[#allocation2 + $0x10] sm:$0xff] %v3406
      %3448 = vst [vmem:[#allocation2 + $0x18] sm:$0xff] %v3407
      %3449 = vst [vmem:[#allocation2 + $0x20] sm:$0xff] %v3408
      %3450 = vst [vmem:[#allocation2 + $0x28] sm:$0xff] %v3409
      %3451 = vst [vmem:[#allocation2 + $0x30] sm:$0xff] %v3410
      %3452 = vst [vmem:[#allocation2 + $0x38] sm:$0xff] %v3411
      %3453 = vst [vmem:[#allocation2 + $0x40] sm:$0xff] %v3412
      %3454 = vst [vmem:[#allocation2 + $0x48] sm:$0xff] %v3413
      %3455 = vst [vmem:[#allocation2 + $0x50] sm:$0xff] %v3414
      %3456 = vst [vmem:[#allocation2 + $0x58] sm:$0xff] %v3415
      %3457 = vst [vmem:[#allocation2 + $0x60] sm:$0xff] %v3416
      %3458 = vst [vmem:[#allocation2 + $0x68] sm:$0xff] %v3417
      %3459 = vst [vmem:[#allocation2 + $0x70] sm:$0xff] %v3418
      %3460 = vst [vmem:[#allocation2 + $0x78] sm:$0xff] %v3419
      %3461 = vst [vmem:[#allocation2 + $0x80] sm:$0xff] %v3420
      %3462 = vst [vmem:[#allocation2 + $0x88] sm:$0xff] %v3421
      %3463 = vst [vmem:[#allocation2 + $0x90] sm:$0xff] %v3422
      %3464 = vst [vmem:[#allocation2 + $0x98] sm:$0xff] %v3423
      %3465 = vst [vmem:[#allocation2 + $0xa0] sm:$0xff] %v3424
      %3466 = vst [vmem:[#allocation2 + $0xa8] sm:$0xff] %v3425
      %3467 = vst [vmem:[#allocation2 + $0xb0] sm:$0xff] %v3426
      %3468 = vst [vmem:[#allocation2 + $0xb8] sm:$0xff] %v3427
      %3469 = vst [vmem:[#allocation2 + $0xc0] sm:$0xff] %v3428
      %3470 = vst [vmem:[#allocation2 + $0xc8] sm:$0xff] %v3429
      %3471 = vst [vmem:[#allocation2 + $0xd0] sm:$0xff] %v3430
      %3472 = vst [vmem:[#allocation2 + $0xd8] sm:$0xff] %v3431
      %3473 = vst [vmem:[#allocation2 + $0xe0] sm:$0xff] %v3432
      %3474 = vst [vmem:[#allocation2 + $0xe8] sm:$0xff] %v3433
      %3475 = vst [vmem:[#allocation2 + $0xf0] sm:$0xff] %v3434
      %3476 = vst [vmem:[#allocation2 + $0xf8] sm:$0xff] %v3435
      %3477 = vst [vmem:[#allocation2 + $0x100] sm:$0xff] %v3436
      %3478 = vst [vmem:[#allocation2 + $0x108] sm:$0xff] %v3437
      %3479 = vst [vmem:[#allocation2 + $0x110] sm:$0xff] %v3438
      %3480 = vst [vmem:[#allocation2 + $0x118] sm:$0xff] %v3439
      %3481 = vst [vmem:[#allocation2 + $0x120] sm:$0xff] %v3440
      %3482 = vst [vmem:[#allocation2 + $0x128] sm:$0xff] %v3441
      %3483 = vst [vmem:[#allocation2 + $0x130] sm:$0xff] %v3442
      %3484 = vst [vmem:[#allocation2 + $0x138] sm:$0xff] %v3443
      %3485 = vst [vmem:[#allocation2 + $0x140] sm:$0xff] %v3444
      %v3486 = vld [vmem:[#allocation2 + $0x13] sm:$0xff]
      %v3487 = vld [vmem:[#allocation2 + $0x1b] sm:$0xff]
      %3488 = vst [vmem:[%s208] sm:$0xff] %v3486
      %3489 = vst [vmem:[%s208 + $0x8] sm:$0xff] %v3487
      %v3490 = vld [vmem:[#allocation2 + $0x25] sm:$0xff]
      %v3491 = vld [vmem:[#allocation2 + $0x2d] sm:$0xff]
      %3492 = vst [vmem:[%s208 + $0x10] sm:$0xff] %v3490
      %3493 = vst [vmem:[%s208 + $0x18] sm:$0xff] %v3491
      %v3494 = vld [vmem:[#allocation2 + $0x37] sm:$0xff]
      %v3495 = vld [vmem:[#allocation2 + $0x3f] sm:$0xff]
      %3496 = vst [vmem:[%s208 + $0x20] sm:$0xff] %v3494
      %3497 = vst [vmem:[%s208 + $0x28] sm:$0xff] %v3495
      %v3498 = vld [vmem:[#allocation2 + $0x49] sm:$0xff]
      %v3499 = vld [vmem:[#allocation2 + $0x51] sm:$0xff]
      %3500 = vst [vmem:[%s208 + $0x30] sm:$0xff] %v3498
      %3501 = vst [vmem:[%s208 + $0x38] sm:$0xff] %v3499
      %v3502 = vld [vmem:[#allocation2 + $0x5b] sm:$0xff]
      %v3503 = vld [vmem:[#allocation2 + $0x63] sm:$0xff]
      %3504 = vst [vmem:[%s208 + $0x40] sm:$0xff] %v3502
      %3505 = vst [vmem:[%s208 + $0x48] sm:$0xff] %v3503
      %v3506 = vld [vmem:[#allocation2 + $0x6d] sm:$0xff]
      %v3507 = vld [vmem:[#allocation2 + $0x75] sm:$0xff]
      %3508 = vst [vmem:[%s208 + $0x50] sm:$0xff] %v3506
      %3509 = vst [vmem:[%s208 + $0x58] sm:$0xff] %v3507
      %v3510 = vld [vmem:[#allocation2 + $0x7f] sm:$0xff]
      %v3511 = vld [vmem:[#allocation2 + $0x87] sm:$0xff]
      %3512 = vst [vmem:[%s208 + $0x60] sm:$0xff] %v3510
      %3513 = vst [vmem:[%s208 + $0x68] sm:$0xff] %v3511
      %v3514 = vld [vmem:[#allocation2 + $0x91] sm:$0xff]
      %v3515 = vld [vmem:[#allocation2 + $0x99] sm:$0xff]
      %3516 = vst [vmem:[%s208 + $0x70] sm:$0xff] %v3514
      %3517 = vst [vmem:[%s208 + $0x78] sm:$0xff] %v3515
      %v3518 = vld [vmem:[#allocation2 + $0xa3] sm:$0xff]
      %v3519 = vld [vmem:[#allocation2 + $0xab] sm:$0xff]
      %3520 = vst [vmem:[%s208 + $0x80] sm:$0xff] %v3518
      %3521 = vst [vmem:[%s208 + $0x88] sm:$0xff] %v3519
      %v3522 = vld [vmem:[#allocation2 + $0xb5] sm:$0xff]
      %v3523 = vld [vmem:[#allocation2 + $0xbd] sm:$0xff]
      %3524 = vst [vmem:[%s208 + $0x90] sm:$0xff] %v3522
      %3525 = vst [vmem:[%s208 + $0x98] sm:$0xff] %v3523
      %v3526 = vld [vmem:[#allocation2 + $0xc7] sm:$0xff]
      %v3527 = vld [vmem:[#allocation2 + $0xcf] sm:$0xff]
      %3528 = vst [vmem:[%s208 + $0xa0] sm:$0xff] %v3526
      %3529 = vst [vmem:[%s208 + $0xa8] sm:$0xff] %v3527
      %v3530 = vld [vmem:[#allocation2 + $0xd9] sm:$0xff]
      %v3531 = vld [vmem:[#allocation2 + $0xe1] sm:$0xff]
      %3532 = vst [vmem:[%s208 + $0xb0] sm:$0xff] %v3530
      %3533 = vst [vmem:[%s208 + $0xb8] sm:$0xff] %v3531
      %v3534 = vld [vmem:[#allocation2 + $0xeb] sm:$0xff]
      %v3535 = vld [vmem:[#allocation2 + $0xf3] sm:$0xff]
      %3536 = vst [vmem:[%s208 + $0xc0] sm:$0xff] %v3534
      %3537 = vst [vmem:[%s208 + $0xc8] sm:$0xff] %v3535
      %v3538 = vld [vmem:[#allocation2 + $0xfd] sm:$0xff]
      %v3539 = vld [vmem:[#allocation2 + $0x105] sm:$0xff]
      %3540 = vst [vmem:[%s208 + $0xd0] sm:$0xff] %v3538
      %3541 = vst [vmem:[%s208 + $0xd8] sm:$0xff] %v3539
      %v3542 = vld [vmem:[#allocation2 + $0x10f] sm:$0xff]
      %v3543 = vld [vmem:[#allocation2 + $0x117] sm:$0xff]
      %3544 = vst [vmem:[%s208 + $0xe0] sm:$0xff] %v3542
      %3545 = vst [vmem:[%s208 + $0xe8] sm:$0xff] %v3543
      %v3546 = vld [vmem:[#allocation2 + $0x121] sm:$0xff]
      %v3547 = vld [vmem:[#allocation2 + $0x129] sm:$0xff]
      %3548 = vst [vmem:[%s208 + $0xf0] sm:$0xff] %v3546
      %3549 = vst [vmem:[%s208 + $0xf8] sm:$0xff] %v3547
      %v3550 = vld [vmem:[%s208] sm:$0xff]
      %v3551 = vld [vmem:[%s208 + $0x8] sm:$0xff]
      %v3552 = vld [vmem:[%s208 + $0x10] sm:$0xff]
      %v3553 = vld [vmem:[%s208 + $0x18] sm:$0xff]
      %v3554 = vld [vmem:[%s208 + $0x20] sm:$0xff]
      %v3555 = vld [vmem:[%s208 + $0x28] sm:$0xff]
      %v3556 = vld [vmem:[%s208 + $0x30] sm:$0xff]
      %v3557 = vld [vmem:[%s208 + $0x38] sm:$0xff]
      %v3558 = vld [vmem:[%s208 + $0x40] sm:$0xff]
      %v3559 = vld [vmem:[%s208 + $0x48] sm:$0xff]
      %v3560 = vld [vmem:[%s208 + $0x50] sm:$0xff]
      %v3561 = vld [vmem:[%s208 + $0x58] sm:$0xff]
      %v3562 = vld [vmem:[%s208 + $0x60] sm:$0xff]
      %v3563 = vld [vmem:[%s208 + $0x68] sm:$0xff]
      %v3564 = vld [vmem:[%s208 + $0x70] sm:$0xff]
      %v3565 = vld [vmem:[%s208 + $0x78] sm:$0xff]
      %v3566 = vld [vmem:[%s208 + $0x80] sm:$0xff]
      %v3567 = vld [vmem:[%s208 + $0x88] sm:$0xff]
      %v3568 = vld [vmem:[%s208 + $0x90] sm:$0xff]
      %v3569 = vld [vmem:[%s208 + $0x98] sm:$0xff]
      %v3570 = vld [vmem:[%s208 + $0xa0] sm:$0xff]
      %v3571 = vld [vmem:[%s208 + $0xa8] sm:$0xff]
      %v3572 = vld [vmem:[%s208 + $0xb0] sm:$0xff]
      %v3573 = vld [vmem:[%s208 + $0xb8] sm:$0xff]
      %v3574 = vld [vmem:[%s208 + $0xc0] sm:$0xff]
      %v3575 = vld [vmem:[%s208 + $0xc8] sm:$0xff]
      %v3576 = vld [vmem:[%s208 + $0xd0] sm:$0xff]
      %v3577 = vld [vmem:[%s208 + $0xd8] sm:$0xff]
      %v3578 = vld [vmem:[%s208 + $0xe0] sm:$0xff]
      %v3579 = vld [vmem:[%s208 + $0xe8] sm:$0xff]
      %v3580 = vld [vmem:[%s208 + $0xf0] sm:$0xff]
      %v3581 = vld [vmem:[%s208 + $0xf8] sm:$0xff]
      %v3582 = vadd.f32 %v3550, %v3551
      %v3583 = vadd.f32 %v3582, %v3552
      %v3584 = vadd.f32 %v3583, %v3553
      %v3585 = vadd.f32 %v3584, %v3554
      %v3586 = vadd.f32 %v3585, %v3555
      %v3587 = vadd.f32 %v3586, %v3556
      %v3588 = vadd.f32 %v3587, %v3557
      %v3589 = vadd.f32 %v3588, %v3558
      %v3590 = vadd.f32 %v3589, %v3559
      %v3591 = vadd.f32 %v3590, %v3560
      %v3592 = vadd.f32 %v3591, %v3561
      %v3593 = vadd.f32 %v3592, %v3562
      %v3594 = vadd.f32 %v3593, %v3563
      %v3595 = vadd.f32 %v3594, %v3564
      %v3596 = vadd.f32 %v3595, %v3565
      %v3597 = vadd.f32 %v3596, %v3566
      %v3598 = vadd.f32 %v3597, %v3567
      %v3599 = vadd.f32 %v3598, %v3568
      %v3600 = vadd.f32 %v3599, %v3569
      %v3601 = vadd.f32 %v3600, %v3570
      %v3602 = vadd.f32 %v3601, %v3571
      %v3603 = vadd.f32 %v3602, %v3572
      %v3604 = vadd.f32 %v3603, %v3573
      %v3605 = vadd.f32 %v3604, %v3574
      %v3606 = vadd.f32 %v3605, %v3575
      %v3607 = vadd.f32 %v3606, %v3576
      %v3608 = vadd.f32 %v3607, %v3577
      %v3609 = vadd.f32 %v3608, %v3578
      %v3610 = vadd.f32 %v3609, %v3579
      %v3611 = vadd.f32 %v3610, %v3580
      %v3612 = vadd.f32 %v3611, %v3581
      %v3613 = vrot.slane %v3612, 4
      %v3614 = vadd.f32 %v3612, %v3613
      %v3615 = vrot.slane %v3614, 2
      %v3616 = vadd.f32 %v3614, %v3615
      %v3617 = vrot.slane %v3616, 1
      %v3618 = vadd.f32 %v3616, %v3617
      %3619 = vst [vmem:[%s211] sm:$0x1] %v3618
      %v3620 = vmul.f32 %v3550, %v3550
      %v3621 = vmul.f32 %v3551, %v3551
      %v3622 = vmul.f32 %v3552, %v3552
      %v3623 = vmul.f32 %v3553, %v3553
      %v3624 = vmul.f32 %v3554, %v3554
      %v3625 = vmul.f32 %v3555, %v3555
      %v3626 = vmul.f32 %v3556, %v3556
      %v3627 = vmul.f32 %v3557, %v3557
      %v3628 = vmul.f32 %v3558, %v3558
      %v3629 = vmul.f32 %v3559, %v3559
      %v3630 = vmul.f32 %v3560, %v3560
      %v3631 = vmul.f32 %v3561, %v3561
      %v3632 = vmul.f32 %v3562, %v3562
      %v3633 = vmul.f32 %v3563, %v3563
      %v3634 = vmul.f32 %v3564, %v3564
      %v3635 = vmul.f32 %v3565, %v3565
      %v3636 = vmul.f32 %v3566, %v3566
      %v3637 = vmul.f32 %v3567, %v3567
      %v3638 = vmul.f32 %v3568, %v3568
      %v3639 = vmul.f32 %v3569, %v3569
      %v3640 = vmul.f32 %v3570, %v3570
      %v3641 = vmul.f32 %v3571, %v3571
      %v3642 = vmul.f32 %v3572, %v3572
      %v3643 = vmul.f32 %v3573, %v3573
      %v3644 = vmul.f32 %v3574, %v3574
      %v3645 = vmul.f32 %v3575, %v3575
      %v3646 = vmul.f32 %v3576, %v3576
      %v3647 = vmul.f32 %v3577, %v3577
      %v3648 = vmul.f32 %v3578, %v3578
      %v3649 = vmul.f32 %v3579, %v3579
      %v3650 = vmul.f32 %v3580, %v3580
      %v3651 = vmul.f32 %v3581, %v3581
      %v3652 = vadd.f32 %v3620, %v3621
      %v3653 = vadd.f32 %v3652, %v3622
      %v3654 = vadd.f32 %v3653, %v3623
      %v3655 = vadd.f32 %v3654, %v3624
      %v3656 = vadd.f32 %v3655, %v3625
      %v3657 = vadd.f32 %v3656, %v3626
      %v3658 = vadd.f32 %v3657, %v3627
      %v3659 = vadd.f32 %v3658, %v3628
      %v3660 = vadd.f32 %v3659, %v3629
      %v3661 = vadd.f32 %v3660, %v3630
      %v3662 = vadd.f32 %v3661, %v3631
      %v3663 = vadd.f32 %v3662, %v3632
      %v3664 = vadd.f32 %v3663, %v3633
      %v3665 = vadd.f32 %v3664, %v3634
      %v3666 = vadd.f32 %v3665, %v3635
      %v3667 = vadd.f32 %v3666, %v3636
      %v3668 = vadd.f32 %v3667, %v3637
      %v3669 = vadd.f32 %v3668, %v3638
      %v3670 = vadd.f32 %v3669, %v3639
      %v3671 = vadd.f32 %v3670, %v3640
      %v3672 = vadd.f32 %v3671, %v3641
      %v3673 = vadd.f32 %v3672, %v3642
      %v3674 = vadd.f32 %v3673, %v3643
      %v3675 = vadd.f32 %v3674, %v3644
      %v3676 = vadd.f32 %v3675, %v3645
      %v3677 = vadd.f32 %v3676, %v3646
      %v3678 = vadd.f32 %v3677, %v3647
      %v3679 = vadd.f32 %v3678, %v3648
      %v3680 = vadd.f32 %v3679, %v3649
      %v3681 = vadd.f32 %v3680, %v3650
      %v3682 = vadd.f32 %v3681, %v3651
      %v3683 = vrot.slane %v3682, 4
      %v3684 = vadd.f32 %v3682, %v3683
      %v3685 = vrot.slane %v3684, 2
      %v3686 = vadd.f32 %v3684, %v3685
      %v3687 = vrot.slane %v3686, 1
      %v3688 = vadd.f32 %v3686, %v3687
      %3689 = vst [vmem:[%s214] sm:$0x1] %v3688
      %p3690 = scmp.lt.s32.totalorder %s16, 1
      %s3691 = scalar_select %p3690, %s16, 1
      %s3692 = smul.addr %s3691, 32
      %s3693 = smul.addr %s3692, 8
      %s3694 = scalar_lea.vmem %s2, %s3693
      %p3695 = scmp.lt.s32.totalorder %s16, 1
      %s3696 = scalar_select %p3695, %s16, 1
      %s3697 = scalar_lea.vmem %s3, %s3696
      %p3698 = scmp.lt.s32.totalorder %s16, 1
      %s3699 = scalar_select %p3698, %s16, 1
      %s3700 = scalar_lea.vmem %s4, %s3699
      // Predicated region
      $region29: #{bottleneck_block.5} parent=27 // pred_check
        %p3701 = pneg %p81
      $region30: #{bottleneck_block.5} parent=27 // pred_check_branch
        %3703 = sbr.rel (%p3701) target = $region32
      $region31: #{bottleneck_block.5} parent=27 // pred_region
        _
      $region32: #{bottleneck_block.5} parent=27 // pred_fallthru
        _
      // Predicated region
      $region33: #{bottleneck_block.5} parent=27 // pred_check
        %p3704 = pneg %p107
      $region34: #{bottleneck_block.5} parent=27 // pred_check_branch
        %3706 = sbr.rel (%p3704) target = $region36
      $region35: #{bottleneck_block.5} parent=27 // pred_region
        _
      $region36: #{bottleneck_block.5} parent=27 // pred_fallthru
        _
      // Predicated region
      $region37: #{bottleneck_block.5} parent=27 // pred_check
        %p3707 = pneg %p133
      $region38: #{bottleneck_block.5} parent=27 // pred_check_branch
        %3709 = sbr.rel (%p3707) target = $region40
      $region39: #{bottleneck_block.5} parent=27 // pred_region
        _
      $region40: #{bottleneck_block.5} parent=27 // pred_fallthru
        _
    $region28: #{bottleneck_block.5} parent=5 // pred_fallthru
      _
    %p3710 = scmp.le.s32.totalorder 2, %s11
    // Predicated region
    $region41: #{bottleneck_block.5} parent=5 // pred_check
      %p3711 = pneg %p3710
    $region42: #{bottleneck_block.5} parent=5 // pred_check_branch
      %3713 = sbr.rel (%p3711) target = $region44
    $region43: #{bottleneck_block.5} parent=5 // pred_region
      %s3714 = ssub.s32 %s11, 2
      // Predicated region
      $region45: #{bottleneck_block.5} parent=43 // pred_check
        %p3715 = pneg %p87
      $region46: #{bottleneck_block.5} parent=43 // pred_check_branch
        %3717 = sbr.rel (%p3715) target = $region48
      $region47: #{bottleneck_block.5} parent=43 // pred_region
        %p3718 = scmp.lt.s32.totalorder %s17, 1
        %s3719 = scalar_select %p3718, %s17, 1
        %s3720 = smul.addr %s3719, 32
        %s3721 = smul.addr %s3720, 8
        %s3722 = scalar_lea.vmem %s2, %s3721
      $region48: #{bottleneck_block.5} parent=43 // pred_fallthru
        _
      // Predicated region
      $region49: #{bottleneck_block.5} parent=43 // pred_check
        %p3723 = pneg %p113
      $region50: #{bottleneck_block.5} parent=43 // pred_check_branch
        %3725 = sbr.rel (%p3723) target = $region52
      $region51: #{bottleneck_block.5} parent=43 // pred_region
        %p3726 = scmp.lt.s32.totalorder %s17, 1
        %s3727 = scalar_select %p3726, %s17, 1
        %s3728 = scalar_lea.vmem %s3, %s3727
      $region52: #{bottleneck_block.5} parent=43 // pred_fallthru
        _
      // Predicated region
      $region53: #{bottleneck_block.5} parent=43 // pred_check
        %p3729 = pneg %p139
      $region54: #{bottleneck_block.5} parent=43 // pred_check_branch
        %3731 = sbr.rel (%p3729) target = $region56
      $region55: #{bottleneck_block.5} parent=43 // pred_region
        %p3732 = scmp.lt.s32.totalorder %s17, 1
        %s3733 = scalar_select %p3732, %s17, 1
        %s3734 = scalar_lea.vmem %s4, %s3733
      $region56: #{bottleneck_block.5} parent=43 // pred_fallthru
        _
    $region44: #{bottleneck_block.5} parent=5 // pred_fallthru
      _
  $region6: #{bottleneck_block.5} parent=0 // loop_footer
    %s15 = sadd.s32 1, %s11
  $region7: #{bottleneck_block.5} parent=0 // loop_footer_branch
    %10 = sbr.rel target = $region3
  $region8: #{bottleneck_block.5} parent=0 // loop_exit
    _

</llo_original>
